<compile_context>
chip_gen: v5e
topology: v5e:2x2
jax: 0.10.0
libtpu: 0.0.40
codegen_flags: <defaults>
</compile_context>

<pallas_src>
import functools

import jax
import jax.numpy as jnp
from jax import lax
from jax.experimental import pallas as pl
from jax.experimental.pallas import tpu as pltpu

NEG_SLOPE = 0.01          # F.leaky_relu default negative slope
C = 64                    # channel width used everywhere in the module
W_DTYPE = jnp.bfloat16    # MXU operand dtype for weights
ACT_DTYPE = jnp.float32   # inter-stage activation storage dtype


def _leaky(x):
    return jnp.where(x >= 0, x, NEG_SLOPE * x)


# ---------------------------------------------------------------------------
# Kernels
# ---------------------------------------------------------------------------
def _stage01_kernel(p_ref, wlo_ref, whi_ref, bup_ref, w1_ref, b1_ref,
                    g_ref, beta_ref, o_ref):
    # p_ref: (tm, 8) raw pixels; one row feeds TWO adjacent stage-1 output
    # pixels (pair packing -> 128-lane-dense output).  Lanes 0..3 / 4..7 are
    # the 2x2 patches of the even / odd output pixel, each in (kh, kw) order.
    p = p_ref[...] * (1.0 / 255.0)                      # x / 255
    wlo = wlo_ref[...]                                  # (1, 128) [w_up | 0]
    whi = whi_ref[...]                                  # (1, 128) [0 | w_up]
    bup = bup_ref[...]                                  # (1, 128) [b_up | b_up]
    b1 = b1_ref[...]                                    # (1, 128)
    g = g_ref[...]                                      # (128, 128) bf16 blockdiag(gamma^T)
    beta = beta_ref[...]                                # (1, 128)

    acc = jnp.zeros((p.shape[0], o_ref.shape[1]), jnp.float32)
    for k in range(4):                                  # (kh, kw) positions
        # 1x1 conv (1 -> 64) + leaky_relu for both pixels of the pair at once.
        y = p[:, k:k + 1] * wlo + p[:, 4 + k:5 + k] * whi + bup
        y = _leaky(y)
        # 2x2/stride-2 conv contribution of tap k (block-diagonal weights).
        acc = acc + jnp.dot(y.astype(W_DTYPE), w1_ref[k],
                            preferred_element_type=jnp.float32)
    h = _leaky(acc + b1)
    # GDN: y_i = h_i * rsqrt(beta_i + sum_j gamma[i, j] * h_j^2)
    den = jnp.dot((h * h).astype(W_DTYPE), g,
                  preferred_element_type=jnp.float32) + beta
    o_ref[...] = (h * lax.rsqrt(den)).astype(o_ref.dtype)


def _down_quad_kernel(a_ref, wt_ref, wb_ref, b_ref, g_ref, beta_ref, o_ref,
                      *, gb, gpr, opr):
    # a_ref: (gb * gpr, 256) "quad" rows (4 adjacent pixels x 64 ch) of the
    #        input activation; each group of gpr rows = one (n, 2i..2i+1) image
    #        row pair (top W/4 rows, then bottom W/4 rows).
    # o_ref: (gb * opr, 128) pair-packed output rows (2 output pixels / row).
    wt = wt_ref[...]                                    # (256, 128) bf16
    wb = wb_ref[...]                                    # (256, 128) bf16
    b = b_ref[...]                                      # (1, 128)
    g = g_ref[...]                                      # (128, 128) bf16
    beta = beta_ref[...]                                # (1, 128)
    for t in range(gb):                                 # static unroll (gb <= 16)
        top = a_ref[pl.ds(t * gpr, opr), :].astype(W_DTYPE)
        bot = a_ref[pl.ds(t * gpr + opr, opr), :].astype(W_DTYPE)
        h = jnp.dot(top, wt, preferred_element_type=jnp.float32)
        h = h + jnp.dot(bot, wb, preferred_element_type=jnp.float32)
        h = _leaky(h + b)
        den = jnp.dot((h * h).astype(W_DTYPE), g,
                      preferred_element_type=jnp.float32) + beta
        o_ref[pl.ds(t * opr, opr), :] = (h * lax.rsqrt(den)).astype(o_ref.dtype)


def _down_patches_kernel(p_ref, w_ref, b_ref, g_ref, beta_ref, o_ref):
    # Fallback for tiny late stages whose width isn't a multiple of 4.
    h = jnp.dot(p_ref[...].astype(W_DTYPE), w_ref[...],
                preferred_element_type=jnp.float32)
    h = _leaky(h + b_ref[...])
    den = jnp.dot((h * h).astype(W_DTYPE), g_ref[...],
                  preferred_element_type=jnp.float32) + beta_ref[...]
    o_ref[...] = (h * lax.rsqrt(den)).astype(o_ref.dtype)


def _minmax_kernel(x_ref, o_ref):
    # Pass 1 of vecNorm: running global min/max accumulated in an SMEM output.
    x = x_ref[...].astype(jnp.float32)
    mn = jnp.min(x)
    mx = jnp.max(x)

    @pl.when(pl.program_id(0) == 0)
    def _():
        o_ref[0] = mn
        o_ref[1] = mx

    @pl.when(pl.program_id(0) != 0)
    def _():
        o_ref[0] = jnp.minimum(o_ref[0], mn)
        o_ref[1] = jnp.maximum(o_ref[1], mx)


def _scale_kernel(x_ref, s_ref, o_ref):
    # Pass 2 of vecNorm: (x - min) / (max - min).
    # No epsilon, to match the reference vecNorm exactly.
    mn = s_ref[0]
    inv = 1.0 / (s_ref[1] - mn)
    o_ref[...] = (x_ref[...].astype(jnp.float32) - mn) * inv


# ---------------------------------------------------------------------------
# pallas_call wrappers
# ---------------------------------------------------------------------------
def _pick_tm(m):
    for tm in (2048, 1024, 512, 256, 128):
        if m % tm == 0:
            return tm
    return m   # tiny / odd sizes: block == full array (allowed)


def _pick_gb(groups, gpr, opr):
    # groups-per-block for the quad down kernel (static unroll count).
    for gb in range(min(groups, 16), 0, -1):
        if groups % gb:
            continue
        if gb == groups:            # whole array in one block
            return gb
        if gb * gpr > 2048:         # keep the input block <= ~2 MB f32
            continue
        if (gb * gpr) % 8 or (gb * opr) % 8:
            continue                # keep non-full blocks sublane aligned
        return gb
    return groups


def _stage01(p0, up, lp):
    m = p0.shape[0]                 # pair-packed stage-1 output rows
    tm = _pick_tm(m)
    return pl.pallas_call(
        _stage01_kernel,
        out_shape=jax.ShapeDtypeStruct((m, 2 * C), ACT_DTYPE),
        grid=(m // tm,),
        in_specs=[
            pl.BlockSpec((tm, 8), lambda i: (i, 0)),
            pl.BlockSpec((1, 2 * C), lambda i: (0, 0)),
            pl.BlockSpec((1, 2 * C), lambda i: (0, 0)),
            pl.BlockSpec((1, 2 * C), lambda i: (0, 0)),
            pl.BlockSpec((4, 2 * C, 2 * C), lambda i: (0, 0, 0)),
            pl.BlockSpec((1, 2 * C), lambda i: (0, 0)),
            pl.BlockSpec((2 * C, 2 * C), lambda i: (0, 0)),
            pl.BlockSpec((1, 2 * C), lambda i: (0, 0)),
        ],
        out_specs=pl.BlockSpec((tm, 2 * C), lambda i: (i, 0)),
        compiler_params=pltpu.CompilerParams(dimension_semantics=("parallel",)),
    )(p0, up["w_lo"], up["w_hi"], up["b_pair"],
      lp["w1_bd"], lp["b_pair"], lp["gamma_bd"], lp["beta_pair"])


def _down_quad(act, lp, n, h, w):
    # `act` holds the (n, h, w, 64) activation in NHWC order; view it (free)
    # as quad rows: one row = 4 adjacent pixels x 64 channels = 256 lanes.
    a = act.reshape(n * h * (w // 4), 4 * C)
    groups = n * (h // 2)           # one group = one image row-pair
    gpr = w // 2                    # input quad rows per group
    opr = w // 4                    # pair-packed output rows per group
    gb = _pick_gb(groups, gpr, opr)
    kernel = functools.partial(_down_quad_kernel, gb=gb, gpr=gpr, opr=opr)
    return pl.pallas_call(
        kernel,
        out_shape=jax.ShapeDtypeStruct((groups * opr, 2 * C), ACT_DTYPE),
        grid=(groups // gb,),
        in_specs=[
            pl.BlockSpec((gb * gpr, 4 * C), lambda i: (i, 0)),
            pl.BlockSpec((4 * C, 2 * C), lambda i: (0, 0)),
            pl.BlockSpec((4 * C, 2 * C), lambda i: (0, 0)),
            pl.BlockSpec((1, 2 * C), lambda i: (0, 0)),
            pl.BlockSpec((2 * C, 2 * C), lambda i: (0, 0)),
            pl.BlockSpec((1, 2 * C), lambda i: (0, 0)),
        ],
        out_specs=pl.BlockSpec((gb * opr, 2 * C), lambda i: (i, 0)),
        compiler_params=pltpu.CompilerParams(dimension_semantics=("parallel",)),
    )(a, lp["w_top_bd"], lp["w_bot_bd"], lp["b_pair"],
      lp["gamma_bd"], lp["beta_pair"])


def _down_patches(act, lp, n, h, w):
    # Tiny fallback path (only used when w % 4 != 0, i.e. minuscule tensors):
    # materialise the (rows, 4C) patch slab in plain JAX and run one matmul.
    a = act.reshape(n, h, w, C)
    p = a.reshape(n, h // 2, 2, w // 2, 2, C)
    p = jnp.transpose(p, (0, 1, 3, 2, 4, 5)).reshape(n * (h // 2) * (w // 2), 4 * C)
    m = p.shape[0]
    tm = _pick_tm(m)
    return pl.pallas_call(
        _down_patches_kernel,
        out_shape=jax.ShapeDtypeStruct((m, C), ACT_DTYPE),
        grid=(m // tm,),
        in_specs=[
            pl.BlockSpec((tm, 4 * C), lambda i: (i, 0)),
            pl.BlockSpec((4 * C, C), lambda i: (0, 0)),
            pl.BlockSpec((1, C), lambda i: (0, 0)),
            pl.BlockSpec((C, C), lambda i: (0, 0)),
            pl.BlockSpec((1, C), lambda i: (0, 0)),
        ],
        out_specs=pl.BlockSpec((tm, C), lambda i: (i, 0)),
        compiler_params=pltpu.CompilerParams(dimension_semantics=("parallel",)),
    )(p, lp["w_mat"], lp["b"], lp["gamma_t"], lp["beta"])


def _vecnorm(flat):
    # Two-pass tiled global (x - min) / (max - min).
    m, c = flat.shape
    tm = _pick_tm(m)
    grid = (m // tm,)
    minmax = pl.pallas_call(
        _minmax_kernel,
        out_shape=jax.ShapeDtypeStruct((2,), jnp.float32),
        grid=grid,
        in_specs=[pl.BlockSpec((tm, c), lambda i: (i, 0))],
        out_specs=pl.BlockSpec(memory_space=pltpu.MemorySpace.SMEM),
        compiler_params=pltpu.CompilerParams(dimension_semantics=("arbitrary",)),
    )(flat)
    return pl.pallas_call(
        _scale_kernel,
        out_shape=jax.ShapeDtypeStruct((m, c), jnp.float32),
        grid=grid,
        in_specs=[
            pl.BlockSpec((tm, c), lambda i: (i, 0)),
            pl.BlockSpec(memory_space=pltpu.MemorySpace.SMEM),
        ],
        out_specs=pl.BlockSpec((tm, c), lambda i: (i, 0)),
        compiler_params=pltpu.CompilerParams(dimension_semantics=("parallel",)),
    )(flat, minmax)


# ---------------------------------------------------------------------------
# Parameters (post-reparameterisation GDN values, conv weights in matrix form)
# ---------------------------------------------------------------------------
def _bd2(m):
    """blockdiag(m, m) for the pixel-pair (128-lane) packing."""
    z = jnp.zeros_like(m)
    return jnp.block([[m, z], [z, m]])


def init_params(key):
    ks = jax.random.split(key, 7)
    # conv_channels_up: Conv2d(1, 64, 1)
    w_up = 0.1 * jax.random.normal(ks[0], (C,))
    b_up = 0.05 * jax.random.normal(ks[1], (C,))
    zeros = jnp.zeros((C,), jnp.float32)
    up = dict(
        w_lo=jnp.concatenate([w_up, zeros]).reshape(1, 2 * C).astype(jnp.float32),
        w_hi=jnp.concatenate([zeros, w_up]).reshape(1, 2 * C).astype(jnp.float32),
        b_pair=jnp.concatenate([b_up, b_up]).reshape(1, 2 * C).astype(jnp.float32),
    )
    down = []
    for li in range(5):
        kw_, kb, kg, kbe = jax.random.split(ks[2 + li], 4)
        # Conv2d(64, 64, 2, 2) weight, PyTorch layout (Cout, Cin, kh, kw)
        w_pt = 0.05 * jax.random.normal(kw_, (C, C, 2, 2))
        b = 0.02 * jax.random.normal(kb, (C,))
        # GDN params (post-reparam): beta ~ 1, gamma ~ 0.1*I, strictly positive.
        beta = 1.0 + 0.05 * jnp.abs(jax.random.normal(kbe, (C,)))
        gamma = 0.1 * jnp.eye(C) + 0.01 * jnp.abs(jax.random.normal(kg, (C, C)))
        gamma_t = gamma.T            # (h^2 @ gamma_t)[i] = sum_j gamma[i,j] h_j^2

        w_k = jnp.transpose(w_pt, (2, 3, 1, 0))        # (kh, kw, cin, cout)
        w_top = w_k[0].reshape(2 * C, C)               # (kw, cin) -> cout, kh=0
        w_bot = w_k[1].reshape(2 * C, C)               # kh=1
        down.append(dict(
            # pair-packed (lane-dense) forms, bf16 MXU operands
            w1_bd=jnp.stack([_bd2(w_k[k // 2, k % 2]) for k in range(4)]).astype(W_DTYPE),
            w_top_bd=_bd2(w_top).astype(W_DTYPE),
            w_bot_bd=_bd2(w_bot).astype(W_DTYPE),
            gamma_bd=_bd2(gamma_t).astype(W_DTYPE),
            b_pair=jnp.concatenate([b, b]).reshape(1, 2 * C).astype(jnp.float32),
            beta_pair=jnp.concatenate([beta, beta]).reshape(1, 2 * C).astype(jnp.float32),
            # plain forms for the tiny-stage fallback path
            w_mat=w_k.reshape(4 * C, C).astype(W_DTYPE),
            gamma_t=gamma_t.astype(W_DTYPE),
            b=b.reshape(1, C).astype(jnp.float32),
            beta=beta.reshape(1, C).astype(jnp.float32),
        ))
    return dict(up=up, down=down)


# ---------------------------------------------------------------------------
# Forward pass
# ---------------------------------------------------------------------------
def encode_net_forward(x_nchw, params):
    n, cin, h, w = x_nchw.shape
    assert cin == 1 and h % 32 == 0 and w % 32 == 0   # five stride-2 stages
    x = x_nchw[:, 0, :, :].astype(jnp.float32)        # (N, H, W) raw pixels

    # Pair-packed raw-pixel slab for the fused stage-0+1 kernel: row (n, i, u)
    # holds the eight pixels feeding stage-1 outputs (n, i, 2u) and (n, i, 2u+1),
    # each 2x2 patch in (kh, kw) order.  Tiny (1-channel) -> cheap.
    p0 = x.reshape(n, h // 2, 2, w // 4, 2, 2)
    p0 = jnp.transpose(p0, (0, 1, 3, 4, 2, 5)).reshape(n * (h // 2) * (w // 4), 8)

    # fused: x/255 -> 1x1 conv -> leaky -> 2x2/s2 conv -> leaky -> GDN
    act = _stage01(p0, params["up"], params["down"][0])
    ch, cw = h // 2, w // 2

    # remaining four stages of: 2x2/s2 conv -> leaky -> GDN (no patch tensors)
    for lp in params["down"][1:]:
        if cw % 4 == 0:
            act = _down_quad(act, lp, n, ch, cw)
        else:
            act = _down_patches(act, lp, n, ch, cw)
        ch, cw = ch // 2, cw // 2

    # vecNorm over the whole output tensor (two-pass tiled reduction)
    out = _vecnorm(act.reshape(n * ch * cw, C)).reshape(n, ch, cw, C)
    return jnp.transpose(out, (0, 3, 1, 2))           # back to NCHW


if __name__ == "__main__":
    key = jax.random.PRNGKey(0)
    kx, kp = jax.random.split(key)
    # 32x32 stand-in for a 256x256 image: five stride-2 stages -> 1x1 output.
    x = jax.random.uniform(kx, (2, 1, 32, 32), minval=0.0, maxval=255.0,
                           dtype=jnp.float32)
    params = init_params(kp)

    fwd = jax.jit(functools.partial(encode_net_forward, params=params))
    out = fwd(x)
    jax.block_until_ready(out)

    assert out.shape == (2, 64, 1, 1), out.shape
    assert bool(jnp.isfinite(out).all())
    assert float(jnp.min(out)) >= -1e-6 and float(jnp.max(out)) <= 1.0 + 1e-5
    print("KERNEL_OK")
</pallas_src>

<mosaic_0001>
module attributes {stable_mosaic.version = 11 : i64} {
  func.func @_down_quad_kernel(%arg0: i32, %arg1: memref<128x256xf32, #tpu.memory_space<vmem>>, %arg2: memref<256x128xbf16, #tpu.memory_space<vmem>>, %arg3: memref<256x128xbf16, #tpu.memory_space<vmem>>, %arg4: memref<1x128xf32, #tpu.memory_space<vmem>>, %arg5: memref<128x128xbf16, #tpu.memory_space<vmem>>, %arg6: memref<1x128xf32, #tpu.memory_space<vmem>>, %arg7: memref<64x128xf32, #tpu.memory_space<vmem>>) attributes {dimension_semantics = [#tpu.dimension_semantics<parallel>], iteration_bounds = array<i64: 1>, scalar_prefetch = 0 : i64, scratch_operands = 0 : i64, tpu.core_type = #tpu.core_type<tc>, window_params = [{transform_indices = @transform_0, window_bounds = array<i64: 128, 256>}, {pipeline_mode = #tpu.pipeline_mode<synchronous>, transform_indices = @transform_1, window_bounds = array<i64: 256, 128>}, {pipeline_mode = #tpu.pipeline_mode<synchronous>, transform_indices = @transform_2, window_bounds = array<i64: 256, 128>}, {pipeline_mode = #tpu.pipeline_mode<synchronous>, transform_indices = @transform_3, window_bounds = array<i64: 1, 128>}, {pipeline_mode = #tpu.pipeline_mode<synchronous>, transform_indices = @transform_4, window_bounds = array<i64: 128, 128>}, {pipeline_mode = #tpu.pipeline_mode<synchronous>, transform_indices = @transform_5, window_bounds = array<i64: 1, 128>}, {transform_indices = @transform_6, window_bounds = array<i64: 64, 128>}]} {
    %c0 = arith.constant 0 : index
    %c0_0 = arith.constant 0 : index
    %0 = vector.load %arg2[%c0, %c0_0] : memref<256x128xbf16, #tpu.memory_space<vmem>>, vector<256x128xbf16>
    %c0_1 = arith.constant 0 : index
    %c0_2 = arith.constant 0 : index
    %1 = vector.load %arg3[%c0_1, %c0_2] : memref<256x128xbf16, #tpu.memory_space<vmem>>, vector<256x128xbf16>
    %c0_3 = arith.constant 0 : index
    %c0_4 = arith.constant 0 : index
    %2 = vector.load %arg4[%c0_3, %c0_4] : memref<1x128xf32, #tpu.memory_space<vmem>>, vector<1x128xf32>
    %c0_5 = arith.constant 0 : index
    %c0_6 = arith.constant 0 : index
    %3 = vector.load %arg5[%c0_5, %c0_6] : memref<128x128xbf16, #tpu.memory_space<vmem>>, vector<128x128xbf16>
    %c0_7 = arith.constant 0 : index
    %c0_8 = arith.constant 0 : index
    %4 = vector.load %arg6[%c0_7, %c0_8] : memref<1x128xf32, #tpu.memory_space<vmem>>, vector<1x128xf32>
    %c0_9 = arith.constant 0 : index
    %c0_10 = arith.constant 0 : index
    %5 = vector.load %arg1[%c0_9, %c0_10] : memref<128x256xf32, #tpu.memory_space<vmem>>, vector<4x256xf32>
    %6 = arith.truncf %5 : vector<4x256xf32> to vector<4x256xbf16>
    %c4 = arith.constant 4 : index
    %c0_11 = arith.constant 0 : index
    %7 = vector.load %arg1[%c4, %c0_11] : memref<128x256xf32, #tpu.memory_space<vmem>>, vector<4x256xf32>
    %8 = arith.truncf %7 : vector<4x256xf32> to vector<4x256xbf16>
    %cst = arith.constant dense<0.000000e+00> : vector<4x128xf32>
    %9 = tpu.matmul %6, %0, %cst {dimension_numbers = #tpu.dot_dimension_numbers<[1], [0], [0], [1], [0, 0, 1, 1], [], []>} : vector<4x256xbf16>, vector<256x128xbf16>, vector<4x128xf32> -> vector<4x128xf32>
    %cst_12 = arith.constant dense<0.000000e+00> : vector<4x128xf32>
    %10 = tpu.matmul %8, %1, %cst_12 {dimension_numbers = #tpu.dot_dimension_numbers<[1], [0], [0], [1], [0, 0, 1, 1], [], []>} : vector<4x256xbf16>, vector<256x128xbf16>, vector<4x128xf32> -> vector<4x128xf32>
    %11 = arith.addf %9, %10 : vector<4x128xf32>
    %12 = vector.broadcast %2 : vector<1x128xf32> to vector<4x128xf32>
    %13 = arith.addf %11, %12 : vector<4x128xf32>
    %cst_13 = arith.constant 0.000000e+00 : f32
    %14 = vector.broadcast %cst_13 : f32 to vector<4x128xf32>
    %15 = arith.cmpf oge, %13, %14 : vector<4x128xf32>
    %cst_14 = arith.constant 0.00999999977 : f32
    %16 = vector.broadcast %cst_14 : f32 to vector<4x128xf32>
    %17 = arith.mulf %16, %13 : vector<4x128xf32>
    %18 = arith.select %15, %13, %17 : vector<4x128xi1>, vector<4x128xf32>
    %19 = arith.mulf %18, %18 : vector<4x128xf32>
    %20 = arith.truncf %19 : vector<4x128xf32> to vector<4x128xbf16>
    %cst_15 = arith.constant dense<0.000000e+00> : vector<4x128xf32>
    %21 = tpu.matmul %20, %3, %cst_15 {dimension_numbers = #tpu.dot_dimension_numbers<[1], [0], [0], [1], [0, 0, 1, 1], [], []>} : vector<4x128xbf16>, vector<128x128xbf16>, vector<4x128xf32> -> vector<4x128xf32>
    %22 = vector.broadcast %4 : vector<1x128xf32> to vector<4x128xf32>
    %23 = arith.addf %21, %22 : vector<4x128xf32>
    %24 = math.rsqrt %23 : vector<4x128xf32>
    %25 = arith.mulf %18, %24 : vector<4x128xf32>
    %c0_16 = arith.constant 0 : index
    %c0_17 = arith.constant 0 : index
    %26 = vector.load %arg7[%c0_16, %c0_17] : memref<64x128xf32, #tpu.memory_space<vmem>>, vector<4x128xf32>
    tpu.vector_store %arg7[%c0_16, %c0_17], %25 {strides = array<i32>} : memref<64x128xf32, #tpu.memory_space<vmem>>, vector<4x128xf32>,
    %c8 = arith.constant 8 : index
    %c0_18 = arith.constant 0 : index
    %27 = vector.load %arg1[%c8, %c0_18] : memref<128x256xf32, #tpu.memory_space<vmem>>, vector<4x256xf32>
    %28 = arith.truncf %27 : vector<4x256xf32> to vector<4x256xbf16>
    %c12 = arith.constant 12 : index
    %c0_19 = arith.constant 0 : index
    %29 = vector.load %arg1[%c12, %c0_19] : memref<128x256xf32, #tpu.memory_space<vmem>>, vector<4x256xf32>
    %30 = arith.truncf %29 : vector<4x256xf32> to vector<4x256xbf16>
    %cst_20 = arith.constant dense<0.000000e+00> : vector<4x128xf32>
    %31 = tpu.matmul %28, %0, %cst_20 {dimension_numbers = #tpu.dot_dimension_numbers<[1], [0], [0], [1], [0, 0, 1, 1], [], []>} : vector<4x256xbf16>, vector<256x128xbf16>, vector<4x128xf32> -> vector<4x128xf32>
    %cst_21 = arith.constant dense<0.000000e+00> : vector<4x128xf32>
    %32 = tpu.matmul %30, %1, %cst_21 {dimension_numbers = #tpu.dot_dimension_numbers<[1], [0], [0], [1], [0, 0, 1, 1], [], []>} : vector<4x256xbf16>, vector<256x128xbf16>, vector<4x128xf32> -> vector<4x128xf32>
    %33 = arith.addf %31, %32 : vector<4x128xf32>
    %34 = vector.broadcast %2 : vector<1x128xf32> to vector<4x128xf32>
    %35 = arith.addf %33, %34 : vector<4x128xf32>
    %cst_22 = arith.constant 0.000000e+00 : f32
    %36 = vector.broadcast %cst_22 : f32 to vector<4x128xf32>
    %37 = arith.cmpf oge, %35, %36 : vector<4x128xf32>
    %cst_23 = arith.constant 0.00999999977 : f32
    %38 = vector.broadcast %cst_23 : f32 to vector<4x128xf32>
    %39 = arith.mulf %38, %35 : vector<4x128xf32>
    %40 = arith.select %37, %35, %39 : vector<4x128xi1>, vector<4x128xf32>
    %41 = arith.mulf %40, %40 : vector<4x128xf32>
    %42 = arith.truncf %41 : vector<4x128xf32> to vector<4x128xbf16>
    %cst_24 = arith.constant dense<0.000000e+00> : vector<4x128xf32>
    %43 = tpu.matmul %42, %3, %cst_24 {dimension_numbers = #tpu.dot_dimension_numbers<[1], [0], [0], [1], [0, 0, 1, 1], [], []>} : vector<4x128xbf16>, vector<128x128xbf16>, vector<4x128xf32> -> vector<4x128xf32>
    %44 = vector.broadcast %4 : vector<1x128xf32> to vector<4x128xf32>
    %45 = arith.addf %43, %44 : vector<4x128xf32>
    %46 = math.rsqrt %45 : vector<4x128xf32>
    %47 = arith.mulf %40, %46 : vector<4x128xf32>
    %c4_25 = arith.constant 4 : index
    %c0_26 = arith.constant 0 : index
    %48 = vector.load %arg7[%c4_25, %c0_26] : memref<64x128xf32, #tpu.memory_space<vmem>>, vector<4x128xf32>
    tpu.vector_store %arg7[%c4_25, %c0_26], %47 {strides = array<i32>} : memref<64x128xf32, #tpu.memory_space<vmem>>, vector<4x128xf32>,
    %c16 = arith.constant 16 : index
    %c0_27 = arith.constant 0 : index
    %49 = vector.load %arg1[%c16, %c0_27] : memref<128x256xf32, #tpu.memory_space<vmem>>, vector<4x256xf32>
    %50 = arith.truncf %49 : vector<4x256xf32> to vector<4x256xbf16>
    %c20 = arith.constant 20 : index
    %c0_28 = arith.constant 0 : index
    %51 = vector.load %arg1[%c20, %c0_28] : memref<128x256xf32, #tpu.memory_space<vmem>>, vector<4x256xf32>
    %52 = arith.truncf %51 : vector<4x256xf32> to vector<4x256xbf16>
    %cst_29 = arith.constant dense<0.000000e+00> : vector<4x128xf32>
    %53 = tpu.matmul %50, %0, %cst_29 {dimension_numbers = #tpu.dot_dimension_numbers<[1], [0], [0], [1], [0, 0, 1, 1], [], []>} : vector<4x256xbf16>, vector<256x128xbf16>, vector<4x128xf32> -> vector<4x128xf32>
    %cst_30 = arith.constant dense<0.000000e+00> : vector<4x128xf32>
    %54 = tpu.matmul %52, %1, %cst_30 {dimension_numbers = #tpu.dot_dimension_numbers<[1], [0], [0], [1], [0, 0, 1, 1], [], []>} : vector<4x256xbf16>, vector<256x128xbf16>, vector<4x128xf32> -> vector<4x128xf32>
    %55 = arith.addf %53, %54 : vector<4x128xf32>
    %56 = vector.broadcast %2 : vector<1x128xf32> to vector<4x128xf32>
    %57 = arith.addf %55, %56 : vector<4x128xf32>
    %cst_31 = arith.constant 0.000000e+00 : f32
    %58 = vector.broadcast %cst_31 : f32 to vector<4x128xf32>
    %59 = arith.cmpf oge, %57, %58 : vector<4x128xf32>
    %cst_32 = arith.constant 0.00999999977 : f32
    %60 = vector.broadcast %cst_32 : f32 to vector<4x128xf32>
    %61 = arith.mulf %60, %57 : vector<4x128xf32>
    %62 = arith.select %59, %57, %61 : vector<4x128xi1>, vector<4x128xf32>
    %63 = arith.mulf %62, %62 : vector<4x128xf32>
    %64 = arith.truncf %63 : vector<4x128xf32> to vector<4x128xbf16>
    %cst_33 = arith.constant dense<0.000000e+00> : vector<4x128xf32>
    %65 = tpu.matmul %64, %3, %cst_33 {dimension_numbers = #tpu.dot_dimension_numbers<[1], [0], [0], [1], [0, 0, 1, 1], [], []>} : vector<4x128xbf16>, vector<128x128xbf16>, vector<4x128xf32> -> vector<4x128xf32>
    %66 = vector.broadcast %4 : vector<1x128xf32> to vector<4x128xf32>
    %67 = arith.addf %65, %66 : vector<4x128xf32>
    %68 = math.rsqrt %67 : vector<4x128xf32>
    %69 = arith.mulf %62, %68 : vector<4x128xf32>
    %c8_34 = arith.constant 8 : index
    %c0_35 = arith.constant 0 : index
    %70 = vector.load %arg7[%c8_34, %c0_35] : memref<64x128xf32, #tpu.memory_space<vmem>>, vector<4x128xf32>
    tpu.vector_store %arg7[%c8_34, %c0_35], %69 {strides = array<i32>} : memref<64x128xf32, #tpu.memory_space<vmem>>, vector<4x128xf32>,
    %c24 = arith.constant 24 : index
    %c0_36 = arith.constant 0 : index
    %71 = vector.load %arg1[%c24, %c0_36] : memref<128x256xf32, #tpu.memory_space<vmem>>, vector<4x256xf32>
    %72 = arith.truncf %71 : vector<4x256xf32> to vector<4x256xbf16>
    %c28 = arith.constant 28 : index
    %c0_37 = arith.constant 0 : index
    %73 = vector.load %arg1[%c28, %c0_37] : memref<128x256xf32, #tpu.memory_space<vmem>>, vector<4x256xf32>
    %74 = arith.truncf %73 : vector<4x256xf32> to vector<4x256xbf16>
    %cst_38 = arith.constant dense<0.000000e+00> : vector<4x128xf32>
    %75 = tpu.matmul %72, %0, %cst_38 {dimension_numbers = #tpu.dot_dimension_numbers<[1], [0], [0], [1], [0, 0, 1, 1], [], []>} : vector<4x256xbf16>, vector<256x128xbf16>, vector<4x128xf32> -> vector<4x128xf32>
    %cst_39 = arith.constant dense<0.000000e+00> : vector<4x128xf32>
    %76 = tpu.matmul %74, %1, %cst_39 {dimension_numbers = #tpu.dot_dimension_numbers<[1], [0], [0], [1], [0, 0, 1, 1], [], []>} : vector<4x256xbf16>, vector<256x128xbf16>, vector<4x128xf32> -> vector<4x128xf32>
    %77 = arith.addf %75, %76 : vector<4x128xf32>
    %78 = vector.broadcast %2 : vector<1x128xf32> to vector<4x128xf32>
    %79 = arith.addf %77, %78 : vector<4x128xf32>
    %cst_40 = arith.constant 0.000000e+00 : f32
    %80 = vector.broadcast %cst_40 : f32 to vector<4x128xf32>
    %81 = arith.cmpf oge, %79, %80 : vector<4x128xf32>
    %cst_41 = arith.constant 0.00999999977 : f32
    %82 = vector.broadcast %cst_41 : f32 to vector<4x128xf32>
    %83 = arith.mulf %82, %79 : vector<4x128xf32>
    %84 = arith.select %81, %79, %83 : vector<4x128xi1>, vector<4x128xf32>
    %85 = arith.mulf %84, %84 : vector<4x128xf32>
    %86 = arith.truncf %85 : vector<4x128xf32> to vector<4x128xbf16>
    %cst_42 = arith.constant dense<0.000000e+00> : vector<4x128xf32>
    %87 = tpu.matmul %86, %3, %cst_42 {dimension_numbers = #tpu.dot_dimension_numbers<[1], [0], [0], [1], [0, 0, 1, 1], [], []>} : vector<4x128xbf16>, vector<128x128xbf16>, vector<4x128xf32> -> vector<4x128xf32>
    %88 = vector.broadcast %4 : vector<1x128xf32> to vector<4x128xf32>
    %89 = arith.addf %87, %88 : vector<4x128xf32>
    %90 = math.rsqrt %89 : vector<4x128xf32>
    %91 = arith.mulf %84, %90 : vector<4x128xf32>
    %c12_43 = arith.constant 12 : index
    %c0_44 = arith.constant 0 : index
    %92 = vector.load %arg7[%c12_43, %c0_44] : memref<64x128xf32, #tpu.memory_space<vmem>>, vector<4x128xf32>
    tpu.vector_store %arg7[%c12_43, %c0_44], %91 {strides = array<i32>} : memref<64x128xf32, #tpu.memory_space<vmem>>, vector<4x128xf32>,
    %c32 = arith.constant 32 : index
    %c0_45 = arith.constant 0 : index
    %93 = vector.load %arg1[%c32, %c0_45] : memref<128x256xf32, #tpu.memory_space<vmem>>, vector<4x256xf32>
    %94 = arith.truncf %93 : vector<4x256xf32> to vector<4x256xbf16>
    %c36 = arith.constant 36 : index
    %c0_46 = arith.constant 0 : index
    %95 = vector.load %arg1[%c36, %c0_46] : memref<128x256xf32, #tpu.memory_space<vmem>>, vector<4x256xf32>
    %96 = arith.truncf %95 : vector<4x256xf32> to vector<4x256xbf16>
    %cst_47 = arith.constant dense<0.000000e+00> : vector<4x128xf32>
    %97 = tpu.matmul %94, %0, %cst_47 {dimension_numbers = #tpu.dot_dimension_numbers<[1], [0], [0], [1], [0, 0, 1, 1], [], []>} : vector<4x256xbf16>, vector<256x128xbf16>, vector<4x128xf32> -> vector<4x128xf32>
    %cst_48 = arith.constant dense<0.000000e+00> : vector<4x128xf32>
    %98 = tpu.matmul %96, %1, %cst_48 {dimension_numbers = #tpu.dot_dimension_numbers<[1], [0], [0], [1], [0, 0, 1, 1], [], []>} : vector<4x256xbf16>, vector<256x128xbf16>, vector<4x128xf32> -> vector<4x128xf32>
    %99 = arith.addf %97, %98 : vector<4x128xf32>
    %100 = vector.broadcast %2 : vector<1x128xf32> to vector<4x128xf32>
    %101 = arith.addf %99, %100 : vector<4x128xf32>
    %cst_49 = arith.constant 0.000000e+00 : f32
    %102 = vector.broadcast %cst_49 : f32 to vector<4x128xf32>
    %103 = arith.cmpf oge, %101, %102 : vector<4x128xf32>
    %cst_50 = arith.constant 0.00999999977 : f32
    %104 = vector.broadcast %cst_50 : f32 to vector<4x128xf32>
    %105 = arith.mulf %104, %101 : vector<4x128xf32>
    %106 = arith.select %103, %101, %105 : vector<4x128xi1>, vector<4x128xf32>
    %107 = arith.mulf %106, %106 : vector<4x128xf32>
    %108 = arith.truncf %107 : vector<4x128xf32> to vector<4x128xbf16>
    %cst_51 = arith.constant dense<0.000000e+00> : vector<4x128xf32>
    %109 = tpu.matmul %108, %3, %cst_51 {dimension_numbers = #tpu.dot_dimension_numbers<[1], [0], [0], [1], [0, 0, 1, 1], [], []>} : vector<4x128xbf16>, vector<128x128xbf16>, vector<4x128xf32> -> vector<4x128xf32>
    %110 = vector.broadcast %4 : vector<1x128xf32> to vector<4x128xf32>
    %111 = arith.addf %109, %110 : vector<4x128xf32>
    %112 = math.rsqrt %111 : vector<4x128xf32>
    %113 = arith.mulf %106, %112 : vector<4x128xf32>
    %c16_52 = arith.constant 16 : index
    %c0_53 = arith.constant 0 : index
    %114 = vector.load %arg7[%c16_52, %c0_53] : memref<64x128xf32, #tpu.memory_space<vmem>>, vector<4x128xf32>
    tpu.vector_store %arg7[%c16_52, %c0_53], %113 {strides = array<i32>} : memref<64x128xf32, #tpu.memory_space<vmem>>, vector<4x128xf32>,
    %c40 = arith.constant 40 : index
    %c0_54 = arith.constant 0 : index
    %115 = vector.load %arg1[%c40, %c0_54] : memref<128x256xf32, #tpu.memory_space<vmem>>, vector<4x256xf32>
    %116 = arith.truncf %115 : vector<4x256xf32> to vector<4x256xbf16>
    %c44 = arith.constant 44 : index
    %c0_55 = arith.constant 0 : index
    %117 = vector.load %arg1[%c44, %c0_55] : memref<128x256xf32, #tpu.memory_space<vmem>>, vector<4x256xf32>
    %118 = arith.truncf %117 : vector<4x256xf32> to vector<4x256xbf16>
    %cst_56 = arith.constant dense<0.000000e+00> : vector<4x128xf32>
    %119 = tpu.matmul %116, %0, %cst_56 {dimension_numbers = #tpu.dot_dimension_numbers<[1], [0], [0], [1], [0, 0, 1, 1], [], []>} : vector<4x256xbf16>, vector<256x128xbf16>, vector<4x128xf32> -> vector<4x128xf32>
    %cst_57 = arith.constant dense<0.000000e+00> : vector<4x128xf32>
    %120 = tpu.matmul %118, %1, %cst_57 {dimension_numbers = #tpu.dot_dimension_numbers<[1], [0], [0], [1], [0, 0, 1, 1], [], []>} : vector<4x256xbf16>, vector<256x128xbf16>, vector<4x128xf32> -> vector<4x128xf32>
    %121 = arith.addf %119, %120 : vector<4x128xf32>
    %122 = vector.broadcast %2 : vector<1x128xf32> to vector<4x128xf32>
    %123 = arith.addf %121, %122 : vector<4x128xf32>
    %cst_58 = arith.constant 0.000000e+00 : f32
    %124 = vector.broadcast %cst_58 : f32 to vector<4x128xf32>
    %125 = arith.cmpf oge, %123, %124 : vector<4x128xf32>
    %cst_59 = arith.constant 0.00999999977 : f32
    %126 = vector.broadcast %cst_59 : f32 to vector<4x128xf32>
    %127 = arith.mulf %126, %123 : vector<4x128xf32>
    %128 = arith.select %125, %123, %127 : vector<4x128xi1>, vector<4x128xf32>
    %129 = arith.mulf %128, %128 : vector<4x128xf32>
    %130 = arith.truncf %129 : vector<4x128xf32> to vector<4x128xbf16>
    %cst_60 = arith.constant dense<0.000000e+00> : vector<4x128xf32>
    %131 = tpu.matmul %130, %3, %cst_60 {dimension_numbers = #tpu.dot_dimension_numbers<[1], [0], [0], [1], [0, 0, 1, 1], [], []>} : vector<4x128xbf16>, vector<128x128xbf16>, vector<4x128xf32> -> vector<4x128xf32>
    %132 = vector.broadcast %4 : vector<1x128xf32> to vector<4x128xf32>
    %133 = arith.addf %131, %132 : vector<4x128xf32>
    %134 = math.rsqrt %133 : vector<4x128xf32>
    %135 = arith.mulf %128, %134 : vector<4x128xf32>
    %c20_61 = arith.constant 20 : index
    %c0_62 = arith.constant 0 : index
    %136 = vector.load %arg7[%c20_61, %c0_62] : memref<64x128xf32, #tpu.memory_space<vmem>>, vector<4x128xf32>
    tpu.vector_store %arg7[%c20_61, %c0_62], %135 {strides = array<i32>} : memref<64x128xf32, #tpu.memory_space<vmem>>, vector<4x128xf32>,
    %c48 = arith.constant 48 : index
    %c0_63 = arith.constant 0 : index
    %137 = vector.load %arg1[%c48, %c0_63] : memref<128x256xf32, #tpu.memory_space<vmem>>, vector<4x256xf32>
    %138 = arith.truncf %137 : vector<4x256xf32> to vector<4x256xbf16>
    %c52 = arith.constant 52 : index
    %c0_64 = arith.constant 0 : index
    %139 = vector.load %arg1[%c52, %c0_64] : memref<128x256xf32, #tpu.memory_space<vmem>>, vector<4x256xf32>
    %140 = arith.truncf %139 : vector<4x256xf32> to vector<4x256xbf16>
    %cst_65 = arith.constant dense<0.000000e+00> : vector<4x128xf32>
    %141 = tpu.matmul %138, %0, %cst_65 {dimension_numbers = #tpu.dot_dimension_numbers<[1], [0], [0], [1], [0, 0, 1, 1], [], []>} : vector<4x256xbf16>, vector<256x128xbf16>, vector<4x128xf32> -> vector<4x128xf32>
    %cst_66 = arith.constant dense<0.000000e+00> : vector<4x128xf32>
    %142 = tpu.matmul %140, %1, %cst_66 {dimension_numbers = #tpu.dot_dimension_numbers<[1], [0], [0], [1], [0, 0, 1, 1], [], []>} : vector<4x256xbf16>, vector<256x128xbf16>, vector<4x128xf32> -> vector<4x128xf32>
    %143 = arith.addf %141, %142 : vector<4x128xf32>
    %144 = vector.broadcast %2 : vector<1x128xf32> to vector<4x128xf32>
    %145 = arith.addf %143, %144 : vector<4x128xf32>
    %cst_67 = arith.constant 0.000000e+00 : f32
    %146 = vector.broadcast %cst_67 : f32 to vector<4x128xf32>
    %147 = arith.cmpf oge, %145, %146 : vector<4x128xf32>
    %cst_68 = arith.constant 0.00999999977 : f32
    %148 = vector.broadcast %cst_68 : f32 to vector<4x128xf32>
    %149 = arith.mulf %148, %145 : vector<4x128xf32>
    %150 = arith.select %147, %145, %149 : vector<4x128xi1>, vector<4x128xf32>
    %151 = arith.mulf %150, %150 : vector<4x128xf32>
    %152 = arith.truncf %151 : vector<4x128xf32> to vector<4x128xbf16>
    %cst_69 = arith.constant dense<0.000000e+00> : vector<4x128xf32>
    %153 = tpu.matmul %152, %3, %cst_69 {dimension_numbers = #tpu.dot_dimension_numbers<[1], [0], [0], [1], [0, 0, 1, 1], [], []>} : vector<4x128xbf16>, vector<128x128xbf16>, vector<4x128xf32> -> vector<4x128xf32>
    %154 = vector.broadcast %4 : vector<1x128xf32> to vector<4x128xf32>
    %155 = arith.addf %153, %154 : vector<4x128xf32>
    %156 = math.rsqrt %155 : vector<4x128xf32>
    %157 = arith.mulf %150, %156 : vector<4x128xf32>
    %c24_70 = arith.constant 24 : index
    %c0_71 = arith.constant 0 : index
    %158 = vector.load %arg7[%c24_70, %c0_71] : memref<64x128xf32, #tpu.memory_space<vmem>>, vector<4x128xf32>
    tpu.vector_store %arg7[%c24_70, %c0_71], %157 {strides = array<i32>} : memref<64x128xf32, #tpu.memory_space<vmem>>, vector<4x128xf32>,
    %c56 = arith.constant 56 : index
    %c0_72 = arith.constant 0 : index
    %159 = vector.load %arg1[%c56, %c0_72] : memref<128x256xf32, #tpu.memory_space<vmem>>, vector<4x256xf32>
    %160 = arith.truncf %159 : vector<4x256xf32> to vector<4x256xbf16>
    %c60 = arith.constant 60 : index
    %c0_73 = arith.constant 0 : index
    %161 = vector.load %arg1[%c60, %c0_73] : memref<128x256xf32, #tpu.memory_space<vmem>>, vector<4x256xf32>
    %162 = arith.truncf %161 : vector<4x256xf32> to vector<4x256xbf16>
    %cst_74 = arith.constant dense<0.000000e+00> : vector<4x128xf32>
    %163 = tpu.matmul %160, %0, %cst_74 {dimension_numbers = #tpu.dot_dimension_numbers<[1], [0], [0], [1], [0, 0, 1, 1], [], []>} : vector<4x256xbf16>, vector<256x128xbf16>, vector<4x128xf32> -> vector<4x128xf32>
    %cst_75 = arith.constant dense<0.000000e+00> : vector<4x128xf32>
    %164 = tpu.matmul %162, %1, %cst_75 {dimension_numbers = #tpu.dot_dimension_numbers<[1], [0], [0], [1], [0, 0, 1, 1], [], []>} : vector<4x256xbf16>, vector<256x128xbf16>, vector<4x128xf32> -> vector<4x128xf32>
    %165 = arith.addf %163, %164 : vector<4x128xf32>
    %166 = vector.broadcast %2 : vector<1x128xf32> to vector<4x128xf32>
    %167 = arith.addf %165, %166 : vector<4x128xf32>
    %cst_76 = arith.constant 0.000000e+00 : f32
    %168 = vector.broadcast %cst_76 : f32 to vector<4x128xf32>
    %169 = arith.cmpf oge, %167, %168 : vector<4x128xf32>
    %cst_77 = arith.constant 0.00999999977 : f32
    %170 = vector.broadcast %cst_77 : f32 to vector<4x128xf32>
    %171 = arith.mulf %170, %167 : vector<4x128xf32>
    %172 = arith.select %169, %167, %171 : vector<4x128xi1>, vector<4x128xf32>
    %173 = arith.mulf %172, %172 : vector<4x128xf32>
    %174 = arith.truncf %173 : vector<4x128xf32> to vector<4x128xbf16>
    %cst_78 = arith.constant dense<0.000000e+00> : vector<4x128xf32>
    %175 = tpu.matmul %174, %3, %cst_78 {dimension_numbers = #tpu.dot_dimension_numbers<[1], [0], [0], [1], [0, 0, 1, 1], [], []>} : vector<4x128xbf16>, vector<128x128xbf16>, vector<4x128xf32> -> vector<4x128xf32>
    %176 = vector.broadcast %4 : vector<1x128xf32> to vector<4x128xf32>
    %177 = arith.addf %175, %176 : vector<4x128xf32>
    %178 = math.rsqrt %177 : vector<4x128xf32>
    %179 = arith.mulf %172, %178 : vector<4x128xf32>
    %c28_79 = arith.constant 28 : index
    %c0_80 = arith.constant 0 : index
    %180 = vector.load %arg7[%c28_79, %c0_80] : memref<64x128xf32, #tpu.memory_space<vmem>>, vector<4x128xf32>
    tpu.vector_store %arg7[%c28_79, %c0_80], %179 {strides = array<i32>} : memref<64x128xf32, #tpu.memory_space<vmem>>, vector<4x128xf32>,
    %c64 = arith.constant 64 : index
    %c0_81 = arith.constant 0 : index
    %181 = vector.load %arg1[%c64, %c0_81] : memref<128x256xf32, #tpu.memory_space<vmem>>, vector<4x256xf32>
    %182 = arith.truncf %181 : vector<4x256xf32> to vector<4x256xbf16>
    %c68 = arith.constant 68 : index
    %c0_82 = arith.constant 0 : index
    %183 = vector.load %arg1[%c68, %c0_82] : memref<128x256xf32, #tpu.memory_space<vmem>>, vector<4x256xf32>
    %184 = arith.truncf %183 : vector<4x256xf32> to vector<4x256xbf16>
    %cst_83 = arith.constant dense<0.000000e+00> : vector<4x128xf32>
    %185 = tpu.matmul %182, %0, %cst_83 {dimension_numbers = #tpu.dot_dimension_numbers<[1], [0], [0], [1], [0, 0, 1, 1], [], []>} : vector<4x256xbf16>, vector<256x128xbf16>, vector<4x128xf32> -> vector<4x128xf32>
    %cst_84 = arith.constant dense<0.000000e+00> : vector<4x128xf32>
    %186 = tpu.matmul %184, %1, %cst_84 {dimension_numbers = #tpu.dot_dimension_numbers<[1], [0], [0], [1], [0, 0, 1, 1], [], []>} : vector<4x256xbf16>, vector<256x128xbf16>, vector<4x128xf32> -> vector<4x128xf32>
    %187 = arith.addf %185, %186 : vector<4x128xf32>
    %188 = vector.broadcast %2 : vector<1x128xf32> to vector<4x128xf32>
    %189 = arith.addf %187, %188 : vector<4x128xf32>
    %cst_85 = arith.constant 0.000000e+00 : f32
    %190 = vector.broadcast %cst_85 : f32 to vector<4x128xf32>
    %191 = arith.cmpf oge, %189, %190 : vector<4x128xf32>
    %cst_86 = arith.constant 0.00999999977 : f32
    %192 = vector.broadcast %cst_86 : f32 to vector<4x128xf32>
    %193 = arith.mulf %192, %189 : vector<4x128xf32>
    %194 = arith.select %191, %189, %193 : vector<4x128xi1>, vector<4x128xf32>
    %195 = arith.mulf %194, %194 : vector<4x128xf32>
    %196 = arith.truncf %195 : vector<4x128xf32> to vector<4x128xbf16>
    %cst_87 = arith.constant dense<0.000000e+00> : vector<4x128xf32>
    %197 = tpu.matmul %196, %3, %cst_87 {dimension_numbers = #tpu.dot_dimension_numbers<[1], [0], [0], [1], [0, 0, 1, 1], [], []>} : vector<4x128xbf16>, vector<128x128xbf16>, vector<4x128xf32> -> vector<4x128xf32>
    %198 = vector.broadcast %4 : vector<1x128xf32> to vector<4x128xf32>
    %199 = arith.addf %197, %198 : vector<4x128xf32>
    %200 = math.rsqrt %199 : vector<4x128xf32>
    %201 = arith.mulf %194, %200 : vector<4x128xf32>
    %c32_88 = arith.constant 32 : index
    %c0_89 = arith.constant 0 : index
    %202 = vector.load %arg7[%c32_88, %c0_89] : memref<64x128xf32, #tpu.memory_space<vmem>>, vector<4x128xf32>
    tpu.vector_store %arg7[%c32_88, %c0_89], %201 {strides = array<i32>} : memref<64x128xf32, #tpu.memory_space<vmem>>, vector<4x128xf32>,
    %c72 = arith.constant 72 : index
    %c0_90 = arith.constant 0 : index
    %203 = vector.load %arg1[%c72, %c0_90] : memref<128x256xf32, #tpu.memory_space<vmem>>, vector<4x256xf32>
    %204 = arith.truncf %203 : vector<4x256xf32> to vector<4x256xbf16>
    %c76 = arith.constant 76 : index
    %c0_91 = arith.constant 0 : index
    %205 = vector.load %arg1[%c76, %c0_91] : memref<128x256xf32, #tpu.memory_space<vmem>>, vector<4x256xf32>
    %206 = arith.truncf %205 : vector<4x256xf32> to vector<4x256xbf16>
    %cst_92 = arith.constant dense<0.000000e+00> : vector<4x128xf32>
    %207 = tpu.matmul %204, %0, %cst_92 {dimension_numbers = #tpu.dot_dimension_numbers<[1], [0], [0], [1], [0, 0, 1, 1], [], []>} : vector<4x256xbf16>, vector<256x128xbf16>, vector<4x128xf32> -> vector<4x128xf32>
    %cst_93 = arith.constant dense<0.000000e+00> : vector<4x128xf32>
    %208 = tpu.matmul %206, %1, %cst_93 {dimension_numbers = #tpu.dot_dimension_numbers<[1], [0], [0], [1], [0, 0, 1, 1], [], []>} : vector<4x256xbf16>, vector<256x128xbf16>, vector<4x128xf32> -> vector<4x128xf32>
    %209 = arith.addf %207, %208 : vector<4x128xf32>
    %210 = vector.broadcast %2 : vector<1x128xf32> to vector<4x128xf32>
    %211 = arith.addf %209, %210 : vector<4x128xf32>
    %cst_94 = arith.constant 0.000000e+00 : f32
    %212 = vector.broadcast %cst_94 : f32 to vector<4x128xf32>
    %213 = arith.cmpf oge, %211, %212 : vector<4x128xf32>
    %cst_95 = arith.constant 0.00999999977 : f32
    %214 = vector.broadcast %cst_95 : f32 to vector<4x128xf32>
    %215 = arith.mulf %214, %211 : vector<4x128xf32>
    %216 = arith.select %213, %211, %215 : vector<4x128xi1>, vector<4x128xf32>
    %217 = arith.mulf %216, %216 : vector<4x128xf32>
    %218 = arith.truncf %217 : vector<4x128xf32> to vector<4x128xbf16>
    %cst_96 = arith.constant dense<0.000000e+00> : vector<4x128xf32>
    %219 = tpu.matmul %218, %3, %cst_96 {dimension_numbers = #tpu.dot_dimension_numbers<[1], [0], [0], [1], [0, 0, 1, 1], [], []>} : vector<4x128xbf16>, vector<128x128xbf16>, vector<4x128xf32> -> vector<4x128xf32>
    %220 = vector.broadcast %4 : vector<1x128xf32> to vector<4x128xf32>
    %221 = arith.addf %219, %220 : vector<4x128xf32>
    %222 = math.rsqrt %221 : vector<4x128xf32>
    %223 = arith.mulf %216, %222 : vector<4x128xf32>
    %c36_97 = arith.constant 36 : index
    %c0_98 = arith.constant 0 : index
    %224 = vector.load %arg7[%c36_97, %c0_98] : memref<64x128xf32, #tpu.memory_space<vmem>>, vector<4x128xf32>
    tpu.vector_store %arg7[%c36_97, %c0_98], %223 {strides = array<i32>} : memref<64x128xf32, #tpu.memory_space<vmem>>, vector<4x128xf32>,
    %c80 = arith.constant 80 : index
    %c0_99 = arith.constant 0 : index
    %225 = vector.load %arg1[%c80, %c0_99] : memref<128x256xf32, #tpu.memory_space<vmem>>, vector<4x256xf32>
    %226 = arith.truncf %225 : vector<4x256xf32> to vector<4x256xbf16>
    %c84 = arith.constant 84 : index
    %c0_100 = arith.constant 0 : index
    %227 = vector.load %arg1[%c84, %c0_100] : memref<128x256xf32, #tpu.memory_space<vmem>>, vector<4x256xf32>
    %228 = arith.truncf %227 : vector<4x256xf32> to vector<4x256xbf16>
    %cst_101 = arith.constant dense<0.000000e+00> : vector<4x128xf32>
    %229 = tpu.matmul %226, %0, %cst_101 {dimension_numbers = #tpu.dot_dimension_numbers<[1], [0], [0], [1], [0, 0, 1, 1], [], []>} : vector<4x256xbf16>, vector<256x128xbf16>, vector<4x128xf32> -> vector<4x128xf32>
    %cst_102 = arith.constant dense<0.000000e+00> : vector<4x128xf32>
    %230 = tpu.matmul %228, %1, %cst_102 {dimension_numbers = #tpu.dot_dimension_numbers<[1], [0], [0], [1], [0, 0, 1, 1], [], []>} : vector<4x256xbf16>, vector<256x128xbf16>, vector<4x128xf32> -> vector<4x128xf32>
    %231 = arith.addf %229, %230 : vector<4x128xf32>
    %232 = vector.broadcast %2 : vector<1x128xf32> to vector<4x128xf32>
    %233 = arith.addf %231, %232 : vector<4x128xf32>
    %cst_103 = arith.constant 0.000000e+00 : f32
    %234 = vector.broadcast %cst_103 : f32 to vector<4x128xf32>
    %235 = arith.cmpf oge, %233, %234 : vector<4x128xf32>
    %cst_104 = arith.constant 0.00999999977 : f32
    %236 = vector.broadcast %cst_104 : f32 to vector<4x128xf32>
    %237 = arith.mulf %236, %233 : vector<4x128xf32>
    %238 = arith.select %235, %233, %237 : vector<4x128xi1>, vector<4x128xf32>
    %239 = arith.mulf %238, %238 : vector<4x128xf32>
    %240 = arith.truncf %239 : vector<4x128xf32> to vector<4x128xbf16>
    %cst_105 = arith.constant dense<0.000000e+00> : vector<4x128xf32>
    %241 = tpu.matmul %240, %3, %cst_105 {dimension_numbers = #tpu.dot_dimension_numbers<[1], [0], [0], [1], [0, 0, 1, 1], [], []>} : vector<4x128xbf16>, vector<128x128xbf16>, vector<4x128xf32> -> vector<4x128xf32>
    %242 = vector.broadcast %4 : vector<1x128xf32> to vector<4x128xf32>
    %243 = arith.addf %241, %242 : vector<4x128xf32>
    %244 = math.rsqrt %243 : vector<4x128xf32>
    %245 = arith.mulf %238, %244 : vector<4x128xf32>
    %c40_106 = arith.constant 40 : index
    %c0_107 = arith.constant 0 : index
    %246 = vector.load %arg7[%c40_106, %c0_107] : memref<64x128xf32, #tpu.memory_space<vmem>>, vector<4x128xf32>
    tpu.vector_store %arg7[%c40_106, %c0_107], %245 {strides = array<i32>} : memref<64x128xf32, #tpu.memory_space<vmem>>, vector<4x128xf32>,
    %c88 = arith.constant 88 : index
    %c0_108 = arith.constant 0 : index
    %247 = vector.load %arg1[%c88, %c0_108] : memref<128x256xf32, #tpu.memory_space<vmem>>, vector<4x256xf32>
    %248 = arith.truncf %247 : vector<4x256xf32> to vector<4x256xbf16>
    %c92 = arith.constant 92 : index
    %c0_109 = arith.constant 0 : index
    %249 = vector.load %arg1[%c92, %c0_109] : memref<128x256xf32, #tpu.memory_space<vmem>>, vector<4x256xf32>
    %250 = arith.truncf %249 : vector<4x256xf32> to vector<4x256xbf16>
    %cst_110 = arith.constant dense<0.000000e+00> : vector<4x128xf32>
    %251 = tpu.matmul %248, %0, %cst_110 {dimension_numbers = #tpu.dot_dimension_numbers<[1], [0], [0], [1], [0, 0, 1, 1], [], []>} : vector<4x256xbf16>, vector<256x128xbf16>, vector<4x128xf32> -> vector<4x128xf32>
    %cst_111 = arith.constant dense<0.000000e+00> : vector<4x128xf32>
    %252 = tpu.matmul %250, %1, %cst_111 {dimension_numbers = #tpu.dot_dimension_numbers<[1], [0], [0], [1], [0, 0, 1, 1], [], []>} : vector<4x256xbf16>, vector<256x128xbf16>, vector<4x128xf32> -> vector<4x128xf32>
    %253 = arith.addf %251, %252 : vector<4x128xf32>
    %254 = vector.broadcast %2 : vector<1x128xf32> to vector<4x128xf32>
    %255 = arith.addf %253, %254 : vector<4x128xf32>
    %cst_112 = arith.constant 0.000000e+00 : f32
    %256 = vector.broadcast %cst_112 : f32 to vector<4x128xf32>
    %257 = arith.cmpf oge, %255, %256 : vector<4x128xf32>
    %cst_113 = arith.constant 0.00999999977 : f32
    %258 = vector.broadcast %cst_113 : f32 to vector<4x128xf32>
    %259 = arith.mulf %258, %255 : vector<4x128xf32>
    %260 = arith.select %257, %255, %259 : vector<4x128xi1>, vector<4x128xf32>
    %261 = arith.mulf %260, %260 : vector<4x128xf32>
    %262 = arith.truncf %261 : vector<4x128xf32> to vector<4x128xbf16>
    %cst_114 = arith.constant dense<0.000000e+00> : vector<4x128xf32>
    %263 = tpu.matmul %262, %3, %cst_114 {dimension_numbers = #tpu.dot_dimension_numbers<[1], [0], [0], [1], [0, 0, 1, 1], [], []>} : vector<4x128xbf16>, vector<128x128xbf16>, vector<4x128xf32> -> vector<4x128xf32>
    %264 = vector.broadcast %4 : vector<1x128xf32> to vector<4x128xf32>
    %265 = arith.addf %263, %264 : vector<4x128xf32>
    %266 = math.rsqrt %265 : vector<4x128xf32>
    %267 = arith.mulf %260, %266 : vector<4x128xf32>
    %c44_115 = arith.constant 44 : index
    %c0_116 = arith.constant 0 : index
    %268 = vector.load %arg7[%c44_115, %c0_116] : memref<64x128xf32, #tpu.memory_space<vmem>>, vector<4x128xf32>
    tpu.vector_store %arg7[%c44_115, %c0_116], %267 {strides = array<i32>} : memref<64x128xf32, #tpu.memory_space<vmem>>, vector<4x128xf32>,
    %c96 = arith.constant 96 : index
    %c0_117 = arith.constant 0 : index
    %269 = vector.load %arg1[%c96, %c0_117] : memref<128x256xf32, #tpu.memory_space<vmem>>, vector<4x256xf32>
    %270 = arith.truncf %269 : vector<4x256xf32> to vector<4x256xbf16>
    %c100 = arith.constant 100 : index
    %c0_118 = arith.constant 0 : index
    %271 = vector.load %arg1[%c100, %c0_118] : memref<128x256xf32, #tpu.memory_space<vmem>>, vector<4x256xf32>
    %272 = arith.truncf %271 : vector<4x256xf32> to vector<4x256xbf16>
    %cst_119 = arith.constant dense<0.000000e+00> : vector<4x128xf32>
    %273 = tpu.matmul %270, %0, %cst_119 {dimension_numbers = #tpu.dot_dimension_numbers<[1], [0], [0], [1], [0, 0, 1, 1], [], []>} : vector<4x256xbf16>, vector<256x128xbf16>, vector<4x128xf32> -> vector<4x128xf32>
    %cst_120 = arith.constant dense<0.000000e+00> : vector<4x128xf32>
    %274 = tpu.matmul %272, %1, %cst_120 {dimension_numbers = #tpu.dot_dimension_numbers<[1], [0], [0], [1], [0, 0, 1, 1], [], []>} : vector<4x256xbf16>, vector<256x128xbf16>, vector<4x128xf32> -> vector<4x128xf32>
    %275 = arith.addf %273, %274 : vector<4x128xf32>
    %276 = vector.broadcast %2 : vector<1x128xf32> to vector<4x128xf32>
    %277 = arith.addf %275, %276 : vector<4x128xf32>
    %cst_121 = arith.constant 0.000000e+00 : f32
    %278 = vector.broadcast %cst_121 : f32 to vector<4x128xf32>
    %279 = arith.cmpf oge, %277, %278 : vector<4x128xf32>
    %cst_122 = arith.constant 0.00999999977 : f32
    %280 = vector.broadcast %cst_122 : f32 to vector<4x128xf32>
    %281 = arith.mulf %280, %277 : vector<4x128xf32>
    %282 = arith.select %279, %277, %281 : vector<4x128xi1>, vector<4x128xf32>
    %283 = arith.mulf %282, %282 : vector<4x128xf32>
    %284 = arith.truncf %283 : vector<4x128xf32> to vector<4x128xbf16>
    %cst_123 = arith.constant dense<0.000000e+00> : vector<4x128xf32>
    %285 = tpu.matmul %284, %3, %cst_123 {dimension_numbers = #tpu.dot_dimension_numbers<[1], [0], [0], [1], [0, 0, 1, 1], [], []>} : vector<4x128xbf16>, vector<128x128xbf16>, vector<4x128xf32> -> vector<4x128xf32>
    %286 = vector.broadcast %4 : vector<1x128xf32> to vector<4x128xf32>
    %287 = arith.addf %285, %286 : vector<4x128xf32>
    %288 = math.rsqrt %287 : vector<4x128xf32>
    %289 = arith.mulf %282, %288 : vector<4x128xf32>
    %c48_124 = arith.constant 48 : index
    %c0_125 = arith.constant 0 : index
    %290 = vector.load %arg7[%c48_124, %c0_125] : memref<64x128xf32, #tpu.memory_space<vmem>>, vector<4x128xf32>
    tpu.vector_store %arg7[%c48_124, %c0_125], %289 {strides = array<i32>} : memref<64x128xf32, #tpu.memory_space<vmem>>, vector<4x128xf32>,
    %c104 = arith.constant 104 : index
    %c0_126 = arith.constant 0 : index
    %291 = vector.load %arg1[%c104, %c0_126] : memref<128x256xf32, #tpu.memory_space<vmem>>, vector<4x256xf32>
    %292 = arith.truncf %291 : vector<4x256xf32> to vector<4x256xbf16>
    %c108 = arith.constant 108 : index
    %c0_127 = arith.constant 0 : index
    %293 = vector.load %arg1[%c108, %c0_127] : memref<128x256xf32, #tpu.memory_space<vmem>>, vector<4x256xf32>
    %294 = arith.truncf %293 : vector<4x256xf32> to vector<4x256xbf16>
    %cst_128 = arith.constant dense<0.000000e+00> : vector<4x128xf32>
    %295 = tpu.matmul %292, %0, %cst_128 {dimension_numbers = #tpu.dot_dimension_numbers<[1], [0], [0], [1], [0, 0, 1, 1], [], []>} : vector<4x256xbf16>, vector<256x128xbf16>, vector<4x128xf32> -> vector<4x128xf32>
    %cst_129 = arith.constant dense<0.000000e+00> : vector<4x128xf32>
    %296 = tpu.matmul %294, %1, %cst_129 {dimension_numbers = #tpu.dot_dimension_numbers<[1], [0], [0], [1], [0, 0, 1, 1], [], []>} : vector<4x256xbf16>, vector<256x128xbf16>, vector<4x128xf32> -> vector<4x128xf32>
    %297 = arith.addf %295, %296 : vector<4x128xf32>
    %298 = vector.broadcast %2 : vector<1x128xf32> to vector<4x128xf32>
    %299 = arith.addf %297, %298 : vector<4x128xf32>
    %cst_130 = arith.constant 0.000000e+00 : f32
    %300 = vector.broadcast %cst_130 : f32 to vector<4x128xf32>
    %301 = arith.cmpf oge, %299, %300 : vector<4x128xf32>
    %cst_131 = arith.constant 0.00999999977 : f32
    %302 = vector.broadcast %cst_131 : f32 to vector<4x128xf32>
    %303 = arith.mulf %302, %299 : vector<4x128xf32>
    %304 = arith.select %301, %299, %303 : vector<4x128xi1>, vector<4x128xf32>
    %305 = arith.mulf %304, %304 : vector<4x128xf32>
    %306 = arith.truncf %305 : vector<4x128xf32> to vector<4x128xbf16>
    %cst_132 = arith.constant dense<0.000000e+00> : vector<4x128xf32>
    %307 = tpu.matmul %306, %3, %cst_132 {dimension_numbers = #tpu.dot_dimension_numbers<[1], [0], [0], [1], [0, 0, 1, 1], [], []>} : vector<4x128xbf16>, vector<128x128xbf16>, vector<4x128xf32> -> vector<4x128xf32>
    %308 = vector.broadcast %4 : vector<1x128xf32> to vector<4x128xf32>
    %309 = arith.addf %307, %308 : vector<4x128xf32>
    %310 = math.rsqrt %309 : vector<4x128xf32>
    %311 = arith.mulf %304, %310 : vector<4x128xf32>
    %c52_133 = arith.constant 52 : index
    %c0_134 = arith.constant 0 : index
    %312 = vector.load %arg7[%c52_133, %c0_134] : memref<64x128xf32, #tpu.memory_space<vmem>>, vector<4x128xf32>
    tpu.vector_store %arg7[%c52_133, %c0_134], %311 {strides = array<i32>} : memref<64x128xf32, #tpu.memory_space<vmem>>, vector<4x128xf32>,
    %c112 = arith.constant 112 : index
    %c0_135 = arith.constant 0 : index
    %313 = vector.load %arg1[%c112, %c0_135] : memref<128x256xf32, #tpu.memory_space<vmem>>, vector<4x256xf32>
    %314 = arith.truncf %313 : vector<4x256xf32> to vector<4x256xbf16>
    %c116 = arith.constant 116 : index
    %c0_136 = arith.constant 0 : index
    %315 = vector.load %arg1[%c116, %c0_136] : memref<128x256xf32, #tpu.memory_space<vmem>>, vector<4x256xf32>
    %316 = arith.truncf %315 : vector<4x256xf32> to vector<4x256xbf16>
    %cst_137 = arith.constant dense<0.000000e+00> : vector<4x128xf32>
    %317 = tpu.matmul %314, %0, %cst_137 {dimension_numbers = #tpu.dot_dimension_numbers<[1], [0], [0], [1], [0, 0, 1, 1], [], []>} : vector<4x256xbf16>, vector<256x128xbf16>, vector<4x128xf32> -> vector<4x128xf32>
    %cst_138 = arith.constant dense<0.000000e+00> : vector<4x128xf32>
    %318 = tpu.matmul %316, %1, %cst_138 {dimension_numbers = #tpu.dot_dimension_numbers<[1], [0], [0], [1], [0, 0, 1, 1], [], []>} : vector<4x256xbf16>, vector<256x128xbf16>, vector<4x128xf32> -> vector<4x128xf32>
    %319 = arith.addf %317, %318 : vector<4x128xf32>
    %320 = vector.broadcast %2 : vector<1x128xf32> to vector<4x128xf32>
    %321 = arith.addf %319, %320 : vector<4x128xf32>
    %cst_139 = arith.constant 0.000000e+00 : f32
    %322 = vector.broadcast %cst_139 : f32 to vector<4x128xf32>
    %323 = arith.cmpf oge, %321, %322 : vector<4x128xf32>
    %cst_140 = arith.constant 0.00999999977 : f32
    %324 = vector.broadcast %cst_140 : f32 to vector<4x128xf32>
    %325 = arith.mulf %324, %321 : vector<4x128xf32>
    %326 = arith.select %323, %321, %325 : vector<4x128xi1>, vector<4x128xf32>
    %327 = arith.mulf %326, %326 : vector<4x128xf32>
    %328 = arith.truncf %327 : vector<4x128xf32> to vector<4x128xbf16>
    %cst_141 = arith.constant dense<0.000000e+00> : vector<4x128xf32>
    %329 = tpu.matmul %328, %3, %cst_141 {dimension_numbers = #tpu.dot_dimension_numbers<[1], [0], [0], [1], [0, 0, 1, 1], [], []>} : vector<4x128xbf16>, vector<128x128xbf16>, vector<4x128xf32> -> vector<4x128xf32>
    %330 = vector.broadcast %4 : vector<1x128xf32> to vector<4x128xf32>
    %331 = arith.addf %329, %330 : vector<4x128xf32>
    %332 = math.rsqrt %331 : vector<4x128xf32>
    %333 = arith.mulf %326, %332 : vector<4x128xf32>
    %c56_142 = arith.constant 56 : index
    %c0_143 = arith.constant 0 : index
    %334 = vector.load %arg7[%c56_142, %c0_143] : memref<64x128xf32, #tpu.memory_space<vmem>>, vector<4x128xf32>
    tpu.vector_store %arg7[%c56_142, %c0_143], %333 {strides = array<i32>} : memref<64x128xf32, #tpu.memory_space<vmem>>, vector<4x128xf32>,
    %c120 = arith.constant 120 : index
    %c0_144 = arith.constant 0 : index
    %335 = vector.load %arg1[%c120, %c0_144] : memref<128x256xf32, #tpu.memory_space<vmem>>, vector<4x256xf32>
    %336 = arith.truncf %335 : vector<4x256xf32> to vector<4x256xbf16>
    %c124 = arith.constant 124 : index
    %c0_145 = arith.constant 0 : index
    %337 = vector.load %arg1[%c124, %c0_145] : memref<128x256xf32, #tpu.memory_space<vmem>>, vector<4x256xf32>
    %338 = arith.truncf %337 : vector<4x256xf32> to vector<4x256xbf16>
    %cst_146 = arith.constant dense<0.000000e+00> : vector<4x128xf32>
    %339 = tpu.matmul %336, %0, %cst_146 {dimension_numbers = #tpu.dot_dimension_numbers<[1], [0], [0], [1], [0, 0, 1, 1], [], []>} : vector<4x256xbf16>, vector<256x128xbf16>, vector<4x128xf32> -> vector<4x128xf32>
    %cst_147 = arith.constant dense<0.000000e+00> : vector<4x128xf32>
    %340 = tpu.matmul %338, %1, %cst_147 {dimension_numbers = #tpu.dot_dimension_numbers<[1], [0], [0], [1], [0, 0, 1, 1], [], []>} : vector<4x256xbf16>, vector<256x128xbf16>, vector<4x128xf32> -> vector<4x128xf32>
    %341 = arith.addf %339, %340 : vector<4x128xf32>
    %342 = vector.broadcast %2 : vector<1x128xf32> to vector<4x128xf32>
    %343 = arith.addf %341, %342 : vector<4x128xf32>
    %cst_148 = arith.constant 0.000000e+00 : f32
    %344 = vector.broadcast %cst_148 : f32 to vector<4x128xf32>
    %345 = arith.cmpf oge, %343, %344 : vector<4x128xf32>
    %cst_149 = arith.constant 0.00999999977 : f32
    %346 = vector.broadcast %cst_149 : f32 to vector<4x128xf32>
    %347 = arith.mulf %346, %343 : vector<4x128xf32>
    %348 = arith.select %345, %343, %347 : vector<4x128xi1>, vector<4x128xf32>
    %349 = arith.mulf %348, %348 : vector<4x128xf32>
    %350 = arith.truncf %349 : vector<4x128xf32> to vector<4x128xbf16>
    %cst_150 = arith.constant dense<0.000000e+00> : vector<4x128xf32>
    %351 = tpu.matmul %350, %3, %cst_150 {dimension_numbers = #tpu.dot_dimension_numbers<[1], [0], [0], [1], [0, 0, 1, 1], [], []>} : vector<4x128xbf16>, vector<128x128xbf16>, vector<4x128xf32> -> vector<4x128xf32>
    %352 = vector.broadcast %4 : vector<1x128xf32> to vector<4x128xf32>
    %353 = arith.addf %351, %352 : vector<4x128xf32>
    %354 = math.rsqrt %353 : vector<4x128xf32>
    %355 = arith.mulf %348, %354 : vector<4x128xf32>
    %c60_151 = arith.constant 60 : index
    %c0_152 = arith.constant 0 : index
    %356 = vector.load %arg7[%c60_151, %c0_152] : memref<64x128xf32, #tpu.memory_space<vmem>>, vector<4x128xf32>
    tpu.vector_store %arg7[%c60_151, %c0_152], %355 {strides = array<i32>} : memref<64x128xf32, #tpu.memory_space<vmem>>, vector<4x128xf32>,
    return
  }
  func.func @transform_0(%arg0: i32) -> (i32, i32) {
    %c0_i32 = arith.constant 0 : i32
    %c0_i32_0 = arith.constant 0 : i32
    return %arg0, %c0_i32 : i32, i32
  }
  func.func @transform_1(%arg0: i32) -> (i32, i32) {
    %c0_i32 = arith.constant 0 : i32
    %c0_i32_0 = arith.constant 0 : i32
    %c0_i32_1 = arith.constant 0 : i32
    return %c0_i32, %c0_i32_0 : i32, i32
  }
  func.func @transform_2(%arg0: i32) -> (i32, i32) {
    %c0_i32 = arith.constant 0 : i32
    %c0_i32_0 = arith.constant 0 : i32
    %c0_i32_1 = arith.constant 0 : i32
    return %c0_i32, %c0_i32_0 : i32, i32
  }
  func.func @transform_3(%arg0: i32) -> (i32, i32) {
    %c0_i32 = arith.constant 0 : i32
    %c0_i32_0 = arith.constant 0 : i32
    %c0_i32_1 = arith.constant 0 : i32
    return %c0_i32, %c0_i32_0 : i32, i32
  }
  func.func @transform_4(%arg0: i32) -> (i32, i32) {
    %c0_i32 = arith.constant 0 : i32
    %c0_i32_0 = arith.constant 0 : i32
    %c0_i32_1 = arith.constant 0 : i32
    return %c0_i32, %c0_i32_0 : i32, i32
  }
  func.func @transform_5(%arg0: i32) -> (i32, i32) {
    %c0_i32 = arith.constant 0 : i32
    %c0_i32_0 = arith.constant 0 : i32
    %c0_i32_1 = arith.constant 0 : i32
    return %c0_i32, %c0_i32_0 : i32, i32
  }
  func.func @transform_6(%arg0: i32) -> (i32, i32) {
    %c0_i32 = arith.constant 0 : i32
    %c0_i32_0 = arith.constant 0 : i32
    return %arg0, %c0_i32 : i32, i32
  }
}

module attributes {stable_mosaic.version = 11 : i64} {
  func.func @_stage01_kernel(%arg0: i32, %arg1: memref<256x8xf32, #tpu.memory_space<vmem>>, %arg2: memref<1x128xf32, #tpu.memory_space<vmem>>, %arg3: memref<1x128xf32, #tpu.memory_space<vmem>>, %arg4: memref<1x128xf32, #tpu.memory_space<vmem>>, %arg5: memref<4x128x128xbf16, #tpu.memory_space<vmem>>, %arg6: memref<1x128xf32, #tpu.memory_space<vmem>>, %arg7: memref<128x128xbf16, #tpu.memory_space<vmem>>, %arg8: memref<1x128xf32, #tpu.memory_space<vmem>>, %arg9: memref<256x128xf32, #tpu.memory_space<vmem>>) attributes {dimension_semantics = [#tpu.dimension_semantics<parallel>], iteration_bounds = array<i64: 1>, scalar_prefetch = 0 : i64, scratch_operands = 0 : i64, tpu.core_type = #tpu.core_type<tc>, window_params = [{transform_indices = @transform_0, window_bounds = array<i64: 256, 8>}, {pipeline_mode = #tpu.pipeline_mode<synchronous>, transform_indices = @transform_1, window_bounds = array<i64: 1, 128>}, {pipeline_mode = #tpu.pipeline_mode<synchronous>, transform_indices = @transform_2, window_bounds = array<i64: 1, 128>}, {pipeline_mode = #tpu.pipeline_mode<synchronous>, transform_indices = @transform_3, window_bounds = array<i64: 1, 128>}, {pipeline_mode = #tpu.pipeline_mode<synchronous>, transform_indices = @transform_4, window_bounds = array<i64: 4, 128, 128>}, {pipeline_mode = #tpu.pipeline_mode<synchronous>, transform_indices = @transform_5, window_bounds = array<i64: 1, 128>}, {pipeline_mode = #tpu.pipeline_mode<synchronous>, transform_indices = @transform_6, window_bounds = array<i64: 128, 128>}, {pipeline_mode = #tpu.pipeline_mode<synchronous>, transform_indices = @transform_7, window_bounds = array<i64: 1, 128>}, {transform_indices = @transform_8, window_bounds = array<i64: 256, 128>}]} {
    %c0 = arith.constant 0 : index
    %c0_0 = arith.constant 0 : index
    %0 = vector.load %arg1[%c0, %c0_0] : memref<256x8xf32, #tpu.memory_space<vmem>>, vector<256x8xf32>
    %cst = arith.constant 0.00392156886 : f32
    %1 = vector.broadcast %cst : f32 to vector<256x8xf32>
    %2 = arith.mulf %0, %1 : vector<256x8xf32>
    %c0_1 = arith.constant 0 : index
    %c0_2 = arith.constant 0 : index
    %3 = vector.load %arg2[%c0_1, %c0_2] : memref<1x128xf32, #tpu.memory_space<vmem>>, vector<1x128xf32>
    %c0_3 = arith.constant 0 : index
    %c0_4 = arith.constant 0 : index
    %4 = vector.load %arg3[%c0_3, %c0_4] : memref<1x128xf32, #tpu.memory_space<vmem>>, vector<1x128xf32>
    %c0_5 = arith.constant 0 : index
    %c0_6 = arith.constant 0 : index
    %5 = vector.load %arg4[%c0_5, %c0_6] : memref<1x128xf32, #tpu.memory_space<vmem>>, vector<1x128xf32>
    %c0_7 = arith.constant 0 : index
    %c0_8 = arith.constant 0 : index
    %6 = vector.load %arg6[%c0_7, %c0_8] : memref<1x128xf32, #tpu.memory_space<vmem>>, vector<1x128xf32>
    %c0_9 = arith.constant 0 : index
    %c0_10 = arith.constant 0 : index
    %7 = vector.load %arg7[%c0_9, %c0_10] : memref<128x128xbf16, #tpu.memory_space<vmem>>, vector<128x128xbf16>
    %c0_11 = arith.constant 0 : index
    %c0_12 = arith.constant 0 : index
    %8 = vector.load %arg8[%c0_11, %c0_12] : memref<1x128xf32, #tpu.memory_space<vmem>>, vector<1x128xf32>
    %cst_13 = arith.constant 0.000000e+00 : f32
    %9 = vector.broadcast %cst_13 : f32 to vector<256x128xf32>
    %10 = vector.extract_strided_slice %2 {offsets = [0, 0], sizes = [256, 1], strides = [1, 1]} : vector<256x8xf32> to vector<256x1xf32>
    %11 = vector.broadcast %10 : vector<256x1xf32> to vector<256x128xf32>
    %12 = vector.broadcast %3 : vector<1x128xf32> to vector<256x128xf32>
    %13 = arith.mulf %11, %12 : vector<256x128xf32>
    %14 = vector.extract_strided_slice %2 {offsets = [0, 4], sizes = [256, 1], strides = [1, 1]} : vector<256x8xf32> to vector<256x1xf32>
    %15 = vector.broadcast %14 : vector<256x1xf32> to vector<256x128xf32>
    %16 = vector.broadcast %4 : vector<1x128xf32> to vector<256x128xf32>
    %17 = arith.mulf %15, %16 : vector<256x128xf32>
    %18 = arith.addf %13, %17 : vector<256x128xf32>
    %19 = vector.broadcast %5 : vector<1x128xf32> to vector<256x128xf32>
    %20 = arith.addf %18, %19 : vector<256x128xf32>
    %cst_14 = arith.constant 0.000000e+00 : f32
    %21 = vector.broadcast %cst_14 : f32 to vector<256x128xf32>
    %22 = arith.cmpf oge, %20, %21 : vector<256x128xf32>
    %cst_15 = arith.constant 0.00999999977 : f32
    %23 = vector.broadcast %cst_15 : f32 to vector<256x128xf32>
    %24 = arith.mulf %23, %20 : vector<256x128xf32>
    %25 = arith.select %22, %20, %24 : vector<256x128xi1>, vector<256x128xf32>
    %26 = arith.truncf %25 : vector<256x128xf32> to vector<256x128xbf16>
    %c0_16 = arith.constant 0 : index
    %c0_17 = arith.constant 0 : index
    %c0_18 = arith.constant 0 : index
    %27 = vector.load %arg5[%c0_16, %c0_17, %c0_18] : memref<4x128x128xbf16, #tpu.memory_space<vmem>>, vector<1x128x128xbf16>
    %28 = vector.shape_cast %27 : vector<1x128x128xbf16> to vector<128x128xbf16>
    %cst_19 = arith.constant dense<0.000000e+00> : vector<256x128xf32>
    %29 = tpu.matmul %26, %28, %cst_19 {dimension_numbers = #tpu.dot_dimension_numbers<[1], [0], [0], [1], [0, 0, 1, 1], [], []>} : vector<256x128xbf16>, vector<128x128xbf16>, vector<256x128xf32> -> vector<256x128xf32>
    %30 = arith.addf %9, %29 : vector<256x128xf32>
    %31 = vector.extract_strided_slice %2 {offsets = [0, 1], sizes = [256, 1], strides = [1, 1]} : vector<256x8xf32> to vector<256x1xf32>
    %32 = vector.broadcast %31 : vector<256x1xf32> to vector<256x128xf32>
    %33 = vector.broadcast %3 : vector<1x128xf32> to vector<256x128xf32>
    %34 = arith.mulf %32, %33 : vector<256x128xf32>
    %35 = vector.extract_strided_slice %2 {offsets = [0, 5], sizes = [256, 1], strides = [1, 1]} : vector<256x8xf32> to vector<256x1xf32>
    %36 = vector.broadcast %35 : vector<256x1xf32> to vector<256x128xf32>
    %37 = vector.broadcast %4 : vector<1x128xf32> to vector<256x128xf32>
    %38 = arith.mulf %36, %37 : vector<256x128xf32>
    %39 = arith.addf %34, %38 : vector<256x128xf32>
    %40 = vector.broadcast %5 : vector<1x128xf32> to vector<256x128xf32>
    %41 = arith.addf %39, %40 : vector<256x128xf32>
    %cst_20 = arith.constant 0.000000e+00 : f32
    %42 = vector.broadcast %cst_20 : f32 to vector<256x128xf32>
    %43 = arith.cmpf oge, %41, %42 : vector<256x128xf32>
    %cst_21 = arith.constant 0.00999999977 : f32
    %44 = vector.broadcast %cst_21 : f32 to vector<256x128xf32>
    %45 = arith.mulf %44, %41 : vector<256x128xf32>
    %46 = arith.select %43, %41, %45 : vector<256x128xi1>, vector<256x128xf32>
    %47 = arith.truncf %46 : vector<256x128xf32> to vector<256x128xbf16>
    %c1 = arith.constant 1 : index
    %c0_22 = arith.constant 0 : index
    %c0_23 = arith.constant 0 : index
    %48 = vector.load %arg5[%c1, %c0_22, %c0_23] : memref<4x128x128xbf16, #tpu.memory_space<vmem>>, vector<1x128x128xbf16>
    %49 = vector.shape_cast %48 : vector<1x128x128xbf16> to vector<128x128xbf16>
    %cst_24 = arith.constant dense<0.000000e+00> : vector<256x128xf32>
    %50 = tpu.matmul %47, %49, %cst_24 {dimension_numbers = #tpu.dot_dimension_numbers<[1], [0], [0], [1], [0, 0, 1, 1], [], []>} : vector<256x128xbf16>, vector<128x128xbf16>, vector<256x128xf32> -> vector<256x128xf32>
    %51 = arith.addf %30, %50 : vector<256x128xf32>
    %52 = vector.extract_strided_slice %2 {offsets = [0, 2], sizes = [256, 1], strides = [1, 1]} : vector<256x8xf32> to vector<256x1xf32>
    %53 = vector.broadcast %52 : vector<256x1xf32> to vector<256x128xf32>
    %54 = vector.broadcast %3 : vector<1x128xf32> to vector<256x128xf32>
    %55 = arith.mulf %53, %54 : vector<256x128xf32>
    %56 = vector.extract_strided_slice %2 {offsets = [0, 6], sizes = [256, 1], strides = [1, 1]} : vector<256x8xf32> to vector<256x1xf32>
    %57 = vector.broadcast %56 : vector<256x1xf32> to vector<256x128xf32>
    %58 = vector.broadcast %4 : vector<1x128xf32> to vector<256x128xf32>
    %59 = arith.mulf %57, %58 : vector<256x128xf32>
    %60 = arith.addf %55, %59 : vector<256x128xf32>
    %61 = vector.broadcast %5 : vector<1x128xf32> to vector<256x128xf32>
    %62 = arith.addf %60, %61 : vector<256x128xf32>
    %cst_25 = arith.constant 0.000000e+00 : f32
    %63 = vector.broadcast %cst_25 : f32 to vector<256x128xf32>
    %64 = arith.cmpf oge, %62, %63 : vector<256x128xf32>
    %cst_26 = arith.constant 0.00999999977 : f32
    %65 = vector.broadcast %cst_26 : f32 to vector<256x128xf32>
    %66 = arith.mulf %65, %62 : vector<256x128xf32>
    %67 = arith.select %64, %62, %66 : vector<256x128xi1>, vector<256x128xf32>
    %68 = arith.truncf %67 : vector<256x128xf32> to vector<256x128xbf16>
    %c2 = arith.constant 2 : index
    %c0_27 = arith.constant 0 : index
    %c0_28 = arith.constant 0 : index
    %69 = vector.load %arg5[%c2, %c0_27, %c0_28] : memref<4x128x128xbf16, #tpu.memory_space<vmem>>, vector<1x128x128xbf16>
    %70 = vector.shape_cast %69 : vector<1x128x128xbf16> to vector<128x128xbf16>
    %cst_29 = arith.constant dense<0.000000e+00> : vector<256x128xf32>
    %71 = tpu.matmul %68, %70, %cst_29 {dimension_numbers = #tpu.dot_dimension_numbers<[1], [0], [0], [1], [0, 0, 1, 1], [], []>} : vector<256x128xbf16>, vector<128x128xbf16>, vector<256x128xf32> -> vector<256x128xf32>
    %72 = arith.addf %51, %71 : vector<256x128xf32>
    %73 = vector.extract_strided_slice %2 {offsets = [0, 3], sizes = [256, 1], strides = [1, 1]} : vector<256x8xf32> to vector<256x1xf32>
    %74 = vector.broadcast %73 : vector<256x1xf32> to vector<256x128xf32>
    %75 = vector.broadcast %3 : vector<1x128xf32> to vector<256x128xf32>
    %76 = arith.mulf %74, %75 : vector<256x128xf32>
    %77 = vector.extract_strided_slice %2 {offsets = [0, 7], sizes = [256, 1], strides = [1, 1]} : vector<256x8xf32> to vector<256x1xf32>
    %78 = vector.broadcast %77 : vector<256x1xf32> to vector<256x128xf32>
    %79 = vector.broadcast %4 : vector<1x128xf32> to vector<256x128xf32>
    %80 = arith.mulf %78, %79 : vector<256x128xf32>
    %81 = arith.addf %76, %80 : vector<256x128xf32>
    %82 = vector.broadcast %5 : vector<1x128xf32> to vector<256x128xf32>
    %83 = arith.addf %81, %82 : vector<256x128xf32>
    %cst_30 = arith.constant 0.000000e+00 : f32
    %84 = vector.broadcast %cst_30 : f32 to vector<256x128xf32>
    %85 = arith.cmpf oge, %83, %84 : vector<256x128xf32>
    %cst_31 = arith.constant 0.00999999977 : f32
    %86 = vector.broadcast %cst_31 : f32 to vector<256x128xf32>
    %87 = arith.mulf %86, %83 : vector<256x128xf32>
    %88 = arith.select %85, %83, %87 : vector<256x128xi1>, vector<256x128xf32>
    %89 = arith.truncf %88 : vector<256x128xf32> to vector<256x128xbf16>
    %c3 = arith.constant 3 : index
    %c0_32 = arith.constant 0 : index
    %c0_33 = arith.constant 0 : index
    %90 = vector.load %arg5[%c3, %c0_32, %c0_33] : memref<4x128x128xbf16, #tpu.memory_space<vmem>>, vector<1x128x128xbf16>
    %91 = vector.shape_cast %90 : vector<1x128x128xbf16> to vector<128x128xbf16>
    %cst_34 = arith.constant dense<0.000000e+00> : vector<256x128xf32>
    %92 = tpu.matmul %89, %91, %cst_34 {dimension_numbers = #tpu.dot_dimension_numbers<[1], [0], [0], [1], [0, 0, 1, 1], [], []>} : vector<256x128xbf16>, vector<128x128xbf16>, vector<256x128xf32> -> vector<256x128xf32>
    %93 = arith.addf %72, %92 : vector<256x128xf32>
    %94 = vector.broadcast %6 : vector<1x128xf32> to vector<256x128xf32>
    %95 = arith.addf %93, %94 : vector<256x128xf32>
    %cst_35 = arith.constant 0.000000e+00 : f32
    %96 = vector.broadcast %cst_35 : f32 to vector<256x128xf32>
    %97 = arith.cmpf oge, %95, %96 : vector<256x128xf32>
    %cst_36 = arith.constant 0.00999999977 : f32
    %98 = vector.broadcast %cst_36 : f32 to vector<256x128xf32>
    %99 = arith.mulf %98, %95 : vector<256x128xf32>
    %100 = arith.select %97, %95, %99 : vector<256x128xi1>, vector<256x128xf32>
    %101 = arith.mulf %100, %100 : vector<256x128xf32>
    %102 = arith.truncf %101 : vector<256x128xf32> to vector<256x128xbf16>
    %cst_37 = arith.constant dense<0.000000e+00> : vector<256x128xf32>
    %103 = tpu.matmul %102, %7, %cst_37 {dimension_numbers = #tpu.dot_dimension_numbers<[1], [0], [0], [1], [0, 0, 1, 1], [], []>} : vector<256x128xbf16>, vector<128x128xbf16>, vector<256x128xf32> -> vector<256x128xf32>
    %104 = vector.broadcast %8 : vector<1x128xf32> to vector<256x128xf32>
    %105 = arith.addf %103, %104 : vector<256x128xf32>
    %106 = math.rsqrt %105 : vector<256x128xf32>
    %107 = arith.mulf %100, %106 : vector<256x128xf32>
    %c0_38 = arith.constant 0 : index
    %c0_39 = arith.constant 0 : index
    %108 = vector.load %arg9[%c0_38, %c0_39] : memref<256x128xf32, #tpu.memory_space<vmem>>, vector<256x128xf32>
    tpu.vector_store %arg9[%c0_38, %c0_39], %107 {strides = array<i32>} : memref<256x128xf32, #tpu.memory_space<vmem>>, vector<256x128xf32>,
    return
  }
  func.func @transform_0(%arg0: i32) -> (i32, i32) {
    %c0_i32 = arith.constant 0 : i32
    %c0_i32_0 = arith.constant 0 : i32
    return %arg0, %c0_i32 : i32, i32
  }
  func.func @transform_1(%arg0: i32) -> (i32, i32) {
    %c0_i32 = arith.constant 0 : i32
    %c0_i32_0 = arith.constant 0 : i32
    %c0_i32_1 = arith.constant 0 : i32
    return %c0_i32, %c0_i32_0 : i32, i32
  }
  func.func @transform_2(%arg0: i32) -> (i32, i32) {
    %c0_i32 = arith.constant 0 : i32
    %c0_i32_0 = arith.constant 0 : i32
    %c0_i32_1 = arith.constant 0 : i32
    return %c0_i32, %c0_i32_0 : i32, i32
  }
  func.func @transform_3(%arg0: i32) -> (i32, i32) {
    %c0_i32 = arith.constant 0 : i32
    %c0_i32_0 = arith.constant 0 : i32
    %c0_i32_1 = arith.constant 0 : i32
    return %c0_i32, %c0_i32_0 : i32, i32
  }
  func.func @transform_4(%arg0: i32) -> (i32, i32, i32) {
    %c0_i32 = arith.constant 0 : i32
    %c0_i32_0 = arith.constant 0 : i32
    %c0_i32_1 = arith.constant 0 : i32
    %c0_i32_2 = arith.constant 0 : i32
    return %c0_i32, %c0_i32_0, %c0_i32_1 : i32, i32, i32
  }
  func.func @transform_5(%arg0: i32) -> (i32, i32) {
    %c0_i32 = arith.constant 0 : i32
    %c0_i32_0 = arith.constant 0 : i32
    %c0_i32_1 = arith.constant 0 : i32
    return %c0_i32, %c0_i32_0 : i32, i32
  }
  func.func @transform_6(%arg0: i32) -> (i32, i32) {
    %c0_i32 = arith.constant 0 : i32
    %c0_i32_0 = arith.constant 0 : i32
    %c0_i32_1 = arith.constant 0 : i32
    return %c0_i32, %c0_i32_0 : i32, i32
  }
  func.func @transform_7(%arg0: i32) -> (i32, i32) {
    %c0_i32 = arith.constant 0 : i32
    %c0_i32_0 = arith.constant 0 : i32
    %c0_i32_1 = arith.constant 0 : i32
    return %c0_i32, %c0_i32_0 : i32, i32
  }
  func.func @transform_8(%arg0: i32) -> (i32, i32) {
    %c0_i32 = arith.constant 0 : i32
    %c0_i32_0 = arith.constant 0 : i32
    return %arg0, %c0_i32 : i32, i32
  }
}

module attributes {stable_mosaic.version = 11 : i64} {
  func.func @_down_quad_kernel(%arg0: i32, %arg1: memref<32x256xf32, #tpu.memory_space<vmem>>, %arg2: memref<256x128xbf16, #tpu.memory_space<vmem>>, %arg3: memref<256x128xbf16, #tpu.memory_space<vmem>>, %arg4: memref<1x128xf32, #tpu.memory_space<vmem>>, %arg5: memref<128x128xbf16, #tpu.memory_space<vmem>>, %arg6: memref<1x128xf32, #tpu.memory_space<vmem>>, %arg7: memref<16x128xf32, #tpu.memory_space<vmem>>) attributes {dimension_semantics = [#tpu.dimension_semantics<parallel>], iteration_bounds = array<i64: 1>, scalar_prefetch = 0 : i64, scratch_operands = 0 : i64, tpu.core_type = #tpu.core_type<tc>, window_params = [{transform_indices = @transform_0, window_bounds = array<i64: 32, 256>}, {pipeline_mode = #tpu.pipeline_mode<synchronous>, transform_indices = @transform_1, window_bounds = array<i64: 256, 128>}, {pipeline_mode = #tpu.pipeline_mode<synchronous>, transform_indices = @transform_2, window_bounds = array<i64: 256, 128>}, {pipeline_mode = #tpu.pipeline_mode<synchronous>, transform_indices = @transform_3, window_bounds = array<i64: 1, 128>}, {pipeline_mode = #tpu.pipeline_mode<synchronous>, transform_indices = @transform_4, window_bounds = array<i64: 128, 128>}, {pipeline_mode = #tpu.pipeline_mode<synchronous>, transform_indices = @transform_5, window_bounds = array<i64: 1, 128>}, {transform_indices = @transform_6, window_bounds = array<i64: 16, 128>}]} {
    %c0 = arith.constant 0 : index
    %c0_0 = arith.constant 0 : index
    %0 = vector.load %arg2[%c0, %c0_0] : memref<256x128xbf16, #tpu.memory_space<vmem>>, vector<256x128xbf16>
    %c0_1 = arith.constant 0 : index
    %c0_2 = arith.constant 0 : index
    %1 = vector.load %arg3[%c0_1, %c0_2] : memref<256x128xbf16, #tpu.memory_space<vmem>>, vector<256x128xbf16>
    %c0_3 = arith.constant 0 : index
    %c0_4 = arith.constant 0 : index
    %2 = vector.load %arg4[%c0_3, %c0_4] : memref<1x128xf32, #tpu.memory_space<vmem>>, vector<1x128xf32>
    %c0_5 = arith.constant 0 : index
    %c0_6 = arith.constant 0 : index
    %3 = vector.load %arg5[%c0_5, %c0_6] : memref<128x128xbf16, #tpu.memory_space<vmem>>, vector<128x128xbf16>
    %c0_7 = arith.constant 0 : index
    %c0_8 = arith.constant 0 : index
    %4 = vector.load %arg6[%c0_7, %c0_8] : memref<1x128xf32, #tpu.memory_space<vmem>>, vector<1x128xf32>
    %c0_9 = arith.constant 0 : index
    %c0_10 = arith.constant 0 : index
    %5 = vector.load %arg1[%c0_9, %c0_10] : memref<32x256xf32, #tpu.memory_space<vmem>>, vector<2x256xf32>
    %6 = arith.truncf %5 : vector<2x256xf32> to vector<2x256xbf16>
    %c2 = arith.constant 2 : index
    %c0_11 = arith.constant 0 : index
    %7 = vector.load %arg1[%c2, %c0_11] : memref<32x256xf32, #tpu.memory_space<vmem>>, vector<2x256xf32>
    %8 = arith.truncf %7 : vector<2x256xf32> to vector<2x256xbf16>
    %cst = arith.constant dense<0.000000e+00> : vector<2x128xf32>
    %9 = tpu.matmul %6, %0, %cst {dimension_numbers = #tpu.dot_dimension_numbers<[1], [0], [0], [1], [0, 0, 1, 1], [], []>} : vector<2x256xbf16>, vector<256x128xbf16>, vector<2x128xf32> -> vector<2x128xf32>
    %cst_12 = arith.constant dense<0.000000e+00> : vector<2x128xf32>
    %10 = tpu.matmul %8, %1, %cst_12 {dimension_numbers = #tpu.dot_dimension_numbers<[1], [0], [0], [1], [0, 0, 1, 1], [], []>} : vector<2x256xbf16>, vector<256x128xbf16>, vector<2x128xf32> -> vector<2x128xf32>
    %11 = arith.addf %9, %10 : vector<2x128xf32>
    %12 = vector.broadcast %2 : vector<1x128xf32> to vector<2x128xf32>
    %13 = arith.addf %11, %12 : vector<2x128xf32>
    %cst_13 = arith.constant 0.000000e+00 : f32
    %14 = vector.broadcast %cst_13 : f32 to vector<2x128xf32>
    %15 = arith.cmpf oge, %13, %14 : vector<2x128xf32>
    %cst_14 = arith.constant 0.00999999977 : f32
    %16 = vector.broadcast %cst_14 : f32 to vector<2x128xf32>
    %17 = arith.mulf %16, %13 : vector<2x128xf32>
    %18 = arith.select %15, %13, %17 : vector<2x128xi1>, vector<2x128xf32>
    %19 = arith.mulf %18, %18 : vector<2x128xf32>
    %20 = arith.truncf %19 : vector<2x128xf32> to vector<2x128xbf16>
    %cst_15 = arith.constant dense<0.000000e+00> : vector<2x128xf32>
    %21 = tpu.matmul %20, %3, %cst_15 {dimension_numbers = #tpu.dot_dimension_numbers<[1], [0], [0], [1], [0, 0, 1, 1], [], []>} : vector<2x128xbf16>, vector<128x128xbf16>, vector<2x128xf32> -> vector<2x128xf32>
    %22 = vector.broadcast %4 : vector<1x128xf32> to vector<2x128xf32>
    %23 = arith.addf %21, %22 : vector<2x128xf32>
    %24 = math.rsqrt %23 : vector<2x128xf32>
    %25 = arith.mulf %18, %24 : vector<2x128xf32>
    %c0_16 = arith.constant 0 : index
    %c0_17 = arith.constant 0 : index
    %26 = vector.load %arg7[%c0_16, %c0_17] : memref<16x128xf32, #tpu.memory_space<vmem>>, vector<2x128xf32>
    tpu.vector_store %arg7[%c0_16, %c0_17], %25 {strides = array<i32>} : memref<16x128xf32, #tpu.memory_space<vmem>>, vector<2x128xf32>,
    %c4 = arith.constant 4 : index
    %c0_18 = arith.constant 0 : index
    %27 = vector.load %arg1[%c4, %c0_18] : memref<32x256xf32, #tpu.memory_space<vmem>>, vector<2x256xf32>
    %28 = arith.truncf %27 : vector<2x256xf32> to vector<2x256xbf16>
    %c6 = arith.constant 6 : index
    %c0_19 = arith.constant 0 : index
    %29 = vector.load %arg1[%c6, %c0_19] : memref<32x256xf32, #tpu.memory_space<vmem>>, vector<2x256xf32>
    %30 = arith.truncf %29 : vector<2x256xf32> to vector<2x256xbf16>
    %cst_20 = arith.constant dense<0.000000e+00> : vector<2x128xf32>
    %31 = tpu.matmul %28, %0, %cst_20 {dimension_numbers = #tpu.dot_dimension_numbers<[1], [0], [0], [1], [0, 0, 1, 1], [], []>} : vector<2x256xbf16>, vector<256x128xbf16>, vector<2x128xf32> -> vector<2x128xf32>
    %cst_21 = arith.constant dense<0.000000e+00> : vector<2x128xf32>
    %32 = tpu.matmul %30, %1, %cst_21 {dimension_numbers = #tpu.dot_dimension_numbers<[1], [0], [0], [1], [0, 0, 1, 1], [], []>} : vector<2x256xbf16>, vector<256x128xbf16>, vector<2x128xf32> -> vector<2x128xf32>
    %33 = arith.addf %31, %32 : vector<2x128xf32>
    %34 = vector.broadcast %2 : vector<1x128xf32> to vector<2x128xf32>
    %35 = arith.addf %33, %34 : vector<2x128xf32>
    %cst_22 = arith.constant 0.000000e+00 : f32
    %36 = vector.broadcast %cst_22 : f32 to vector<2x128xf32>
    %37 = arith.cmpf oge, %35, %36 : vector<2x128xf32>
    %cst_23 = arith.constant 0.00999999977 : f32
    %38 = vector.broadcast %cst_23 : f32 to vector<2x128xf32>
    %39 = arith.mulf %38, %35 : vector<2x128xf32>
    %40 = arith.select %37, %35, %39 : vector<2x128xi1>, vector<2x128xf32>
    %41 = arith.mulf %40, %40 : vector<2x128xf32>
    %42 = arith.truncf %41 : vector<2x128xf32> to vector<2x128xbf16>
    %cst_24 = arith.constant dense<0.000000e+00> : vector<2x128xf32>
    %43 = tpu.matmul %42, %3, %cst_24 {dimension_numbers = #tpu.dot_dimension_numbers<[1], [0], [0], [1], [0, 0, 1, 1], [], []>} : vector<2x128xbf16>, vector<128x128xbf16>, vector<2x128xf32> -> vector<2x128xf32>
    %44 = vector.broadcast %4 : vector<1x128xf32> to vector<2x128xf32>
    %45 = arith.addf %43, %44 : vector<2x128xf32>
    %46 = math.rsqrt %45 : vector<2x128xf32>
    %47 = arith.mulf %40, %46 : vector<2x128xf32>
    %c2_25 = arith.constant 2 : index
    %c0_26 = arith.constant 0 : index
    %48 = vector.load %arg7[%c2_25, %c0_26] : memref<16x128xf32, #tpu.memory_space<vmem>>, vector<2x128xf32>
    tpu.vector_store %arg7[%c2_25, %c0_26], %47 {strides = array<i32>} : memref<16x128xf32, #tpu.memory_space<vmem>>, vector<2x128xf32>,
    %c8 = arith.constant 8 : index
    %c0_27 = arith.constant 0 : index
    %49 = vector.load %arg1[%c8, %c0_27] : memref<32x256xf32, #tpu.memory_space<vmem>>, vector<2x256xf32>
    %50 = arith.truncf %49 : vector<2x256xf32> to vector<2x256xbf16>
    %c10 = arith.constant 10 : index
    %c0_28 = arith.constant 0 : index
    %51 = vector.load %arg1[%c10, %c0_28] : memref<32x256xf32, #tpu.memory_space<vmem>>, vector<2x256xf32>
    %52 = arith.truncf %51 : vector<2x256xf32> to vector<2x256xbf16>
    %cst_29 = arith.constant dense<0.000000e+00> : vector<2x128xf32>
    %53 = tpu.matmul %50, %0, %cst_29 {dimension_numbers = #tpu.dot_dimension_numbers<[1], [0], [0], [1], [0, 0, 1, 1], [], []>} : vector<2x256xbf16>, vector<256x128xbf16>, vector<2x128xf32> -> vector<2x128xf32>
    %cst_30 = arith.constant dense<0.000000e+00> : vector<2x128xf32>
    %54 = tpu.matmul %52, %1, %cst_30 {dimension_numbers = #tpu.dot_dimension_numbers<[1], [0], [0], [1], [0, 0, 1, 1], [], []>} : vector<2x256xbf16>, vector<256x128xbf16>, vector<2x128xf32> -> vector<2x128xf32>
    %55 = arith.addf %53, %54 : vector<2x128xf32>
    %56 = vector.broadcast %2 : vector<1x128xf32> to vector<2x128xf32>
    %57 = arith.addf %55, %56 : vector<2x128xf32>
    %cst_31 = arith.constant 0.000000e+00 : f32
    %58 = vector.broadcast %cst_31 : f32 to vector<2x128xf32>
    %59 = arith.cmpf oge, %57, %58 : vector<2x128xf32>
    %cst_32 = arith.constant 0.00999999977 : f32
    %60 = vector.broadcast %cst_32 : f32 to vector<2x128xf32>
    %61 = arith.mulf %60, %57 : vector<2x128xf32>
    %62 = arith.select %59, %57, %61 : vector<2x128xi1>, vector<2x128xf32>
    %63 = arith.mulf %62, %62 : vector<2x128xf32>
    %64 = arith.truncf %63 : vector<2x128xf32> to vector<2x128xbf16>
    %cst_33 = arith.constant dense<0.000000e+00> : vector<2x128xf32>
    %65 = tpu.matmul %64, %3, %cst_33 {dimension_numbers = #tpu.dot_dimension_numbers<[1], [0], [0], [1], [0, 0, 1, 1], [], []>} : vector<2x128xbf16>, vector<128x128xbf16>, vector<2x128xf32> -> vector<2x128xf32>
    %66 = vector.broadcast %4 : vector<1x128xf32> to vector<2x128xf32>
    %67 = arith.addf %65, %66 : vector<2x128xf32>
    %68 = math.rsqrt %67 : vector<2x128xf32>
    %69 = arith.mulf %62, %68 : vector<2x128xf32>
    %c4_34 = arith.constant 4 : index
    %c0_35 = arith.constant 0 : index
    %70 = vector.load %arg7[%c4_34, %c0_35] : memref<16x128xf32, #tpu.memory_space<vmem>>, vector<2x128xf32>
    tpu.vector_store %arg7[%c4_34, %c0_35], %69 {strides = array<i32>} : memref<16x128xf32, #tpu.memory_space<vmem>>, vector<2x128xf32>,
    %c12 = arith.constant 12 : index
    %c0_36 = arith.constant 0 : index
    %71 = vector.load %arg1[%c12, %c0_36] : memref<32x256xf32, #tpu.memory_space<vmem>>, vector<2x256xf32>
    %72 = arith.truncf %71 : vector<2x256xf32> to vector<2x256xbf16>
    %c14 = arith.constant 14 : index
    %c0_37 = arith.constant 0 : index
    %73 = vector.load %arg1[%c14, %c0_37] : memref<32x256xf32, #tpu.memory_space<vmem>>, vector<2x256xf32>
    %74 = arith.truncf %73 : vector<2x256xf32> to vector<2x256xbf16>
    %cst_38 = arith.constant dense<0.000000e+00> : vector<2x128xf32>
    %75 = tpu.matmul %72, %0, %cst_38 {dimension_numbers = #tpu.dot_dimension_numbers<[1], [0], [0], [1], [0, 0, 1, 1], [], []>} : vector<2x256xbf16>, vector<256x128xbf16>, vector<2x128xf32> -> vector<2x128xf32>
    %cst_39 = arith.constant dense<0.000000e+00> : vector<2x128xf32>
    %76 = tpu.matmul %74, %1, %cst_39 {dimension_numbers = #tpu.dot_dimension_numbers<[1], [0], [0], [1], [0, 0, 1, 1], [], []>} : vector<2x256xbf16>, vector<256x128xbf16>, vector<2x128xf32> -> vector<2x128xf32>
    %77 = arith.addf %75, %76 : vector<2x128xf32>
    %78 = vector.broadcast %2 : vector<1x128xf32> to vector<2x128xf32>
    %79 = arith.addf %77, %78 : vector<2x128xf32>
    %cst_40 = arith.constant 0.000000e+00 : f32
    %80 = vector.broadcast %cst_40 : f32 to vector<2x128xf32>
    %81 = arith.cmpf oge, %79, %80 : vector<2x128xf32>
    %cst_41 = arith.constant 0.00999999977 : f32
    %82 = vector.broadcast %cst_41 : f32 to vector<2x128xf32>
    %83 = arith.mulf %82, %79 : vector<2x128xf32>
    %84 = arith.select %81, %79, %83 : vector<2x128xi1>, vector<2x128xf32>
    %85 = arith.mulf %84, %84 : vector<2x128xf32>
    %86 = arith.truncf %85 : vector<2x128xf32> to vector<2x128xbf16>
    %cst_42 = arith.constant dense<0.000000e+00> : vector<2x128xf32>
    %87 = tpu.matmul %86, %3, %cst_42 {dimension_numbers = #tpu.dot_dimension_numbers<[1], [0], [0], [1], [0, 0, 1, 1], [], []>} : vector<2x128xbf16>, vector<128x128xbf16>, vector<2x128xf32> -> vector<2x128xf32>
    %88 = vector.broadcast %4 : vector<1x128xf32> to vector<2x128xf32>
    %89 = arith.addf %87, %88 : vector<2x128xf32>
    %90 = math.rsqrt %89 : vector<2x128xf32>
    %91 = arith.mulf %84, %90 : vector<2x128xf32>
    %c6_43 = arith.constant 6 : index
    %c0_44 = arith.constant 0 : index
    %92 = vector.load %arg7[%c6_43, %c0_44] : memref<16x128xf32, #tpu.memory_space<vmem>>, vector<2x128xf32>
    tpu.vector_store %arg7[%c6_43, %c0_44], %91 {strides = array<i32>} : memref<16x128xf32, #tpu.memory_space<vmem>>, vector<2x128xf32>,
    %c16 = arith.constant 16 : index
    %c0_45 = arith.constant 0 : index
    %93 = vector.load %arg1[%c16, %c0_45] : memref<32x256xf32, #tpu.memory_space<vmem>>, vector<2x256xf32>
    %94 = arith.truncf %93 : vector<2x256xf32> to vector<2x256xbf16>
    %c18 = arith.constant 18 : index
    %c0_46 = arith.constant 0 : index
    %95 = vector.load %arg1[%c18, %c0_46] : memref<32x256xf32, #tpu.memory_space<vmem>>, vector<2x256xf32>
    %96 = arith.truncf %95 : vector<2x256xf32> to vector<2x256xbf16>
    %cst_47 = arith.constant dense<0.000000e+00> : vector<2x128xf32>
    %97 = tpu.matmul %94, %0, %cst_47 {dimension_numbers = #tpu.dot_dimension_numbers<[1], [0], [0], [1], [0, 0, 1, 1], [], []>} : vector<2x256xbf16>, vector<256x128xbf16>, vector<2x128xf32> -> vector<2x128xf32>
    %cst_48 = arith.constant dense<0.000000e+00> : vector<2x128xf32>
    %98 = tpu.matmul %96, %1, %cst_48 {dimension_numbers = #tpu.dot_dimension_numbers<[1], [0], [0], [1], [0, 0, 1, 1], [], []>} : vector<2x256xbf16>, vector<256x128xbf16>, vector<2x128xf32> -> vector<2x128xf32>
    %99 = arith.addf %97, %98 : vector<2x128xf32>
    %100 = vector.broadcast %2 : vector<1x128xf32> to vector<2x128xf32>
    %101 = arith.addf %99, %100 : vector<2x128xf32>
    %cst_49 = arith.constant 0.000000e+00 : f32
    %102 = vector.broadcast %cst_49 : f32 to vector<2x128xf32>
    %103 = arith.cmpf oge, %101, %102 : vector<2x128xf32>
    %cst_50 = arith.constant 0.00999999977 : f32
    %104 = vector.broadcast %cst_50 : f32 to vector<2x128xf32>
    %105 = arith.mulf %104, %101 : vector<2x128xf32>
    %106 = arith.select %103, %101, %105 : vector<2x128xi1>, vector<2x128xf32>
    %107 = arith.mulf %106, %106 : vector<2x128xf32>
    %108 = arith.truncf %107 : vector<2x128xf32> to vector<2x128xbf16>
    %cst_51 = arith.constant dense<0.000000e+00> : vector<2x128xf32>
    %109 = tpu.matmul %108, %3, %cst_51 {dimension_numbers = #tpu.dot_dimension_numbers<[1], [0], [0], [1], [0, 0, 1, 1], [], []>} : vector<2x128xbf16>, vector<128x128xbf16>, vector<2x128xf32> -> vector<2x128xf32>
    %110 = vector.broadcast %4 : vector<1x128xf32> to vector<2x128xf32>
    %111 = arith.addf %109, %110 : vector<2x128xf32>
    %112 = math.rsqrt %111 : vector<2x128xf32>
    %113 = arith.mulf %106, %112 : vector<2x128xf32>
    %c8_52 = arith.constant 8 : index
    %c0_53 = arith.constant 0 : index
    %114 = vector.load %arg7[%c8_52, %c0_53] : memref<16x128xf32, #tpu.memory_space<vmem>>, vector<2x128xf32>
    tpu.vector_store %arg7[%c8_52, %c0_53], %113 {strides = array<i32>} : memref<16x128xf32, #tpu.memory_space<vmem>>, vector<2x128xf32>,
    %c20 = arith.constant 20 : index
    %c0_54 = arith.constant 0 : index
    %115 = vector.load %arg1[%c20, %c0_54] : memref<32x256xf32, #tpu.memory_space<vmem>>, vector<2x256xf32>
    %116 = arith.truncf %115 : vector<2x256xf32> to vector<2x256xbf16>
    %c22 = arith.constant 22 : index
    %c0_55 = arith.constant 0 : index
    %117 = vector.load %arg1[%c22, %c0_55] : memref<32x256xf32, #tpu.memory_space<vmem>>, vector<2x256xf32>
    %118 = arith.truncf %117 : vector<2x256xf32> to vector<2x256xbf16>
    %cst_56 = arith.constant dense<0.000000e+00> : vector<2x128xf32>
    %119 = tpu.matmul %116, %0, %cst_56 {dimension_numbers = #tpu.dot_dimension_numbers<[1], [0], [0], [1], [0, 0, 1, 1], [], []>} : vector<2x256xbf16>, vector<256x128xbf16>, vector<2x128xf32> -> vector<2x128xf32>
    %cst_57 = arith.constant dense<0.000000e+00> : vector<2x128xf32>
    %120 = tpu.matmul %118, %1, %cst_57 {dimension_numbers = #tpu.dot_dimension_numbers<[1], [0], [0], [1], [0, 0, 1, 1], [], []>} : vector<2x256xbf16>, vector<256x128xbf16>, vector<2x128xf32> -> vector<2x128xf32>
    %121 = arith.addf %119, %120 : vector<2x128xf32>
    %122 = vector.broadcast %2 : vector<1x128xf32> to vector<2x128xf32>
    %123 = arith.addf %121, %122 : vector<2x128xf32>
    %cst_58 = arith.constant 0.000000e+00 : f32
    %124 = vector.broadcast %cst_58 : f32 to vector<2x128xf32>
    %125 = arith.cmpf oge, %123, %124 : vector<2x128xf32>
    %cst_59 = arith.constant 0.00999999977 : f32
    %126 = vector.broadcast %cst_59 : f32 to vector<2x128xf32>
    %127 = arith.mulf %126, %123 : vector<2x128xf32>
    %128 = arith.select %125, %123, %127 : vector<2x128xi1>, vector<2x128xf32>
    %129 = arith.mulf %128, %128 : vector<2x128xf32>
    %130 = arith.truncf %129 : vector<2x128xf32> to vector<2x128xbf16>
    %cst_60 = arith.constant dense<0.000000e+00> : vector<2x128xf32>
    %131 = tpu.matmul %130, %3, %cst_60 {dimension_numbers = #tpu.dot_dimension_numbers<[1], [0], [0], [1], [0, 0, 1, 1], [], []>} : vector<2x128xbf16>, vector<128x128xbf16>, vector<2x128xf32> -> vector<2x128xf32>
    %132 = vector.broadcast %4 : vector<1x128xf32> to vector<2x128xf32>
    %133 = arith.addf %131, %132 : vector<2x128xf32>
    %134 = math.rsqrt %133 : vector<2x128xf32>
    %135 = arith.mulf %128, %134 : vector<2x128xf32>
    %c10_61 = arith.constant 10 : index
    %c0_62 = arith.constant 0 : index
    %136 = vector.load %arg7[%c10_61, %c0_62] : memref<16x128xf32, #tpu.memory_space<vmem>>, vector<2x128xf32>
    tpu.vector_store %arg7[%c10_61, %c0_62], %135 {strides = array<i32>} : memref<16x128xf32, #tpu.memory_space<vmem>>, vector<2x128xf32>,
    %c24 = arith.constant 24 : index
    %c0_63 = arith.constant 0 : index
    %137 = vector.load %arg1[%c24, %c0_63] : memref<32x256xf32, #tpu.memory_space<vmem>>, vector<2x256xf32>
    %138 = arith.truncf %137 : vector<2x256xf32> to vector<2x256xbf16>
    %c26 = arith.constant 26 : index
    %c0_64 = arith.constant 0 : index
    %139 = vector.load %arg1[%c26, %c0_64] : memref<32x256xf32, #tpu.memory_space<vmem>>, vector<2x256xf32>
    %140 = arith.truncf %139 : vector<2x256xf32> to vector<2x256xbf16>
    %cst_65 = arith.constant dense<0.000000e+00> : vector<2x128xf32>
    %141 = tpu.matmul %138, %0, %cst_65 {dimension_numbers = #tpu.dot_dimension_numbers<[1], [0], [0], [1], [0, 0, 1, 1], [], []>} : vector<2x256xbf16>, vector<256x128xbf16>, vector<2x128xf32> -> vector<2x128xf32>
    %cst_66 = arith.constant dense<0.000000e+00> : vector<2x128xf32>
    %142 = tpu.matmul %140, %1, %cst_66 {dimension_numbers = #tpu.dot_dimension_numbers<[1], [0], [0], [1], [0, 0, 1, 1], [], []>} : vector<2x256xbf16>, vector<256x128xbf16>, vector<2x128xf32> -> vector<2x128xf32>
    %143 = arith.addf %141, %142 : vector<2x128xf32>
    %144 = vector.broadcast %2 : vector<1x128xf32> to vector<2x128xf32>
    %145 = arith.addf %143, %144 : vector<2x128xf32>
    %cst_67 = arith.constant 0.000000e+00 : f32
    %146 = vector.broadcast %cst_67 : f32 to vector<2x128xf32>
    %147 = arith.cmpf oge, %145, %146 : vector<2x128xf32>
    %cst_68 = arith.constant 0.00999999977 : f32
    %148 = vector.broadcast %cst_68 : f32 to vector<2x128xf32>
    %149 = arith.mulf %148, %145 : vector<2x128xf32>
    %150 = arith.select %147, %145, %149 : vector<2x128xi1>, vector<2x128xf32>
    %151 = arith.mulf %150, %150 : vector<2x128xf32>
    %152 = arith.truncf %151 : vector<2x128xf32> to vector<2x128xbf16>
    %cst_69 = arith.constant dense<0.000000e+00> : vector<2x128xf32>
    %153 = tpu.matmul %152, %3, %cst_69 {dimension_numbers = #tpu.dot_dimension_numbers<[1], [0], [0], [1], [0, 0, 1, 1], [], []>} : vector<2x128xbf16>, vector<128x128xbf16>, vector<2x128xf32> -> vector<2x128xf32>
    %154 = vector.broadcast %4 : vector<1x128xf32> to vector<2x128xf32>
    %155 = arith.addf %153, %154 : vector<2x128xf32>
    %156 = math.rsqrt %155 : vector<2x128xf32>
    %157 = arith.mulf %150, %156 : vector<2x128xf32>
    %c12_70 = arith.constant 12 : index
    %c0_71 = arith.constant 0 : index
    %158 = vector.load %arg7[%c12_70, %c0_71] : memref<16x128xf32, #tpu.memory_space<vmem>>, vector<2x128xf32>
    tpu.vector_store %arg7[%c12_70, %c0_71], %157 {strides = array<i32>} : memref<16x128xf32, #tpu.memory_space<vmem>>, vector<2x128xf32>,
    %c28 = arith.constant 28 : index
    %c0_72 = arith.constant 0 : index
    %159 = vector.load %arg1[%c28, %c0_72] : memref<32x256xf32, #tpu.memory_space<vmem>>, vector<2x256xf32>
    %160 = arith.truncf %159 : vector<2x256xf32> to vector<2x256xbf16>
    %c30 = arith.constant 30 : index
    %c0_73 = arith.constant 0 : index
    %161 = vector.load %arg1[%c30, %c0_73] : memref<32x256xf32, #tpu.memory_space<vmem>>, vector<2x256xf32>
    %162 = arith.truncf %161 : vector<2x256xf32> to vector<2x256xbf16>
    %cst_74 = arith.constant dense<0.000000e+00> : vector<2x128xf32>
    %163 = tpu.matmul %160, %0, %cst_74 {dimension_numbers = #tpu.dot_dimension_numbers<[1], [0], [0], [1], [0, 0, 1, 1], [], []>} : vector<2x256xbf16>, vector<256x128xbf16>, vector<2x128xf32> -> vector<2x128xf32>
    %cst_75 = arith.constant dense<0.000000e+00> : vector<2x128xf32>
    %164 = tpu.matmul %162, %1, %cst_75 {dimension_numbers = #tpu.dot_dimension_numbers<[1], [0], [0], [1], [0, 0, 1, 1], [], []>} : vector<2x256xbf16>, vector<256x128xbf16>, vector<2x128xf32> -> vector<2x128xf32>
    %165 = arith.addf %163, %164 : vector<2x128xf32>
    %166 = vector.broadcast %2 : vector<1x128xf32> to vector<2x128xf32>
    %167 = arith.addf %165, %166 : vector<2x128xf32>
    %cst_76 = arith.constant 0.000000e+00 : f32
    %168 = vector.broadcast %cst_76 : f32 to vector<2x128xf32>
    %169 = arith.cmpf oge, %167, %168 : vector<2x128xf32>
    %cst_77 = arith.constant 0.00999999977 : f32
    %170 = vector.broadcast %cst_77 : f32 to vector<2x128xf32>
    %171 = arith.mulf %170, %167 : vector<2x128xf32>
    %172 = arith.select %169, %167, %171 : vector<2x128xi1>, vector<2x128xf32>
    %173 = arith.mulf %172, %172 : vector<2x128xf32>
    %174 = arith.truncf %173 : vector<2x128xf32> to vector<2x128xbf16>
    %cst_78 = arith.constant dense<0.000000e+00> : vector<2x128xf32>
    %175 = tpu.matmul %174, %3, %cst_78 {dimension_numbers = #tpu.dot_dimension_numbers<[1], [0], [0], [1], [0, 0, 1, 1], [], []>} : vector<2x128xbf16>, vector<128x128xbf16>, vector<2x128xf32> -> vector<2x128xf32>
    %176 = vector.broadcast %4 : vector<1x128xf32> to vector<2x128xf32>
    %177 = arith.addf %175, %176 : vector<2x128xf32>
    %178 = math.rsqrt %177 : vector<2x128xf32>
    %179 = arith.mulf %172, %178 : vector<2x128xf32>
    %c14_79 = arith.constant 14 : index
    %c0_80 = arith.constant 0 : index
    %180 = vector.load %arg7[%c14_79, %c0_80] : memref<16x128xf32, #tpu.memory_space<vmem>>, vector<2x128xf32>
    tpu.vector_store %arg7[%c14_79, %c0_80], %179 {strides = array<i32>} : memref<16x128xf32, #tpu.memory_space<vmem>>, vector<2x128xf32>,
    return
  }
  func.func @transform_0(%arg0: i32) -> (i32, i32) {
    %c0_i32 = arith.constant 0 : i32
    %c0_i32_0 = arith.constant 0 : i32
    return %arg0, %c0_i32 : i32, i32
  }
  func.func @transform_1(%arg0: i32) -> (i32, i32) {
    %c0_i32 = arith.constant 0 : i32
    %c0_i32_0 = arith.constant 0 : i32
    %c0_i32_1 = arith.constant 0 : i32
    return %c0_i32, %c0_i32_0 : i32, i32
  }
  func.func @transform_2(%arg0: i32) -> (i32, i32) {
    %c0_i32 = arith.constant 0 : i32
    %c0_i32_0 = arith.constant 0 : i32
    %c0_i32_1 = arith.constant 0 : i32
    return %c0_i32, %c0_i32_0 : i32, i32
  }
  func.func @transform_3(%arg0: i32) -> (i32, i32) {
    %c0_i32 = arith.constant 0 : i32
    %c0_i32_0 = arith.constant 0 : i32
    %c0_i32_1 = arith.constant 0 : i32
    return %c0_i32, %c0_i32_0 : i32, i32
  }
  func.func @transform_4(%arg0: i32) -> (i32, i32) {
    %c0_i32 = arith.constant 0 : i32
    %c0_i32_0 = arith.constant 0 : i32
    %c0_i32_1 = arith.constant 0 : i32
    return %c0_i32, %c0_i32_0 : i32, i32
  }
  func.func @transform_5(%arg0: i32) -> (i32, i32) {
    %c0_i32 = arith.constant 0 : i32
    %c0_i32_0 = arith.constant 0 : i32
    %c0_i32_1 = arith.constant 0 : i32
    return %c0_i32, %c0_i32_0 : i32, i32
  }
  func.func @transform_6(%arg0: i32) -> (i32, i32) {
    %c0_i32 = arith.constant 0 : i32
    %c0_i32_0 = arith.constant 0 : i32
    return %arg0, %c0_i32 : i32, i32
  }
}

module attributes {stable_mosaic.version = 11 : i64} {
  func.func @_down_quad_kernel(%arg0: i32, %arg1: memref<8x256xf32, #tpu.memory_space<vmem>>, %arg2: memref<256x128xbf16, #tpu.memory_space<vmem>>, %arg3: memref<256x128xbf16, #tpu.memory_space<vmem>>, %arg4: memref<1x128xf32, #tpu.memory_space<vmem>>, %arg5: memref<128x128xbf16, #tpu.memory_space<vmem>>, %arg6: memref<1x128xf32, #tpu.memory_space<vmem>>, %arg7: memref<4x128xf32, #tpu.memory_space<vmem>>) attributes {dimension_semantics = [#tpu.dimension_semantics<parallel>], iteration_bounds = array<i64: 1>, scalar_prefetch = 0 : i64, scratch_operands = 0 : i64, tpu.core_type = #tpu.core_type<tc>, window_params = [{transform_indices = @transform_0, window_bounds = array<i64: 8, 256>}, {pipeline_mode = #tpu.pipeline_mode<synchronous>, transform_indices = @transform_1, window_bounds = array<i64: 256, 128>}, {pipeline_mode = #tpu.pipeline_mode<synchronous>, transform_indices = @transform_2, window_bounds = array<i64: 256, 128>}, {pipeline_mode = #tpu.pipeline_mode<synchronous>, transform_indices = @transform_3, window_bounds = array<i64: 1, 128>}, {pipeline_mode = #tpu.pipeline_mode<synchronous>, transform_indices = @transform_4, window_bounds = array<i64: 128, 128>}, {pipeline_mode = #tpu.pipeline_mode<synchronous>, transform_indices = @transform_5, window_bounds = array<i64: 1, 128>}, {transform_indices = @transform_6, window_bounds = array<i64: 4, 128>}]} {
    %c0 = arith.constant 0 : index
    %c0_0 = arith.constant 0 : index
    %0 = vector.load %arg2[%c0, %c0_0] : memref<256x128xbf16, #tpu.memory_space<vmem>>, vector<256x128xbf16>
    %c0_1 = arith.constant 0 : index
    %c0_2 = arith.constant 0 : index
    %1 = vector.load %arg3[%c0_1, %c0_2] : memref<256x128xbf16, #tpu.memory_space<vmem>>, vector<256x128xbf16>
    %c0_3 = arith.constant 0 : index
    %c0_4 = arith.constant 0 : index
    %2 = vector.load %arg4[%c0_3, %c0_4] : memref<1x128xf32, #tpu.memory_space<vmem>>, vector<1x128xf32>
    %c0_5 = arith.constant 0 : index
    %c0_6 = arith.constant 0 : index
    %3 = vector.load %arg5[%c0_5, %c0_6] : memref<128x128xbf16, #tpu.memory_space<vmem>>, vector<128x128xbf16>
    %c0_7 = arith.constant 0 : index
    %c0_8 = arith.constant 0 : index
    %4 = vector.load %arg6[%c0_7, %c0_8] : memref<1x128xf32, #tpu.memory_space<vmem>>, vector<1x128xf32>
    %c0_9 = arith.constant 0 : index
    %c0_10 = arith.constant 0 : index
    %5 = vector.load %arg1[%c0_9, %c0_10] : memref<8x256xf32, #tpu.memory_space<vmem>>, vector<1x256xf32>
    %6 = arith.truncf %5 : vector<1x256xf32> to vector<1x256xbf16>
    %c1 = arith.constant 1 : index
    %c0_11 = arith.constant 0 : index
    %7 = vector.load %arg1[%c1, %c0_11] : memref<8x256xf32, #tpu.memory_space<vmem>>, vector<1x256xf32>
    %8 = arith.truncf %7 : vector<1x256xf32> to vector<1x256xbf16>
    %cst = arith.constant dense<0.000000e+00> : vector<1x128xf32>
    %9 = tpu.matmul %6, %0, %cst {dimension_numbers = #tpu.dot_dimension_numbers<[1], [0], [0], [1], [0, 0, 1, 1], [], []>} : vector<1x256xbf16>, vector<256x128xbf16>, vector<1x128xf32> -> vector<1x128xf32>
    %cst_12 = arith.constant dense<0.000000e+00> : vector<1x128xf32>
    %10 = tpu.matmul %8, %1, %cst_12 {dimension_numbers = #tpu.dot_dimension_numbers<[1], [0], [0], [1], [0, 0, 1, 1], [], []>} : vector<1x256xbf16>, vector<256x128xbf16>, vector<1x128xf32> -> vector<1x128xf32>
    %11 = arith.addf %9, %10 : vector<1x128xf32>
    %12 = arith.addf %11, %2 : vector<1x128xf32>
    %cst_13 = arith.constant 0.000000e+00 : f32
    %13 = vector.broadcast %cst_13 : f32 to vector<1x128xf32>
    %14 = arith.cmpf oge, %12, %13 : vector<1x128xf32>
    %cst_14 = arith.constant 0.00999999977 : f32
    %15 = vector.broadcast %cst_14 : f32 to vector<1x128xf32>
    %16 = arith.mulf %15, %12 : vector<1x128xf32>
    %17 = arith.select %14, %12, %16 : vector<1x128xi1>, vector<1x128xf32>
    %18 = arith.mulf %17, %17 : vector<1x128xf32>
    %19 = arith.truncf %18 : vector<1x128xf32> to vector<1x128xbf16>
    %cst_15 = arith.constant dense<0.000000e+00> : vector<1x128xf32>
    %20 = tpu.matmul %19, %3, %cst_15 {dimension_numbers = #tpu.dot_dimension_numbers<[1], [0], [0], [1], [0, 0, 1, 1], [], []>} : vector<1x128xbf16>, vector<128x128xbf16>, vector<1x128xf32> -> vector<1x128xf32>
    %21 = arith.addf %20, %4 : vector<1x128xf32>
    %22 = math.rsqrt %21 : vector<1x128xf32>
    %23 = arith.mulf %17, %22 : vector<1x128xf32>
    %c0_16 = arith.constant 0 : index
    %c0_17 = arith.constant 0 : index
    %24 = vector.load %arg7[%c0_16, %c0_17] : memref<4x128xf32, #tpu.memory_space<vmem>>, vector<1x128xf32>
    tpu.vector_store %arg7[%c0_16, %c0_17], %23 {strides = array<i32>} : memref<4x128xf32, #tpu.memory_space<vmem>>, vector<1x128xf32>,
    %c2 = arith.constant 2 : index
    %c0_18 = arith.constant 0 : index
    %25 = vector.load %arg1[%c2, %c0_18] : memref<8x256xf32, #tpu.memory_space<vmem>>, vector<1x256xf32>
    %26 = arith.truncf %25 : vector<1x256xf32> to vector<1x256xbf16>
    %c3 = arith.constant 3 : index
    %c0_19 = arith.constant 0 : index
    %27 = vector.load %arg1[%c3, %c0_19] : memref<8x256xf32, #tpu.memory_space<vmem>>, vector<1x256xf32>
    %28 = arith.truncf %27 : vector<1x256xf32> to vector<1x256xbf16>
    %cst_20 = arith.constant dense<0.000000e+00> : vector<1x128xf32>
    %29 = tpu.matmul %26, %0, %cst_20 {dimension_numbers = #tpu.dot_dimension_numbers<[1], [0], [0], [1], [0, 0, 1, 1], [], []>} : vector<1x256xbf16>, vector<256x128xbf16>, vector<1x128xf32> -> vector<1x128xf32>
    %cst_21 = arith.constant dense<0.000000e+00> : vector<1x128xf32>
    %30 = tpu.matmul %28, %1, %cst_21 {dimension_numbers = #tpu.dot_dimension_numbers<[1], [0], [0], [1], [0, 0, 1, 1], [], []>} : vector<1x256xbf16>, vector<256x128xbf16>, vector<1x128xf32> -> vector<1x128xf32>
    %31 = arith.addf %29, %30 : vector<1x128xf32>
    %32 = arith.addf %31, %2 : vector<1x128xf32>
    %cst_22 = arith.constant 0.000000e+00 : f32
    %33 = vector.broadcast %cst_22 : f32 to vector<1x128xf32>
    %34 = arith.cmpf oge, %32, %33 : vector<1x128xf32>
    %cst_23 = arith.constant 0.00999999977 : f32
    %35 = vector.broadcast %cst_23 : f32 to vector<1x128xf32>
    %36 = arith.mulf %35, %32 : vector<1x128xf32>
    %37 = arith.select %34, %32, %36 : vector<1x128xi1>, vector<1x128xf32>
    %38 = arith.mulf %37, %37 : vector<1x128xf32>
    %39 = arith.truncf %38 : vector<1x128xf32> to vector<1x128xbf16>
    %cst_24 = arith.constant dense<0.000000e+00> : vector<1x128xf32>
    %40 = tpu.matmul %39, %3, %cst_24 {dimension_numbers = #tpu.dot_dimension_numbers<[1], [0], [0], [1], [0, 0, 1, 1], [], []>} : vector<1x128xbf16>, vector<128x128xbf16>, vector<1x128xf32> -> vector<1x128xf32>
    %41 = arith.addf %40, %4 : vector<1x128xf32>
    %42 = math.rsqrt %41 : vector<1x128xf32>
    %43 = arith.mulf %37, %42 : vector<1x128xf32>
    %c1_25 = arith.constant 1 : index
    %c0_26 = arith.constant 0 : index
    %44 = vector.load %arg7[%c1_25, %c0_26] : memref<4x128xf32, #tpu.memory_space<vmem>>, vector<1x128xf32>
    tpu.vector_store %arg7[%c1_25, %c0_26], %43 {strides = array<i32>} : memref<4x128xf32, #tpu.memory_space<vmem>>, vector<1x128xf32>,
    %c4 = arith.constant 4 : index
    %c0_27 = arith.constant 0 : index
    %45 = vector.load %arg1[%c4, %c0_27] : memref<8x256xf32, #tpu.memory_space<vmem>>, vector<1x256xf32>
    %46 = arith.truncf %45 : vector<1x256xf32> to vector<1x256xbf16>
    %c5 = arith.constant 5 : index
    %c0_28 = arith.constant 0 : index
    %47 = vector.load %arg1[%c5, %c0_28] : memref<8x256xf32, #tpu.memory_space<vmem>>, vector<1x256xf32>
    %48 = arith.truncf %47 : vector<1x256xf32> to vector<1x256xbf16>
    %cst_29 = arith.constant dense<0.000000e+00> : vector<1x128xf32>
    %49 = tpu.matmul %46, %0, %cst_29 {dimension_numbers = #tpu.dot_dimension_numbers<[1], [0], [0], [1], [0, 0, 1, 1], [], []>} : vector<1x256xbf16>, vector<256x128xbf16>, vector<1x128xf32> -> vector<1x128xf32>
    %cst_30 = arith.constant dense<0.000000e+00> : vector<1x128xf32>
    %50 = tpu.matmul %48, %1, %cst_30 {dimension_numbers = #tpu.dot_dimension_numbers<[1], [0], [0], [1], [0, 0, 1, 1], [], []>} : vector<1x256xbf16>, vector<256x128xbf16>, vector<1x128xf32> -> vector<1x128xf32>
    %51 = arith.addf %49, %50 : vector<1x128xf32>
    %52 = arith.addf %51, %2 : vector<1x128xf32>
    %cst_31 = arith.constant 0.000000e+00 : f32
    %53 = vector.broadcast %cst_31 : f32 to vector<1x128xf32>
    %54 = arith.cmpf oge, %52, %53 : vector<1x128xf32>
    %cst_32 = arith.constant 0.00999999977 : f32
    %55 = vector.broadcast %cst_32 : f32 to vector<1x128xf32>
    %56 = arith.mulf %55, %52 : vector<1x128xf32>
    %57 = arith.select %54, %52, %56 : vector<1x128xi1>, vector<1x128xf32>
    %58 = arith.mulf %57, %57 : vector<1x128xf32>
    %59 = arith.truncf %58 : vector<1x128xf32> to vector<1x128xbf16>
    %cst_33 = arith.constant dense<0.000000e+00> : vector<1x128xf32>
    %60 = tpu.matmul %59, %3, %cst_33 {dimension_numbers = #tpu.dot_dimension_numbers<[1], [0], [0], [1], [0, 0, 1, 1], [], []>} : vector<1x128xbf16>, vector<128x128xbf16>, vector<1x128xf32> -> vector<1x128xf32>
    %61 = arith.addf %60, %4 : vector<1x128xf32>
    %62 = math.rsqrt %61 : vector<1x128xf32>
    %63 = arith.mulf %57, %62 : vector<1x128xf32>
    %c2_34 = arith.constant 2 : index
    %c0_35 = arith.constant 0 : index
    %64 = vector.load %arg7[%c2_34, %c0_35] : memref<4x128xf32, #tpu.memory_space<vmem>>, vector<1x128xf32>
    tpu.vector_store %arg7[%c2_34, %c0_35], %63 {strides = array<i32>} : memref<4x128xf32, #tpu.memory_space<vmem>>, vector<1x128xf32>,
    %c6 = arith.constant 6 : index
    %c0_36 = arith.constant 0 : index
    %65 = vector.load %arg1[%c6, %c0_36] : memref<8x256xf32, #tpu.memory_space<vmem>>, vector<1x256xf32>
    %66 = arith.truncf %65 : vector<1x256xf32> to vector<1x256xbf16>
    %c7 = arith.constant 7 : index
    %c0_37 = arith.constant 0 : index
    %67 = vector.load %arg1[%c7, %c0_37] : memref<8x256xf32, #tpu.memory_space<vmem>>, vector<1x256xf32>
    %68 = arith.truncf %67 : vector<1x256xf32> to vector<1x256xbf16>
    %cst_38 = arith.constant dense<0.000000e+00> : vector<1x128xf32>
    %69 = tpu.matmul %66, %0, %cst_38 {dimension_numbers = #tpu.dot_dimension_numbers<[1], [0], [0], [1], [0, 0, 1, 1], [], []>} : vector<1x256xbf16>, vector<256x128xbf16>, vector<1x128xf32> -> vector<1x128xf32>
    %cst_39 = arith.constant dense<0.000000e+00> : vector<1x128xf32>
    %70 = tpu.matmul %68, %1, %cst_39 {dimension_numbers = #tpu.dot_dimension_numbers<[1], [0], [0], [1], [0, 0, 1, 1], [], []>} : vector<1x256xbf16>, vector<256x128xbf16>, vector<1x128xf32> -> vector<1x128xf32>
    %71 = arith.addf %69, %70 : vector<1x128xf32>
    %72 = arith.addf %71, %2 : vector<1x128xf32>
    %cst_40 = arith.constant 0.000000e+00 : f32
    %73 = vector.broadcast %cst_40 : f32 to vector<1x128xf32>
    %74 = arith.cmpf oge, %72, %73 : vector<1x128xf32>
    %cst_41 = arith.constant 0.00999999977 : f32
    %75 = vector.broadcast %cst_41 : f32 to vector<1x128xf32>
    %76 = arith.mulf %75, %72 : vector<1x128xf32>
    %77 = arith.select %74, %72, %76 : vector<1x128xi1>, vector<1x128xf32>
    %78 = arith.mulf %77, %77 : vector<1x128xf32>
    %79 = arith.truncf %78 : vector<1x128xf32> to vector<1x128xbf16>
    %cst_42 = arith.constant dense<0.000000e+00> : vector<1x128xf32>
    %80 = tpu.matmul %79, %3, %cst_42 {dimension_numbers = #tpu.dot_dimension_numbers<[1], [0], [0], [1], [0, 0, 1, 1], [], []>} : vector<1x128xbf16>, vector<128x128xbf16>, vector<1x128xf32> -> vector<1x128xf32>
    %81 = arith.addf %80, %4 : vector<1x128xf32>
    %82 = math.rsqrt %81 : vector<1x128xf32>
    %83 = arith.mulf %77, %82 : vector<1x128xf32>
    %c3_43 = arith.constant 3 : index
    %c0_44 = arith.constant 0 : index
    %84 = vector.load %arg7[%c3_43, %c0_44] : memref<4x128xf32, #tpu.memory_space<vmem>>, vector<1x128xf32>
    tpu.vector_store %arg7[%c3_43, %c0_44], %83 {strides = array<i32>} : memref<4x128xf32, #tpu.memory_space<vmem>>, vector<1x128xf32>,
    return
  }
  func.func @transform_0(%arg0: i32) -> (i32, i32) {
    %c0_i32 = arith.constant 0 : i32
    %c0_i32_0 = arith.constant 0 : i32
    return %arg0, %c0_i32 : i32, i32
  }
  func.func @transform_1(%arg0: i32) -> (i32, i32) {
    %c0_i32 = arith.constant 0 : i32
    %c0_i32_0 = arith.constant 0 : i32
    %c0_i32_1 = arith.constant 0 : i32
    return %c0_i32, %c0_i32_0 : i32, i32
  }
  func.func @transform_2(%arg0: i32) -> (i32, i32) {
    %c0_i32 = arith.constant 0 : i32
    %c0_i32_0 = arith.constant 0 : i32
    %c0_i32_1 = arith.constant 0 : i32
    return %c0_i32, %c0_i32_0 : i32, i32
  }
  func.func @transform_3(%arg0: i32) -> (i32, i32) {
    %c0_i32 = arith.constant 0 : i32
    %c0_i32_0 = arith.constant 0 : i32
    %c0_i32_1 = arith.constant 0 : i32
    return %c0_i32, %c0_i32_0 : i32, i32
  }
  func.func @transform_4(%arg0: i32) -> (i32, i32) {
    %c0_i32 = arith.constant 0 : i32
    %c0_i32_0 = arith.constant 0 : i32
    %c0_i32_1 = arith.constant 0 : i32
    return %c0_i32, %c0_i32_0 : i32, i32
  }
  func.func @transform_5(%arg0: i32) -> (i32, i32) {
    %c0_i32 = arith.constant 0 : i32
    %c0_i32_0 = arith.constant 0 : i32
    %c0_i32_1 = arith.constant 0 : i32
    return %c0_i32, %c0_i32_0 : i32, i32
  }
  func.func @transform_6(%arg0: i32) -> (i32, i32) {
    %c0_i32 = arith.constant 0 : i32
    %c0_i32_0 = arith.constant 0 : i32
    return %arg0, %c0_i32 : i32, i32
  }
}

module attributes {stable_mosaic.version = 11 : i64} {
  func.func @_down_patches_kernel(%arg0: i32, %arg1: memref<2x256xf32, #tpu.memory_space<vmem>>, %arg2: memref<256x64xbf16, #tpu.memory_space<vmem>>, %arg3: memref<1x64xf32, #tpu.memory_space<vmem>>, %arg4: memref<64x64xbf16, #tpu.memory_space<vmem>>, %arg5: memref<1x64xf32, #tpu.memory_space<vmem>>, %arg6: memref<2x64xf32, #tpu.memory_space<vmem>>) attributes {dimension_semantics = [#tpu.dimension_semantics<parallel>], iteration_bounds = array<i64: 1>, scalar_prefetch = 0 : i64, scratch_operands = 0 : i64, tpu.core_type = #tpu.core_type<tc>, window_params = [{transform_indices = @transform_0, window_bounds = array<i64: 2, 256>}, {pipeline_mode = #tpu.pipeline_mode<synchronous>, transform_indices = @transform_1, window_bounds = array<i64: 256, 64>}, {pipeline_mode = #tpu.pipeline_mode<synchronous>, transform_indices = @transform_2, window_bounds = array<i64: 1, 64>}, {pipeline_mode = #tpu.pipeline_mode<synchronous>, transform_indices = @transform_3, window_bounds = array<i64: 64, 64>}, {pipeline_mode = #tpu.pipeline_mode<synchronous>, transform_indices = @transform_4, window_bounds = array<i64: 1, 64>}, {transform_indices = @transform_5, window_bounds = array<i64: 2, 64>}]} {
    %c0 = arith.constant 0 : index
    %c0_0 = arith.constant 0 : index
    %0 = vector.load %arg1[%c0, %c0_0] : memref<2x256xf32, #tpu.memory_space<vmem>>, vector<2x256xf32>
    %1 = arith.truncf %0 : vector<2x256xf32> to vector<2x256xbf16>
    %c0_1 = arith.constant 0 : index
    %c0_2 = arith.constant 0 : index
    %2 = vector.load %arg2[%c0_1, %c0_2] : memref<256x64xbf16, #tpu.memory_space<vmem>>, vector<256x64xbf16>
    %cst = arith.constant dense<0.000000e+00> : vector<2x64xf32>
    %3 = tpu.matmul %1, %2, %cst {dimension_numbers = #tpu.dot_dimension_numbers<[1], [0], [0], [1], [0, 0, 1, 1], [], []>} : vector<2x256xbf16>, vector<256x64xbf16>, vector<2x64xf32> -> vector<2x64xf32>
    %c0_3 = arith.constant 0 : index
    %c0_4 = arith.constant 0 : index
    %4 = vector.load %arg3[%c0_3, %c0_4] : memref<1x64xf32, #tpu.memory_space<vmem>>, vector<1x64xf32>
    %5 = vector.broadcast %4 : vector<1x64xf32> to vector<2x64xf32>
    %6 = arith.addf %3, %5 : vector<2x64xf32>
    %cst_5 = arith.constant 0.000000e+00 : f32
    %7 = vector.broadcast %cst_5 : f32 to vector<2x64xf32>
    %8 = arith.cmpf oge, %6, %7 : vector<2x64xf32>
    %cst_6 = arith.constant 0.00999999977 : f32
    %9 = vector.broadcast %cst_6 : f32 to vector<2x64xf32>
    %10 = arith.mulf %9, %6 : vector<2x64xf32>
    %11 = arith.select %8, %6, %10 : vector<2x64xi1>, vector<2x64xf32>
    %12 = arith.mulf %11, %11 : vector<2x64xf32>
    %13 = arith.truncf %12 : vector<2x64xf32> to vector<2x64xbf16>
    %c0_7 = arith.constant 0 : index
    %c0_8 = arith.constant 0 : index
    %14 = vector.load %arg4[%c0_7, %c0_8] : memref<64x64xbf16, #tpu.memory_space<vmem>>, vector<64x64xbf16>
    %cst_9 = arith.constant dense<0.000000e+00> : vector<2x64xf32>
    %15 = tpu.matmul %13, %14, %cst_9 {dimension_numbers = #tpu.dot_dimension_numbers<[1], [0], [0], [1], [0, 0, 1, 1], [], []>} : vector<2x64xbf16>, vector<64x64xbf16>, vector<2x64xf32> -> vector<2x64xf32>
    %c0_10 = arith.constant 0 : index
    %c0_11 = arith.constant 0 : index
    %16 = vector.load %arg5[%c0_10, %c0_11] : memref<1x64xf32, #tpu.memory_space<vmem>>, vector<1x64xf32>
    %17 = vector.broadcast %16 : vector<1x64xf32> to vector<2x64xf32>
    %18 = arith.addf %15, %17 : vector<2x64xf32>
    %19 = math.rsqrt %18 : vector<2x64xf32>
    %20 = arith.mulf %11, %19 : vector<2x64xf32>
    %c0_12 = arith.constant 0 : index
    %c0_13 = arith.constant 0 : index
    %21 = vector.load %arg6[%c0_12, %c0_13] : memref<2x64xf32, #tpu.memory_space<vmem>>, vector<2x64xf32>
    tpu.vector_store %arg6[%c0_12, %c0_13], %20 {strides = array<i32>} : memref<2x64xf32, #tpu.memory_space<vmem>>, vector<2x64xf32>,
    return
  }
  func.func @transform_0(%arg0: i32) -> (i32, i32) {
    %c0_i32 = arith.constant 0 : i32
    %c0_i32_0 = arith.constant 0 : i32
    return %arg0, %c0_i32 : i32, i32
  }
  func.func @transform_1(%arg0: i32) -> (i32, i32) {
    %c0_i32 = arith.constant 0 : i32
    %c0_i32_0 = arith.constant 0 : i32
    %c0_i32_1 = arith.constant 0 : i32
    return %c0_i32, %c0_i32_0 : i32, i32
  }
  func.func @transform_2(%arg0: i32) -> (i32, i32) {
    %c0_i32 = arith.constant 0 : i32
    %c0_i32_0 = arith.constant 0 : i32
    %c0_i32_1 = arith.constant 0 : i32
    return %c0_i32, %c0_i32_0 : i32, i32
  }
  func.func @transform_3(%arg0: i32) -> (i32, i32) {
    %c0_i32 = arith.constant 0 : i32
    %c0_i32_0 = arith.constant 0 : i32
    %c0_i32_1 = arith.constant 0 : i32
    return %c0_i32, %c0_i32_0 : i32, i32
  }
  func.func @transform_4(%arg0: i32) -> (i32, i32) {
    %c0_i32 = arith.constant 0 : i32
    %c0_i32_0 = arith.constant 0 : i32
    %c0_i32_1 = arith.constant 0 : i32
    return %c0_i32, %c0_i32_0 : i32, i32
  }
  func.func @transform_5(%arg0: i32) -> (i32, i32) {
    %c0_i32 = arith.constant 0 : i32
    %c0_i32_0 = arith.constant 0 : i32
    return %arg0, %c0_i32 : i32, i32
  }
}

module attributes {stable_mosaic.version = 11 : i64} {
  func.func @_minmax_kernel(%arg0: i32, %arg1: memref<2x64xf32, #tpu.memory_space<vmem>>, %arg2: memref<2xf32, #tpu.memory_space<smem>>) attributes {dimension_semantics = [#tpu.dimension_semantics<arbitrary>], iteration_bounds = array<i64: 1>, scalar_prefetch = 0 : i64, scratch_operands = 0 : i64, tpu.core_type = #tpu.core_type<tc>, window_params = [{transform_indices = @transform_0, window_bounds = array<i64: 2, 64>}, {transform_indices = @transform_1, window_bounds = array<i64: 2>}]} {
    %c0 = arith.constant 0 : index
    %c0_0 = arith.constant 0 : index
    %0 = vector.load %arg1[%c0, %c0_0] : memref<2x64xf32, #tpu.memory_space<vmem>>, vector<2x64xf32>
    %1 = vector.shape_cast %0 : vector<2x64xf32> to vector<1x2x64xf32>
    %cst = arith.constant dense<0x7F800000> : vector<1xf32>
    %2 = vector.multi_reduction <minimumf>, %1, %cst [1, 2] : vector<1x2x64xf32> to vector<1xf32>
    %3 = vector.shape_cast %2 : vector<1xf32> to vector<1x1x1xf32>
    %4 = vector.extract %3[0, 0, 0] : f32 from vector<1x1x1xf32>
    %5 = vector.shape_cast %0 : vector<2x64xf32> to vector<1x2x64xf32>
    %cst_1 = arith.constant dense<0xFF800000> : vector<1xf32>
    %6 = vector.multi_reduction <maximumf>, %5, %cst_1 [1, 2] : vector<1x2x64xf32> to vector<1xf32>
    %7 = vector.shape_cast %6 : vector<1xf32> to vector<1x1x1xf32>
    %8 = vector.extract %7[0, 0, 0] : f32 from vector<1x1x1xf32>
    %c0_i32 = arith.constant 0 : i32
    %9 = arith.cmpi eq, %arg0, %c0_i32 : i32
    %10 = arith.extui %9 : i1 to i32
    %c0_i32_2 = arith.constant 0 : i32
    %11 = arith.cmpi ne, %10, %c0_i32_2 : i32
    scf.if %11 {
      %c0_5 = arith.constant 0 : index
      %15 = memref.load %arg2[%c0_5] : memref<2xf32, #tpu.memory_space<smem>>
      memref.store %4, %arg2[%c0_5] : memref<2xf32, #tpu.memory_space<smem>>
      %c1 = arith.constant 1 : index
      %16 = memref.load %arg2[%c1] : memref<2xf32, #tpu.memory_space<smem>>
      memref.store %8, %arg2[%c1] : memref<2xf32, #tpu.memory_space<smem>>
    } else {
    }
    %c0_i32_3 = arith.constant 0 : i32
    %12 = arith.cmpi ne, %arg0, %c0_i32_3 : i32
    %13 = arith.extui %12 : i1 to i32
    %c0_i32_4 = arith.constant 0 : i32
    %14 = arith.cmpi ne, %13, %c0_i32_4 : i32
    scf.if %14 {
      %c0_5 = arith.constant 0 : index
      %15 = memref.load %arg2[%c0_5] : memref<2xf32, #tpu.memory_space<smem>>
      %16 = arith.minimumf %15, %4 : f32
      %c0_6 = arith.constant 0 : index
      %17 = memref.load %arg2[%c0_6] : memref<2xf32, #tpu.memory_space<smem>>
      memref.store %16, %arg2[%c0_6] : memref<2xf32, #tpu.memory_space<smem>>
      %c1 = arith.constant 1 : index
      %18 = memref.load %arg2[%c1] : memref<2xf32, #tpu.memory_space<smem>>
      %19 = arith.maximumf %18, %8 : f32
      %c1_7 = arith.constant 1 : index
      %20 = memref.load %arg2[%c1_7] : memref<2xf32, #tpu.memory_space<smem>>
      memref.store %19, %arg2[%c1_7] : memref<2xf32, #tpu.memory_space<smem>>
    } else {
    }
    return
  }
  func.func @transform_0(%arg0: i32) -> (i32, i32) {
    %c0_i32 = arith.constant 0 : i32
    %c0_i32_0 = arith.constant 0 : i32
    return %arg0, %c0_i32 : i32, i32
  }
  func.func @transform_1(%arg0: i32) -> i32 {
    %c0_i32 = arith.constant 0 : i32
    %c0_i32_0 = arith.constant 0 : i32
    return %c0_i32 : i32
  }
}

module attributes {stable_mosaic.version = 11 : i64} {
  func.func @_scale_kernel(%arg0: i32, %arg1: memref<2x64xf32, #tpu.memory_space<vmem>>, %arg2: memref<2xf32, #tpu.memory_space<smem>>, %arg3: memref<2x64xf32, #tpu.memory_space<vmem>>) attributes {dimension_semantics = [#tpu.dimension_semantics<parallel>], iteration_bounds = array<i64: 1>, scalar_prefetch = 0 : i64, scratch_operands = 0 : i64, tpu.core_type = #tpu.core_type<tc>, window_params = [{transform_indices = @transform_0, window_bounds = array<i64: 2, 64>}, {transform_indices = @transform_1, window_bounds = array<i64: 2>}, {transform_indices = @transform_2, window_bounds = array<i64: 2, 64>}]} {
    %c0 = arith.constant 0 : index
    %0 = memref.load %arg2[%c0] : memref<2xf32, #tpu.memory_space<smem>>
    %c1 = arith.constant 1 : index
    %1 = memref.load %arg2[%c1] : memref<2xf32, #tpu.memory_space<smem>>
    %2 = arith.subf %1, %0 : f32
    %cst = arith.constant 1.000000e+00 : f32
    %3 = arith.divf %cst, %2 : f32
    %c0_0 = arith.constant 0 : index
    %c0_1 = arith.constant 0 : index
    %4 = vector.load %arg1[%c0_0, %c0_1] : memref<2x64xf32, #tpu.memory_space<vmem>>, vector<2x64xf32>
    %5 = vector.broadcast %0 : f32 to vector<2x64xf32>
    %6 = arith.subf %4, %5 : vector<2x64xf32>
    %7 = vector.broadcast %3 : f32 to vector<2x64xf32>
    %8 = arith.mulf %6, %7 : vector<2x64xf32>
    %c0_2 = arith.constant 0 : index
    %c0_3 = arith.constant 0 : index
    %9 = vector.load %arg3[%c0_2, %c0_3] : memref<2x64xf32, #tpu.memory_space<vmem>>, vector<2x64xf32>
    tpu.vector_store %arg3[%c0_2, %c0_3], %8 {strides = array<i32>} : memref<2x64xf32, #tpu.memory_space<vmem>>, vector<2x64xf32>,
    return
  }
  func.func @transform_0(%arg0: i32) -> (i32, i32) {
    %c0_i32 = arith.constant 0 : i32
    %c0_i32_0 = arith.constant 0 : i32
    return %arg0, %c0_i32 : i32, i32
  }
  func.func @transform_1(%arg0: i32) -> i32 {
    %c0_i32 = arith.constant 0 : i32
    %c0_i32_0 = arith.constant 0 : i32
    return %c0_i32 : i32
  }
  func.func @transform_2(%arg0: i32) -> (i32, i32) {
    %c0_i32 = arith.constant 0 : i32
    %c0_i32_0 = arith.constant 0 : i32
    return %arg0, %c0_i32 : i32, i32
  }
}

</mosaic_0001>

<llo_original>
// kernel: squeeze.1
$region0: #{squeeze.1}
  %s0 = inlined_call_operand.vmem [shape: f32[2,1,32,32], index: 0, kind: input, shape index: {}]
  %s1 = inlined_call_operand.vmem [shape: f32[2,16,2,8,2,2], index: 1, kind: output, shape index: {}]
  %v2 = vld [vmem:[%s0] sm:$0xff]
  %vm3 = vcmask 15360
  %4 = vst.msk [vmem:[%s1] ss:$16 sm:$0x3] %vm3, %v2
  %5 = vst.msk [vmem:[%s1] ss:$16 sm:$0xc] %vm3, %v2
  %6 = vst.msk [vmem:[%s1] ss:$16 sm:$0x30] %vm3, %v2
  %7 = vst.msk [vmem:[%s1] ss:$16 sm:$0xc0] %vm3, %v2
  %s8 = scalar_lea.vmem %s0, 8
  %v9 = vld [vmem:[%s8] sm:$0xff]
  %vm10 = vcmask 15360
  %s11 = scalar_lea.vmem %s1, 128
  %12 = vst.msk [vmem:[%s11] ss:$16 sm:$0x3] %vm10, %v9
  %s13 = scalar_lea.vmem %s1, 128
  %14 = vst.msk [vmem:[%s13] ss:$16 sm:$0xc] %vm10, %v9
  %s15 = scalar_lea.vmem %s1, 128
  %16 = vst.msk [vmem:[%s15] ss:$16 sm:$0x30] %vm10, %v9
  %s17 = scalar_lea.vmem %s1, 128
  %18 = vst.msk [vmem:[%s17] ss:$16 sm:$0xc0] %vm10, %v9
  %s19 = scalar_lea.vmem %s0, 16
  %v20 = vld [vmem:[%s19] sm:$0xff]
  %vm21 = vcmask 15360
  %s22 = scalar_lea.vmem %s1, 256
  %23 = vst.msk [vmem:[%s22] ss:$16 sm:$0x3] %vm21, %v20
  %s24 = scalar_lea.vmem %s1, 256
  %25 = vst.msk [vmem:[%s24] ss:$16 sm:$0xc] %vm21, %v20
  %s26 = scalar_lea.vmem %s1, 256
  %27 = vst.msk [vmem:[%s26] ss:$16 sm:$0x30] %vm21, %v20
  %s28 = scalar_lea.vmem %s1, 256
  %29 = vst.msk [vmem:[%s28] ss:$16 sm:$0xc0] %vm21, %v20
  %s30 = scalar_lea.vmem %s0, 24
  %v31 = vld [vmem:[%s30] sm:$0xff]
  %vm32 = vcmask 15360
  %s33 = scalar_lea.vmem %s1, 384
  %34 = vst.msk [vmem:[%s33] ss:$16 sm:$0x3] %vm32, %v31
  %s35 = scalar_lea.vmem %s1, 384
  %36 = vst.msk [vmem:[%s35] ss:$16 sm:$0xc] %vm32, %v31
  %s37 = scalar_lea.vmem %s1, 384
  %38 = vst.msk [vmem:[%s37] ss:$16 sm:$0x30] %vm32, %v31
  %s39 = scalar_lea.vmem %s1, 384
  %40 = vst.msk [vmem:[%s39] ss:$16 sm:$0xc0] %vm32, %v31
  %s41 = scalar_lea.vmem %s0, 32
  %v42 = vld [vmem:[%s41] sm:$0xff]
  %vm43 = vcmask 15360
  %s44 = scalar_lea.vmem %s1, 512
  %45 = vst.msk [vmem:[%s44] ss:$16 sm:$0x3] %vm43, %v42
  %s46 = scalar_lea.vmem %s1, 512
  %47 = vst.msk [vmem:[%s46] ss:$16 sm:$0xc] %vm43, %v42
  %s48 = scalar_lea.vmem %s1, 512
  %49 = vst.msk [vmem:[%s48] ss:$16 sm:$0x30] %vm43, %v42
  %s50 = scalar_lea.vmem %s1, 512
  %51 = vst.msk [vmem:[%s50] ss:$16 sm:$0xc0] %vm43, %v42
  %s52 = scalar_lea.vmem %s0, 40
  %v53 = vld [vmem:[%s52] sm:$0xff]
  %vm54 = vcmask 15360
  %s55 = scalar_lea.vmem %s1, 640
  %56 = vst.msk [vmem:[%s55] ss:$16 sm:$0x3] %vm54, %v53
  %s57 = scalar_lea.vmem %s1, 640
  %58 = vst.msk [vmem:[%s57] ss:$16 sm:$0xc] %vm54, %v53
  %s59 = scalar_lea.vmem %s1, 640
  %60 = vst.msk [vmem:[%s59] ss:$16 sm:$0x30] %vm54, %v53
  %s61 = scalar_lea.vmem %s1, 640
  %62 = vst.msk [vmem:[%s61] ss:$16 sm:$0xc0] %vm54, %v53
  %s63 = scalar_lea.vmem %s0, 48
  %v64 = vld [vmem:[%s63] sm:$0xff]
  %vm65 = vcmask 15360
  %s66 = scalar_lea.vmem %s1, 768
  %67 = vst.msk [vmem:[%s66] ss:$16 sm:$0x3] %vm65, %v64
  %s68 = scalar_lea.vmem %s1, 768
  %69 = vst.msk [vmem:[%s68] ss:$16 sm:$0xc] %vm65, %v64
  %s70 = scalar_lea.vmem %s1, 768
  %71 = vst.msk [vmem:[%s70] ss:$16 sm:$0x30] %vm65, %v64
  %s72 = scalar_lea.vmem %s1, 768
  %73 = vst.msk [vmem:[%s72] ss:$16 sm:$0xc0] %vm65, %v64
  %s74 = scalar_lea.vmem %s0, 56
  %v75 = vld [vmem:[%s74] sm:$0xff]
  %vm76 = vcmask 15360
  %s77 = scalar_lea.vmem %s1, 896
  %78 = vst.msk [vmem:[%s77] ss:$16 sm:$0x3] %vm76, %v75
  %s79 = scalar_lea.vmem %s1, 896
  %80 = vst.msk [vmem:[%s79] ss:$16 sm:$0xc] %vm76, %v75
  %s81 = scalar_lea.vmem %s1, 896
  %82 = vst.msk [vmem:[%s81] ss:$16 sm:$0x30] %vm76, %v75
  %s83 = scalar_lea.vmem %s1, 896
  %84 = vst.msk [vmem:[%s83] ss:$16 sm:$0xc0] %vm76, %v75
  %v85 = vld [vmem:[%s0] sm:$0xff]
  %86 = vrot.lane.b32.xlu0 %v85, 126
  %v87 = vpop.permute.xlu0 %86
  %vm88 = vcmask 15360
  %s89 = scalar_lea.vmem %s1, 1
  %90 = vst.msk [vmem:[%s89] ss:$16 sm:$0x3] %vm88, %v87
  %s91 = scalar_lea.vmem %s1, 1
  %92 = vst.msk [vmem:[%s91] ss:$16 sm:$0xc] %vm88, %v87
  %s93 = scalar_lea.vmem %s1, 1
  %94 = vst.msk [vmem:[%s93] ss:$16 sm:$0x30] %vm88, %v87
  %s95 = scalar_lea.vmem %s1, 1
  %96 = vst.msk [vmem:[%s95] ss:$16 sm:$0xc0] %vm88, %v87
  %s97 = scalar_lea.vmem %s0, 8
  %v98 = vld [vmem:[%s97] sm:$0xff]
  %99 = vrot.lane.b32.xlu0 %v98, 126
  %v100 = vpop.permute.xlu0 %99
  %vm101 = vcmask 15360
  %s102 = scalar_lea.vmem %s1, 129
  %103 = vst.msk [vmem:[%s102] ss:$16 sm:$0x3] %vm101, %v100
  %s104 = scalar_lea.vmem %s1, 129
  %105 = vst.msk [vmem:[%s104] ss:$16 sm:$0xc] %vm101, %v100
  %s106 = scalar_lea.vmem %s1, 129
  %107 = vst.msk [vmem:[%s106] ss:$16 sm:$0x30] %vm101, %v100
  %s108 = scalar_lea.vmem %s1, 129
  %109 = vst.msk [vmem:[%s108] ss:$16 sm:$0xc0] %vm101, %v100
  %s110 = scalar_lea.vmem %s0, 16
  %v111 = vld [vmem:[%s110] sm:$0xff]
  %112 = vrot.lane.b32.xlu0 %v111, 126
  %v113 = vpop.permute.xlu0 %112
  %vm114 = vcmask 15360
  %s115 = scalar_lea.vmem %s1, 257
  %116 = vst.msk [vmem:[%s115] ss:$16 sm:$0x3] %vm114, %v113
  %s117 = scalar_lea.vmem %s1, 257
  %118 = vst.msk [vmem:[%s117] ss:$16 sm:$0xc] %vm114, %v113
  %s119 = scalar_lea.vmem %s1, 257
  %120 = vst.msk [vmem:[%s119] ss:$16 sm:$0x30] %vm114, %v113
  %s121 = scalar_lea.vmem %s1, 257
  %122 = vst.msk [vmem:[%s121] ss:$16 sm:$0xc0] %vm114, %v113
  %s123 = scalar_lea.vmem %s0, 24
  %v124 = vld [vmem:[%s123] sm:$0xff]
  %125 = vrot.lane.b32.xlu0 %v124, 126
  %v126 = vpop.permute.xlu0 %125
  %vm127 = vcmask 15360
  %s128 = scalar_lea.vmem %s1, 385
  %129 = vst.msk [vmem:[%s128] ss:$16 sm:$0x3] %vm127, %v126
  %s130 = scalar_lea.vmem %s1, 385
  %131 = vst.msk [vmem:[%s130] ss:$16 sm:$0xc] %vm127, %v126
  %s132 = scalar_lea.vmem %s1, 385
  %133 = vst.msk [vmem:[%s132] ss:$16 sm:$0x30] %vm127, %v126
  %s134 = scalar_lea.vmem %s1, 385
  %135 = vst.msk [vmem:[%s134] ss:$16 sm:$0xc0] %vm127, %v126
  %s136 = scalar_lea.vmem %s0, 32
  %v137 = vld [vmem:[%s136] sm:$0xff]
  %138 = vrot.lane.b32.xlu0 %v137, 126
  %v139 = vpop.permute.xlu0 %138
  %vm140 = vcmask 15360
  %s141 = scalar_lea.vmem %s1, 513
  %142 = vst.msk [vmem:[%s141] ss:$16 sm:$0x3] %vm140, %v139
  %s143 = scalar_lea.vmem %s1, 513
  %144 = vst.msk [vmem:[%s143] ss:$16 sm:$0xc] %vm140, %v139
  %s145 = scalar_lea.vmem %s1, 513
  %146 = vst.msk [vmem:[%s145] ss:$16 sm:$0x30] %vm140, %v139
  %s147 = scalar_lea.vmem %s1, 513
  %148 = vst.msk [vmem:[%s147] ss:$16 sm:$0xc0] %vm140, %v139
  %s149 = scalar_lea.vmem %s0, 40
  %v150 = vld [vmem:[%s149] sm:$0xff]
  %151 = vrot.lane.b32.xlu0 %v150, 126
  %v152 = vpop.permute.xlu0 %151
  %vm153 = vcmask 15360
  %s154 = scalar_lea.vmem %s1, 641
  %155 = vst.msk [vmem:[%s154] ss:$16 sm:$0x3] %vm153, %v152
  %s156 = scalar_lea.vmem %s1, 641
  %157 = vst.msk [vmem:[%s156] ss:$16 sm:$0xc] %vm153, %v152
  %s158 = scalar_lea.vmem %s1, 641
  %159 = vst.msk [vmem:[%s158] ss:$16 sm:$0x30] %vm153, %v152
  %s160 = scalar_lea.vmem %s1, 641
  %161 = vst.msk [vmem:[%s160] ss:$16 sm:$0xc0] %vm153, %v152
  %s162 = scalar_lea.vmem %s0, 48
  %v163 = vld [vmem:[%s162] sm:$0xff]
  %164 = vrot.lane.b32.xlu0 %v163, 126
  %v165 = vpop.permute.xlu0 %164
  %vm166 = vcmask 15360
  %s167 = scalar_lea.vmem %s1, 769
  %168 = vst.msk [vmem:[%s167] ss:$16 sm:$0x3] %vm166, %v165
  %s169 = scalar_lea.vmem %s1, 769
  %170 = vst.msk [vmem:[%s169] ss:$16 sm:$0xc] %vm166, %v165
  %s171 = scalar_lea.vmem %s1, 769
  %172 = vst.msk [vmem:[%s171] ss:$16 sm:$0x30] %vm166, %v165
  %s173 = scalar_lea.vmem %s1, 769
  %174 = vst.msk [vmem:[%s173] ss:$16 sm:$0xc0] %vm166, %v165
  %s175 = scalar_lea.vmem %s0, 56
  %v176 = vld [vmem:[%s175] sm:$0xff]
  %177 = vrot.lane.b32.xlu0 %v176, 126
  %v178 = vpop.permute.xlu0 %177
  %vm179 = vcmask 15360
  %s180 = scalar_lea.vmem %s1, 897
  %181 = vst.msk [vmem:[%s180] ss:$16 sm:$0x3] %vm179, %v178
  %s182 = scalar_lea.vmem %s1, 897
  %183 = vst.msk [vmem:[%s182] ss:$16 sm:$0xc] %vm179, %v178
  %s184 = scalar_lea.vmem %s1, 897
  %185 = vst.msk [vmem:[%s184] ss:$16 sm:$0x30] %vm179, %v178
  %s186 = scalar_lea.vmem %s1, 897
  %187 = vst.msk [vmem:[%s186] ss:$16 sm:$0xc0] %vm179, %v178
  %v188 = vld [vmem:[%s0] sm:$0xff]
  %189 = vrot.lane.b32.xlu0 %v188, 124
  %v190 = vpop.permute.xlu0 %189
  %vm191 = vcmask 15360
  %s192 = scalar_lea.vmem %s1, 2
  %193 = vst.msk [vmem:[%s192] ss:$16 sm:$0x3] %vm191, %v190
  %s194 = scalar_lea.vmem %s1, 2
  %195 = vst.msk [vmem:[%s194] ss:$16 sm:$0xc] %vm191, %v190
  %s196 = scalar_lea.vmem %s1, 2
  %197 = vst.msk [vmem:[%s196] ss:$16 sm:$0x30] %vm191, %v190
  %s198 = scalar_lea.vmem %s1, 2
  %199 = vst.msk [vmem:[%s198] ss:$16 sm:$0xc0] %vm191, %v190
  %s200 = scalar_lea.vmem %s0, 8
  %v201 = vld [vmem:[%s200] sm:$0xff]
  %202 = vrot.lane.b32.xlu0 %v201, 124
  %v203 = vpop.permute.xlu0 %202
  %vm204 = vcmask 15360
  %s205 = scalar_lea.vmem %s1, 130
  %206 = vst.msk [vmem:[%s205] ss:$16 sm:$0x3] %vm204, %v203
  %s207 = scalar_lea.vmem %s1, 130
  %208 = vst.msk [vmem:[%s207] ss:$16 sm:$0xc] %vm204, %v203
  %s209 = scalar_lea.vmem %s1, 130
  %210 = vst.msk [vmem:[%s209] ss:$16 sm:$0x30] %vm204, %v203
  %s211 = scalar_lea.vmem %s1, 130
  %212 = vst.msk [vmem:[%s211] ss:$16 sm:$0xc0] %vm204, %v203
  %s213 = scalar_lea.vmem %s0, 16
  %v214 = vld [vmem:[%s213] sm:$0xff]
  %215 = vrot.lane.b32.xlu0 %v214, 124
  %v216 = vpop.permute.xlu0 %215
  %vm217 = vcmask 15360
  %s218 = scalar_lea.vmem %s1, 258
  %219 = vst.msk [vmem:[%s218] ss:$16 sm:$0x3] %vm217, %v216
  %s220 = scalar_lea.vmem %s1, 258
  %221 = vst.msk [vmem:[%s220] ss:$16 sm:$0xc] %vm217, %v216
  %s222 = scalar_lea.vmem %s1, 258
  %223 = vst.msk [vmem:[%s222] ss:$16 sm:$0x30] %vm217, %v216
  %s224 = scalar_lea.vmem %s1, 258
  %225 = vst.msk [vmem:[%s224] ss:$16 sm:$0xc0] %vm217, %v216
  %s226 = scalar_lea.vmem %s0, 24
  %v227 = vld [vmem:[%s226] sm:$0xff]
  %228 = vrot.lane.b32.xlu0 %v227, 124
  %v229 = vpop.permute.xlu0 %228
  %vm230 = vcmask 15360
  %s231 = scalar_lea.vmem %s1, 386
  %232 = vst.msk [vmem:[%s231] ss:$16 sm:$0x3] %vm230, %v229
  %s233 = scalar_lea.vmem %s1, 386
  %234 = vst.msk [vmem:[%s233] ss:$16 sm:$0xc] %vm230, %v229
  %s235 = scalar_lea.vmem %s1, 386
  %236 = vst.msk [vmem:[%s235] ss:$16 sm:$0x30] %vm230, %v229
  %s237 = scalar_lea.vmem %s1, 386
  %238 = vst.msk [vmem:[%s237] ss:$16 sm:$0xc0] %vm230, %v229
  %s239 = scalar_lea.vmem %s0, 32
  %v240 = vld [vmem:[%s239] sm:$0xff]
  %241 = vrot.lane.b32.xlu0 %v240, 124
  %v242 = vpop.permute.xlu0 %241
  %vm243 = vcmask 15360
  %s244 = scalar_lea.vmem %s1, 514
  %245 = vst.msk [vmem:[%s244] ss:$16 sm:$0x3] %vm243, %v242
  %s246 = scalar_lea.vmem %s1, 514
  %247 = vst.msk [vmem:[%s246] ss:$16 sm:$0xc] %vm243, %v242
  %s248 = scalar_lea.vmem %s1, 514
  %249 = vst.msk [vmem:[%s248] ss:$16 sm:$0x30] %vm243, %v242
  %s250 = scalar_lea.vmem %s1, 514
  %251 = vst.msk [vmem:[%s250] ss:$16 sm:$0xc0] %vm243, %v242
  %s252 = scalar_lea.vmem %s0, 40
  %v253 = vld [vmem:[%s252] sm:$0xff]
  %254 = vrot.lane.b32.xlu0 %v253, 124
  %v255 = vpop.permute.xlu0 %254
  %vm256 = vcmask 15360
  %s257 = scalar_lea.vmem %s1, 642
  %258 = vst.msk [vmem:[%s257] ss:$16 sm:$0x3] %vm256, %v255
  %s259 = scalar_lea.vmem %s1, 642
  %260 = vst.msk [vmem:[%s259] ss:$16 sm:$0xc] %vm256, %v255
  %s261 = scalar_lea.vmem %s1, 642
  %262 = vst.msk [vmem:[%s261] ss:$16 sm:$0x30] %vm256, %v255
  %s263 = scalar_lea.vmem %s1, 642
  %264 = vst.msk [vmem:[%s263] ss:$16 sm:$0xc0] %vm256, %v255
  %s265 = scalar_lea.vmem %s0, 48
  %v266 = vld [vmem:[%s265] sm:$0xff]
  %267 = vrot.lane.b32.xlu0 %v266, 124
  %v268 = vpop.permute.xlu0 %267
  %vm269 = vcmask 15360
  %s270 = scalar_lea.vmem %s1, 770
  %271 = vst.msk [vmem:[%s270] ss:$16 sm:$0x3] %vm269, %v268
  %s272 = scalar_lea.vmem %s1, 770
  %273 = vst.msk [vmem:[%s272] ss:$16 sm:$0xc] %vm269, %v268
  %s274 = scalar_lea.vmem %s1, 770
  %275 = vst.msk [vmem:[%s274] ss:$16 sm:$0x30] %vm269, %v268
  %s276 = scalar_lea.vmem %s1, 770
  %277 = vst.msk [vmem:[%s276] ss:$16 sm:$0xc0] %vm269, %v268
  %s278 = scalar_lea.vmem %s0, 56
  %v279 = vld [vmem:[%s278] sm:$0xff]
  %280 = vrot.lane.b32.xlu0 %v279, 124
  %v281 = vpop.permute.xlu0 %280
  %vm282 = vcmask 15360
  %s283 = scalar_lea.vmem %s1, 898
  %284 = vst.msk [vmem:[%s283] ss:$16 sm:$0x3] %vm282, %v281
  %s285 = scalar_lea.vmem %s1, 898
  %286 = vst.msk [vmem:[%s285] ss:$16 sm:$0xc] %vm282, %v281
  %s287 = scalar_lea.vmem %s1, 898
  %288 = vst.msk [vmem:[%s287] ss:$16 sm:$0x30] %vm282, %v281
  %s289 = scalar_lea.vmem %s1, 898
  %290 = vst.msk [vmem:[%s289] ss:$16 sm:$0xc0] %vm282, %v281
  %v291 = vld [vmem:[%s0] sm:$0xff]
  %292 = vrot.lane.b32.xlu0 %v291, 122
  %v293 = vpop.permute.xlu0 %292
  %vm294 = vcmask 15360
  %s295 = scalar_lea.vmem %s1, 3
  %296 = vst.msk [vmem:[%s295] ss:$16 sm:$0x3] %vm294, %v293
  %s297 = scalar_lea.vmem %s1, 3
  %298 = vst.msk [vmem:[%s297] ss:$16 sm:$0xc] %vm294, %v293
  %s299 = scalar_lea.vmem %s1, 3
  %300 = vst.msk [vmem:[%s299] ss:$16 sm:$0x30] %vm294, %v293
  %s301 = scalar_lea.vmem %s1, 3
  %302 = vst.msk [vmem:[%s301] ss:$16 sm:$0xc0] %vm294, %v293
  %s303 = scalar_lea.vmem %s0, 8
  %v304 = vld [vmem:[%s303] sm:$0xff]
  %305 = vrot.lane.b32.xlu0 %v304, 122
  %v306 = vpop.permute.xlu0 %305
  %vm307 = vcmask 15360
  %s308 = scalar_lea.vmem %s1, 131
  %309 = vst.msk [vmem:[%s308] ss:$16 sm:$0x3] %vm307, %v306
  %s310 = scalar_lea.vmem %s1, 131
  %311 = vst.msk [vmem:[%s310] ss:$16 sm:$0xc] %vm307, %v306
  %s312 = scalar_lea.vmem %s1, 131
  %313 = vst.msk [vmem:[%s312] ss:$16 sm:$0x30] %vm307, %v306
  %s314 = scalar_lea.vmem %s1, 131
  %315 = vst.msk [vmem:[%s314] ss:$16 sm:$0xc0] %vm307, %v306
  %s316 = scalar_lea.vmem %s0, 16
  %v317 = vld [vmem:[%s316] sm:$0xff]
  %318 = vrot.lane.b32.xlu0 %v317, 122
  %v319 = vpop.permute.xlu0 %318
  %vm320 = vcmask 15360
  %s321 = scalar_lea.vmem %s1, 259
  %322 = vst.msk [vmem:[%s321] ss:$16 sm:$0x3] %vm320, %v319
  %s323 = scalar_lea.vmem %s1, 259
  %324 = vst.msk [vmem:[%s323] ss:$16 sm:$0xc] %vm320, %v319
  %s325 = scalar_lea.vmem %s1, 259
  %326 = vst.msk [vmem:[%s325] ss:$16 sm:$0x30] %vm320, %v319
  %s327 = scalar_lea.vmem %s1, 259
  %328 = vst.msk [vmem:[%s327] ss:$16 sm:$0xc0] %vm320, %v319
  %s329 = scalar_lea.vmem %s0, 24
  %v330 = vld [vmem:[%s329] sm:$0xff]
  %331 = vrot.lane.b32.xlu0 %v330, 122
  %v332 = vpop.permute.xlu0 %331
  %vm333 = vcmask 15360
  %s334 = scalar_lea.vmem %s1, 387
  %335 = vst.msk [vmem:[%s334] ss:$16 sm:$0x3] %vm333, %v332
  %s336 = scalar_lea.vmem %s1, 387
  %337 = vst.msk [vmem:[%s336] ss:$16 sm:$0xc] %vm333, %v332
  %s338 = scalar_lea.vmem %s1, 387
  %339 = vst.msk [vmem:[%s338] ss:$16 sm:$0x30] %vm333, %v332
  %s340 = scalar_lea.vmem %s1, 387
  %341 = vst.msk [vmem:[%s340] ss:$16 sm:$0xc0] %vm333, %v332
  %s342 = scalar_lea.vmem %s0, 32
  %v343 = vld [vmem:[%s342] sm:$0xff]
  %344 = vrot.lane.b32.xlu0 %v343, 122
  %v345 = vpop.permute.xlu0 %344
  %vm346 = vcmask 15360
  %s347 = scalar_lea.vmem %s1, 515
  %348 = vst.msk [vmem:[%s347] ss:$16 sm:$0x3] %vm346, %v345
  %s349 = scalar_lea.vmem %s1, 515
  %350 = vst.msk [vmem:[%s349] ss:$16 sm:$0xc] %vm346, %v345
  %s351 = scalar_lea.vmem %s1, 515
  %352 = vst.msk [vmem:[%s351] ss:$16 sm:$0x30] %vm346, %v345
  %s353 = scalar_lea.vmem %s1, 515
  %354 = vst.msk [vmem:[%s353] ss:$16 sm:$0xc0] %vm346, %v345
  %s355 = scalar_lea.vmem %s0, 40
  %v356 = vld [vmem:[%s355] sm:$0xff]
  %357 = vrot.lane.b32.xlu0 %v356, 122
  %v358 = vpop.permute.xlu0 %357
  %vm359 = vcmask 15360
  %s360 = scalar_lea.vmem %s1, 643
  %361 = vst.msk [vmem:[%s360] ss:$16 sm:$0x3] %vm359, %v358
  %s362 = scalar_lea.vmem %s1, 643
  %363 = vst.msk [vmem:[%s362] ss:$16 sm:$0xc] %vm359, %v358
  %s364 = scalar_lea.vmem %s1, 643
  %365 = vst.msk [vmem:[%s364] ss:$16 sm:$0x30] %vm359, %v358
  %s366 = scalar_lea.vmem %s1, 643
  %367 = vst.msk [vmem:[%s366] ss:$16 sm:$0xc0] %vm359, %v358
  %s368 = scalar_lea.vmem %s0, 48
  %v369 = vld [vmem:[%s368] sm:$0xff]
  %370 = vrot.lane.b32.xlu0 %v369, 122
  %v371 = vpop.permute.xlu0 %370
  %vm372 = vcmask 15360
  %s373 = scalar_lea.vmem %s1, 771
  %374 = vst.msk [vmem:[%s373] ss:$16 sm:$0x3] %vm372, %v371
  %s375 = scalar_lea.vmem %s1, 771
  %376 = vst.msk [vmem:[%s375] ss:$16 sm:$0xc] %vm372, %v371
  %s377 = scalar_lea.vmem %s1, 771
  %378 = vst.msk [vmem:[%s377] ss:$16 sm:$0x30] %vm372, %v371
  %s379 = scalar_lea.vmem %s1, 771
  %380 = vst.msk [vmem:[%s379] ss:$16 sm:$0xc0] %vm372, %v371
  %s381 = scalar_lea.vmem %s0, 56
  %v382 = vld [vmem:[%s381] sm:$0xff]
  %383 = vrot.lane.b32.xlu0 %v382, 122
  %v384 = vpop.permute.xlu0 %383
  %vm385 = vcmask 15360
  %s386 = scalar_lea.vmem %s1, 899
  %387 = vst.msk [vmem:[%s386] ss:$16 sm:$0x3] %vm385, %v384
  %s388 = scalar_lea.vmem %s1, 899
  %389 = vst.msk [vmem:[%s388] ss:$16 sm:$0xc] %vm385, %v384
  %s390 = scalar_lea.vmem %s1, 899
  %391 = vst.msk [vmem:[%s390] ss:$16 sm:$0x30] %vm385, %v384
  %s392 = scalar_lea.vmem %s1, 899
  %393 = vst.msk [vmem:[%s392] ss:$16 sm:$0xc0] %vm385, %v384
  %v394 = vld [vmem:[%s0] sm:$0xff]
  %395 = vrot.lane.b32.xlu0 %v394, 120
  %v396 = vpop.permute.xlu0 %395
  %vm397 = vcmask 15360
  %s398 = scalar_lea.vmem %s1, 4
  %399 = vst.msk [vmem:[%s398] ss:$16 sm:$0x3] %vm397, %v396
  %s400 = scalar_lea.vmem %s1, 4
  %401 = vst.msk [vmem:[%s400] ss:$16 sm:$0xc] %vm397, %v396
  %s402 = scalar_lea.vmem %s1, 4
  %403 = vst.msk [vmem:[%s402] ss:$16 sm:$0x30] %vm397, %v396
  %s404 = scalar_lea.vmem %s1, 4
  %405 = vst.msk [vmem:[%s404] ss:$16 sm:$0xc0] %vm397, %v396
  %s406 = scalar_lea.vmem %s0, 8
  %v407 = vld [vmem:[%s406] sm:$0xff]
  %408 = vrot.lane.b32.xlu0 %v407, 120
  %v409 = vpop.permute.xlu0 %408
  %vm410 = vcmask 15360
  %s411 = scalar_lea.vmem %s1, 132
  %412 = vst.msk [vmem:[%s411] ss:$16 sm:$0x3] %vm410, %v409
  %s413 = scalar_lea.vmem %s1, 132
  %414 = vst.msk [vmem:[%s413] ss:$16 sm:$0xc] %vm410, %v409
  %s415 = scalar_lea.vmem %s1, 132
  %416 = vst.msk [vmem:[%s415] ss:$16 sm:$0x30] %vm410, %v409
  %s417 = scalar_lea.vmem %s1, 132
  %418 = vst.msk [vmem:[%s417] ss:$16 sm:$0xc0] %vm410, %v409
  %s419 = scalar_lea.vmem %s0, 16
  %v420 = vld [vmem:[%s419] sm:$0xff]
  %421 = vrot.lane.b32.xlu0 %v420, 120
  %v422 = vpop.permute.xlu0 %421
  %vm423 = vcmask 15360
  %s424 = scalar_lea.vmem %s1, 260
  %425 = vst.msk [vmem:[%s424] ss:$16 sm:$0x3] %vm423, %v422
  %s426 = scalar_lea.vmem %s1, 260
  %427 = vst.msk [vmem:[%s426] ss:$16 sm:$0xc] %vm423, %v422
  %s428 = scalar_lea.vmem %s1, 260
  %429 = vst.msk [vmem:[%s428] ss:$16 sm:$0x30] %vm423, %v422
  %s430 = scalar_lea.vmem %s1, 260
  %431 = vst.msk [vmem:[%s430] ss:$16 sm:$0xc0] %vm423, %v422
  %s432 = scalar_lea.vmem %s0, 24
  %v433 = vld [vmem:[%s432] sm:$0xff]
  %434 = vrot.lane.b32.xlu0 %v433, 120
  %v435 = vpop.permute.xlu0 %434
  %vm436 = vcmask 15360
  %s437 = scalar_lea.vmem %s1, 388
  %438 = vst.msk [vmem:[%s437] ss:$16 sm:$0x3] %vm436, %v435
  %s439 = scalar_lea.vmem %s1, 388
  %440 = vst.msk [vmem:[%s439] ss:$16 sm:$0xc] %vm436, %v435
  %s441 = scalar_lea.vmem %s1, 388
  %442 = vst.msk [vmem:[%s441] ss:$16 sm:$0x30] %vm436, %v435
  %s443 = scalar_lea.vmem %s1, 388
  %444 = vst.msk [vmem:[%s443] ss:$16 sm:$0xc0] %vm436, %v435
  %s445 = scalar_lea.vmem %s0, 32
  %v446 = vld [vmem:[%s445] sm:$0xff]
  %447 = vrot.lane.b32.xlu0 %v446, 120
  %v448 = vpop.permute.xlu0 %447
  %vm449 = vcmask 15360
  %s450 = scalar_lea.vmem %s1, 516
  %451 = vst.msk [vmem:[%s450] ss:$16 sm:$0x3] %vm449, %v448
  %s452 = scalar_lea.vmem %s1, 516
  %453 = vst.msk [vmem:[%s452] ss:$16 sm:$0xc] %vm449, %v448
  %s454 = scalar_lea.vmem %s1, 516
  %455 = vst.msk [vmem:[%s454] ss:$16 sm:$0x30] %vm449, %v448
  %s456 = scalar_lea.vmem %s1, 516
  %457 = vst.msk [vmem:[%s456] ss:$16 sm:$0xc0] %vm449, %v448
  %s458 = scalar_lea.vmem %s0, 40
  %v459 = vld [vmem:[%s458] sm:$0xff]
  %460 = vrot.lane.b32.xlu0 %v459, 120
  %v461 = vpop.permute.xlu0 %460
  %vm462 = vcmask 15360
  %s463 = scalar_lea.vmem %s1, 644
  %464 = vst.msk [vmem:[%s463] ss:$16 sm:$0x3] %vm462, %v461
  %s465 = scalar_lea.vmem %s1, 644
  %466 = vst.msk [vmem:[%s465] ss:$16 sm:$0xc] %vm462, %v461
  %s467 = scalar_lea.vmem %s1, 644
  %468 = vst.msk [vmem:[%s467] ss:$16 sm:$0x30] %vm462, %v461
  %s469 = scalar_lea.vmem %s1, 644
  %470 = vst.msk [vmem:[%s469] ss:$16 sm:$0xc0] %vm462, %v461
  %s471 = scalar_lea.vmem %s0, 48
  %v472 = vld [vmem:[%s471] sm:$0xff]
  %473 = vrot.lane.b32.xlu0 %v472, 120
  %v474 = vpop.permute.xlu0 %473
  %vm475 = vcmask 15360
  %s476 = scalar_lea.vmem %s1, 772
  %477 = vst.msk [vmem:[%s476] ss:$16 sm:$0x3] %vm475, %v474
  %s478 = scalar_lea.vmem %s1, 772
  %479 = vst.msk [vmem:[%s478] ss:$16 sm:$0xc] %vm475, %v474
  %s480 = scalar_lea.vmem %s1, 772
  %481 = vst.msk [vmem:[%s480] ss:$16 sm:$0x30] %vm475, %v474
  %s482 = scalar_lea.vmem %s1, 772
  %483 = vst.msk [vmem:[%s482] ss:$16 sm:$0xc0] %vm475, %v474
  %s484 = scalar_lea.vmem %s0, 56
  %v485 = vld [vmem:[%s484] sm:$0xff]
  %486 = vrot.lane.b32.xlu0 %v485, 120
  %v487 = vpop.permute.xlu0 %486
  %vm488 = vcmask 15360
  %s489 = scalar_lea.vmem %s1, 900
  %490 = vst.msk [vmem:[%s489] ss:$16 sm:$0x3] %vm488, %v487
  %s491 = scalar_lea.vmem %s1, 900
  %492 = vst.msk [vmem:[%s491] ss:$16 sm:$0xc] %vm488, %v487
  %s493 = scalar_lea.vmem %s1, 900
  %494 = vst.msk [vmem:[%s493] ss:$16 sm:$0x30] %vm488, %v487
  %s495 = scalar_lea.vmem %s1, 900
  %496 = vst.msk [vmem:[%s495] ss:$16 sm:$0xc0] %vm488, %v487
  %v497 = vld [vmem:[%s0] sm:$0xff]
  %498 = vrot.lane.b32.xlu0 %v497, 118
  %v499 = vpop.permute.xlu0 %498
  %vm500 = vcmask 15360
  %s501 = scalar_lea.vmem %s1, 5
  %502 = vst.msk [vmem:[%s501] ss:$16 sm:$0x3] %vm500, %v499
  %s503 = scalar_lea.vmem %s1, 5
  %504 = vst.msk [vmem:[%s503] ss:$16 sm:$0xc] %vm500, %v499
  %s505 = scalar_lea.vmem %s1, 5
  %506 = vst.msk [vmem:[%s505] ss:$16 sm:$0x30] %vm500, %v499
  %s507 = scalar_lea.vmem %s1, 5
  %508 = vst.msk [vmem:[%s507] ss:$16 sm:$0xc0] %vm500, %v499
  %s509 = scalar_lea.vmem %s0, 8
  %v510 = vld [vmem:[%s509] sm:$0xff]
  %511 = vrot.lane.b32.xlu0 %v510, 118
  %v512 = vpop.permute.xlu0 %511
  %vm513 = vcmask 15360
  %s514 = scalar_lea.vmem %s1, 133
  %515 = vst.msk [vmem:[%s514] ss:$16 sm:$0x3] %vm513, %v512
  %s516 = scalar_lea.vmem %s1, 133
  %517 = vst.msk [vmem:[%s516] ss:$16 sm:$0xc] %vm513, %v512
  %s518 = scalar_lea.vmem %s1, 133
  %519 = vst.msk [vmem:[%s518] ss:$16 sm:$0x30] %vm513, %v512
  %s520 = scalar_lea.vmem %s1, 133
  %521 = vst.msk [vmem:[%s520] ss:$16 sm:$0xc0] %vm513, %v512
  %s522 = scalar_lea.vmem %s0, 16
  %v523 = vld [vmem:[%s522] sm:$0xff]
  %524 = vrot.lane.b32.xlu0 %v523, 118
  %v525 = vpop.permute.xlu0 %524
  %vm526 = vcmask 15360
  %s527 = scalar_lea.vmem %s1, 261
  %528 = vst.msk [vmem:[%s527] ss:$16 sm:$0x3] %vm526, %v525
  %s529 = scalar_lea.vmem %s1, 261
  %530 = vst.msk [vmem:[%s529] ss:$16 sm:$0xc] %vm526, %v525
  %s531 = scalar_lea.vmem %s1, 261
  %532 = vst.msk [vmem:[%s531] ss:$16 sm:$0x30] %vm526, %v525
  %s533 = scalar_lea.vmem %s1, 261
  %534 = vst.msk [vmem:[%s533] ss:$16 sm:$0xc0] %vm526, %v525
  %s535 = scalar_lea.vmem %s0, 24
  %v536 = vld [vmem:[%s535] sm:$0xff]
  %537 = vrot.lane.b32.xlu0 %v536, 118
  %v538 = vpop.permute.xlu0 %537
  %vm539 = vcmask 15360
  %s540 = scalar_lea.vmem %s1, 389
  %541 = vst.msk [vmem:[%s540] ss:$16 sm:$0x3] %vm539, %v538
  %s542 = scalar_lea.vmem %s1, 389
  %543 = vst.msk [vmem:[%s542] ss:$16 sm:$0xc] %vm539, %v538
  %s544 = scalar_lea.vmem %s1, 389
  %545 = vst.msk [vmem:[%s544] ss:$16 sm:$0x30] %vm539, %v538
  %s546 = scalar_lea.vmem %s1, 389
  %547 = vst.msk [vmem:[%s546] ss:$16 sm:$0xc0] %vm539, %v538
  %s548 = scalar_lea.vmem %s0, 32
  %v549 = vld [vmem:[%s548] sm:$0xff]
  %550 = vrot.lane.b32.xlu0 %v549, 118
  %v551 = vpop.permute.xlu0 %550
  %vm552 = vcmask 15360
  %s553 = scalar_lea.vmem %s1, 517
  %554 = vst.msk [vmem:[%s553] ss:$16 sm:$0x3] %vm552, %v551
  %s555 = scalar_lea.vmem %s1, 517
  %556 = vst.msk [vmem:[%s555] ss:$16 sm:$0xc] %vm552, %v551
  %s557 = scalar_lea.vmem %s1, 517
  %558 = vst.msk [vmem:[%s557] ss:$16 sm:$0x30] %vm552, %v551
  %s559 = scalar_lea.vmem %s1, 517
  %560 = vst.msk [vmem:[%s559] ss:$16 sm:$0xc0] %vm552, %v551
  %s561 = scalar_lea.vmem %s0, 40
  %v562 = vld [vmem:[%s561] sm:$0xff]
  %563 = vrot.lane.b32.xlu0 %v562, 118
  %v564 = vpop.permute.xlu0 %563
  %vm565 = vcmask 15360
  %s566 = scalar_lea.vmem %s1, 645
  %567 = vst.msk [vmem:[%s566] ss:$16 sm:$0x3] %vm565, %v564
  %s568 = scalar_lea.vmem %s1, 645
  %569 = vst.msk [vmem:[%s568] ss:$16 sm:$0xc] %vm565, %v564
  %s570 = scalar_lea.vmem %s1, 645
  %571 = vst.msk [vmem:[%s570] ss:$16 sm:$0x30] %vm565, %v564
  %s572 = scalar_lea.vmem %s1, 645
  %573 = vst.msk [vmem:[%s572] ss:$16 sm:$0xc0] %vm565, %v564
  %s574 = scalar_lea.vmem %s0, 48
  %v575 = vld [vmem:[%s574] sm:$0xff]
  %576 = vrot.lane.b32.xlu0 %v575, 118
  %v577 = vpop.permute.xlu0 %576
  %vm578 = vcmask 15360
  %s579 = scalar_lea.vmem %s1, 773
  %580 = vst.msk [vmem:[%s579] ss:$16 sm:$0x3] %vm578, %v577
  %s581 = scalar_lea.vmem %s1, 773
  %582 = vst.msk [vmem:[%s581] ss:$16 sm:$0xc] %vm578, %v577
  %s583 = scalar_lea.vmem %s1, 773
  %584 = vst.msk [vmem:[%s583] ss:$16 sm:$0x30] %vm578, %v577
  %s585 = scalar_lea.vmem %s1, 773
  %586 = vst.msk [vmem:[%s585] ss:$16 sm:$0xc0] %vm578, %v577
  %s587 = scalar_lea.vmem %s0, 56
  %v588 = vld [vmem:[%s587] sm:$0xff]
  %589 = vrot.lane.b32.xlu0 %v588, 118
  %v590 = vpop.permute.xlu0 %589
  %vm591 = vcmask 15360
  %s592 = scalar_lea.vmem %s1, 901
  %593 = vst.msk [vmem:[%s592] ss:$16 sm:$0x3] %vm591, %v590
  %s594 = scalar_lea.vmem %s1, 901
  %595 = vst.msk [vmem:[%s594] ss:$16 sm:$0xc] %vm591, %v590
  %s596 = scalar_lea.vmem %s1, 901
  %597 = vst.msk [vmem:[%s596] ss:$16 sm:$0x30] %vm591, %v590
  %s598 = scalar_lea.vmem %s1, 901
  %599 = vst.msk [vmem:[%s598] ss:$16 sm:$0xc0] %vm591, %v590
  %v600 = vld [vmem:[%s0] sm:$0xff]
  %601 = vrot.lane.b32.xlu0 %v600, 116
  %v602 = vpop.permute.xlu0 %601
  %vm603 = vcmask 15360
  %s604 = scalar_lea.vmem %s1, 6
  %605 = vst.msk [vmem:[%s604] ss:$16 sm:$0x3] %vm603, %v602
  %s606 = scalar_lea.vmem %s1, 6
  %607 = vst.msk [vmem:[%s606] ss:$16 sm:$0xc] %vm603, %v602
  %s608 = scalar_lea.vmem %s1, 6
  %609 = vst.msk [vmem:[%s608] ss:$16 sm:$0x30] %vm603, %v602
  %s610 = scalar_lea.vmem %s1, 6
  %611 = vst.msk [vmem:[%s610] ss:$16 sm:$0xc0] %vm603, %v602
  %s612 = scalar_lea.vmem %s0, 8
  %v613 = vld [vmem:[%s612] sm:$0xff]
  %614 = vrot.lane.b32.xlu0 %v613, 116
  %v615 = vpop.permute.xlu0 %614
  %vm616 = vcmask 15360
  %s617 = scalar_lea.vmem %s1, 134
  %618 = vst.msk [vmem:[%s617] ss:$16 sm:$0x3] %vm616, %v615
  %s619 = scalar_lea.vmem %s1, 134
  %620 = vst.msk [vmem:[%s619] ss:$16 sm:$0xc] %vm616, %v615
  %s621 = scalar_lea.vmem %s1, 134
  %622 = vst.msk [vmem:[%s621] ss:$16 sm:$0x30] %vm616, %v615
  %s623 = scalar_lea.vmem %s1, 134
  %624 = vst.msk [vmem:[%s623] ss:$16 sm:$0xc0] %vm616, %v615
  %s625 = scalar_lea.vmem %s0, 16
  %v626 = vld [vmem:[%s625] sm:$0xff]
  %627 = vrot.lane.b32.xlu0 %v626, 116
  %v628 = vpop.permute.xlu0 %627
  %vm629 = vcmask 15360
  %s630 = scalar_lea.vmem %s1, 262
  %631 = vst.msk [vmem:[%s630] ss:$16 sm:$0x3] %vm629, %v628
  %s632 = scalar_lea.vmem %s1, 262
  %633 = vst.msk [vmem:[%s632] ss:$16 sm:$0xc] %vm629, %v628
  %s634 = scalar_lea.vmem %s1, 262
  %635 = vst.msk [vmem:[%s634] ss:$16 sm:$0x30] %vm629, %v628
  %s636 = scalar_lea.vmem %s1, 262
  %637 = vst.msk [vmem:[%s636] ss:$16 sm:$0xc0] %vm629, %v628
  %s638 = scalar_lea.vmem %s0, 24
  %v639 = vld [vmem:[%s638] sm:$0xff]
  %640 = vrot.lane.b32.xlu0 %v639, 116
  %v641 = vpop.permute.xlu0 %640
  %vm642 = vcmask 15360
  %s643 = scalar_lea.vmem %s1, 390
  %644 = vst.msk [vmem:[%s643] ss:$16 sm:$0x3] %vm642, %v641
  %s645 = scalar_lea.vmem %s1, 390
  %646 = vst.msk [vmem:[%s645] ss:$16 sm:$0xc] %vm642, %v641
  %s647 = scalar_lea.vmem %s1, 390
  %648 = vst.msk [vmem:[%s647] ss:$16 sm:$0x30] %vm642, %v641
  %s649 = scalar_lea.vmem %s1, 390
  %650 = vst.msk [vmem:[%s649] ss:$16 sm:$0xc0] %vm642, %v641
  %s651 = scalar_lea.vmem %s0, 32
  %v652 = vld [vmem:[%s651] sm:$0xff]
  %653 = vrot.lane.b32.xlu0 %v652, 116
  %v654 = vpop.permute.xlu0 %653
  %vm655 = vcmask 15360
  %s656 = scalar_lea.vmem %s1, 518
  %657 = vst.msk [vmem:[%s656] ss:$16 sm:$0x3] %vm655, %v654
  %s658 = scalar_lea.vmem %s1, 518
  %659 = vst.msk [vmem:[%s658] ss:$16 sm:$0xc] %vm655, %v654
  %s660 = scalar_lea.vmem %s1, 518
  %661 = vst.msk [vmem:[%s660] ss:$16 sm:$0x30] %vm655, %v654
  %s662 = scalar_lea.vmem %s1, 518
  %663 = vst.msk [vmem:[%s662] ss:$16 sm:$0xc0] %vm655, %v654
  %s664 = scalar_lea.vmem %s0, 40
  %v665 = vld [vmem:[%s664] sm:$0xff]
  %666 = vrot.lane.b32.xlu0 %v665, 116
  %v667 = vpop.permute.xlu0 %666
  %vm668 = vcmask 15360
  %s669 = scalar_lea.vmem %s1, 646
  %670 = vst.msk [vmem:[%s669] ss:$16 sm:$0x3] %vm668, %v667
  %s671 = scalar_lea.vmem %s1, 646
  %672 = vst.msk [vmem:[%s671] ss:$16 sm:$0xc] %vm668, %v667
  %s673 = scalar_lea.vmem %s1, 646
  %674 = vst.msk [vmem:[%s673] ss:$16 sm:$0x30] %vm668, %v667
  %s675 = scalar_lea.vmem %s1, 646
  %676 = vst.msk [vmem:[%s675] ss:$16 sm:$0xc0] %vm668, %v667
  %s677 = scalar_lea.vmem %s0, 48
  %v678 = vld [vmem:[%s677] sm:$0xff]
  %679 = vrot.lane.b32.xlu0 %v678, 116
  %v680 = vpop.permute.xlu0 %679
  %vm681 = vcmask 15360
  %s682 = scalar_lea.vmem %s1, 774
  %683 = vst.msk [vmem:[%s682] ss:$16 sm:$0x3] %vm681, %v680
  %s684 = scalar_lea.vmem %s1, 774
  %685 = vst.msk [vmem:[%s684] ss:$16 sm:$0xc] %vm681, %v680
  %s686 = scalar_lea.vmem %s1, 774
  %687 = vst.msk [vmem:[%s686] ss:$16 sm:$0x30] %vm681, %v680
  %s688 = scalar_lea.vmem %s1, 774
  %689 = vst.msk [vmem:[%s688] ss:$16 sm:$0xc0] %vm681, %v680
  %s690 = scalar_lea.vmem %s0, 56
  %v691 = vld [vmem:[%s690] sm:$0xff]
  %692 = vrot.lane.b32.xlu0 %v691, 116
  %v693 = vpop.permute.xlu0 %692
  %vm694 = vcmask 15360
  %s695 = scalar_lea.vmem %s1, 902
  %696 = vst.msk [vmem:[%s695] ss:$16 sm:$0x3] %vm694, %v693
  %s697 = scalar_lea.vmem %s1, 902
  %698 = vst.msk [vmem:[%s697] ss:$16 sm:$0xc] %vm694, %v693
  %s699 = scalar_lea.vmem %s1, 902
  %700 = vst.msk [vmem:[%s699] ss:$16 sm:$0x30] %vm694, %v693
  %s701 = scalar_lea.vmem %s1, 902
  %702 = vst.msk [vmem:[%s701] ss:$16 sm:$0xc0] %vm694, %v693
  %v703 = vld [vmem:[%s0] sm:$0xff]
  %704 = vrot.lane.b32.xlu0 %v703, 114
  %v705 = vpop.permute.xlu0 %704
  %vm706 = vcmask 15360
  %s707 = scalar_lea.vmem %s1, 7
  %708 = vst.msk [vmem:[%s707] ss:$16 sm:$0x3] %vm706, %v705
  %s709 = scalar_lea.vmem %s1, 7
  %710 = vst.msk [vmem:[%s709] ss:$16 sm:$0xc] %vm706, %v705
  %s711 = scalar_lea.vmem %s1, 7
  %712 = vst.msk [vmem:[%s711] ss:$16 sm:$0x30] %vm706, %v705
  %s713 = scalar_lea.vmem %s1, 7
  %714 = vst.msk [vmem:[%s713] ss:$16 sm:$0xc0] %vm706, %v705
  %s715 = scalar_lea.vmem %s0, 8
  %v716 = vld [vmem:[%s715] sm:$0xff]
  %717 = vrot.lane.b32.xlu0 %v716, 114
  %v718 = vpop.permute.xlu0 %717
  %vm719 = vcmask 15360
  %s720 = scalar_lea.vmem %s1, 135
  %721 = vst.msk [vmem:[%s720] ss:$16 sm:$0x3] %vm719, %v718
  %s722 = scalar_lea.vmem %s1, 135
  %723 = vst.msk [vmem:[%s722] ss:$16 sm:$0xc] %vm719, %v718
  %s724 = scalar_lea.vmem %s1, 135
  %725 = vst.msk [vmem:[%s724] ss:$16 sm:$0x30] %vm719, %v718
  %s726 = scalar_lea.vmem %s1, 135
  %727 = vst.msk [vmem:[%s726] ss:$16 sm:$0xc0] %vm719, %v718
  %s728 = scalar_lea.vmem %s0, 16
  %v729 = vld [vmem:[%s728] sm:$0xff]
  %730 = vrot.lane.b32.xlu0 %v729, 114
  %v731 = vpop.permute.xlu0 %730
  %vm732 = vcmask 15360
  %s733 = scalar_lea.vmem %s1, 263
  %734 = vst.msk [vmem:[%s733] ss:$16 sm:$0x3] %vm732, %v731
  %s735 = scalar_lea.vmem %s1, 263
  %736 = vst.msk [vmem:[%s735] ss:$16 sm:$0xc] %vm732, %v731
  %s737 = scalar_lea.vmem %s1, 263
  %738 = vst.msk [vmem:[%s737] ss:$16 sm:$0x30] %vm732, %v731
  %s739 = scalar_lea.vmem %s1, 263
  %740 = vst.msk [vmem:[%s739] ss:$16 sm:$0xc0] %vm732, %v731
  %s741 = scalar_lea.vmem %s0, 24
  %v742 = vld [vmem:[%s741] sm:$0xff]
  %743 = vrot.lane.b32.xlu0 %v742, 114
  %v744 = vpop.permute.xlu0 %743
  %vm745 = vcmask 15360
  %s746 = scalar_lea.vmem %s1, 391
  %747 = vst.msk [vmem:[%s746] ss:$16 sm:$0x3] %vm745, %v744
  %s748 = scalar_lea.vmem %s1, 391
  %749 = vst.msk [vmem:[%s748] ss:$16 sm:$0xc] %vm745, %v744
  %s750 = scalar_lea.vmem %s1, 391
  %751 = vst.msk [vmem:[%s750] ss:$16 sm:$0x30] %vm745, %v744
  %s752 = scalar_lea.vmem %s1, 391
  %753 = vst.msk [vmem:[%s752] ss:$16 sm:$0xc0] %vm745, %v744
  %s754 = scalar_lea.vmem %s0, 32
  %v755 = vld [vmem:[%s754] sm:$0xff]
  %756 = vrot.lane.b32.xlu0 %v755, 114
  %v757 = vpop.permute.xlu0 %756
  %vm758 = vcmask 15360
  %s759 = scalar_lea.vmem %s1, 519
  %760 = vst.msk [vmem:[%s759] ss:$16 sm:$0x3] %vm758, %v757
  %s761 = scalar_lea.vmem %s1, 519
  %762 = vst.msk [vmem:[%s761] ss:$16 sm:$0xc] %vm758, %v757
  %s763 = scalar_lea.vmem %s1, 519
  %764 = vst.msk [vmem:[%s763] ss:$16 sm:$0x30] %vm758, %v757
  %s765 = scalar_lea.vmem %s1, 519
  %766 = vst.msk [vmem:[%s765] ss:$16 sm:$0xc0] %vm758, %v757
  %s767 = scalar_lea.vmem %s0, 40
  %v768 = vld [vmem:[%s767] sm:$0xff]
  %769 = vrot.lane.b32.xlu0 %v768, 114
  %v770 = vpop.permute.xlu0 %769
  %vm771 = vcmask 15360
  %s772 = scalar_lea.vmem %s1, 647
  %773 = vst.msk [vmem:[%s772] ss:$16 sm:$0x3] %vm771, %v770
  %s774 = scalar_lea.vmem %s1, 647
  %775 = vst.msk [vmem:[%s774] ss:$16 sm:$0xc] %vm771, %v770
  %s776 = scalar_lea.vmem %s1, 647
  %777 = vst.msk [vmem:[%s776] ss:$16 sm:$0x30] %vm771, %v770
  %s778 = scalar_lea.vmem %s1, 647
  %779 = vst.msk [vmem:[%s778] ss:$16 sm:$0xc0] %vm771, %v770
  %s780 = scalar_lea.vmem %s0, 48
  %v781 = vld [vmem:[%s780] sm:$0xff]
  %782 = vrot.lane.b32.xlu0 %v781, 114
  %v783 = vpop.permute.xlu0 %782
  %vm784 = vcmask 15360
  %s785 = scalar_lea.vmem %s1, 775
  %786 = vst.msk [vmem:[%s785] ss:$16 sm:$0x3] %vm784, %v783
  %s787 = scalar_lea.vmem %s1, 775
  %788 = vst.msk [vmem:[%s787] ss:$16 sm:$0xc] %vm784, %v783
  %s789 = scalar_lea.vmem %s1, 775
  %790 = vst.msk [vmem:[%s789] ss:$16 sm:$0x30] %vm784, %v783
  %s791 = scalar_lea.vmem %s1, 775
  %792 = vst.msk [vmem:[%s791] ss:$16 sm:$0xc0] %vm784, %v783
  %s793 = scalar_lea.vmem %s0, 56
  %v794 = vld [vmem:[%s793] sm:$0xff]
  %795 = vrot.lane.b32.xlu0 %v794, 114
  %v796 = vpop.permute.xlu0 %795
  %vm797 = vcmask 15360
  %s798 = scalar_lea.vmem %s1, 903
  %799 = vst.msk [vmem:[%s798] ss:$16 sm:$0x3] %vm797, %v796
  %s800 = scalar_lea.vmem %s1, 903
  %801 = vst.msk [vmem:[%s800] ss:$16 sm:$0xc] %vm797, %v796
  %s802 = scalar_lea.vmem %s1, 903
  %803 = vst.msk [vmem:[%s802] ss:$16 sm:$0x30] %vm797, %v796
  %s804 = scalar_lea.vmem %s1, 903
  %805 = vst.msk [vmem:[%s804] ss:$16 sm:$0xc0] %vm797, %v796
  %v806 = vld [vmem:[%s0] sm:$0xff]
  %807 = vrot.lane.b32.xlu0 %v806, 112
  %v808 = vpop.permute.xlu0 %807
  %vm809 = vcmask 15360
  %s810 = scalar_lea.vmem %s1, 8
  %811 = vst.msk [vmem:[%s810] ss:$16 sm:$0x3] %vm809, %v808
  %s812 = scalar_lea.vmem %s1, 8
  %813 = vst.msk [vmem:[%s812] ss:$16 sm:$0xc] %vm809, %v808
  %s814 = scalar_lea.vmem %s1, 8
  %815 = vst.msk [vmem:[%s814] ss:$16 sm:$0x30] %vm809, %v808
  %s816 = scalar_lea.vmem %s1, 8
  %817 = vst.msk [vmem:[%s816] ss:$16 sm:$0xc0] %vm809, %v808
  %s818 = scalar_lea.vmem %s0, 8
  %v819 = vld [vmem:[%s818] sm:$0xff]
  %820 = vrot.lane.b32.xlu0 %v819, 112
  %v821 = vpop.permute.xlu0 %820
  %vm822 = vcmask 15360
  %s823 = scalar_lea.vmem %s1, 136
  %824 = vst.msk [vmem:[%s823] ss:$16 sm:$0x3] %vm822, %v821
  %s825 = scalar_lea.vmem %s1, 136
  %826 = vst.msk [vmem:[%s825] ss:$16 sm:$0xc] %vm822, %v821
  %s827 = scalar_lea.vmem %s1, 136
  %828 = vst.msk [vmem:[%s827] ss:$16 sm:$0x30] %vm822, %v821
  %s829 = scalar_lea.vmem %s1, 136
  %830 = vst.msk [vmem:[%s829] ss:$16 sm:$0xc0] %vm822, %v821
  %s831 = scalar_lea.vmem %s0, 16
  %v832 = vld [vmem:[%s831] sm:$0xff]
  %833 = vrot.lane.b32.xlu0 %v832, 112
  %v834 = vpop.permute.xlu0 %833
  %vm835 = vcmask 15360
  %s836 = scalar_lea.vmem %s1, 264
  %837 = vst.msk [vmem:[%s836] ss:$16 sm:$0x3] %vm835, %v834
  %s838 = scalar_lea.vmem %s1, 264
  %839 = vst.msk [vmem:[%s838] ss:$16 sm:$0xc] %vm835, %v834
  %s840 = scalar_lea.vmem %s1, 264
  %841 = vst.msk [vmem:[%s840] ss:$16 sm:$0x30] %vm835, %v834
  %s842 = scalar_lea.vmem %s1, 264
  %843 = vst.msk [vmem:[%s842] ss:$16 sm:$0xc0] %vm835, %v834
  %s844 = scalar_lea.vmem %s0, 24
  %v845 = vld [vmem:[%s844] sm:$0xff]
  %846 = vrot.lane.b32.xlu0 %v845, 112
  %v847 = vpop.permute.xlu0 %846
  %vm848 = vcmask 15360
  %s849 = scalar_lea.vmem %s1, 392
  %850 = vst.msk [vmem:[%s849] ss:$16 sm:$0x3] %vm848, %v847
  %s851 = scalar_lea.vmem %s1, 392
  %852 = vst.msk [vmem:[%s851] ss:$16 sm:$0xc] %vm848, %v847
  %s853 = scalar_lea.vmem %s1, 392
  %854 = vst.msk [vmem:[%s853] ss:$16 sm:$0x30] %vm848, %v847
  %s855 = scalar_lea.vmem %s1, 392
  %856 = vst.msk [vmem:[%s855] ss:$16 sm:$0xc0] %vm848, %v847
  %s857 = scalar_lea.vmem %s0, 32
  %v858 = vld [vmem:[%s857] sm:$0xff]
  %859 = vrot.lane.b32.xlu0 %v858, 112
  %v860 = vpop.permute.xlu0 %859
  %vm861 = vcmask 15360
  %s862 = scalar_lea.vmem %s1, 520
  %863 = vst.msk [vmem:[%s862] ss:$16 sm:$0x3] %vm861, %v860
  %s864 = scalar_lea.vmem %s1, 520
  %865 = vst.msk [vmem:[%s864] ss:$16 sm:$0xc] %vm861, %v860
  %s866 = scalar_lea.vmem %s1, 520
  %867 = vst.msk [vmem:[%s866] ss:$16 sm:$0x30] %vm861, %v860
  %s868 = scalar_lea.vmem %s1, 520
  %869 = vst.msk [vmem:[%s868] ss:$16 sm:$0xc0] %vm861, %v860
  %s870 = scalar_lea.vmem %s0, 40
  %v871 = vld [vmem:[%s870] sm:$0xff]
  %872 = vrot.lane.b32.xlu0 %v871, 112
  %v873 = vpop.permute.xlu0 %872
  %vm874 = vcmask 15360
  %s875 = scalar_lea.vmem %s1, 648
  %876 = vst.msk [vmem:[%s875] ss:$16 sm:$0x3] %vm874, %v873
  %s877 = scalar_lea.vmem %s1, 648
  %878 = vst.msk [vmem:[%s877] ss:$16 sm:$0xc] %vm874, %v873
  %s879 = scalar_lea.vmem %s1, 648
  %880 = vst.msk [vmem:[%s879] ss:$16 sm:$0x30] %vm874, %v873
  %s881 = scalar_lea.vmem %s1, 648
  %882 = vst.msk [vmem:[%s881] ss:$16 sm:$0xc0] %vm874, %v873
  %s883 = scalar_lea.vmem %s0, 48
  %v884 = vld [vmem:[%s883] sm:$0xff]
  %885 = vrot.lane.b32.xlu0 %v884, 112
  %v886 = vpop.permute.xlu0 %885
  %vm887 = vcmask 15360
  %s888 = scalar_lea.vmem %s1, 776
  %889 = vst.msk [vmem:[%s888] ss:$16 sm:$0x3] %vm887, %v886
  %s890 = scalar_lea.vmem %s1, 776
  %891 = vst.msk [vmem:[%s890] ss:$16 sm:$0xc] %vm887, %v886
  %s892 = scalar_lea.vmem %s1, 776
  %893 = vst.msk [vmem:[%s892] ss:$16 sm:$0x30] %vm887, %v886
  %s894 = scalar_lea.vmem %s1, 776
  %895 = vst.msk [vmem:[%s894] ss:$16 sm:$0xc0] %vm887, %v886
  %s896 = scalar_lea.vmem %s0, 56
  %v897 = vld [vmem:[%s896] sm:$0xff]
  %898 = vrot.lane.b32.xlu0 %v897, 112
  %v899 = vpop.permute.xlu0 %898
  %vm900 = vcmask 15360
  %s901 = scalar_lea.vmem %s1, 904
  %902 = vst.msk [vmem:[%s901] ss:$16 sm:$0x3] %vm900, %v899
  %s903 = scalar_lea.vmem %s1, 904
  %904 = vst.msk [vmem:[%s903] ss:$16 sm:$0xc] %vm900, %v899
  %s905 = scalar_lea.vmem %s1, 904
  %906 = vst.msk [vmem:[%s905] ss:$16 sm:$0x30] %vm900, %v899
  %s907 = scalar_lea.vmem %s1, 904
  %908 = vst.msk [vmem:[%s907] ss:$16 sm:$0xc0] %vm900, %v899
  %v909 = vld [vmem:[%s0] sm:$0xff]
  %910 = vrot.lane.b32.xlu0 %v909, 110
  %v911 = vpop.permute.xlu0 %910
  %vm912 = vcmask 15360
  %s913 = scalar_lea.vmem %s1, 9
  %914 = vst.msk [vmem:[%s913] ss:$16 sm:$0x3] %vm912, %v911
  %s915 = scalar_lea.vmem %s1, 9
  %916 = vst.msk [vmem:[%s915] ss:$16 sm:$0xc] %vm912, %v911
  %s917 = scalar_lea.vmem %s1, 9
  %918 = vst.msk [vmem:[%s917] ss:$16 sm:$0x30] %vm912, %v911
  %s919 = scalar_lea.vmem %s1, 9
  %920 = vst.msk [vmem:[%s919] ss:$16 sm:$0xc0] %vm912, %v911
  %s921 = scalar_lea.vmem %s0, 8
  %v922 = vld [vmem:[%s921] sm:$0xff]
  %923 = vrot.lane.b32.xlu0 %v922, 110
  %v924 = vpop.permute.xlu0 %923
  %vm925 = vcmask 15360
  %s926 = scalar_lea.vmem %s1, 137
  %927 = vst.msk [vmem:[%s926] ss:$16 sm:$0x3] %vm925, %v924
  %s928 = scalar_lea.vmem %s1, 137
  %929 = vst.msk [vmem:[%s928] ss:$16 sm:$0xc] %vm925, %v924
  %s930 = scalar_lea.vmem %s1, 137
  %931 = vst.msk [vmem:[%s930] ss:$16 sm:$0x30] %vm925, %v924
  %s932 = scalar_lea.vmem %s1, 137
  %933 = vst.msk [vmem:[%s932] ss:$16 sm:$0xc0] %vm925, %v924
  %s934 = scalar_lea.vmem %s0, 16
  %v935 = vld [vmem:[%s934] sm:$0xff]
  %936 = vrot.lane.b32.xlu0 %v935, 110
  %v937 = vpop.permute.xlu0 %936
  %vm938 = vcmask 15360
  %s939 = scalar_lea.vmem %s1, 265
  %940 = vst.msk [vmem:[%s939] ss:$16 sm:$0x3] %vm938, %v937
  %s941 = scalar_lea.vmem %s1, 265
  %942 = vst.msk [vmem:[%s941] ss:$16 sm:$0xc] %vm938, %v937
  %s943 = scalar_lea.vmem %s1, 265
  %944 = vst.msk [vmem:[%s943] ss:$16 sm:$0x30] %vm938, %v937
  %s945 = scalar_lea.vmem %s1, 265
  %946 = vst.msk [vmem:[%s945] ss:$16 sm:$0xc0] %vm938, %v937
  %s947 = scalar_lea.vmem %s0, 24
  %v948 = vld [vmem:[%s947] sm:$0xff]
  %949 = vrot.lane.b32.xlu0 %v948, 110
  %v950 = vpop.permute.xlu0 %949
  %vm951 = vcmask 15360
  %s952 = scalar_lea.vmem %s1, 393
  %953 = vst.msk [vmem:[%s952] ss:$16 sm:$0x3] %vm951, %v950
  %s954 = scalar_lea.vmem %s1, 393
  %955 = vst.msk [vmem:[%s954] ss:$16 sm:$0xc] %vm951, %v950
  %s956 = scalar_lea.vmem %s1, 393
  %957 = vst.msk [vmem:[%s956] ss:$16 sm:$0x30] %vm951, %v950
  %s958 = scalar_lea.vmem %s1, 393
  %959 = vst.msk [vmem:[%s958] ss:$16 sm:$0xc0] %vm951, %v950
  %s960 = scalar_lea.vmem %s0, 32
  %v961 = vld [vmem:[%s960] sm:$0xff]
  %962 = vrot.lane.b32.xlu0 %v961, 110
  %v963 = vpop.permute.xlu0 %962
  %vm964 = vcmask 15360
  %s965 = scalar_lea.vmem %s1, 521
  %966 = vst.msk [vmem:[%s965] ss:$16 sm:$0x3] %vm964, %v963
  %s967 = scalar_lea.vmem %s1, 521
  %968 = vst.msk [vmem:[%s967] ss:$16 sm:$0xc] %vm964, %v963
  %s969 = scalar_lea.vmem %s1, 521
  %970 = vst.msk [vmem:[%s969] ss:$16 sm:$0x30] %vm964, %v963
  %s971 = scalar_lea.vmem %s1, 521
  %972 = vst.msk [vmem:[%s971] ss:$16 sm:$0xc0] %vm964, %v963
  %s973 = scalar_lea.vmem %s0, 40
  %v974 = vld [vmem:[%s973] sm:$0xff]
  %975 = vrot.lane.b32.xlu0 %v974, 110
  %v976 = vpop.permute.xlu0 %975
  %vm977 = vcmask 15360
  %s978 = scalar_lea.vmem %s1, 649
  %979 = vst.msk [vmem:[%s978] ss:$16 sm:$0x3] %vm977, %v976
  %s980 = scalar_lea.vmem %s1, 649
  %981 = vst.msk [vmem:[%s980] ss:$16 sm:$0xc] %vm977, %v976
  %s982 = scalar_lea.vmem %s1, 649
  %983 = vst.msk [vmem:[%s982] ss:$16 sm:$0x30] %vm977, %v976
  %s984 = scalar_lea.vmem %s1, 649
  %985 = vst.msk [vmem:[%s984] ss:$16 sm:$0xc0] %vm977, %v976
  %s986 = scalar_lea.vmem %s0, 48
  %v987 = vld [vmem:[%s986] sm:$0xff]
  %988 = vrot.lane.b32.xlu0 %v987, 110
  %v989 = vpop.permute.xlu0 %988
  %vm990 = vcmask 15360
  %s991 = scalar_lea.vmem %s1, 777
  %992 = vst.msk [vmem:[%s991] ss:$16 sm:$0x3] %vm990, %v989
  %s993 = scalar_lea.vmem %s1, 777
  %994 = vst.msk [vmem:[%s993] ss:$16 sm:$0xc] %vm990, %v989
  %s995 = scalar_lea.vmem %s1, 777
  %996 = vst.msk [vmem:[%s995] ss:$16 sm:$0x30] %vm990, %v989
  %s997 = scalar_lea.vmem %s1, 777
  %998 = vst.msk [vmem:[%s997] ss:$16 sm:$0xc0] %vm990, %v989
  %s999 = scalar_lea.vmem %s0, 56
  %v1000 = vld [vmem:[%s999] sm:$0xff]
  %1001 = vrot.lane.b32.xlu0 %v1000, 110
  %v1002 = vpop.permute.xlu0 %1001
  %vm1003 = vcmask 15360
  %s1004 = scalar_lea.vmem %s1, 905
  %1005 = vst.msk [vmem:[%s1004] ss:$16 sm:$0x3] %vm1003, %v1002
  %s1006 = scalar_lea.vmem %s1, 905
  %1007 = vst.msk [vmem:[%s1006] ss:$16 sm:$0xc] %vm1003, %v1002
  %s1008 = scalar_lea.vmem %s1, 905
  %1009 = vst.msk [vmem:[%s1008] ss:$16 sm:$0x30] %vm1003, %v1002
  %s1010 = scalar_lea.vmem %s1, 905
  %1011 = vst.msk [vmem:[%s1010] ss:$16 sm:$0xc0] %vm1003, %v1002
  %v1012 = vld [vmem:[%s0] sm:$0xff]
  %1013 = vrot.lane.b32.xlu0 %v1012, 108
  %v1014 = vpop.permute.xlu0 %1013
  %vm1015 = vcmask 15360
  %s1016 = scalar_lea.vmem %s1, 10
  %1017 = vst.msk [vmem:[%s1016] ss:$16 sm:$0x3] %vm1015, %v1014
  %s1018 = scalar_lea.vmem %s1, 10
  %1019 = vst.msk [vmem:[%s1018] ss:$16 sm:$0xc] %vm1015, %v1014
  %s1020 = scalar_lea.vmem %s1, 10
  %1021 = vst.msk [vmem:[%s1020] ss:$16 sm:$0x30] %vm1015, %v1014
  %s1022 = scalar_lea.vmem %s1, 10
  %1023 = vst.msk [vmem:[%s1022] ss:$16 sm:$0xc0] %vm1015, %v1014
  %s1024 = scalar_lea.vmem %s0, 8
  %v1025 = vld [vmem:[%s1024] sm:$0xff]
  %1026 = vrot.lane.b32.xlu0 %v1025, 108
  %v1027 = vpop.permute.xlu0 %1026
  %vm1028 = vcmask 15360
  %s1029 = scalar_lea.vmem %s1, 138
  %1030 = vst.msk [vmem:[%s1029] ss:$16 sm:$0x3] %vm1028, %v1027
  %s1031 = scalar_lea.vmem %s1, 138
  %1032 = vst.msk [vmem:[%s1031] ss:$16 sm:$0xc] %vm1028, %v1027
  %s1033 = scalar_lea.vmem %s1, 138
  %1034 = vst.msk [vmem:[%s1033] ss:$16 sm:$0x30] %vm1028, %v1027
  %s1035 = scalar_lea.vmem %s1, 138
  %1036 = vst.msk [vmem:[%s1035] ss:$16 sm:$0xc0] %vm1028, %v1027
  %s1037 = scalar_lea.vmem %s0, 16
  %v1038 = vld [vmem:[%s1037] sm:$0xff]
  %1039 = vrot.lane.b32.xlu0 %v1038, 108
  %v1040 = vpop.permute.xlu0 %1039
  %vm1041 = vcmask 15360
  %s1042 = scalar_lea.vmem %s1, 266
  %1043 = vst.msk [vmem:[%s1042] ss:$16 sm:$0x3] %vm1041, %v1040
  %s1044 = scalar_lea.vmem %s1, 266
  %1045 = vst.msk [vmem:[%s1044] ss:$16 sm:$0xc] %vm1041, %v1040
  %s1046 = scalar_lea.vmem %s1, 266
  %1047 = vst.msk [vmem:[%s1046] ss:$16 sm:$0x30] %vm1041, %v1040
  %s1048 = scalar_lea.vmem %s1, 266
  %1049 = vst.msk [vmem:[%s1048] ss:$16 sm:$0xc0] %vm1041, %v1040
  %s1050 = scalar_lea.vmem %s0, 24
  %v1051 = vld [vmem:[%s1050] sm:$0xff]
  %1052 = vrot.lane.b32.xlu0 %v1051, 108
  %v1053 = vpop.permute.xlu0 %1052
  %vm1054 = vcmask 15360
  %s1055 = scalar_lea.vmem %s1, 394
  %1056 = vst.msk [vmem:[%s1055] ss:$16 sm:$0x3] %vm1054, %v1053
  %s1057 = scalar_lea.vmem %s1, 394
  %1058 = vst.msk [vmem:[%s1057] ss:$16 sm:$0xc] %vm1054, %v1053
  %s1059 = scalar_lea.vmem %s1, 394
  %1060 = vst.msk [vmem:[%s1059] ss:$16 sm:$0x30] %vm1054, %v1053
  %s1061 = scalar_lea.vmem %s1, 394
  %1062 = vst.msk [vmem:[%s1061] ss:$16 sm:$0xc0] %vm1054, %v1053
  %s1063 = scalar_lea.vmem %s0, 32
  %v1064 = vld [vmem:[%s1063] sm:$0xff]
  %1065 = vrot.lane.b32.xlu0 %v1064, 108
  %v1066 = vpop.permute.xlu0 %1065
  %vm1067 = vcmask 15360
  %s1068 = scalar_lea.vmem %s1, 522
  %1069 = vst.msk [vmem:[%s1068] ss:$16 sm:$0x3] %vm1067, %v1066
  %s1070 = scalar_lea.vmem %s1, 522
  %1071 = vst.msk [vmem:[%s1070] ss:$16 sm:$0xc] %vm1067, %v1066
  %s1072 = scalar_lea.vmem %s1, 522
  %1073 = vst.msk [vmem:[%s1072] ss:$16 sm:$0x30] %vm1067, %v1066
  %s1074 = scalar_lea.vmem %s1, 522
  %1075 = vst.msk [vmem:[%s1074] ss:$16 sm:$0xc0] %vm1067, %v1066
  %s1076 = scalar_lea.vmem %s0, 40
  %v1077 = vld [vmem:[%s1076] sm:$0xff]
  %1078 = vrot.lane.b32.xlu0 %v1077, 108
  %v1079 = vpop.permute.xlu0 %1078
  %vm1080 = vcmask 15360
  %s1081 = scalar_lea.vmem %s1, 650
  %1082 = vst.msk [vmem:[%s1081] ss:$16 sm:$0x3] %vm1080, %v1079
  %s1083 = scalar_lea.vmem %s1, 650
  %1084 = vst.msk [vmem:[%s1083] ss:$16 sm:$0xc] %vm1080, %v1079
  %s1085 = scalar_lea.vmem %s1, 650
  %1086 = vst.msk [vmem:[%s1085] ss:$16 sm:$0x30] %vm1080, %v1079
  %s1087 = scalar_lea.vmem %s1, 650
  %1088 = vst.msk [vmem:[%s1087] ss:$16 sm:$0xc0] %vm1080, %v1079
  %s1089 = scalar_lea.vmem %s0, 48
  %v1090 = vld [vmem:[%s1089] sm:$0xff]
  %1091 = vrot.lane.b32.xlu0 %v1090, 108
  %v1092 = vpop.permute.xlu0 %1091
  %vm1093 = vcmask 15360
  %s1094 = scalar_lea.vmem %s1, 778
  %1095 = vst.msk [vmem:[%s1094] ss:$16 sm:$0x3] %vm1093, %v1092
  %s1096 = scalar_lea.vmem %s1, 778
  %1097 = vst.msk [vmem:[%s1096] ss:$16 sm:$0xc] %vm1093, %v1092
  %s1098 = scalar_lea.vmem %s1, 778
  %1099 = vst.msk [vmem:[%s1098] ss:$16 sm:$0x30] %vm1093, %v1092
  %s1100 = scalar_lea.vmem %s1, 778
  %1101 = vst.msk [vmem:[%s1100] ss:$16 sm:$0xc0] %vm1093, %v1092
  %s1102 = scalar_lea.vmem %s0, 56
  %v1103 = vld [vmem:[%s1102] sm:$0xff]
  %1104 = vrot.lane.b32.xlu0 %v1103, 108
  %v1105 = vpop.permute.xlu0 %1104
  %vm1106 = vcmask 15360
  %s1107 = scalar_lea.vmem %s1, 906
  %1108 = vst.msk [vmem:[%s1107] ss:$16 sm:$0x3] %vm1106, %v1105
  %s1109 = scalar_lea.vmem %s1, 906
  %1110 = vst.msk [vmem:[%s1109] ss:$16 sm:$0xc] %vm1106, %v1105
  %s1111 = scalar_lea.vmem %s1, 906
  %1112 = vst.msk [vmem:[%s1111] ss:$16 sm:$0x30] %vm1106, %v1105
  %s1113 = scalar_lea.vmem %s1, 906
  %1114 = vst.msk [vmem:[%s1113] ss:$16 sm:$0xc0] %vm1106, %v1105
  %v1115 = vld [vmem:[%s0] sm:$0xff]
  %1116 = vrot.lane.b32.xlu0 %v1115, 106
  %v1117 = vpop.permute.xlu0 %1116
  %vm1118 = vcmask 15360
  %s1119 = scalar_lea.vmem %s1, 11
  %1120 = vst.msk [vmem:[%s1119] ss:$16 sm:$0x3] %vm1118, %v1117
  %s1121 = scalar_lea.vmem %s1, 11
  %1122 = vst.msk [vmem:[%s1121] ss:$16 sm:$0xc] %vm1118, %v1117
  %s1123 = scalar_lea.vmem %s1, 11
  %1124 = vst.msk [vmem:[%s1123] ss:$16 sm:$0x30] %vm1118, %v1117
  %s1125 = scalar_lea.vmem %s1, 11
  %1126 = vst.msk [vmem:[%s1125] ss:$16 sm:$0xc0] %vm1118, %v1117
  %s1127 = scalar_lea.vmem %s0, 8
  %v1128 = vld [vmem:[%s1127] sm:$0xff]
  %1129 = vrot.lane.b32.xlu0 %v1128, 106
  %v1130 = vpop.permute.xlu0 %1129
  %vm1131 = vcmask 15360
  %s1132 = scalar_lea.vmem %s1, 139
  %1133 = vst.msk [vmem:[%s1132] ss:$16 sm:$0x3] %vm1131, %v1130
  %s1134 = scalar_lea.vmem %s1, 139
  %1135 = vst.msk [vmem:[%s1134] ss:$16 sm:$0xc] %vm1131, %v1130
  %s1136 = scalar_lea.vmem %s1, 139
  %1137 = vst.msk [vmem:[%s1136] ss:$16 sm:$0x30] %vm1131, %v1130
  %s1138 = scalar_lea.vmem %s1, 139
  %1139 = vst.msk [vmem:[%s1138] ss:$16 sm:$0xc0] %vm1131, %v1130
  %s1140 = scalar_lea.vmem %s0, 16
  %v1141 = vld [vmem:[%s1140] sm:$0xff]
  %1142 = vrot.lane.b32.xlu0 %v1141, 106
  %v1143 = vpop.permute.xlu0 %1142
  %vm1144 = vcmask 15360
  %s1145 = scalar_lea.vmem %s1, 267
  %1146 = vst.msk [vmem:[%s1145] ss:$16 sm:$0x3] %vm1144, %v1143
  %s1147 = scalar_lea.vmem %s1, 267
  %1148 = vst.msk [vmem:[%s1147] ss:$16 sm:$0xc] %vm1144, %v1143
  %s1149 = scalar_lea.vmem %s1, 267
  %1150 = vst.msk [vmem:[%s1149] ss:$16 sm:$0x30] %vm1144, %v1143
  %s1151 = scalar_lea.vmem %s1, 267
  %1152 = vst.msk [vmem:[%s1151] ss:$16 sm:$0xc0] %vm1144, %v1143
  %s1153 = scalar_lea.vmem %s0, 24
  %v1154 = vld [vmem:[%s1153] sm:$0xff]
  %1155 = vrot.lane.b32.xlu0 %v1154, 106
  %v1156 = vpop.permute.xlu0 %1155
  %vm1157 = vcmask 15360
  %s1158 = scalar_lea.vmem %s1, 395
  %1159 = vst.msk [vmem:[%s1158] ss:$16 sm:$0x3] %vm1157, %v1156
  %s1160 = scalar_lea.vmem %s1, 395
  %1161 = vst.msk [vmem:[%s1160] ss:$16 sm:$0xc] %vm1157, %v1156
  %s1162 = scalar_lea.vmem %s1, 395
  %1163 = vst.msk [vmem:[%s1162] ss:$16 sm:$0x30] %vm1157, %v1156
  %s1164 = scalar_lea.vmem %s1, 395
  %1165 = vst.msk [vmem:[%s1164] ss:$16 sm:$0xc0] %vm1157, %v1156
  %s1166 = scalar_lea.vmem %s0, 32
  %v1167 = vld [vmem:[%s1166] sm:$0xff]
  %1168 = vrot.lane.b32.xlu0 %v1167, 106
  %v1169 = vpop.permute.xlu0 %1168
  %vm1170 = vcmask 15360
  %s1171 = scalar_lea.vmem %s1, 523
  %1172 = vst.msk [vmem:[%s1171] ss:$16 sm:$0x3] %vm1170, %v1169
  %s1173 = scalar_lea.vmem %s1, 523
  %1174 = vst.msk [vmem:[%s1173] ss:$16 sm:$0xc] %vm1170, %v1169
  %s1175 = scalar_lea.vmem %s1, 523
  %1176 = vst.msk [vmem:[%s1175] ss:$16 sm:$0x30] %vm1170, %v1169
  %s1177 = scalar_lea.vmem %s1, 523
  %1178 = vst.msk [vmem:[%s1177] ss:$16 sm:$0xc0] %vm1170, %v1169
  %s1179 = scalar_lea.vmem %s0, 40
  %v1180 = vld [vmem:[%s1179] sm:$0xff]
  %1181 = vrot.lane.b32.xlu0 %v1180, 106
  %v1182 = vpop.permute.xlu0 %1181
  %vm1183 = vcmask 15360
  %s1184 = scalar_lea.vmem %s1, 651
  %1185 = vst.msk [vmem:[%s1184] ss:$16 sm:$0x3] %vm1183, %v1182
  %s1186 = scalar_lea.vmem %s1, 651
  %1187 = vst.msk [vmem:[%s1186] ss:$16 sm:$0xc] %vm1183, %v1182
  %s1188 = scalar_lea.vmem %s1, 651
  %1189 = vst.msk [vmem:[%s1188] ss:$16 sm:$0x30] %vm1183, %v1182
  %s1190 = scalar_lea.vmem %s1, 651
  %1191 = vst.msk [vmem:[%s1190] ss:$16 sm:$0xc0] %vm1183, %v1182
  %s1192 = scalar_lea.vmem %s0, 48
  %v1193 = vld [vmem:[%s1192] sm:$0xff]
  %1194 = vrot.lane.b32.xlu0 %v1193, 106
  %v1195 = vpop.permute.xlu0 %1194
  %vm1196 = vcmask 15360
  %s1197 = scalar_lea.vmem %s1, 779
  %1198 = vst.msk [vmem:[%s1197] ss:$16 sm:$0x3] %vm1196, %v1195
  %s1199 = scalar_lea.vmem %s1, 779
  %1200 = vst.msk [vmem:[%s1199] ss:$16 sm:$0xc] %vm1196, %v1195
  %s1201 = scalar_lea.vmem %s1, 779
  %1202 = vst.msk [vmem:[%s1201] ss:$16 sm:$0x30] %vm1196, %v1195
  %s1203 = scalar_lea.vmem %s1, 779
  %1204 = vst.msk [vmem:[%s1203] ss:$16 sm:$0xc0] %vm1196, %v1195
  %s1205 = scalar_lea.vmem %s0, 56
  %v1206 = vld [vmem:[%s1205] sm:$0xff]
  %1207 = vrot.lane.b32.xlu0 %v1206, 106
  %v1208 = vpop.permute.xlu0 %1207
  %vm1209 = vcmask 15360
  %s1210 = scalar_lea.vmem %s1, 907
  %1211 = vst.msk [vmem:[%s1210] ss:$16 sm:$0x3] %vm1209, %v1208
  %s1212 = scalar_lea.vmem %s1, 907
  %1213 = vst.msk [vmem:[%s1212] ss:$16 sm:$0xc] %vm1209, %v1208
  %s1214 = scalar_lea.vmem %s1, 907
  %1215 = vst.msk [vmem:[%s1214] ss:$16 sm:$0x30] %vm1209, %v1208
  %s1216 = scalar_lea.vmem %s1, 907
  %1217 = vst.msk [vmem:[%s1216] ss:$16 sm:$0xc0] %vm1209, %v1208
  %v1218 = vld [vmem:[%s0] sm:$0xff]
  %1219 = vrot.lane.b32.xlu0 %v1218, 104
  %v1220 = vpop.permute.xlu0 %1219
  %vm1221 = vcmask 15360
  %s1222 = scalar_lea.vmem %s1, 12
  %1223 = vst.msk [vmem:[%s1222] ss:$16 sm:$0x3] %vm1221, %v1220
  %s1224 = scalar_lea.vmem %s1, 12
  %1225 = vst.msk [vmem:[%s1224] ss:$16 sm:$0xc] %vm1221, %v1220
  %s1226 = scalar_lea.vmem %s1, 12
  %1227 = vst.msk [vmem:[%s1226] ss:$16 sm:$0x30] %vm1221, %v1220
  %s1228 = scalar_lea.vmem %s1, 12
  %1229 = vst.msk [vmem:[%s1228] ss:$16 sm:$0xc0] %vm1221, %v1220
  %s1230 = scalar_lea.vmem %s0, 8
  %v1231 = vld [vmem:[%s1230] sm:$0xff]
  %1232 = vrot.lane.b32.xlu0 %v1231, 104
  %v1233 = vpop.permute.xlu0 %1232
  %vm1234 = vcmask 15360
  %s1235 = scalar_lea.vmem %s1, 140
  %1236 = vst.msk [vmem:[%s1235] ss:$16 sm:$0x3] %vm1234, %v1233
  %s1237 = scalar_lea.vmem %s1, 140
  %1238 = vst.msk [vmem:[%s1237] ss:$16 sm:$0xc] %vm1234, %v1233
  %s1239 = scalar_lea.vmem %s1, 140
  %1240 = vst.msk [vmem:[%s1239] ss:$16 sm:$0x30] %vm1234, %v1233
  %s1241 = scalar_lea.vmem %s1, 140
  %1242 = vst.msk [vmem:[%s1241] ss:$16 sm:$0xc0] %vm1234, %v1233
  %s1243 = scalar_lea.vmem %s0, 16
  %v1244 = vld [vmem:[%s1243] sm:$0xff]
  %1245 = vrot.lane.b32.xlu0 %v1244, 104
  %v1246 = vpop.permute.xlu0 %1245
  %vm1247 = vcmask 15360
  %s1248 = scalar_lea.vmem %s1, 268
  %1249 = vst.msk [vmem:[%s1248] ss:$16 sm:$0x3] %vm1247, %v1246
  %s1250 = scalar_lea.vmem %s1, 268
  %1251 = vst.msk [vmem:[%s1250] ss:$16 sm:$0xc] %vm1247, %v1246
  %s1252 = scalar_lea.vmem %s1, 268
  %1253 = vst.msk [vmem:[%s1252] ss:$16 sm:$0x30] %vm1247, %v1246
  %s1254 = scalar_lea.vmem %s1, 268
  %1255 = vst.msk [vmem:[%s1254] ss:$16 sm:$0xc0] %vm1247, %v1246
  %s1256 = scalar_lea.vmem %s0, 24
  %v1257 = vld [vmem:[%s1256] sm:$0xff]
  %1258 = vrot.lane.b32.xlu0 %v1257, 104
  %v1259 = vpop.permute.xlu0 %1258
  %vm1260 = vcmask 15360
  %s1261 = scalar_lea.vmem %s1, 396
  %1262 = vst.msk [vmem:[%s1261] ss:$16 sm:$0x3] %vm1260, %v1259
  %s1263 = scalar_lea.vmem %s1, 396
  %1264 = vst.msk [vmem:[%s1263] ss:$16 sm:$0xc] %vm1260, %v1259
  %s1265 = scalar_lea.vmem %s1, 396
  %1266 = vst.msk [vmem:[%s1265] ss:$16 sm:$0x30] %vm1260, %v1259
  %s1267 = scalar_lea.vmem %s1, 396
  %1268 = vst.msk [vmem:[%s1267] ss:$16 sm:$0xc0] %vm1260, %v1259
  %s1269 = scalar_lea.vmem %s0, 32
  %v1270 = vld [vmem:[%s1269] sm:$0xff]
  %1271 = vrot.lane.b32.xlu0 %v1270, 104
  %v1272 = vpop.permute.xlu0 %1271
  %vm1273 = vcmask 15360
  %s1274 = scalar_lea.vmem %s1, 524
  %1275 = vst.msk [vmem:[%s1274] ss:$16 sm:$0x3] %vm1273, %v1272
  %s1276 = scalar_lea.vmem %s1, 524
  %1277 = vst.msk [vmem:[%s1276] ss:$16 sm:$0xc] %vm1273, %v1272
  %s1278 = scalar_lea.vmem %s1, 524
  %1279 = vst.msk [vmem:[%s1278] ss:$16 sm:$0x30] %vm1273, %v1272
  %s1280 = scalar_lea.vmem %s1, 524
  %1281 = vst.msk [vmem:[%s1280] ss:$16 sm:$0xc0] %vm1273, %v1272
  %s1282 = scalar_lea.vmem %s0, 40
  %v1283 = vld [vmem:[%s1282] sm:$0xff]
  %1284 = vrot.lane.b32.xlu0 %v1283, 104
  %v1285 = vpop.permute.xlu0 %1284
  %vm1286 = vcmask 15360
  %s1287 = scalar_lea.vmem %s1, 652
  %1288 = vst.msk [vmem:[%s1287] ss:$16 sm:$0x3] %vm1286, %v1285
  %s1289 = scalar_lea.vmem %s1, 652
  %1290 = vst.msk [vmem:[%s1289] ss:$16 sm:$0xc] %vm1286, %v1285
  %s1291 = scalar_lea.vmem %s1, 652
  %1292 = vst.msk [vmem:[%s1291] ss:$16 sm:$0x30] %vm1286, %v1285
  %s1293 = scalar_lea.vmem %s1, 652
  %1294 = vst.msk [vmem:[%s1293] ss:$16 sm:$0xc0] %vm1286, %v1285
  %s1295 = scalar_lea.vmem %s0, 48
  %v1296 = vld [vmem:[%s1295] sm:$0xff]
  %1297 = vrot.lane.b32.xlu0 %v1296, 104
  %v1298 = vpop.permute.xlu0 %1297
  %vm1299 = vcmask 15360
  %s1300 = scalar_lea.vmem %s1, 780
  %1301 = vst.msk [vmem:[%s1300] ss:$16 sm:$0x3] %vm1299, %v1298
  %s1302 = scalar_lea.vmem %s1, 780
  %1303 = vst.msk [vmem:[%s1302] ss:$16 sm:$0xc] %vm1299, %v1298
  %s1304 = scalar_lea.vmem %s1, 780
  %1305 = vst.msk [vmem:[%s1304] ss:$16 sm:$0x30] %vm1299, %v1298
  %s1306 = scalar_lea.vmem %s1, 780
  %1307 = vst.msk [vmem:[%s1306] ss:$16 sm:$0xc0] %vm1299, %v1298
  %s1308 = scalar_lea.vmem %s0, 56
  %v1309 = vld [vmem:[%s1308] sm:$0xff]
  %1310 = vrot.lane.b32.xlu0 %v1309, 104
  %v1311 = vpop.permute.xlu0 %1310
  %vm1312 = vcmask 15360
  %s1313 = scalar_lea.vmem %s1, 908
  %1314 = vst.msk [vmem:[%s1313] ss:$16 sm:$0x3] %vm1312, %v1311
  %s1315 = scalar_lea.vmem %s1, 908
  %1316 = vst.msk [vmem:[%s1315] ss:$16 sm:$0xc] %vm1312, %v1311
  %s1317 = scalar_lea.vmem %s1, 908
  %1318 = vst.msk [vmem:[%s1317] ss:$16 sm:$0x30] %vm1312, %v1311
  %s1319 = scalar_lea.vmem %s1, 908
  %1320 = vst.msk [vmem:[%s1319] ss:$16 sm:$0xc0] %vm1312, %v1311
  %v1321 = vld [vmem:[%s0] sm:$0xff]
  %1322 = vrot.lane.b32.xlu0 %v1321, 102
  %v1323 = vpop.permute.xlu0 %1322
  %vm1324 = vcmask 15360
  %s1325 = scalar_lea.vmem %s1, 13
  %1326 = vst.msk [vmem:[%s1325] ss:$16 sm:$0x3] %vm1324, %v1323
  %s1327 = scalar_lea.vmem %s1, 13
  %1328 = vst.msk [vmem:[%s1327] ss:$16 sm:$0xc] %vm1324, %v1323
  %s1329 = scalar_lea.vmem %s1, 13
  %1330 = vst.msk [vmem:[%s1329] ss:$16 sm:$0x30] %vm1324, %v1323
  %s1331 = scalar_lea.vmem %s1, 13
  %1332 = vst.msk [vmem:[%s1331] ss:$16 sm:$0xc0] %vm1324, %v1323
  %s1333 = scalar_lea.vmem %s0, 8
  %v1334 = vld [vmem:[%s1333] sm:$0xff]
  %1335 = vrot.lane.b32.xlu0 %v1334, 102
  %v1336 = vpop.permute.xlu0 %1335
  %vm1337 = vcmask 15360
  %s1338 = scalar_lea.vmem %s1, 141
  %1339 = vst.msk [vmem:[%s1338] ss:$16 sm:$0x3] %vm1337, %v1336
  %s1340 = scalar_lea.vmem %s1, 141
  %1341 = vst.msk [vmem:[%s1340] ss:$16 sm:$0xc] %vm1337, %v1336
  %s1342 = scalar_lea.vmem %s1, 141
  %1343 = vst.msk [vmem:[%s1342] ss:$16 sm:$0x30] %vm1337, %v1336
  %s1344 = scalar_lea.vmem %s1, 141
  %1345 = vst.msk [vmem:[%s1344] ss:$16 sm:$0xc0] %vm1337, %v1336
  %s1346 = scalar_lea.vmem %s0, 16
  %v1347 = vld [vmem:[%s1346] sm:$0xff]
  %1348 = vrot.lane.b32.xlu0 %v1347, 102
  %v1349 = vpop.permute.xlu0 %1348
  %vm1350 = vcmask 15360
  %s1351 = scalar_lea.vmem %s1, 269
  %1352 = vst.msk [vmem:[%s1351] ss:$16 sm:$0x3] %vm1350, %v1349
  %s1353 = scalar_lea.vmem %s1, 269
  %1354 = vst.msk [vmem:[%s1353] ss:$16 sm:$0xc] %vm1350, %v1349
  %s1355 = scalar_lea.vmem %s1, 269
  %1356 = vst.msk [vmem:[%s1355] ss:$16 sm:$0x30] %vm1350, %v1349
  %s1357 = scalar_lea.vmem %s1, 269
  %1358 = vst.msk [vmem:[%s1357] ss:$16 sm:$0xc0] %vm1350, %v1349
  %s1359 = scalar_lea.vmem %s0, 24
  %v1360 = vld [vmem:[%s1359] sm:$0xff]
  %1361 = vrot.lane.b32.xlu0 %v1360, 102
  %v1362 = vpop.permute.xlu0 %1361
  %vm1363 = vcmask 15360
  %s1364 = scalar_lea.vmem %s1, 397
  %1365 = vst.msk [vmem:[%s1364] ss:$16 sm:$0x3] %vm1363, %v1362
  %s1366 = scalar_lea.vmem %s1, 397
  %1367 = vst.msk [vmem:[%s1366] ss:$16 sm:$0xc] %vm1363, %v1362
  %s1368 = scalar_lea.vmem %s1, 397
  %1369 = vst.msk [vmem:[%s1368] ss:$16 sm:$0x30] %vm1363, %v1362
  %s1370 = scalar_lea.vmem %s1, 397
  %1371 = vst.msk [vmem:[%s1370] ss:$16 sm:$0xc0] %vm1363, %v1362
  %s1372 = scalar_lea.vmem %s0, 32
  %v1373 = vld [vmem:[%s1372] sm:$0xff]
  %1374 = vrot.lane.b32.xlu0 %v1373, 102
  %v1375 = vpop.permute.xlu0 %1374
  %vm1376 = vcmask 15360
  %s1377 = scalar_lea.vmem %s1, 525
  %1378 = vst.msk [vmem:[%s1377] ss:$16 sm:$0x3] %vm1376, %v1375
  %s1379 = scalar_lea.vmem %s1, 525
  %1380 = vst.msk [vmem:[%s1379] ss:$16 sm:$0xc] %vm1376, %v1375
  %s1381 = scalar_lea.vmem %s1, 525
  %1382 = vst.msk [vmem:[%s1381] ss:$16 sm:$0x30] %vm1376, %v1375
  %s1383 = scalar_lea.vmem %s1, 525
  %1384 = vst.msk [vmem:[%s1383] ss:$16 sm:$0xc0] %vm1376, %v1375
  %s1385 = scalar_lea.vmem %s0, 40
  %v1386 = vld [vmem:[%s1385] sm:$0xff]
  %1387 = vrot.lane.b32.xlu0 %v1386, 102
  %v1388 = vpop.permute.xlu0 %1387
  %vm1389 = vcmask 15360
  %s1390 = scalar_lea.vmem %s1, 653
  %1391 = vst.msk [vmem:[%s1390] ss:$16 sm:$0x3] %vm1389, %v1388
  %s1392 = scalar_lea.vmem %s1, 653
  %1393 = vst.msk [vmem:[%s1392] ss:$16 sm:$0xc] %vm1389, %v1388
  %s1394 = scalar_lea.vmem %s1, 653
  %1395 = vst.msk [vmem:[%s1394] ss:$16 sm:$0x30] %vm1389, %v1388
  %s1396 = scalar_lea.vmem %s1, 653
  %1397 = vst.msk [vmem:[%s1396] ss:$16 sm:$0xc0] %vm1389, %v1388
  %s1398 = scalar_lea.vmem %s0, 48
  %v1399 = vld [vmem:[%s1398] sm:$0xff]
  %1400 = vrot.lane.b32.xlu0 %v1399, 102
  %v1401 = vpop.permute.xlu0 %1400
  %vm1402 = vcmask 15360
  %s1403 = scalar_lea.vmem %s1, 781
  %1404 = vst.msk [vmem:[%s1403] ss:$16 sm:$0x3] %vm1402, %v1401
  %s1405 = scalar_lea.vmem %s1, 781
  %1406 = vst.msk [vmem:[%s1405] ss:$16 sm:$0xc] %vm1402, %v1401
  %s1407 = scalar_lea.vmem %s1, 781
  %1408 = vst.msk [vmem:[%s1407] ss:$16 sm:$0x30] %vm1402, %v1401
  %s1409 = scalar_lea.vmem %s1, 781
  %1410 = vst.msk [vmem:[%s1409] ss:$16 sm:$0xc0] %vm1402, %v1401
  %s1411 = scalar_lea.vmem %s0, 56
  %v1412 = vld [vmem:[%s1411] sm:$0xff]
  %1413 = vrot.lane.b32.xlu0 %v1412, 102
  %v1414 = vpop.permute.xlu0 %1413
  %vm1415 = vcmask 15360
  %s1416 = scalar_lea.vmem %s1, 909
  %1417 = vst.msk [vmem:[%s1416] ss:$16 sm:$0x3] %vm1415, %v1414
  %s1418 = scalar_lea.vmem %s1, 909
  %1419 = vst.msk [vmem:[%s1418] ss:$16 sm:$0xc] %vm1415, %v1414
  %s1420 = scalar_lea.vmem %s1, 909
  %1421 = vst.msk [vmem:[%s1420] ss:$16 sm:$0x30] %vm1415, %v1414
  %s1422 = scalar_lea.vmem %s1, 909
  %1423 = vst.msk [vmem:[%s1422] ss:$16 sm:$0xc0] %vm1415, %v1414
  %v1424 = vld [vmem:[%s0] sm:$0xff]
  %1425 = vrot.lane.b32.xlu0 %v1424, 100
  %v1426 = vpop.permute.xlu0 %1425
  %vm1427 = vcmask 15360
  %s1428 = scalar_lea.vmem %s1, 14
  %1429 = vst.msk [vmem:[%s1428] ss:$16 sm:$0x3] %vm1427, %v1426
  %s1430 = scalar_lea.vmem %s1, 14
  %1431 = vst.msk [vmem:[%s1430] ss:$16 sm:$0xc] %vm1427, %v1426
  %s1432 = scalar_lea.vmem %s1, 14
  %1433 = vst.msk [vmem:[%s1432] ss:$16 sm:$0x30] %vm1427, %v1426
  %s1434 = scalar_lea.vmem %s1, 14
  %1435 = vst.msk [vmem:[%s1434] ss:$16 sm:$0xc0] %vm1427, %v1426
  %s1436 = scalar_lea.vmem %s0, 8
  %v1437 = vld [vmem:[%s1436] sm:$0xff]
  %1438 = vrot.lane.b32.xlu0 %v1437, 100
  %v1439 = vpop.permute.xlu0 %1438
  %vm1440 = vcmask 15360
  %s1441 = scalar_lea.vmem %s1, 142
  %1442 = vst.msk [vmem:[%s1441] ss:$16 sm:$0x3] %vm1440, %v1439
  %s1443 = scalar_lea.vmem %s1, 142
  %1444 = vst.msk [vmem:[%s1443] ss:$16 sm:$0xc] %vm1440, %v1439
  %s1445 = scalar_lea.vmem %s1, 142
  %1446 = vst.msk [vmem:[%s1445] ss:$16 sm:$0x30] %vm1440, %v1439
  %s1447 = scalar_lea.vmem %s1, 142
  %1448 = vst.msk [vmem:[%s1447] ss:$16 sm:$0xc0] %vm1440, %v1439
  %s1449 = scalar_lea.vmem %s0, 16
  %v1450 = vld [vmem:[%s1449] sm:$0xff]
  %1451 = vrot.lane.b32.xlu0 %v1450, 100
  %v1452 = vpop.permute.xlu0 %1451
  %vm1453 = vcmask 15360
  %s1454 = scalar_lea.vmem %s1, 270
  %1455 = vst.msk [vmem:[%s1454] ss:$16 sm:$0x3] %vm1453, %v1452
  %s1456 = scalar_lea.vmem %s1, 270
  %1457 = vst.msk [vmem:[%s1456] ss:$16 sm:$0xc] %vm1453, %v1452
  %s1458 = scalar_lea.vmem %s1, 270
  %1459 = vst.msk [vmem:[%s1458] ss:$16 sm:$0x30] %vm1453, %v1452
  %s1460 = scalar_lea.vmem %s1, 270
  %1461 = vst.msk [vmem:[%s1460] ss:$16 sm:$0xc0] %vm1453, %v1452
  %s1462 = scalar_lea.vmem %s0, 24
  %v1463 = vld [vmem:[%s1462] sm:$0xff]
  %1464 = vrot.lane.b32.xlu0 %v1463, 100
  %v1465 = vpop.permute.xlu0 %1464
  %vm1466 = vcmask 15360
  %s1467 = scalar_lea.vmem %s1, 398
  %1468 = vst.msk [vmem:[%s1467] ss:$16 sm:$0x3] %vm1466, %v1465
  %s1469 = scalar_lea.vmem %s1, 398
  %1470 = vst.msk [vmem:[%s1469] ss:$16 sm:$0xc] %vm1466, %v1465
  %s1471 = scalar_lea.vmem %s1, 398
  %1472 = vst.msk [vmem:[%s1471] ss:$16 sm:$0x30] %vm1466, %v1465
  %s1473 = scalar_lea.vmem %s1, 398
  %1474 = vst.msk [vmem:[%s1473] ss:$16 sm:$0xc0] %vm1466, %v1465
  %s1475 = scalar_lea.vmem %s0, 32
  %v1476 = vld [vmem:[%s1475] sm:$0xff]
  %1477 = vrot.lane.b32.xlu0 %v1476, 100
  %v1478 = vpop.permute.xlu0 %1477
  %vm1479 = vcmask 15360
  %s1480 = scalar_lea.vmem %s1, 526
  %1481 = vst.msk [vmem:[%s1480] ss:$16 sm:$0x3] %vm1479, %v1478
  %s1482 = scalar_lea.vmem %s1, 526
  %1483 = vst.msk [vmem:[%s1482] ss:$16 sm:$0xc] %vm1479, %v1478
  %s1484 = scalar_lea.vmem %s1, 526
  %1485 = vst.msk [vmem:[%s1484] ss:$16 sm:$0x30] %vm1479, %v1478
  %s1486 = scalar_lea.vmem %s1, 526
  %1487 = vst.msk [vmem:[%s1486] ss:$16 sm:$0xc0] %vm1479, %v1478
  %s1488 = scalar_lea.vmem %s0, 40
  %v1489 = vld [vmem:[%s1488] sm:$0xff]
  %1490 = vrot.lane.b32.xlu0 %v1489, 100
  %v1491 = vpop.permute.xlu0 %1490
  %vm1492 = vcmask 15360
  %s1493 = scalar_lea.vmem %s1, 654
  %1494 = vst.msk [vmem:[%s1493] ss:$16 sm:$0x3] %vm1492, %v1491
  %s1495 = scalar_lea.vmem %s1, 654
  %1496 = vst.msk [vmem:[%s1495] ss:$16 sm:$0xc] %vm1492, %v1491
  %s1497 = scalar_lea.vmem %s1, 654
  %1498 = vst.msk [vmem:[%s1497] ss:$16 sm:$0x30] %vm1492, %v1491
  %s1499 = scalar_lea.vmem %s1, 654
  %1500 = vst.msk [vmem:[%s1499] ss:$16 sm:$0xc0] %vm1492, %v1491
  %s1501 = scalar_lea.vmem %s0, 48
  %v1502 = vld [vmem:[%s1501] sm:$0xff]
  %1503 = vrot.lane.b32.xlu0 %v1502, 100
  %v1504 = vpop.permute.xlu0 %1503
  %vm1505 = vcmask 15360
  %s1506 = scalar_lea.vmem %s1, 782
  %1507 = vst.msk [vmem:[%s1506] ss:$16 sm:$0x3] %vm1505, %v1504
  %s1508 = scalar_lea.vmem %s1, 782
  %1509 = vst.msk [vmem:[%s1508] ss:$16 sm:$0xc] %vm1505, %v1504
  %s1510 = scalar_lea.vmem %s1, 782
  %1511 = vst.msk [vmem:[%s1510] ss:$16 sm:$0x30] %vm1505, %v1504
  %s1512 = scalar_lea.vmem %s1, 782
  %1513 = vst.msk [vmem:[%s1512] ss:$16 sm:$0xc0] %vm1505, %v1504
  %s1514 = scalar_lea.vmem %s0, 56
  %v1515 = vld [vmem:[%s1514] sm:$0xff]
  %1516 = vrot.lane.b32.xlu0 %v1515, 100
  %v1517 = vpop.permute.xlu0 %1516
  %vm1518 = vcmask 15360
  %s1519 = scalar_lea.vmem %s1, 910
  %1520 = vst.msk [vmem:[%s1519] ss:$16 sm:$0x3] %vm1518, %v1517
  %s1521 = scalar_lea.vmem %s1, 910
  %1522 = vst.msk [vmem:[%s1521] ss:$16 sm:$0xc] %vm1518, %v1517
  %s1523 = scalar_lea.vmem %s1, 910
  %1524 = vst.msk [vmem:[%s1523] ss:$16 sm:$0x30] %vm1518, %v1517
  %s1525 = scalar_lea.vmem %s1, 910
  %1526 = vst.msk [vmem:[%s1525] ss:$16 sm:$0xc0] %vm1518, %v1517
  %v1527 = vld [vmem:[%s0] sm:$0xff]
  %1528 = vrot.lane.b32.xlu0 %v1527, 98
  %v1529 = vpop.permute.xlu0 %1528
  %vm1530 = vcmask 15360
  %s1531 = scalar_lea.vmem %s1, 15
  %1532 = vst.msk [vmem:[%s1531] ss:$16 sm:$0x3] %vm1530, %v1529
  %s1533 = scalar_lea.vmem %s1, 15
  %1534 = vst.msk [vmem:[%s1533] ss:$16 sm:$0xc] %vm1530, %v1529
  %s1535 = scalar_lea.vmem %s1, 15
  %1536 = vst.msk [vmem:[%s1535] ss:$16 sm:$0x30] %vm1530, %v1529
  %s1537 = scalar_lea.vmem %s1, 15
  %1538 = vst.msk [vmem:[%s1537] ss:$16 sm:$0xc0] %vm1530, %v1529
  %s1539 = scalar_lea.vmem %s0, 8
  %v1540 = vld [vmem:[%s1539] sm:$0xff]
  %1541 = vrot.lane.b32.xlu0 %v1540, 98
  %v1542 = vpop.permute.xlu0 %1541
  %vm1543 = vcmask 15360
  %s1544 = scalar_lea.vmem %s1, 143
  %1545 = vst.msk [vmem:[%s1544] ss:$16 sm:$0x3] %vm1543, %v1542
  %s1546 = scalar_lea.vmem %s1, 143
  %1547 = vst.msk [vmem:[%s1546] ss:$16 sm:$0xc] %vm1543, %v1542
  %s1548 = scalar_lea.vmem %s1, 143
  %1549 = vst.msk [vmem:[%s1548] ss:$16 sm:$0x30] %vm1543, %v1542
  %s1550 = scalar_lea.vmem %s1, 143
  %1551 = vst.msk [vmem:[%s1550] ss:$16 sm:$0xc0] %vm1543, %v1542
  %s1552 = scalar_lea.vmem %s0, 16
  %v1553 = vld [vmem:[%s1552] sm:$0xff]
  %1554 = vrot.lane.b32.xlu0 %v1553, 98
  %v1555 = vpop.permute.xlu0 %1554
  %vm1556 = vcmask 15360
  %s1557 = scalar_lea.vmem %s1, 271
  %1558 = vst.msk [vmem:[%s1557] ss:$16 sm:$0x3] %vm1556, %v1555
  %s1559 = scalar_lea.vmem %s1, 271
  %1560 = vst.msk [vmem:[%s1559] ss:$16 sm:$0xc] %vm1556, %v1555
  %s1561 = scalar_lea.vmem %s1, 271
  %1562 = vst.msk [vmem:[%s1561] ss:$16 sm:$0x30] %vm1556, %v1555
  %s1563 = scalar_lea.vmem %s1, 271
  %1564 = vst.msk [vmem:[%s1563] ss:$16 sm:$0xc0] %vm1556, %v1555
  %s1565 = scalar_lea.vmem %s0, 24
  %v1566 = vld [vmem:[%s1565] sm:$0xff]
  %1567 = vrot.lane.b32.xlu0 %v1566, 98
  %v1568 = vpop.permute.xlu0 %1567
  %vm1569 = vcmask 15360
  %s1570 = scalar_lea.vmem %s1, 399
  %1571 = vst.msk [vmem:[%s1570] ss:$16 sm:$0x3] %vm1569, %v1568
  %s1572 = scalar_lea.vmem %s1, 399
  %1573 = vst.msk [vmem:[%s1572] ss:$16 sm:$0xc] %vm1569, %v1568
  %s1574 = scalar_lea.vmem %s1, 399
  %1575 = vst.msk [vmem:[%s1574] ss:$16 sm:$0x30] %vm1569, %v1568
  %s1576 = scalar_lea.vmem %s1, 399
  %1577 = vst.msk [vmem:[%s1576] ss:$16 sm:$0xc0] %vm1569, %v1568
  %s1578 = scalar_lea.vmem %s0, 32
  %v1579 = vld [vmem:[%s1578] sm:$0xff]
  %1580 = vrot.lane.b32.xlu0 %v1579, 98
  %v1581 = vpop.permute.xlu0 %1580
  %vm1582 = vcmask 15360
  %s1583 = scalar_lea.vmem %s1, 527
  %1584 = vst.msk [vmem:[%s1583] ss:$16 sm:$0x3] %vm1582, %v1581
  %s1585 = scalar_lea.vmem %s1, 527
  %1586 = vst.msk [vmem:[%s1585] ss:$16 sm:$0xc] %vm1582, %v1581
  %s1587 = scalar_lea.vmem %s1, 527
  %1588 = vst.msk [vmem:[%s1587] ss:$16 sm:$0x30] %vm1582, %v1581
  %s1589 = scalar_lea.vmem %s1, 527
  %1590 = vst.msk [vmem:[%s1589] ss:$16 sm:$0xc0] %vm1582, %v1581
  %s1591 = scalar_lea.vmem %s0, 40
  %v1592 = vld [vmem:[%s1591] sm:$0xff]
  %1593 = vrot.lane.b32.xlu0 %v1592, 98
  %v1594 = vpop.permute.xlu0 %1593
  %vm1595 = vcmask 15360
  %s1596 = scalar_lea.vmem %s1, 655
  %1597 = vst.msk [vmem:[%s1596] ss:$16 sm:$0x3] %vm1595, %v1594
  %s1598 = scalar_lea.vmem %s1, 655
  %1599 = vst.msk [vmem:[%s1598] ss:$16 sm:$0xc] %vm1595, %v1594
  %s1600 = scalar_lea.vmem %s1, 655
  %1601 = vst.msk [vmem:[%s1600] ss:$16 sm:$0x30] %vm1595, %v1594
  %s1602 = scalar_lea.vmem %s1, 655
  %1603 = vst.msk [vmem:[%s1602] ss:$16 sm:$0xc0] %vm1595, %v1594
  %s1604 = scalar_lea.vmem %s0, 48
  %v1605 = vld [vmem:[%s1604] sm:$0xff]
  %1606 = vrot.lane.b32.xlu0 %v1605, 98
  %v1607 = vpop.permute.xlu0 %1606
  %vm1608 = vcmask 15360
  %s1609 = scalar_lea.vmem %s1, 783
  %1610 = vst.msk [vmem:[%s1609] ss:$16 sm:$0x3] %vm1608, %v1607
  %s1611 = scalar_lea.vmem %s1, 783
  %1612 = vst.msk [vmem:[%s1611] ss:$16 sm:$0xc] %vm1608, %v1607
  %s1613 = scalar_lea.vmem %s1, 783
  %1614 = vst.msk [vmem:[%s1613] ss:$16 sm:$0x30] %vm1608, %v1607
  %s1615 = scalar_lea.vmem %s1, 783
  %1616 = vst.msk [vmem:[%s1615] ss:$16 sm:$0xc0] %vm1608, %v1607
  %s1617 = scalar_lea.vmem %s0, 56
  %v1618 = vld [vmem:[%s1617] sm:$0xff]
  %1619 = vrot.lane.b32.xlu0 %v1618, 98
  %v1620 = vpop.permute.xlu0 %1619
  %vm1621 = vcmask 15360
  %s1622 = scalar_lea.vmem %s1, 911
  %1623 = vst.msk [vmem:[%s1622] ss:$16 sm:$0x3] %vm1621, %v1620
  %s1624 = scalar_lea.vmem %s1, 911
  %1625 = vst.msk [vmem:[%s1624] ss:$16 sm:$0xc] %vm1621, %v1620
  %s1626 = scalar_lea.vmem %s1, 911
  %1627 = vst.msk [vmem:[%s1626] ss:$16 sm:$0x30] %vm1621, %v1620
  %s1628 = scalar_lea.vmem %s1, 911
  %1629 = vst.msk [vmem:[%s1628] ss:$16 sm:$0xc0] %vm1621, %v1620

// kernel: encode_net_forward.9
$region0: #{encode_net_forward.9}
  #allocation0 [shape = 'u32[]', space=smem, size = 0x4, offset = 0x4, fixed_abs, tag = 'smem constant byte address 0x4 - core index']
  #allocation1 [shape = 'u32[72,128]{1,0:T(1,128)}', space=vmem, size = 0x9000, scoped, tag = 'internal scratch']
  %s0 = inlined_call_operand.vmem [shape: f32[32,256], index: 0, kind: input, shape index: {}]
  %s1 = inlined_call_operand.vmem [shape: bf16[256,128], index: 1, kind: input, shape index: {}]
  %s2 = inlined_call_operand.vmem [shape: bf16[256,128], index: 2, kind: input, shape index: {}]
  %s3 = inlined_call_operand.vmem [shape: f32[1,128], index: 3, kind: input, shape index: {}]
  %s4 = inlined_call_operand.vmem [shape: bf16[128,128], index: 4, kind: input, shape index: {}]
  %s5 = inlined_call_operand.vmem [shape: f32[1,128], index: 5, kind: input, shape index: {}]
  %s6 = inlined_call_operand.vmem [shape: f32[16,128], index: 6, kind: output, shape index: {}]
  %s7 = sld [smem:[#allocation0]]
  $region34: #{encode_net_forward.9} parent=0
    _
  %s9 = ssub.s32 1, %s7
  %s10 = scalar_select 0, %s9, %s7
  // Predicated region
  $region2: #{encode_net_forward.9} parent=0 // pred_check
    _
  $region3: #{encode_net_forward.9} parent=0 // pred_check_branch
    %12 = sbr.rel (0) target = $region5
  $region4: #{encode_net_forward.9} parent=0 // pred_region
    _
  $region5: #{encode_net_forward.9} parent=0 // pred_fallthru
    _
  // Predicated region
  $region6: #{encode_net_forward.9} parent=0 // pred_check
    _
  $region7: #{encode_net_forward.9} parent=0 // pred_check_branch
    %14 = sbr.rel (0) target = $region9
  $region8: #{encode_net_forward.9} parent=0 // pred_region
    _
  $region9: #{encode_net_forward.9} parent=0 // pred_fallthru
    _
  // Predicated region
  $region10: #{encode_net_forward.9} parent=0 // pred_check
    _
  $region11: #{encode_net_forward.9} parent=0 // pred_check_branch
    %16 = sbr.rel (0) target = $region13
  $region12: #{encode_net_forward.9} parent=0 // pred_region
    _
  $region13: #{encode_net_forward.9} parent=0 // pred_fallthru
    _
  // Predicated region
  $region14: #{encode_net_forward.9} parent=0 // pred_check
    _
  $region15: #{encode_net_forward.9} parent=0 // pred_check_branch
    %18 = sbr.rel (0) target = $region17
  $region16: #{encode_net_forward.9} parent=0 // pred_region
    _
  $region17: #{encode_net_forward.9} parent=0 // pred_fallthru
    _
  // Predicated region
  $region18: #{encode_net_forward.9} parent=0 // pred_check
    _
  $region19: #{encode_net_forward.9} parent=0 // pred_check_branch
    %20 = sbr.rel (0) target = $region21
  $region20: #{encode_net_forward.9} parent=0 // pred_region
    _
  $region21: #{encode_net_forward.9} parent=0 // pred_fallthru
    _
  // Predicated region
  $region22: #{encode_net_forward.9} parent=0 // pred_check
    _
  $region23: #{encode_net_forward.9} parent=0 // pred_check_branch
    %22 = sbr.rel (0) target = $region25
  $region24: #{encode_net_forward.9} parent=0 // pred_region
    _
  $region25: #{encode_net_forward.9} parent=0 // pred_fallthru
    _
  %v23 = vld [vmem:[%s1] sm:$0xf]
  %v24 = vld [vmem:[%s1 + $0x4] sm:$0xf]
  %v25 = vld [vmem:[%s1 + $0x8] sm:$0xf]
  %v26 = vld [vmem:[%s1 + $0xc] sm:$0xf]
  %v27 = vld [vmem:[%s1 + $0x10] sm:$0xf]
  %v28 = vld [vmem:[%s1 + $0x14] sm:$0xf]
  %v29 = vld [vmem:[%s1 + $0x18] sm:$0xf]
  %v30 = vld [vmem:[%s1 + $0x1c] sm:$0xf]
  %v31 = vld [vmem:[%s1 + $0x20] sm:$0xf]
  %v32 = vld [vmem:[%s1 + $0x24] sm:$0xf]
  %v33 = vld [vmem:[%s1 + $0x28] sm:$0xf]
  %v34 = vld [vmem:[%s1 + $0x2c] sm:$0xf]
  %v35 = vld [vmem:[%s1 + $0x30] sm:$0xf]
  %v36 = vld [vmem:[%s1 + $0x34] sm:$0xf]
  %v37 = vld [vmem:[%s1 + $0x38] sm:$0xf]
  %v38 = vld [vmem:[%s1 + $0x3c] sm:$0xf]
  %v39 = vld [vmem:[%s1 + $0x40] sm:$0xf]
  %v40 = vld [vmem:[%s1 + $0x44] sm:$0xf]
  %v41 = vld [vmem:[%s1 + $0x48] sm:$0xf]
  %v42 = vld [vmem:[%s1 + $0x4c] sm:$0xf]
  %v43 = vld [vmem:[%s1 + $0x50] sm:$0xf]
  %v44 = vld [vmem:[%s1 + $0x54] sm:$0xf]
  %v45 = vld [vmem:[%s1 + $0x58] sm:$0xf]
  %v46 = vld [vmem:[%s1 + $0x5c] sm:$0xf]
  %v47 = vld [vmem:[%s1 + $0x60] sm:$0xf]
  %v48 = vld [vmem:[%s1 + $0x64] sm:$0xf]
  %v49 = vld [vmem:[%s1 + $0x68] sm:$0xf]
  %v50 = vld [vmem:[%s1 + $0x6c] sm:$0xf]
  %v51 = vld [vmem:[%s1 + $0x70] sm:$0xf]
  %v52 = vld [vmem:[%s1 + $0x74] sm:$0xf]
  %v53 = vld [vmem:[%s1 + $0x78] sm:$0xf]
  %v54 = vld [vmem:[%s1 + $0x7c] sm:$0xf]
  %v55 = vld [vmem:[%s2] sm:$0xf]
  %v56 = vld [vmem:[%s2 + $0x4] sm:$0xf]
  %v57 = vld [vmem:[%s2 + $0x8] sm:$0xf]
  %v58 = vld [vmem:[%s2 + $0xc] sm:$0xf]
  %v59 = vld [vmem:[%s2 + $0x10] sm:$0xf]
  %v60 = vld [vmem:[%s2 + $0x14] sm:$0xf]
  %v61 = vld [vmem:[%s2 + $0x18] sm:$0xf]
  %v62 = vld [vmem:[%s2 + $0x1c] sm:$0xf]
  %v63 = vld [vmem:[%s2 + $0x20] sm:$0xf]
  %v64 = vld [vmem:[%s2 + $0x24] sm:$0xf]
  %v65 = vld [vmem:[%s2 + $0x28] sm:$0xf]
  %v66 = vld [vmem:[%s2 + $0x2c] sm:$0xf]
  %v67 = vld [vmem:[%s2 + $0x30] sm:$0xf]
  %v68 = vld [vmem:[%s2 + $0x34] sm:$0xf]
  %v69 = vld [vmem:[%s2 + $0x38] sm:$0xf]
  %v70 = vld [vmem:[%s2 + $0x3c] sm:$0xf]
  %v71 = vld [vmem:[%s2 + $0x40] sm:$0xf]
  %v72 = vld [vmem:[%s2 + $0x44] sm:$0xf]
  %v73 = vld [vmem:[%s2 + $0x48] sm:$0xf]
  %v74 = vld [vmem:[%s2 + $0x4c] sm:$0xf]
  %v75 = vld [vmem:[%s2 + $0x50] sm:$0xf]
  %v76 = vld [vmem:[%s2 + $0x54] sm:$0xf]
  %v77 = vld [vmem:[%s2 + $0x58] sm:$0xf]
  %v78 = vld [vmem:[%s2 + $0x5c] sm:$0xf]
  %v79 = vld [vmem:[%s2 + $0x60] sm:$0xf]
  %v80 = vld [vmem:[%s2 + $0x64] sm:$0xf]
  %v81 = vld [vmem:[%s2 + $0x68] sm:$0xf]
  %v82 = vld [vmem:[%s2 + $0x6c] sm:$0xf]
  %v83 = vld [vmem:[%s2 + $0x70] sm:$0xf]
  %v84 = vld [vmem:[%s2 + $0x74] sm:$0xf]
  %v85 = vld [vmem:[%s2 + $0x78] sm:$0xf]
  %v86 = vld [vmem:[%s2 + $0x7c] sm:$0xf]
  %v87 = vld [vmem:[%s3] sm:$0x1]
  %v88 = vld [vmem:[%s4] sm:$0xf]
  %v89 = vld [vmem:[%s4 + $0x4] sm:$0xf]
  %v90 = vld [vmem:[%s4 + $0x8] sm:$0xf]
  %v91 = vld [vmem:[%s4 + $0xc] sm:$0xf]
  %v92 = vld [vmem:[%s4 + $0x10] sm:$0xf]
  %v93 = vld [vmem:[%s4 + $0x14] sm:$0xf]
  %v94 = vld [vmem:[%s4 + $0x18] sm:$0xf]
  %v95 = vld [vmem:[%s4 + $0x1c] sm:$0xf]
  %v96 = vld [vmem:[%s4 + $0x20] sm:$0xf]
  %v97 = vld [vmem:[%s4 + $0x24] sm:$0xf]
  %v98 = vld [vmem:[%s4 + $0x28] sm:$0xf]
  %v99 = vld [vmem:[%s4 + $0x2c] sm:$0xf]
  %v100 = vld [vmem:[%s4 + $0x30] sm:$0xf]
  %v101 = vld [vmem:[%s4 + $0x34] sm:$0xf]
  %v102 = vld [vmem:[%s4 + $0x38] sm:$0xf]
  %v103 = vld [vmem:[%s4 + $0x3c] sm:$0xf]
  %v104 = vld [vmem:[%s5] sm:$0x1]
  %v105 = vld [vmem:[%s0] sm:$0x3]
  %v106 = vld [vmem:[%s0 + $0x8] sm:$0x3]
  %v107 = vpack.c.bf16 %v105, %v105
  %v108 = vpack.c.bf16 %v106, %v106
  %v109 = vld [vmem:[%s0] sm:$0xc]
  %v110 = vld [vmem:[%s0 + $0x8] sm:$0xc]
  %v111 = vpack.c.bf16 %v109, %v109
  %v112 = vpack.c.bf16 %v110, %v110
  %v115 = vrot.slane %v111, 1
  %v116 = vrot.slane %v112, 1
  %v151 = vunpack.c.l.b16 %v55
  %v152 = vunpack.c.l.b16 %v56
  %v153 = vunpack.c.l.b16 %v57
  %v154 = vunpack.c.l.b16 %v58
  %v155 = vunpack.c.l.b16 %v59
  %v156 = vunpack.c.l.b16 %v60
  %v157 = vunpack.c.l.b16 %v61
  %v158 = vunpack.c.l.b16 %v62
  %v159 = vunpack.c.l.b16 %v63
  %v160 = vunpack.c.l.b16 %v64
  %v161 = vunpack.c.l.b16 %v65
  %v162 = vunpack.c.l.b16 %v66
  %v163 = vunpack.c.l.b16 %v67
  %v164 = vunpack.c.l.b16 %v68
  %v165 = vunpack.c.l.b16 %v69
  %v166 = vunpack.c.l.b16 %v70
  %v167 = vunpack.c.l.b16 %v71
  %v168 = vunpack.c.l.b16 %v72
  %v169 = vunpack.c.l.b16 %v73
  %v170 = vunpack.c.l.b16 %v74
  %v171 = vunpack.c.l.b16 %v75
  %v172 = vunpack.c.l.b16 %v76
  %v173 = vunpack.c.l.b16 %v77
  %v174 = vunpack.c.l.b16 %v78
  %v175 = vunpack.c.l.b16 %v79
  %v176 = vunpack.c.l.b16 %v80
  %v177 = vunpack.c.l.b16 %v81
  %v178 = vunpack.c.l.b16 %v82
  %v179 = vunpack.c.l.b16 %v83
  %v180 = vunpack.c.l.b16 %v84
  %v181 = vunpack.c.l.b16 %v85
  %v182 = vunpack.c.l.b16 %v86
  %v183 = vpack.c.b16 %v152, %v151
  %v184 = vpack.c.b16 %v154, %v153
  %v185 = vpack.c.b16 %v156, %v155
  %v186 = vpack.c.b16 %v158, %v157
  %v187 = vpack.c.b16 %v160, %v159
  %v188 = vpack.c.b16 %v162, %v161
  %v189 = vpack.c.b16 %v164, %v163
  %v190 = vpack.c.b16 %v166, %v165
  %v191 = vpack.c.b16 %v168, %v167
  %v192 = vpack.c.b16 %v170, %v169
  %v193 = vpack.c.b16 %v172, %v171
  %v194 = vpack.c.b16 %v174, %v173
  %v195 = vpack.c.b16 %v176, %v175
  %v196 = vpack.c.b16 %v178, %v177
  %v197 = vpack.c.b16 %v180, %v179
  %v198 = vpack.c.b16 %v182, %v181
  %215 = vmatpush.bf16.msra.mxu0 %v190
  %216 = vmatpush.bf16.msra.mxu0 %v189
  %217 = vmatpush.bf16.msra.mxu0 %v188
  %218 = vmatpush.bf16.msra.mxu0 %v187
  %219 = vmatpush.bf16.msra.mxu0 %v186
  %220 = vmatpush.bf16.msra.mxu0 %v185
  %221 = vmatpush.bf16.msra.mxu0 %v184
  %222 = vmatpush.bf16.msra.mxu0 %v183
  %223 = vmatmul.bf16.gmra.mxu0 %v115
  %v224 = vpop.f32.mrf.mxu0
  %v225 = vadd.f32 0.0, %v224
  %v226 = vpop.f32.mrf.mxu0
  %227 = vdwg.mxu0
  %228 = vmatpush.bf16.msra.mxu0 %v198
  %229 = vmatpush.bf16.msra.mxu0 %v197
  %230 = vmatpush.bf16.msra.mxu0 %v196
  %231 = vmatpush.bf16.msra.mxu0 %v195
  %232 = vmatpush.bf16.msra.mxu0 %v194
  %233 = vmatpush.bf16.msra.mxu0 %v193
  %234 = vmatpush.bf16.msra.mxu0 %v192
  %235 = vmatpush.bf16.msra.mxu0 %v191
  %236 = vmatmul.bf16.gmra.mxu0 %v116
  %v237 = vpop.f32.mrf.mxu0
  %v238 = vadd.f32 %v225, %v237
  %v239 = vpop.f32.mrf.mxu0
  %240 = vdwg.mxu0
  %v273 = vunpack.c.l.b16 %v23
  %v274 = vunpack.c.l.b16 %v24
  %v275 = vunpack.c.l.b16 %v25
  %v276 = vunpack.c.l.b16 %v26
  %v277 = vunpack.c.l.b16 %v27
  %v278 = vunpack.c.l.b16 %v28
  %v279 = vunpack.c.l.b16 %v29
  %v280 = vunpack.c.l.b16 %v30
  %v281 = vunpack.c.l.b16 %v31
  %v282 = vunpack.c.l.b16 %v32
  %v283 = vunpack.c.l.b16 %v33
  %v284 = vunpack.c.l.b16 %v34
  %v285 = vunpack.c.l.b16 %v35
  %v286 = vunpack.c.l.b16 %v36
  %v287 = vunpack.c.l.b16 %v37
  %v288 = vunpack.c.l.b16 %v38
  %v289 = vunpack.c.l.b16 %v39
  %v290 = vunpack.c.l.b16 %v40
  %v291 = vunpack.c.l.b16 %v41
  %v292 = vunpack.c.l.b16 %v42
  %v293 = vunpack.c.l.b16 %v43
  %v294 = vunpack.c.l.b16 %v44
  %v295 = vunpack.c.l.b16 %v45
  %v296 = vunpack.c.l.b16 %v46
  %v297 = vunpack.c.l.b16 %v47
  %v298 = vunpack.c.l.b16 %v48
  %v299 = vunpack.c.l.b16 %v49
  %v300 = vunpack.c.l.b16 %v50
  %v301 = vunpack.c.l.b16 %v51
  %v302 = vunpack.c.l.b16 %v52
  %v303 = vunpack.c.l.b16 %v53
  %v304 = vunpack.c.l.b16 %v54
  %v305 = vpack.c.b16 %v274, %v273
  %v306 = vpack.c.b16 %v276, %v275
  %v307 = vpack.c.b16 %v278, %v277
  %v308 = vpack.c.b16 %v280, %v279
  %v309 = vpack.c.b16 %v282, %v281
  %v310 = vpack.c.b16 %v284, %v283
  %v311 = vpack.c.b16 %v286, %v285
  %v312 = vpack.c.b16 %v288, %v287
  %v313 = vpack.c.b16 %v290, %v289
  %v314 = vpack.c.b16 %v292, %v291
  %v315 = vpack.c.b16 %v294, %v293
  %v316 = vpack.c.b16 %v296, %v295
  %v317 = vpack.c.b16 %v298, %v297
  %v318 = vpack.c.b16 %v300, %v299
  %v319 = vpack.c.b16 %v302, %v301
  %v320 = vpack.c.b16 %v304, %v303
  %337 = vmatpush.bf16.msra.mxu0 %v312
  %338 = vmatpush.bf16.msra.mxu0 %v311
  %339 = vmatpush.bf16.msra.mxu0 %v310
  %340 = vmatpush.bf16.msra.mxu0 %v309
  %341 = vmatpush.bf16.msra.mxu0 %v308
  %342 = vmatpush.bf16.msra.mxu0 %v307
  %343 = vmatpush.bf16.msra.mxu0 %v306
  %344 = vmatpush.bf16.msra.mxu0 %v305
  %345 = vmatmul.bf16.gmra.mxu0 %v107
  %v346 = vpop.f32.mrf.mxu0
  %v347 = vadd.f32 %v238, %v346
  %v348 = vpop.f32.mrf.mxu0
  %349 = vdwg.mxu0
  %350 = vmatpush.bf16.msra.mxu0 %v320
  %351 = vmatpush.bf16.msra.mxu0 %v319
  %352 = vmatpush.bf16.msra.mxu0 %v318
  %353 = vmatpush.bf16.msra.mxu0 %v317
  %354 = vmatpush.bf16.msra.mxu0 %v316
  %355 = vmatpush.bf16.msra.mxu0 %v315
  %356 = vmatpush.bf16.msra.mxu0 %v314
  %357 = vmatpush.bf16.msra.mxu0 %v313
  %358 = vmatmul.bf16.gmra.mxu0 %v108
  %v359 = vpop.f32.mrf.mxu0
  %v360 = vadd.f32 %v347, %v359
  %v361 = vpop.f32.mrf.mxu0
  %362 = vdwg.mxu0
  %v364 = vperm.slane %v87, 0
  %v366 = vadd.f32 %v360, %v364
  %vm367 = vcmp.ge.f32.partialorder %v366, 0.0
  %v368 = vmul.f32 %v366, 0.01
  %v369 = vsel %vm367, %v366, %v368
  %v370 = vmul.f32 %v369, %v369
  %v371 = vpack.c.bf16 %v370, %v370
  %v373 = vperm.slane %v104, 0
  %v391 = vunpack.c.l.b16 %v88
  %v392 = vunpack.c.l.b16 %v89
  %v393 = vunpack.c.l.b16 %v90
  %v394 = vunpack.c.l.b16 %v91
  %v395 = vunpack.c.l.b16 %v92
  %v396 = vunpack.c.l.b16 %v93
  %v397 = vunpack.c.l.b16 %v94
  %v398 = vunpack.c.l.b16 %v95
  %v399 = vunpack.c.l.b16 %v96
  %v400 = vunpack.c.l.b16 %v97
  %v401 = vunpack.c.l.b16 %v98
  %v402 = vunpack.c.l.b16 %v99
  %v403 = vunpack.c.l.b16 %v100
  %v404 = vunpack.c.l.b16 %v101
  %v405 = vunpack.c.l.b16 %v102
  %v406 = vunpack.c.l.b16 %v103
  %v407 = vpack.c.b16 %v392, %v391
  %v408 = vpack.c.b16 %v394, %v393
  %v409 = vpack.c.b16 %v396, %v395
  %v410 = vpack.c.b16 %v398, %v397
  %v411 = vpack.c.b16 %v400, %v399
  %v412 = vpack.c.b16 %v402, %v401
  %v413 = vpack.c.b16 %v404, %v403
  %v414 = vpack.c.b16 %v406, %v405
  %423 = vmatpush.bf16.msra.mxu0 %v414
  %424 = vmatpush.bf16.msra.mxu0 %v413
  %425 = vmatpush.bf16.msra.mxu0 %v412
  %426 = vmatpush.bf16.msra.mxu0 %v411
  %427 = vmatpush.bf16.msra.mxu0 %v410
  %428 = vmatpush.bf16.msra.mxu0 %v409
  %429 = vmatpush.bf16.msra.mxu0 %v408
  %430 = vmatpush.bf16.msra.mxu0 %v407
  %431 = vmatmul.bf16.gmra.mxu0 %v371
  %v432 = vpop.f32.mrf.mxu0
  %v433 = vadd.f32 %v373, %v432
  %v434 = vpop.f32.mrf.mxu0
  %435 = vdwg.mxu0
  %v436 = vrsqrt.pop %v433
  %v437 = vmul.f32 %v436, %v433
  %v438 = vmul.f32 %v437, %v436
  %v439 = vmul.f32 0.5, %v438
  %v440 = vsub.f32 1.5, %v439
  %v441 = vmul.f32 %v436, %v440
  %vm442 = vweird.f32 %v433
  %vm443 = vweird.f32 %v436
  %vm444 = vmor %vm442, %vm443
  %v445 = vsel %vm444, %v436, %v441
  %v446 = vmul.f32 %v369, %v445
  %447 = vst [vmem:[%s6] sm:$0x3] %v446
  %v448 = vld [vmem:[%s0] sm:$0x30]
  %v449 = vld [vmem:[%s0 + $0x8] sm:$0x30]
  %v450 = vpack.c.bf16 %v448, %v448
  %v451 = vpack.c.bf16 %v449, %v449
  %v452 = vld [vmem:[%s0] sm:$0xc0]
  %v453 = vld [vmem:[%s0 + $0x8] sm:$0xc0]
  %v454 = vpack.c.bf16 %v452, %v452
  %v455 = vpack.c.bf16 %v453, %v453
  %v458 = vrot.slane %v454, 3
  %v459 = vrot.slane %v455, 3
  %462 = vmatpush.bf16.msra.mxu0 %v190
  %463 = vmatpush.bf16.msra.mxu0 %v189
  %464 = vmatpush.bf16.msra.mxu0 %v188
  %465 = vmatpush.bf16.msra.mxu0 %v187
  %466 = vmatpush.bf16.msra.mxu0 %v186
  %467 = vmatpush.bf16.msra.mxu0 %v185
  %468 = vmatpush.bf16.msra.mxu0 %v184
  %469 = vmatpush.bf16.msra.mxu0 %v183
  %470 = vmatmul.bf16.gmra.mxu0 %v458
  %v471 = vpop.f32.mrf.mxu0
  %v472 = vadd.f32 0.0, %v471
  %v473 = vpop.f32.mrf.mxu0
  %474 = vdwg.mxu0
  %475 = vmatpush.bf16.msra.mxu0 %v198
  %476 = vmatpush.bf16.msra.mxu0 %v197
  %477 = vmatpush.bf16.msra.mxu0 %v196
  %478 = vmatpush.bf16.msra.mxu0 %v195
  %479 = vmatpush.bf16.msra.mxu0 %v194
  %480 = vmatpush.bf16.msra.mxu0 %v193
  %481 = vmatpush.bf16.msra.mxu0 %v192
  %482 = vmatpush.bf16.msra.mxu0 %v191
  %483 = vmatmul.bf16.gmra.mxu0 %v459
  %v484 = vpop.f32.mrf.mxu0
  %v485 = vadd.f32 %v472, %v484
  %v486 = vpop.f32.mrf.mxu0
  %487 = vdwg.mxu0
  %v490 = vrot.slane %v450, 2
  %v491 = vrot.slane %v451, 2
  %494 = vmatpush.bf16.msra.mxu0 %v312
  %495 = vmatpush.bf16.msra.mxu0 %v311
  %496 = vmatpush.bf16.msra.mxu0 %v310
  %497 = vmatpush.bf16.msra.mxu0 %v309
  %498 = vmatpush.bf16.msra.mxu0 %v308
  %499 = vmatpush.bf16.msra.mxu0 %v307
  %500 = vmatpush.bf16.msra.mxu0 %v306
  %501 = vmatpush.bf16.msra.mxu0 %v305
  %502 = vmatmul.bf16.gmra.mxu0 %v490
  %v503 = vpop.f32.mrf.mxu0
  %v504 = vadd.f32 %v485, %v503
  %v505 = vpop.f32.mrf.mxu0
  %506 = vdwg.mxu0
  %507 = vmatpush.bf16.msra.mxu0 %v320
  %508 = vmatpush.bf16.msra.mxu0 %v319
  %509 = vmatpush.bf16.msra.mxu0 %v318
  %510 = vmatpush.bf16.msra.mxu0 %v317
  %511 = vmatpush.bf16.msra.mxu0 %v316
  %512 = vmatpush.bf16.msra.mxu0 %v315
  %513 = vmatpush.bf16.msra.mxu0 %v314
  %514 = vmatpush.bf16.msra.mxu0 %v313
  %515 = vmatmul.bf16.gmra.mxu0 %v491
  %v516 = vpop.f32.mrf.mxu0
  %v517 = vadd.f32 %v504, %v516
  %v518 = vpop.f32.mrf.mxu0
  %519 = vdwg.mxu0
  %v520 = vadd.f32 %v517, %v364
  %vm521 = vcmp.ge.f32.partialorder %v520, 0.0
  %v522 = vmul.f32 %v520, 0.01
  %v523 = vsel %vm521, %v520, %v522
  %v524 = vmul.f32 %v523, %v523
  %v525 = vpack.c.bf16 %v524, %v524
  %526 = vmatpush.bf16.msra.mxu0 %v414
  %527 = vmatpush.bf16.msra.mxu0 %v413
  %528 = vmatpush.bf16.msra.mxu0 %v412
  %529 = vmatpush.bf16.msra.mxu0 %v411
  %530 = vmatpush.bf16.msra.mxu0 %v410
  %531 = vmatpush.bf16.msra.mxu0 %v409
  %532 = vmatpush.bf16.msra.mxu0 %v408
  %533 = vmatpush.bf16.msra.mxu0 %v407
  %534 = vmatmul.bf16.gmra.mxu0 %v525
  %v535 = vpop.f32.mrf.mxu0
  %v536 = vadd.f32 %v373, %v535
  %v537 = vpop.f32.mrf.mxu0
  %538 = vdwg.mxu0
  %v539 = vrsqrt.pop %v536
  %v540 = vmul.f32 %v539, %v536
  %v541 = vmul.f32 %v540, %v539
  %v542 = vmul.f32 0.5, %v541
  %v543 = vsub.f32 1.5, %v542
  %v544 = vmul.f32 %v539, %v543
  %vm545 = vweird.f32 %v536
  %vm546 = vweird.f32 %v539
  %vm547 = vmor %vm545, %vm546
  %v548 = vsel %vm547, %v539, %v544
  %v549 = vmul.f32 %v523, %v548
  %550 = vst [vmem:[%s6 + $0x2] sm:$0x3] %v549
  %v551 = vld [vmem:[%s0 + $0x10] sm:$0x3]
  %v552 = vld [vmem:[%s0 + $0x18] sm:$0x3]
  %v553 = vpack.c.bf16 %v551, %v551
  %v554 = vpack.c.bf16 %v552, %v552
  %v555 = vld [vmem:[%s0 + $0x10] sm:$0xc]
  %v556 = vld [vmem:[%s0 + $0x18] sm:$0xc]
  %v557 = vpack.c.bf16 %v555, %v555
  %v558 = vpack.c.bf16 %v556, %v556
  %v561 = vrot.slane %v557, 1
  %v562 = vrot.slane %v558, 1
  %565 = vmatpush.bf16.msra.mxu0 %v190
  %566 = vmatpush.bf16.msra.mxu0 %v189
  %567 = vmatpush.bf16.msra.mxu0 %v188
  %568 = vmatpush.bf16.msra.mxu0 %v187
  %569 = vmatpush.bf16.msra.mxu0 %v186
  %570 = vmatpush.bf16.msra.mxu0 %v185
  %571 = vmatpush.bf16.msra.mxu0 %v184
  %572 = vmatpush.bf16.msra.mxu0 %v183
  %573 = vmatmul.bf16.gmra.mxu0 %v561
  %v574 = vpop.f32.mrf.mxu0
  %v575 = vadd.f32 0.0, %v574
  %v576 = vpop.f32.mrf.mxu0
  %577 = vdwg.mxu0
  %578 = vmatpush.bf16.msra.mxu0 %v198
  %579 = vmatpush.bf16.msra.mxu0 %v197
  %580 = vmatpush.bf16.msra.mxu0 %v196
  %581 = vmatpush.bf16.msra.mxu0 %v195
  %582 = vmatpush.bf16.msra.mxu0 %v194
  %583 = vmatpush.bf16.msra.mxu0 %v193
  %584 = vmatpush.bf16.msra.mxu0 %v192
  %585 = vmatpush.bf16.msra.mxu0 %v191
  %586 = vmatmul.bf16.gmra.mxu0 %v562
  %v587 = vpop.f32.mrf.mxu0
  %v588 = vadd.f32 %v575, %v587
  %v589 = vpop.f32.mrf.mxu0
  %590 = vdwg.mxu0
  %591 = vmatpush.bf16.msra.mxu0 %v312
  %592 = vmatpush.bf16.msra.mxu0 %v311
  %593 = vmatpush.bf16.msra.mxu0 %v310
  %594 = vmatpush.bf16.msra.mxu0 %v309
  %595 = vmatpush.bf16.msra.mxu0 %v308
  %596 = vmatpush.bf16.msra.mxu0 %v307
  %597 = vmatpush.bf16.msra.mxu0 %v306
  %598 = vmatpush.bf16.msra.mxu0 %v305
  %599 = vmatmul.bf16.gmra.mxu0 %v553
  %v600 = vpop.f32.mrf.mxu0
  %v601 = vadd.f32 %v588, %v600
  %v602 = vpop.f32.mrf.mxu0
  %603 = vdwg.mxu0
  %604 = vmatpush.bf16.msra.mxu0 %v320
  %605 = vmatpush.bf16.msra.mxu0 %v319
  %606 = vmatpush.bf16.msra.mxu0 %v318
  %607 = vmatpush.bf16.msra.mxu0 %v317
  %608 = vmatpush.bf16.msra.mxu0 %v316
  %609 = vmatpush.bf16.msra.mxu0 %v315
  %610 = vmatpush.bf16.msra.mxu0 %v314
  %611 = vmatpush.bf16.msra.mxu0 %v313
  %612 = vmatmul.bf16.gmra.mxu0 %v554
  %v613 = vpop.f32.mrf.mxu0
  %v614 = vadd.f32 %v601, %v613
  %v615 = vpop.f32.mrf.mxu0
  %616 = vdwg.mxu0
  %v617 = vadd.f32 %v614, %v364
  %vm618 = vcmp.ge.f32.partialorder %v617, 0.0
  %v619 = vmul.f32 %v617, 0.01
  %v620 = vsel %vm618, %v617, %v619
  %v621 = vmul.f32 %v620, %v620
  %v622 = vpack.c.bf16 %v621, %v621
  %623 = vmatpush.bf16.msra.mxu0 %v414
  %624 = vmatpush.bf16.msra.mxu0 %v413
  %625 = vmatpush.bf16.msra.mxu0 %v412
  %626 = vmatpush.bf16.msra.mxu0 %v411
  %627 = vmatpush.bf16.msra.mxu0 %v410
  %628 = vmatpush.bf16.msra.mxu0 %v409
  %629 = vmatpush.bf16.msra.mxu0 %v408
  %630 = vmatpush.bf16.msra.mxu0 %v407
  %631 = vmatmul.bf16.gmra.mxu0 %v622
  %v632 = vpop.f32.mrf.mxu0
  %v633 = vadd.f32 %v373, %v632
  %v634 = vpop.f32.mrf.mxu0
  %635 = vdwg.mxu0
  %v636 = vrsqrt.pop %v633
  %v637 = vmul.f32 %v636, %v633
  %v638 = vmul.f32 %v637, %v636
  %v639 = vmul.f32 0.5, %v638
  %v640 = vsub.f32 1.5, %v639
  %v641 = vmul.f32 %v636, %v640
  %vm642 = vweird.f32 %v633
  %vm643 = vweird.f32 %v636
  %vm644 = vmor %vm642, %vm643
  %v645 = vsel %vm644, %v636, %v641
  %v646 = vmul.f32 %v620, %v645
  %647 = vst [vmem:[%s6 + $0x4] sm:$0x3] %v646
  %v648 = vld [vmem:[%s0 + $0x10] sm:$0x30]
  %v649 = vld [vmem:[%s0 + $0x18] sm:$0x30]
  %v650 = vpack.c.bf16 %v648, %v648
  %v651 = vpack.c.bf16 %v649, %v649
  %v652 = vld [vmem:[%s0 + $0x10] sm:$0xc0]
  %v653 = vld [vmem:[%s0 + $0x18] sm:$0xc0]
  %v654 = vpack.c.bf16 %v652, %v652
  %v655 = vpack.c.bf16 %v653, %v653
  %v658 = vrot.slane %v654, 3
  %v659 = vrot.slane %v655, 3
  %662 = vmatpush.bf16.msra.mxu0 %v190
  %663 = vmatpush.bf16.msra.mxu0 %v189
  %664 = vmatpush.bf16.msra.mxu0 %v188
  %665 = vmatpush.bf16.msra.mxu0 %v187
  %666 = vmatpush.bf16.msra.mxu0 %v186
  %667 = vmatpush.bf16.msra.mxu0 %v185
  %668 = vmatpush.bf16.msra.mxu0 %v184
  %669 = vmatpush.bf16.msra.mxu0 %v183
  %670 = vmatmul.bf16.gmra.mxu0 %v658
  %v671 = vpop.f32.mrf.mxu0
  %v672 = vadd.f32 0.0, %v671
  %v673 = vpop.f32.mrf.mxu0
  %674 = vdwg.mxu0
  %675 = vmatpush.bf16.msra.mxu0 %v198
  %676 = vmatpush.bf16.msra.mxu0 %v197
  %677 = vmatpush.bf16.msra.mxu0 %v196
  %678 = vmatpush.bf16.msra.mxu0 %v195
  %679 = vmatpush.bf16.msra.mxu0 %v194
  %680 = vmatpush.bf16.msra.mxu0 %v193
  %681 = vmatpush.bf16.msra.mxu0 %v192
  %682 = vmatpush.bf16.msra.mxu0 %v191
  %683 = vmatmul.bf16.gmra.mxu0 %v659
  %v684 = vpop.f32.mrf.mxu0
  %v685 = vadd.f32 %v672, %v684
  %v686 = vpop.f32.mrf.mxu0
  %687 = vdwg.mxu0
  %v690 = vrot.slane %v650, 2
  %v691 = vrot.slane %v651, 2
  %694 = vmatpush.bf16.msra.mxu0 %v312
  %695 = vmatpush.bf16.msra.mxu0 %v311
  %696 = vmatpush.bf16.msra.mxu0 %v310
  %697 = vmatpush.bf16.msra.mxu0 %v309
  %698 = vmatpush.bf16.msra.mxu0 %v308
  %699 = vmatpush.bf16.msra.mxu0 %v307
  %700 = vmatpush.bf16.msra.mxu0 %v306
  %701 = vmatpush.bf16.msra.mxu0 %v305
  %702 = vmatmul.bf16.gmra.mxu0 %v690
  %v703 = vpop.f32.mrf.mxu0
  %v704 = vadd.f32 %v685, %v703
  %v705 = vpop.f32.mrf.mxu0
  %706 = vdwg.mxu0
  %707 = vmatpush.bf16.msra.mxu0 %v320
  %708 = vmatpush.bf16.msra.mxu0 %v319
  %709 = vmatpush.bf16.msra.mxu0 %v318
  %710 = vmatpush.bf16.msra.mxu0 %v317
  %711 = vmatpush.bf16.msra.mxu0 %v316
  %712 = vmatpush.bf16.msra.mxu0 %v315
  %713 = vmatpush.bf16.msra.mxu0 %v314
  %714 = vmatpush.bf16.msra.mxu0 %v313
  %715 = vmatmul.bf16.gmra.mxu0 %v691
  %v716 = vpop.f32.mrf.mxu0
  %v717 = vadd.f32 %v704, %v716
  %v718 = vpop.f32.mrf.mxu0
  %719 = vdwg.mxu0
  %v720 = vadd.f32 %v717, %v364
  %vm721 = vcmp.ge.f32.partialorder %v720, 0.0
  %v722 = vmul.f32 %v720, 0.01
  %v723 = vsel %vm721, %v720, %v722
  %v724 = vmul.f32 %v723, %v723
  %v725 = vpack.c.bf16 %v724, %v724
  %726 = vmatpush.bf16.msra.mxu0 %v414
  %727 = vmatpush.bf16.msra.mxu0 %v413
  %728 = vmatpush.bf16.msra.mxu0 %v412
  %729 = vmatpush.bf16.msra.mxu0 %v411
  %730 = vmatpush.bf16.msra.mxu0 %v410
  %731 = vmatpush.bf16.msra.mxu0 %v409
  %732 = vmatpush.bf16.msra.mxu0 %v408
  %733 = vmatpush.bf16.msra.mxu0 %v407
  %734 = vmatmul.bf16.gmra.mxu0 %v725
  %v735 = vpop.f32.mrf.mxu0
  %v736 = vadd.f32 %v373, %v735
  %v737 = vpop.f32.mrf.mxu0
  %738 = vdwg.mxu0
  %v739 = vrsqrt.pop %v736
  %v740 = vmul.f32 %v739, %v736
  %v741 = vmul.f32 %v740, %v739
  %v742 = vmul.f32 0.5, %v741
  %v743 = vsub.f32 1.5, %v742
  %v744 = vmul.f32 %v739, %v743
  %vm745 = vweird.f32 %v736
  %vm746 = vweird.f32 %v739
  %vm747 = vmor %vm745, %vm746
  %v748 = vsel %vm747, %v739, %v744
  %v749 = vmul.f32 %v723, %v748
  %750 = vst [vmem:[%s6 + $0x6] sm:$0x3] %v749
  %v751 = vld [vmem:[%s0 + $0x20] sm:$0x3]
  %v752 = vld [vmem:[%s0 + $0x28] sm:$0x3]
  %v753 = vpack.c.bf16 %v751, %v751
  %v754 = vpack.c.bf16 %v752, %v752
  %v755 = vld [vmem:[%s0 + $0x20] sm:$0xc]
  %v756 = vld [vmem:[%s0 + $0x28] sm:$0xc]
  %v757 = vpack.c.bf16 %v755, %v755
  %v758 = vpack.c.bf16 %v756, %v756
  %v761 = vrot.slane %v757, 1
  %v762 = vrot.slane %v758, 1
  %765 = vmatpush.bf16.msra.mxu0 %v190
  %766 = vmatpush.bf16.msra.mxu0 %v189
  %767 = vmatpush.bf16.msra.mxu0 %v188
  %768 = vmatpush.bf16.msra.mxu0 %v187
  %769 = vmatpush.bf16.msra.mxu0 %v186
  %770 = vmatpush.bf16.msra.mxu0 %v185
  %771 = vmatpush.bf16.msra.mxu0 %v184
  %772 = vmatpush.bf16.msra.mxu0 %v183
  %773 = vmatmul.bf16.gmra.mxu0 %v761
  %v774 = vpop.f32.mrf.mxu0
  %v775 = vadd.f32 0.0, %v774
  %v776 = vpop.f32.mrf.mxu0
  %777 = vdwg.mxu0
  %778 = vmatpush.bf16.msra.mxu0 %v198
  %779 = vmatpush.bf16.msra.mxu0 %v197
  %780 = vmatpush.bf16.msra.mxu0 %v196
  %781 = vmatpush.bf16.msra.mxu0 %v195
  %782 = vmatpush.bf16.msra.mxu0 %v194
  %783 = vmatpush.bf16.msra.mxu0 %v193
  %784 = vmatpush.bf16.msra.mxu0 %v192
  %785 = vmatpush.bf16.msra.mxu0 %v191
  %786 = vmatmul.bf16.gmra.mxu0 %v762
  %v787 = vpop.f32.mrf.mxu0
  %v788 = vadd.f32 %v775, %v787
  %v789 = vpop.f32.mrf.mxu0
  %790 = vdwg.mxu0
  %791 = vmatpush.bf16.msra.mxu0 %v312
  %792 = vmatpush.bf16.msra.mxu0 %v311
  %793 = vmatpush.bf16.msra.mxu0 %v310
  %794 = vmatpush.bf16.msra.mxu0 %v309
  %795 = vmatpush.bf16.msra.mxu0 %v308
  %796 = vmatpush.bf16.msra.mxu0 %v307
  %797 = vmatpush.bf16.msra.mxu0 %v306
  %798 = vmatpush.bf16.msra.mxu0 %v305
  %799 = vmatmul.bf16.gmra.mxu0 %v753
  %v800 = vpop.f32.mrf.mxu0
  %v801 = vadd.f32 %v788, %v800
  %v802 = vpop.f32.mrf.mxu0
  %803 = vdwg.mxu0
  %804 = vmatpush.bf16.msra.mxu0 %v320
  %805 = vmatpush.bf16.msra.mxu0 %v319
  %806 = vmatpush.bf16.msra.mxu0 %v318
  %807 = vmatpush.bf16.msra.mxu0 %v317
  %808 = vmatpush.bf16.msra.mxu0 %v316
  %809 = vmatpush.bf16.msra.mxu0 %v315
  %810 = vmatpush.bf16.msra.mxu0 %v314
  %811 = vmatpush.bf16.msra.mxu0 %v313
  %812 = vmatmul.bf16.gmra.mxu0 %v754
  %v813 = vpop.f32.mrf.mxu0
  %v814 = vadd.f32 %v801, %v813
  %v815 = vpop.f32.mrf.mxu0
  %816 = vdwg.mxu0
  %v817 = vadd.f32 %v814, %v364
  %vm818 = vcmp.ge.f32.partialorder %v817, 0.0
  %v819 = vmul.f32 %v817, 0.01
  %v820 = vsel %vm818, %v817, %v819
  %v821 = vmul.f32 %v820, %v820
  %v822 = vpack.c.bf16 %v821, %v821
  %823 = vmatpush.bf16.msra.mxu0 %v414
  %824 = vmatpush.bf16.msra.mxu0 %v413
  %825 = vmatpush.bf16.msra.mxu0 %v412
  %826 = vmatpush.bf16.msra.mxu0 %v411
  %827 = vmatpush.bf16.msra.mxu0 %v410
  %828 = vmatpush.bf16.msra.mxu0 %v409
  %829 = vmatpush.bf16.msra.mxu0 %v408
  %830 = vmatpush.bf16.msra.mxu0 %v407
  %831 = vmatmul.bf16.gmra.mxu0 %v822
  %v832 = vpop.f32.mrf.mxu0
  %v833 = vadd.f32 %v373, %v832
  %v834 = vpop.f32.mrf.mxu0
  %835 = vdwg.mxu0
  %v836 = vrsqrt.pop %v833
  %v837 = vmul.f32 %v836, %v833
  %v838 = vmul.f32 %v837, %v836
  %v839 = vmul.f32 0.5, %v838
  %v840 = vsub.f32 1.5, %v839
  %v841 = vmul.f32 %v836, %v840
  %vm842 = vweird.f32 %v833
  %vm843 = vweird.f32 %v836
  %vm844 = vmor %vm842, %vm843
  %v845 = vsel %vm844, %v836, %v841
  %v846 = vmul.f32 %v820, %v845
  %847 = vst [vmem:[%s6 + $0x8] sm:$0x3] %v846
  %v848 = vld [vmem:[%s0 + $0x20] sm:$0x30]
  %v849 = vld [vmem:[%s0 + $0x28] sm:$0x30]
  %v850 = vpack.c.bf16 %v848, %v848
  %v851 = vpack.c.bf16 %v849, %v849
  %v852 = vld [vmem:[%s0 + $0x20] sm:$0xc0]
  %v853 = vld [vmem:[%s0 + $0x28] sm:$0xc0]
  %v854 = vpack.c.bf16 %v852, %v852
  %v855 = vpack.c.bf16 %v853, %v853
  %v858 = vrot.slane %v854, 3
  %v859 = vrot.slane %v855, 3
  %862 = vmatpush.bf16.msra.mxu0 %v190
  %863 = vmatpush.bf16.msra.mxu0 %v189
  %864 = vmatpush.bf16.msra.mxu0 %v188
  %865 = vmatpush.bf16.msra.mxu0 %v187
  %866 = vmatpush.bf16.msra.mxu0 %v186
  %867 = vmatpush.bf16.msra.mxu0 %v185
  %868 = vmatpush.bf16.msra.mxu0 %v184
  %869 = vmatpush.bf16.msra.mxu0 %v183
  %870 = vmatmul.bf16.gmra.mxu0 %v858
  %v871 = vpop.f32.mrf.mxu0
  %v872 = vadd.f32 0.0, %v871
  %v873 = vpop.f32.mrf.mxu0
  %874 = vdwg.mxu0
  %875 = vmatpush.bf16.msra.mxu0 %v198
  %876 = vmatpush.bf16.msra.mxu0 %v197
  %877 = vmatpush.bf16.msra.mxu0 %v196
  %878 = vmatpush.bf16.msra.mxu0 %v195
  %879 = vmatpush.bf16.msra.mxu0 %v194
  %880 = vmatpush.bf16.msra.mxu0 %v193
  %881 = vmatpush.bf16.msra.mxu0 %v192
  %882 = vmatpush.bf16.msra.mxu0 %v191
  %883 = vmatmul.bf16.gmra.mxu0 %v859
  %v884 = vpop.f32.mrf.mxu0
  %v885 = vadd.f32 %v872, %v884
  %v886 = vpop.f32.mrf.mxu0
  %887 = vdwg.mxu0
  %v890 = vrot.slane %v850, 2
  %v891 = vrot.slane %v851, 2
  %894 = vmatpush.bf16.msra.mxu0 %v312
  %895 = vmatpush.bf16.msra.mxu0 %v311
  %896 = vmatpush.bf16.msra.mxu0 %v310
  %897 = vmatpush.bf16.msra.mxu0 %v309
  %898 = vmatpush.bf16.msra.mxu0 %v308
  %899 = vmatpush.bf16.msra.mxu0 %v307
  %900 = vmatpush.bf16.msra.mxu0 %v306
  %901 = vmatpush.bf16.msra.mxu0 %v305
  %902 = vmatmul.bf16.gmra.mxu0 %v890
  %v903 = vpop.f32.mrf.mxu0
  %v904 = vadd.f32 %v885, %v903
  %v905 = vpop.f32.mrf.mxu0
  %906 = vdwg.mxu0
  %907 = vmatpush.bf16.msra.mxu0 %v320
  %908 = vmatpush.bf16.msra.mxu0 %v319
  %909 = vmatpush.bf16.msra.mxu0 %v318
  %910 = vmatpush.bf16.msra.mxu0 %v317
  %911 = vmatpush.bf16.msra.mxu0 %v316
  %912 = vmatpush.bf16.msra.mxu0 %v315
  %913 = vmatpush.bf16.msra.mxu0 %v314
  %914 = vmatpush.bf16.msra.mxu0 %v313
  %915 = vmatmul.bf16.gmra.mxu0 %v891
  %v916 = vpop.f32.mrf.mxu0
  %v917 = vadd.f32 %v904, %v916
  %v918 = vpop.f32.mrf.mxu0
  %919 = vdwg.mxu0
  %v920 = vadd.f32 %v917, %v364
  %vm921 = vcmp.ge.f32.partialorder %v920, 0.0
  %v922 = vmul.f32 %v920, 0.01
  %v923 = vsel %vm921, %v920, %v922
  %v924 = vmul.f32 %v923, %v923
  %v925 = vpack.c.bf16 %v924, %v924
  %926 = vmatpush.bf16.msra.mxu0 %v414
  %927 = vmatpush.bf16.msra.mxu0 %v413
  %928 = vmatpush.bf16.msra.mxu0 %v412
  %929 = vmatpush.bf16.msra.mxu0 %v411
  %930 = vmatpush.bf16.msra.mxu0 %v410
  %931 = vmatpush.bf16.msra.mxu0 %v409
  %932 = vmatpush.bf16.msra.mxu0 %v408
  %933 = vmatpush.bf16.msra.mxu0 %v407
  %934 = vmatmul.bf16.gmra.mxu0 %v925
  %v935 = vpop.f32.mrf.mxu0
  %v936 = vadd.f32 %v373, %v935
  %v937 = vpop.f32.mrf.mxu0
  %938 = vdwg.mxu0
  %v939 = vrsqrt.pop %v936
  %v940 = vmul.f32 %v939, %v936
  %v941 = vmul.f32 %v940, %v939
  %v942 = vmul.f32 0.5, %v941
  %v943 = vsub.f32 1.5, %v942
  %v944 = vmul.f32 %v939, %v943
  %vm945 = vweird.f32 %v936
  %vm946 = vweird.f32 %v939
  %vm947 = vmor %vm945, %vm946
  %v948 = vsel %vm947, %v939, %v944
  %v949 = vmul.f32 %v923, %v948
  %950 = vst [vmem:[%s6 + $0xa] sm:$0x3] %v949
  %v951 = vld [vmem:[%s0 + $0x30] sm:$0x3]
  %v952 = vld [vmem:[%s0 + $0x38] sm:$0x3]
  %v953 = vpack.c.bf16 %v951, %v951
  %v954 = vpack.c.bf16 %v952, %v952
  %v955 = vld [vmem:[%s0 + $0x30] sm:$0xc]
  %v956 = vld [vmem:[%s0 + $0x38] sm:$0xc]
  %v957 = vpack.c.bf16 %v955, %v955
  %v958 = vpack.c.bf16 %v956, %v956
  %v961 = vrot.slane %v957, 1
  %v962 = vrot.slane %v958, 1
  %965 = vmatpush.bf16.msra.mxu0 %v190
  %966 = vmatpush.bf16.msra.mxu0 %v189
  %967 = vmatpush.bf16.msra.mxu0 %v188
  %968 = vmatpush.bf16.msra.mxu0 %v187
  %969 = vmatpush.bf16.msra.mxu0 %v186
  %970 = vmatpush.bf16.msra.mxu0 %v185
  %971 = vmatpush.bf16.msra.mxu0 %v184
  %972 = vmatpush.bf16.msra.mxu0 %v183
  %973 = vmatmul.bf16.gmra.mxu0 %v961
  %v974 = vpop.f32.mrf.mxu0
  %v975 = vadd.f32 0.0, %v974
  %v976 = vpop.f32.mrf.mxu0
  %977 = vdwg.mxu0
  %978 = vmatpush.bf16.msra.mxu0 %v198
  %979 = vmatpush.bf16.msra.mxu0 %v197
  %980 = vmatpush.bf16.msra.mxu0 %v196
  %981 = vmatpush.bf16.msra.mxu0 %v195
  %982 = vmatpush.bf16.msra.mxu0 %v194
  %983 = vmatpush.bf16.msra.mxu0 %v193
  %984 = vmatpush.bf16.msra.mxu0 %v192
  %985 = vmatpush.bf16.msra.mxu0 %v191
  %986 = vmatmul.bf16.gmra.mxu0 %v962
  %v987 = vpop.f32.mrf.mxu0
  %v988 = vadd.f32 %v975, %v987
  %v989 = vpop.f32.mrf.mxu0
  %990 = vdwg.mxu0
  %991 = vmatpush.bf16.msra.mxu0 %v312
  %992 = vmatpush.bf16.msra.mxu0 %v311
  %993 = vmatpush.bf16.msra.mxu0 %v310
  %994 = vmatpush.bf16.msra.mxu0 %v309
  %995 = vmatpush.bf16.msra.mxu0 %v308
  %996 = vmatpush.bf16.msra.mxu0 %v307
  %997 = vmatpush.bf16.msra.mxu0 %v306
  %998 = vmatpush.bf16.msra.mxu0 %v305
  %999 = vmatmul.bf16.gmra.mxu0 %v953
  %v1000 = vpop.f32.mrf.mxu0
  %v1001 = vadd.f32 %v988, %v1000
  %v1002 = vpop.f32.mrf.mxu0
  %1003 = vdwg.mxu0
  %1004 = vmatpush.bf16.msra.mxu0 %v320
  %1005 = vmatpush.bf16.msra.mxu0 %v319
  %1006 = vmatpush.bf16.msra.mxu0 %v318
  %1007 = vmatpush.bf16.msra.mxu0 %v317
  %1008 = vmatpush.bf16.msra.mxu0 %v316
  %1009 = vmatpush.bf16.msra.mxu0 %v315
  %1010 = vmatpush.bf16.msra.mxu0 %v314
  %1011 = vmatpush.bf16.msra.mxu0 %v313
  %1012 = vmatmul.bf16.gmra.mxu0 %v954
  %v1013 = vpop.f32.mrf.mxu0
  %v1014 = vadd.f32 %v1001, %v1013
  %v1015 = vpop.f32.mrf.mxu0
  %1016 = vdwg.mxu0
  %v1017 = vadd.f32 %v1014, %v364
  %vm1018 = vcmp.ge.f32.partialorder %v1017, 0.0
  %v1019 = vmul.f32 %v1017, 0.01
  %v1020 = vsel %vm1018, %v1017, %v1019
  %v1021 = vmul.f32 %v1020, %v1020
  %v1022 = vpack.c.bf16 %v1021, %v1021
  %1023 = vmatpush.bf16.msra.mxu0 %v414
  %1024 = vmatpush.bf16.msra.mxu0 %v413
  %1025 = vmatpush.bf16.msra.mxu0 %v412
  %1026 = vmatpush.bf16.msra.mxu0 %v411
  %1027 = vmatpush.bf16.msra.mxu0 %v410
  %1028 = vmatpush.bf16.msra.mxu0 %v409
  %1029 = vmatpush.bf16.msra.mxu0 %v408
  %1030 = vmatpush.bf16.msra.mxu0 %v407
  %1031 = vmatmul.bf16.gmra.mxu0 %v1022
  %v1032 = vpop.f32.mrf.mxu0
  %v1033 = vadd.f32 %v373, %v1032
  %v1034 = vpop.f32.mrf.mxu0
  %1035 = vdwg.mxu0
  %v1036 = vrsqrt.pop %v1033
  %v1037 = vmul.f32 %v1036, %v1033
  %v1038 = vmul.f32 %v1037, %v1036
  %v1039 = vmul.f32 0.5, %v1038
  %v1040 = vsub.f32 1.5, %v1039
  %v1041 = vmul.f32 %v1036, %v1040
  %vm1042 = vweird.f32 %v1033
  %vm1043 = vweird.f32 %v1036
  %vm1044 = vmor %vm1042, %vm1043
  %v1045 = vsel %vm1044, %v1036, %v1041
  %v1046 = vmul.f32 %v1020, %v1045
  %1047 = vst [vmem:[%s6 + $0xc] sm:$0x3] %v1046
  %v1048 = vld [vmem:[%s0 + $0x30] sm:$0x30]
  %v1049 = vld [vmem:[%s0 + $0x38] sm:$0x30]
  %v1050 = vpack.c.bf16 %v1048, %v1048
  %v1051 = vpack.c.bf16 %v1049, %v1049
  %v1052 = vld [vmem:[%s0 + $0x30] sm:$0xc0]
  %v1053 = vld [vmem:[%s0 + $0x38] sm:$0xc0]
  %v1054 = vpack.c.bf16 %v1052, %v1052
  %v1055 = vpack.c.bf16 %v1053, %v1053
  %v1058 = vrot.slane %v1054, 3
  %v1059 = vrot.slane %v1055, 3
  %1062 = vmatpush.bf16.msra.mxu0 %v190
  %1063 = vmatpush.bf16.msra.mxu0 %v189
  %1064 = vmatpush.bf16.msra.mxu0 %v188
  %1065 = vmatpush.bf16.msra.mxu0 %v187
  %1066 = vmatpush.bf16.msra.mxu0 %v186
  %1067 = vmatpush.bf16.msra.mxu0 %v185
  %1068 = vmatpush.bf16.msra.mxu0 %v184
  %1069 = vmatpush.bf16.msra.mxu0 %v183
  %1070 = vmatmul.bf16.gmra.mxu0 %v1058
  %v1071 = vpop.f32.mrf.mxu0
  %v1072 = vadd.f32 0.0, %v1071
  %v1073 = vpop.f32.mrf.mxu0
  %1074 = vdwg.mxu0
  %1075 = vmatpush.bf16.msra.mxu0 %v198
  %1076 = vmatpush.bf16.msra.mxu0 %v197
  %1077 = vmatpush.bf16.msra.mxu0 %v196
  %1078 = vmatpush.bf16.msra.mxu0 %v195
  %1079 = vmatpush.bf16.msra.mxu0 %v194
  %1080 = vmatpush.bf16.msra.mxu0 %v193
  %1081 = vmatpush.bf16.msra.mxu0 %v192
  %1082 = vmatpush.bf16.msra.mxu0 %v191
  %1083 = vmatmul.bf16.gmra.mxu0 %v1059
  %v1084 = vpop.f32.mrf.mxu0
  %v1085 = vadd.f32 %v1072, %v1084
  %v1086 = vpop.f32.mrf.mxu0
  %1087 = vdwg.mxu0
  %v1090 = vrot.slane %v1050, 2
  %v1091 = vrot.slane %v1051, 2
  %1094 = vmatpush.bf16.msra.mxu0 %v312
  %1095 = vmatpush.bf16.msra.mxu0 %v311
  %1096 = vmatpush.bf16.msra.mxu0 %v310
  %1097 = vmatpush.bf16.msra.mxu0 %v309
  %1098 = vmatpush.bf16.msra.mxu0 %v308
  %1099 = vmatpush.bf16.msra.mxu0 %v307
  %1100 = vmatpush.bf16.msra.mxu0 %v306
  %1101 = vmatpush.bf16.msra.mxu0 %v305
  %1102 = vmatmul.bf16.gmra.mxu0 %v1090
  %v1103 = vpop.f32.mrf.mxu0
  %v1104 = vadd.f32 %v1085, %v1103
  %v1105 = vpop.f32.mrf.mxu0
  %1106 = vdwg.mxu0
  %1107 = vmatpush.bf16.msra.mxu0 %v320
  %1108 = vmatpush.bf16.msra.mxu0 %v319
  %1109 = vmatpush.bf16.msra.mxu0 %v318
  %1110 = vmatpush.bf16.msra.mxu0 %v317
  %1111 = vmatpush.bf16.msra.mxu0 %v316
  %1112 = vmatpush.bf16.msra.mxu0 %v315
  %1113 = vmatpush.bf16.msra.mxu0 %v314
  %1114 = vmatpush.bf16.msra.mxu0 %v313
  %1115 = vmatmul.bf16.gmra.mxu0 %v1091
  %v1116 = vpop.f32.mrf.mxu0
  %v1117 = vadd.f32 %v1104, %v1116
  %v1118 = vpop.f32.mrf.mxu0
  %1119 = vdwg.mxu0
  %v1120 = vadd.f32 %v1117, %v364
  %vm1121 = vcmp.ge.f32.partialorder %v1120, 0.0
  %v1122 = vmul.f32 %v1120, 0.01
  %v1123 = vsel %vm1121, %v1120, %v1122
  %v1124 = vmul.f32 %v1123, %v1123
  %v1125 = vpack.c.bf16 %v1124, %v1124
  %1126 = vmatpush.bf16.msra.mxu0 %v414
  %1127 = vmatpush.bf16.msra.mxu0 %v413
  %1128 = vmatpush.bf16.msra.mxu0 %v412
  %1129 = vmatpush.bf16.msra.mxu0 %v411
  %1130 = vmatpush.bf16.msra.mxu0 %v410
  %1131 = vmatpush.bf16.msra.mxu0 %v409
  %1132 = vmatpush.bf16.msra.mxu0 %v408
  %1133 = vmatpush.bf16.msra.mxu0 %v407
  %1134 = vmatmul.bf16.gmra.mxu0 %v1125
  %v1135 = vpop.f32.mrf.mxu0
  %v1136 = vadd.f32 %v373, %v1135
  %v1137 = vpop.f32.mrf.mxu0
  %1138 = vdwg.mxu0
  %v1139 = vrsqrt.pop %v1136
  %v1140 = vmul.f32 %v1139, %v1136
  %v1141 = vmul.f32 %v1140, %v1139
  %v1142 = vmul.f32 0.5, %v1141
  %v1143 = vsub.f32 1.5, %v1142
  %v1144 = vmul.f32 %v1139, %v1143
  %vm1145 = vweird.f32 %v1136
  %vm1146 = vweird.f32 %v1139
  %vm1147 = vmor %vm1145, %vm1146
  %v1148 = vsel %vm1147, %v1139, %v1144
  %v1149 = vmul.f32 %v1123, %v1148
  %1150 = vst [vmem:[%s6 + $0xe] sm:$0x3] %v1149
  // Predicated region
  $region26: #{encode_net_forward.9} parent=0 // pred_check
    _
  $region27: #{encode_net_forward.9} parent=0 // pred_check_branch
    %1152 = sbr.rel (0) target = $region29
  $region28: #{encode_net_forward.9} parent=0 // pred_region
    _
  $region29: #{encode_net_forward.9} parent=0 // pred_fallthru
    _
  // Predicated region
  $region30: #{encode_net_forward.9} parent=0 // pred_check
    _
  $region31: #{encode_net_forward.9} parent=0 // pred_check_branch
    %1154 = sbr.rel (0) target = $region33
  $region32: #{encode_net_forward.9} parent=0 // pred_region
    _
  $region33: #{encode_net_forward.9} parent=0 // pred_fallthru
    _

// kernel: encode_net_forward.8
$region0: #{encode_net_forward.8}
  #allocation0 [shape = 'u32[]', space=smem, size = 0x4, offset = 0x4, fixed_abs, tag = 'smem constant byte address 0x4 - core index']
  #allocation1 [shape = 'u32[72,128]{1,0:T(1,128)}', space=vmem, size = 0x9000, scoped, tag = 'internal scratch']
  %s0 = inlined_call_operand.vmem [shape: f32[128,256], index: 0, kind: input, shape index: {}]
  %s1 = inlined_call_operand.vmem [shape: bf16[256,128], index: 1, kind: input, shape index: {}]
  %s2 = inlined_call_operand.vmem [shape: bf16[256,128], index: 2, kind: input, shape index: {}]
  %s3 = inlined_call_operand.vmem [shape: f32[1,128], index: 3, kind: input, shape index: {}]
  %s4 = inlined_call_operand.vmem [shape: bf16[128,128], index: 4, kind: input, shape index: {}]
  %s5 = inlined_call_operand.vmem [shape: f32[1,128], index: 5, kind: input, shape index: {}]
  %s6 = inlined_call_operand.vmem [shape: f32[64,128], index: 6, kind: output, shape index: {}]
  %s7 = sld [smem:[#allocation0]]
  $region34: #{encode_net_forward.8} parent=0
    _
  %s9 = ssub.s32 1, %s7
  %s10 = scalar_select 0, %s9, %s7
  // Predicated region
  $region2: #{encode_net_forward.8} parent=0 // pred_check
    _
  $region3: #{encode_net_forward.8} parent=0 // pred_check_branch
    %12 = sbr.rel (0) target = $region5
  $region4: #{encode_net_forward.8} parent=0 // pred_region
    _
  $region5: #{encode_net_forward.8} parent=0 // pred_fallthru
    _
  // Predicated region
  $region6: #{encode_net_forward.8} parent=0 // pred_check
    _
  $region7: #{encode_net_forward.8} parent=0 // pred_check_branch
    %14 = sbr.rel (0) target = $region9
  $region8: #{encode_net_forward.8} parent=0 // pred_region
    _
  $region9: #{encode_net_forward.8} parent=0 // pred_fallthru
    _
  // Predicated region
  $region10: #{encode_net_forward.8} parent=0 // pred_check
    _
  $region11: #{encode_net_forward.8} parent=0 // pred_check_branch
    %16 = sbr.rel (0) target = $region13
  $region12: #{encode_net_forward.8} parent=0 // pred_region
    _
  $region13: #{encode_net_forward.8} parent=0 // pred_fallthru
    _
  // Predicated region
  $region14: #{encode_net_forward.8} parent=0 // pred_check
    _
  $region15: #{encode_net_forward.8} parent=0 // pred_check_branch
    %18 = sbr.rel (0) target = $region17
  $region16: #{encode_net_forward.8} parent=0 // pred_region
    _
  $region17: #{encode_net_forward.8} parent=0 // pred_fallthru
    _
  // Predicated region
  $region18: #{encode_net_forward.8} parent=0 // pred_check
    _
  $region19: #{encode_net_forward.8} parent=0 // pred_check_branch
    %20 = sbr.rel (0) target = $region21
  $region20: #{encode_net_forward.8} parent=0 // pred_region
    _
  $region21: #{encode_net_forward.8} parent=0 // pred_fallthru
    _
  // Predicated region
  $region22: #{encode_net_forward.8} parent=0 // pred_check
    _
  $region23: #{encode_net_forward.8} parent=0 // pred_check_branch
    %22 = sbr.rel (0) target = $region25
  $region24: #{encode_net_forward.8} parent=0 // pred_region
    _
  $region25: #{encode_net_forward.8} parent=0 // pred_fallthru
    _
  %v23 = vld [vmem:[%s1] sm:$0xf]
  %v24 = vld [vmem:[%s1 + $0x4] sm:$0xf]
  %v25 = vld [vmem:[%s1 + $0x8] sm:$0xf]
  %v26 = vld [vmem:[%s1 + $0xc] sm:$0xf]
  %v27 = vld [vmem:[%s1 + $0x10] sm:$0xf]
  %v28 = vld [vmem:[%s1 + $0x14] sm:$0xf]
  %v29 = vld [vmem:[%s1 + $0x18] sm:$0xf]
  %v30 = vld [vmem:[%s1 + $0x1c] sm:$0xf]
  %v31 = vld [vmem:[%s1 + $0x20] sm:$0xf]
  %v32 = vld [vmem:[%s1 + $0x24] sm:$0xf]
  %v33 = vld [vmem:[%s1 + $0x28] sm:$0xf]
  %v34 = vld [vmem:[%s1 + $0x2c] sm:$0xf]
  %v35 = vld [vmem:[%s1 + $0x30] sm:$0xf]
  %v36 = vld [vmem:[%s1 + $0x34] sm:$0xf]
  %v37 = vld [vmem:[%s1 + $0x38] sm:$0xf]
  %v38 = vld [vmem:[%s1 + $0x3c] sm:$0xf]
  %v39 = vld [vmem:[%s1 + $0x40] sm:$0xf]
  %v40 = vld [vmem:[%s1 + $0x44] sm:$0xf]
  %v41 = vld [vmem:[%s1 + $0x48] sm:$0xf]
  %v42 = vld [vmem:[%s1 + $0x4c] sm:$0xf]
  %v43 = vld [vmem:[%s1 + $0x50] sm:$0xf]
  %v44 = vld [vmem:[%s1 + $0x54] sm:$0xf]
  %v45 = vld [vmem:[%s1 + $0x58] sm:$0xf]
  %v46 = vld [vmem:[%s1 + $0x5c] sm:$0xf]
  %v47 = vld [vmem:[%s1 + $0x60] sm:$0xf]
  %v48 = vld [vmem:[%s1 + $0x64] sm:$0xf]
  %v49 = vld [vmem:[%s1 + $0x68] sm:$0xf]
  %v50 = vld [vmem:[%s1 + $0x6c] sm:$0xf]
  %v51 = vld [vmem:[%s1 + $0x70] sm:$0xf]
  %v52 = vld [vmem:[%s1 + $0x74] sm:$0xf]
  %v53 = vld [vmem:[%s1 + $0x78] sm:$0xf]
  %v54 = vld [vmem:[%s1 + $0x7c] sm:$0xf]
  %v55 = vld [vmem:[%s2] sm:$0xf]
  %v56 = vld [vmem:[%s2 + $0x4] sm:$0xf]
  %v57 = vld [vmem:[%s2 + $0x8] sm:$0xf]
  %v58 = vld [vmem:[%s2 + $0xc] sm:$0xf]
  %v59 = vld [vmem:[%s2 + $0x10] sm:$0xf]
  %v60 = vld [vmem:[%s2 + $0x14] sm:$0xf]
  %v61 = vld [vmem:[%s2 + $0x18] sm:$0xf]
  %v62 = vld [vmem:[%s2 + $0x1c] sm:$0xf]
  %v63 = vld [vmem:[%s2 + $0x20] sm:$0xf]
  %v64 = vld [vmem:[%s2 + $0x24] sm:$0xf]
  %v65 = vld [vmem:[%s2 + $0x28] sm:$0xf]
  %v66 = vld [vmem:[%s2 + $0x2c] sm:$0xf]
  %v67 = vld [vmem:[%s2 + $0x30] sm:$0xf]
  %v68 = vld [vmem:[%s2 + $0x34] sm:$0xf]
  %v69 = vld [vmem:[%s2 + $0x38] sm:$0xf]
  %v70 = vld [vmem:[%s2 + $0x3c] sm:$0xf]
  %v71 = vld [vmem:[%s2 + $0x40] sm:$0xf]
  %v72 = vld [vmem:[%s2 + $0x44] sm:$0xf]
  %v73 = vld [vmem:[%s2 + $0x48] sm:$0xf]
  %v74 = vld [vmem:[%s2 + $0x4c] sm:$0xf]
  %v75 = vld [vmem:[%s2 + $0x50] sm:$0xf]
  %v76 = vld [vmem:[%s2 + $0x54] sm:$0xf]
  %v77 = vld [vmem:[%s2 + $0x58] sm:$0xf]
  %v78 = vld [vmem:[%s2 + $0x5c] sm:$0xf]
  %v79 = vld [vmem:[%s2 + $0x60] sm:$0xf]
  %v80 = vld [vmem:[%s2 + $0x64] sm:$0xf]
  %v81 = vld [vmem:[%s2 + $0x68] sm:$0xf]
  %v82 = vld [vmem:[%s2 + $0x6c] sm:$0xf]
  %v83 = vld [vmem:[%s2 + $0x70] sm:$0xf]
  %v84 = vld [vmem:[%s2 + $0x74] sm:$0xf]
  %v85 = vld [vmem:[%s2 + $0x78] sm:$0xf]
  %v86 = vld [vmem:[%s2 + $0x7c] sm:$0xf]
  %v87 = vld [vmem:[%s3] sm:$0x1]
  %v88 = vld [vmem:[%s4] sm:$0xf]
  %v89 = vld [vmem:[%s4 + $0x4] sm:$0xf]
  %v90 = vld [vmem:[%s4 + $0x8] sm:$0xf]
  %v91 = vld [vmem:[%s4 + $0xc] sm:$0xf]
  %v92 = vld [vmem:[%s4 + $0x10] sm:$0xf]
  %v93 = vld [vmem:[%s4 + $0x14] sm:$0xf]
  %v94 = vld [vmem:[%s4 + $0x18] sm:$0xf]
  %v95 = vld [vmem:[%s4 + $0x1c] sm:$0xf]
  %v96 = vld [vmem:[%s4 + $0x20] sm:$0xf]
  %v97 = vld [vmem:[%s4 + $0x24] sm:$0xf]
  %v98 = vld [vmem:[%s4 + $0x28] sm:$0xf]
  %v99 = vld [vmem:[%s4 + $0x2c] sm:$0xf]
  %v100 = vld [vmem:[%s4 + $0x30] sm:$0xf]
  %v101 = vld [vmem:[%s4 + $0x34] sm:$0xf]
  %v102 = vld [vmem:[%s4 + $0x38] sm:$0xf]
  %v103 = vld [vmem:[%s4 + $0x3c] sm:$0xf]
  %v104 = vld [vmem:[%s5] sm:$0x1]
  %v105 = vld [vmem:[%s0] sm:$0xf]
  %v106 = vld [vmem:[%s0 + $0x8] sm:$0xf]
  %v107 = vpack.c.bf16 %v105, %v105
  %v108 = vpack.c.bf16 %v106, %v106
  %v109 = vld [vmem:[%s0] sm:$0xf0]
  %v110 = vld [vmem:[%s0 + $0x8] sm:$0xf0]
  %v111 = vpack.c.bf16 %v109, %v109
  %v112 = vpack.c.bf16 %v110, %v110
  %v115 = vrot.slane %v111, 2
  %v116 = vrot.slane %v112, 2
  %v151 = vunpack.c.l.b16 %v55
  %v152 = vunpack.c.l.b16 %v56
  %v153 = vunpack.c.l.b16 %v57
  %v154 = vunpack.c.l.b16 %v58
  %v155 = vunpack.c.l.b16 %v59
  %v156 = vunpack.c.l.b16 %v60
  %v157 = vunpack.c.l.b16 %v61
  %v158 = vunpack.c.l.b16 %v62
  %v159 = vunpack.c.l.b16 %v63
  %v160 = vunpack.c.l.b16 %v64
  %v161 = vunpack.c.l.b16 %v65
  %v162 = vunpack.c.l.b16 %v66
  %v163 = vunpack.c.l.b16 %v67
  %v164 = vunpack.c.l.b16 %v68
  %v165 = vunpack.c.l.b16 %v69
  %v166 = vunpack.c.l.b16 %v70
  %v167 = vunpack.c.l.b16 %v71
  %v168 = vunpack.c.l.b16 %v72
  %v169 = vunpack.c.l.b16 %v73
  %v170 = vunpack.c.l.b16 %v74
  %v171 = vunpack.c.l.b16 %v75
  %v172 = vunpack.c.l.b16 %v76
  %v173 = vunpack.c.l.b16 %v77
  %v174 = vunpack.c.l.b16 %v78
  %v175 = vunpack.c.l.b16 %v79
  %v176 = vunpack.c.l.b16 %v80
  %v177 = vunpack.c.l.b16 %v81
  %v178 = vunpack.c.l.b16 %v82
  %v179 = vunpack.c.l.b16 %v83
  %v180 = vunpack.c.l.b16 %v84
  %v181 = vunpack.c.l.b16 %v85
  %v182 = vunpack.c.l.b16 %v86
  %v183 = vpack.c.b16 %v152, %v151
  %v184 = vpack.c.b16 %v154, %v153
  %v185 = vpack.c.b16 %v156, %v155
  %v186 = vpack.c.b16 %v158, %v157
  %v187 = vpack.c.b16 %v160, %v159
  %v188 = vpack.c.b16 %v162, %v161
  %v189 = vpack.c.b16 %v164, %v163
  %v190 = vpack.c.b16 %v166, %v165
  %v191 = vpack.c.b16 %v168, %v167
  %v192 = vpack.c.b16 %v170, %v169
  %v193 = vpack.c.b16 %v172, %v171
  %v194 = vpack.c.b16 %v174, %v173
  %v195 = vpack.c.b16 %v176, %v175
  %v196 = vpack.c.b16 %v178, %v177
  %v197 = vpack.c.b16 %v180, %v179
  %v198 = vpack.c.b16 %v182, %v181
  %215 = vmatpush.bf16.msra.mxu0 %v190
  %216 = vmatpush.bf16.msra.mxu0 %v189
  %217 = vmatpush.bf16.msra.mxu0 %v188
  %218 = vmatpush.bf16.msra.mxu0 %v187
  %219 = vmatpush.bf16.msra.mxu0 %v186
  %220 = vmatpush.bf16.msra.mxu0 %v185
  %221 = vmatpush.bf16.msra.mxu0 %v184
  %222 = vmatpush.bf16.msra.mxu0 %v183
  %223 = vmatmul.bf16.gmra.mxu0 %v115
  %v224 = vpop.f32.mrf.mxu0
  %v225 = vadd.f32 0.0, %v224
  %v226 = vpop.f32.mrf.mxu0
  %227 = vdwg.mxu0
  %228 = vmatpush.bf16.msra.mxu0 %v198
  %229 = vmatpush.bf16.msra.mxu0 %v197
  %230 = vmatpush.bf16.msra.mxu0 %v196
  %231 = vmatpush.bf16.msra.mxu0 %v195
  %232 = vmatpush.bf16.msra.mxu0 %v194
  %233 = vmatpush.bf16.msra.mxu0 %v193
  %234 = vmatpush.bf16.msra.mxu0 %v192
  %235 = vmatpush.bf16.msra.mxu0 %v191
  %236 = vmatmul.bf16.gmra.mxu0 %v116
  %v237 = vpop.f32.mrf.mxu0
  %v238 = vadd.f32 %v225, %v237
  %v239 = vpop.f32.mrf.mxu0
  %240 = vdwg.mxu0
  %v273 = vunpack.c.l.b16 %v23
  %v274 = vunpack.c.l.b16 %v24
  %v275 = vunpack.c.l.b16 %v25
  %v276 = vunpack.c.l.b16 %v26
  %v277 = vunpack.c.l.b16 %v27
  %v278 = vunpack.c.l.b16 %v28
  %v279 = vunpack.c.l.b16 %v29
  %v280 = vunpack.c.l.b16 %v30
  %v281 = vunpack.c.l.b16 %v31
  %v282 = vunpack.c.l.b16 %v32
  %v283 = vunpack.c.l.b16 %v33
  %v284 = vunpack.c.l.b16 %v34
  %v285 = vunpack.c.l.b16 %v35
  %v286 = vunpack.c.l.b16 %v36
  %v287 = vunpack.c.l.b16 %v37
  %v288 = vunpack.c.l.b16 %v38
  %v289 = vunpack.c.l.b16 %v39
  %v290 = vunpack.c.l.b16 %v40
  %v291 = vunpack.c.l.b16 %v41
  %v292 = vunpack.c.l.b16 %v42
  %v293 = vunpack.c.l.b16 %v43
  %v294 = vunpack.c.l.b16 %v44
  %v295 = vunpack.c.l.b16 %v45
  %v296 = vunpack.c.l.b16 %v46
  %v297 = vunpack.c.l.b16 %v47
  %v298 = vunpack.c.l.b16 %v48
  %v299 = vunpack.c.l.b16 %v49
  %v300 = vunpack.c.l.b16 %v50
  %v301 = vunpack.c.l.b16 %v51
  %v302 = vunpack.c.l.b16 %v52
  %v303 = vunpack.c.l.b16 %v53
  %v304 = vunpack.c.l.b16 %v54
  %v305 = vpack.c.b16 %v274, %v273
  %v306 = vpack.c.b16 %v276, %v275
  %v307 = vpack.c.b16 %v278, %v277
  %v308 = vpack.c.b16 %v280, %v279
  %v309 = vpack.c.b16 %v282, %v281
  %v310 = vpack.c.b16 %v284, %v283
  %v311 = vpack.c.b16 %v286, %v285
  %v312 = vpack.c.b16 %v288, %v287
  %v313 = vpack.c.b16 %v290, %v289
  %v314 = vpack.c.b16 %v292, %v291
  %v315 = vpack.c.b16 %v294, %v293
  %v316 = vpack.c.b16 %v296, %v295
  %v317 = vpack.c.b16 %v298, %v297
  %v318 = vpack.c.b16 %v300, %v299
  %v319 = vpack.c.b16 %v302, %v301
  %v320 = vpack.c.b16 %v304, %v303
  %337 = vmatpush.bf16.msra.mxu0 %v312
  %338 = vmatpush.bf16.msra.mxu0 %v311
  %339 = vmatpush.bf16.msra.mxu0 %v310
  %340 = vmatpush.bf16.msra.mxu0 %v309
  %341 = vmatpush.bf16.msra.mxu0 %v308
  %342 = vmatpush.bf16.msra.mxu0 %v307
  %343 = vmatpush.bf16.msra.mxu0 %v306
  %344 = vmatpush.bf16.msra.mxu0 %v305
  %345 = vmatmul.bf16.gmra.mxu0 %v107
  %v346 = vpop.f32.mrf.mxu0
  %v347 = vadd.f32 %v238, %v346
  %v348 = vpop.f32.mrf.mxu0
  %349 = vdwg.mxu0
  %350 = vmatpush.bf16.msra.mxu0 %v320
  %351 = vmatpush.bf16.msra.mxu0 %v319
  %352 = vmatpush.bf16.msra.mxu0 %v318
  %353 = vmatpush.bf16.msra.mxu0 %v317
  %354 = vmatpush.bf16.msra.mxu0 %v316
  %355 = vmatpush.bf16.msra.mxu0 %v315
  %356 = vmatpush.bf16.msra.mxu0 %v314
  %357 = vmatpush.bf16.msra.mxu0 %v313
  %358 = vmatmul.bf16.gmra.mxu0 %v108
  %v359 = vpop.f32.mrf.mxu0
  %v360 = vadd.f32 %v347, %v359
  %v361 = vpop.f32.mrf.mxu0
  %362 = vdwg.mxu0
  %v364 = vperm.slane %v87, 0
  %v366 = vadd.f32 %v360, %v364
  %vm367 = vcmp.ge.f32.partialorder %v366, 0.0
  %v368 = vmul.f32 %v366, 0.01
  %v369 = vsel %vm367, %v366, %v368
  %v370 = vmul.f32 %v369, %v369
  %v371 = vpack.c.bf16 %v370, %v370
  %v373 = vperm.slane %v104, 0
  %v391 = vunpack.c.l.b16 %v88
  %v392 = vunpack.c.l.b16 %v89
  %v393 = vunpack.c.l.b16 %v90
  %v394 = vunpack.c.l.b16 %v91
  %v395 = vunpack.c.l.b16 %v92
  %v396 = vunpack.c.l.b16 %v93
  %v397 = vunpack.c.l.b16 %v94
  %v398 = vunpack.c.l.b16 %v95
  %v399 = vunpack.c.l.b16 %v96
  %v400 = vunpack.c.l.b16 %v97
  %v401 = vunpack.c.l.b16 %v98
  %v402 = vunpack.c.l.b16 %v99
  %v403 = vunpack.c.l.b16 %v100
  %v404 = vunpack.c.l.b16 %v101
  %v405 = vunpack.c.l.b16 %v102
  %v406 = vunpack.c.l.b16 %v103
  %v407 = vpack.c.b16 %v392, %v391
  %v408 = vpack.c.b16 %v394, %v393
  %v409 = vpack.c.b16 %v396, %v395
  %v410 = vpack.c.b16 %v398, %v397
  %v411 = vpack.c.b16 %v400, %v399
  %v412 = vpack.c.b16 %v402, %v401
  %v413 = vpack.c.b16 %v404, %v403
  %v414 = vpack.c.b16 %v406, %v405
  %423 = vmatpush.bf16.msra.mxu0 %v414
  %424 = vmatpush.bf16.msra.mxu0 %v413
  %425 = vmatpush.bf16.msra.mxu0 %v412
  %426 = vmatpush.bf16.msra.mxu0 %v411
  %427 = vmatpush.bf16.msra.mxu0 %v410
  %428 = vmatpush.bf16.msra.mxu0 %v409
  %429 = vmatpush.bf16.msra.mxu0 %v408
  %430 = vmatpush.bf16.msra.mxu0 %v407
  %431 = vmatmul.bf16.gmra.mxu0 %v371
  %v432 = vpop.f32.mrf.mxu0
  %v433 = vadd.f32 %v373, %v432
  %v434 = vpop.f32.mrf.mxu0
  %435 = vdwg.mxu0
  %v436 = vrsqrt.pop %v433
  %v437 = vmul.f32 %v436, %v433
  %v438 = vmul.f32 %v437, %v436
  %v439 = vmul.f32 0.5, %v438
  %v440 = vsub.f32 1.5, %v439
  %v441 = vmul.f32 %v436, %v440
  %vm442 = vweird.f32 %v433
  %vm443 = vweird.f32 %v436
  %vm444 = vmor %vm442, %vm443
  %v445 = vsel %vm444, %v436, %v441
  %v446 = vmul.f32 %v369, %v445
  %447 = vst [vmem:[%s6] sm:$0xf] %v446
  %v448 = vld [vmem:[%s0 + $0x10] sm:$0xf]
  %v449 = vld [vmem:[%s0 + $0x18] sm:$0xf]
  %v450 = vpack.c.bf16 %v448, %v448
  %v451 = vpack.c.bf16 %v449, %v449
  %v452 = vld [vmem:[%s0 + $0x10] sm:$0xf0]
  %v453 = vld [vmem:[%s0 + $0x18] sm:$0xf0]
  %v454 = vpack.c.bf16 %v452, %v452
  %v455 = vpack.c.bf16 %v453, %v453
  %v458 = vrot.slane %v454, 2
  %v459 = vrot.slane %v455, 2
  %462 = vmatpush.bf16.msra.mxu0 %v190
  %463 = vmatpush.bf16.msra.mxu0 %v189
  %464 = vmatpush.bf16.msra.mxu0 %v188
  %465 = vmatpush.bf16.msra.mxu0 %v187
  %466 = vmatpush.bf16.msra.mxu0 %v186
  %467 = vmatpush.bf16.msra.mxu0 %v185
  %468 = vmatpush.bf16.msra.mxu0 %v184
  %469 = vmatpush.bf16.msra.mxu0 %v183
  %470 = vmatmul.bf16.gmra.mxu0 %v458
  %v471 = vpop.f32.mrf.mxu0
  %v472 = vadd.f32 0.0, %v471
  %v473 = vpop.f32.mrf.mxu0
  %474 = vdwg.mxu0
  %475 = vmatpush.bf16.msra.mxu0 %v198
  %476 = vmatpush.bf16.msra.mxu0 %v197
  %477 = vmatpush.bf16.msra.mxu0 %v196
  %478 = vmatpush.bf16.msra.mxu0 %v195
  %479 = vmatpush.bf16.msra.mxu0 %v194
  %480 = vmatpush.bf16.msra.mxu0 %v193
  %481 = vmatpush.bf16.msra.mxu0 %v192
  %482 = vmatpush.bf16.msra.mxu0 %v191
  %483 = vmatmul.bf16.gmra.mxu0 %v459
  %v484 = vpop.f32.mrf.mxu0
  %v485 = vadd.f32 %v472, %v484
  %v486 = vpop.f32.mrf.mxu0
  %487 = vdwg.mxu0
  %488 = vmatpush.bf16.msra.mxu0 %v312
  %489 = vmatpush.bf16.msra.mxu0 %v311
  %490 = vmatpush.bf16.msra.mxu0 %v310
  %491 = vmatpush.bf16.msra.mxu0 %v309
  %492 = vmatpush.bf16.msra.mxu0 %v308
  %493 = vmatpush.bf16.msra.mxu0 %v307
  %494 = vmatpush.bf16.msra.mxu0 %v306
  %495 = vmatpush.bf16.msra.mxu0 %v305
  %496 = vmatmul.bf16.gmra.mxu0 %v450
  %v497 = vpop.f32.mrf.mxu0
  %v498 = vadd.f32 %v485, %v497
  %v499 = vpop.f32.mrf.mxu0
  %500 = vdwg.mxu0
  %501 = vmatpush.bf16.msra.mxu0 %v320
  %502 = vmatpush.bf16.msra.mxu0 %v319
  %503 = vmatpush.bf16.msra.mxu0 %v318
  %504 = vmatpush.bf16.msra.mxu0 %v317
  %505 = vmatpush.bf16.msra.mxu0 %v316
  %506 = vmatpush.bf16.msra.mxu0 %v315
  %507 = vmatpush.bf16.msra.mxu0 %v314
  %508 = vmatpush.bf16.msra.mxu0 %v313
  %509 = vmatmul.bf16.gmra.mxu0 %v451
  %v510 = vpop.f32.mrf.mxu0
  %v511 = vadd.f32 %v498, %v510
  %v512 = vpop.f32.mrf.mxu0
  %513 = vdwg.mxu0
  %v514 = vadd.f32 %v511, %v364
  %vm515 = vcmp.ge.f32.partialorder %v514, 0.0
  %v516 = vmul.f32 %v514, 0.01
  %v517 = vsel %vm515, %v514, %v516
  %v518 = vmul.f32 %v517, %v517
  %v519 = vpack.c.bf16 %v518, %v518
  %520 = vmatpush.bf16.msra.mxu0 %v414
  %521 = vmatpush.bf16.msra.mxu0 %v413
  %522 = vmatpush.bf16.msra.mxu0 %v412
  %523 = vmatpush.bf16.msra.mxu0 %v411
  %524 = vmatpush.bf16.msra.mxu0 %v410
  %525 = vmatpush.bf16.msra.mxu0 %v409
  %526 = vmatpush.bf16.msra.mxu0 %v408
  %527 = vmatpush.bf16.msra.mxu0 %v407
  %528 = vmatmul.bf16.gmra.mxu0 %v519
  %v529 = vpop.f32.mrf.mxu0
  %v530 = vadd.f32 %v373, %v529
  %v531 = vpop.f32.mrf.mxu0
  %532 = vdwg.mxu0
  %v533 = vrsqrt.pop %v530
  %v534 = vmul.f32 %v533, %v530
  %v535 = vmul.f32 %v534, %v533
  %v536 = vmul.f32 0.5, %v535
  %v537 = vsub.f32 1.5, %v536
  %v538 = vmul.f32 %v533, %v537
  %vm539 = vweird.f32 %v530
  %vm540 = vweird.f32 %v533
  %vm541 = vmor %vm539, %vm540
  %v542 = vsel %vm541, %v533, %v538
  %v543 = vmul.f32 %v517, %v542
  %544 = vst [vmem:[%s6 + $0x4] sm:$0xf] %v543
  %v545 = vld [vmem:[%s0 + $0x20] sm:$0xf]
  %v546 = vld [vmem:[%s0 + $0x28] sm:$0xf]
  %v547 = vpack.c.bf16 %v545, %v545
  %v548 = vpack.c.bf16 %v546, %v546
  %v549 = vld [vmem:[%s0 + $0x20] sm:$0xf0]
  %v550 = vld [vmem:[%s0 + $0x28] sm:$0xf0]
  %v551 = vpack.c.bf16 %v549, %v549
  %v552 = vpack.c.bf16 %v550, %v550
  %v555 = vrot.slane %v551, 2
  %v556 = vrot.slane %v552, 2
  %559 = vmatpush.bf16.msra.mxu0 %v190
  %560 = vmatpush.bf16.msra.mxu0 %v189
  %561 = vmatpush.bf16.msra.mxu0 %v188
  %562 = vmatpush.bf16.msra.mxu0 %v187
  %563 = vmatpush.bf16.msra.mxu0 %v186
  %564 = vmatpush.bf16.msra.mxu0 %v185
  %565 = vmatpush.bf16.msra.mxu0 %v184
  %566 = vmatpush.bf16.msra.mxu0 %v183
  %567 = vmatmul.bf16.gmra.mxu0 %v555
  %v568 = vpop.f32.mrf.mxu0
  %v569 = vadd.f32 0.0, %v568
  %v570 = vpop.f32.mrf.mxu0
  %571 = vdwg.mxu0
  %572 = vmatpush.bf16.msra.mxu0 %v198
  %573 = vmatpush.bf16.msra.mxu0 %v197
  %574 = vmatpush.bf16.msra.mxu0 %v196
  %575 = vmatpush.bf16.msra.mxu0 %v195
  %576 = vmatpush.bf16.msra.mxu0 %v194
  %577 = vmatpush.bf16.msra.mxu0 %v193
  %578 = vmatpush.bf16.msra.mxu0 %v192
  %579 = vmatpush.bf16.msra.mxu0 %v191
  %580 = vmatmul.bf16.gmra.mxu0 %v556
  %v581 = vpop.f32.mrf.mxu0
  %v582 = vadd.f32 %v569, %v581
  %v583 = vpop.f32.mrf.mxu0
  %584 = vdwg.mxu0
  %585 = vmatpush.bf16.msra.mxu0 %v312
  %586 = vmatpush.bf16.msra.mxu0 %v311
  %587 = vmatpush.bf16.msra.mxu0 %v310
  %588 = vmatpush.bf16.msra.mxu0 %v309
  %589 = vmatpush.bf16.msra.mxu0 %v308
  %590 = vmatpush.bf16.msra.mxu0 %v307
  %591 = vmatpush.bf16.msra.mxu0 %v306
  %592 = vmatpush.bf16.msra.mxu0 %v305
  %593 = vmatmul.bf16.gmra.mxu0 %v547
  %v594 = vpop.f32.mrf.mxu0
  %v595 = vadd.f32 %v582, %v594
  %v596 = vpop.f32.mrf.mxu0
  %597 = vdwg.mxu0
  %598 = vmatpush.bf16.msra.mxu0 %v320
  %599 = vmatpush.bf16.msra.mxu0 %v319
  %600 = vmatpush.bf16.msra.mxu0 %v318
  %601 = vmatpush.bf16.msra.mxu0 %v317
  %602 = vmatpush.bf16.msra.mxu0 %v316
  %603 = vmatpush.bf16.msra.mxu0 %v315
  %604 = vmatpush.bf16.msra.mxu0 %v314
  %605 = vmatpush.bf16.msra.mxu0 %v313
  %606 = vmatmul.bf16.gmra.mxu0 %v548
  %v607 = vpop.f32.mrf.mxu0
  %v608 = vadd.f32 %v595, %v607
  %v609 = vpop.f32.mrf.mxu0
  %610 = vdwg.mxu0
  %v611 = vadd.f32 %v608, %v364
  %vm612 = vcmp.ge.f32.partialorder %v611, 0.0
  %v613 = vmul.f32 %v611, 0.01
  %v614 = vsel %vm612, %v611, %v613
  %v615 = vmul.f32 %v614, %v614
  %v616 = vpack.c.bf16 %v615, %v615
  %617 = vmatpush.bf16.msra.mxu0 %v414
  %618 = vmatpush.bf16.msra.mxu0 %v413
  %619 = vmatpush.bf16.msra.mxu0 %v412
  %620 = vmatpush.bf16.msra.mxu0 %v411
  %621 = vmatpush.bf16.msra.mxu0 %v410
  %622 = vmatpush.bf16.msra.mxu0 %v409
  %623 = vmatpush.bf16.msra.mxu0 %v408
  %624 = vmatpush.bf16.msra.mxu0 %v407
  %625 = vmatmul.bf16.gmra.mxu0 %v616
  %v626 = vpop.f32.mrf.mxu0
  %v627 = vadd.f32 %v373, %v626
  %v628 = vpop.f32.mrf.mxu0
  %629 = vdwg.mxu0
  %v630 = vrsqrt.pop %v627
  %v631 = vmul.f32 %v630, %v627
  %v632 = vmul.f32 %v631, %v630
  %v633 = vmul.f32 0.5, %v632
  %v634 = vsub.f32 1.5, %v633
  %v635 = vmul.f32 %v630, %v634
  %vm636 = vweird.f32 %v627
  %vm637 = vweird.f32 %v630
  %vm638 = vmor %vm636, %vm637
  %v639 = vsel %vm638, %v630, %v635
  %v640 = vmul.f32 %v614, %v639
  %641 = vst [vmem:[%s6 + $0x8] sm:$0xf] %v640
  %v642 = vld [vmem:[%s0 + $0x30] sm:$0xf]
  %v643 = vld [vmem:[%s0 + $0x38] sm:$0xf]
  %v644 = vpack.c.bf16 %v642, %v642
  %v645 = vpack.c.bf16 %v643, %v643
  %v646 = vld [vmem:[%s0 + $0x30] sm:$0xf0]
  %v647 = vld [vmem:[%s0 + $0x38] sm:$0xf0]
  %v648 = vpack.c.bf16 %v646, %v646
  %v649 = vpack.c.bf16 %v647, %v647
  %v652 = vrot.slane %v648, 2
  %v653 = vrot.slane %v649, 2
  %656 = vmatpush.bf16.msra.mxu0 %v190
  %657 = vmatpush.bf16.msra.mxu0 %v189
  %658 = vmatpush.bf16.msra.mxu0 %v188
  %659 = vmatpush.bf16.msra.mxu0 %v187
  %660 = vmatpush.bf16.msra.mxu0 %v186
  %661 = vmatpush.bf16.msra.mxu0 %v185
  %662 = vmatpush.bf16.msra.mxu0 %v184
  %663 = vmatpush.bf16.msra.mxu0 %v183
  %664 = vmatmul.bf16.gmra.mxu0 %v652
  %v665 = vpop.f32.mrf.mxu0
  %v666 = vadd.f32 0.0, %v665
  %v667 = vpop.f32.mrf.mxu0
  %668 = vdwg.mxu0
  %669 = vmatpush.bf16.msra.mxu0 %v198
  %670 = vmatpush.bf16.msra.mxu0 %v197
  %671 = vmatpush.bf16.msra.mxu0 %v196
  %672 = vmatpush.bf16.msra.mxu0 %v195
  %673 = vmatpush.bf16.msra.mxu0 %v194
  %674 = vmatpush.bf16.msra.mxu0 %v193
  %675 = vmatpush.bf16.msra.mxu0 %v192
  %676 = vmatpush.bf16.msra.mxu0 %v191
  %677 = vmatmul.bf16.gmra.mxu0 %v653
  %v678 = vpop.f32.mrf.mxu0
  %v679 = vadd.f32 %v666, %v678
  %v680 = vpop.f32.mrf.mxu0
  %681 = vdwg.mxu0
  %682 = vmatpush.bf16.msra.mxu0 %v312
  %683 = vmatpush.bf16.msra.mxu0 %v311
  %684 = vmatpush.bf16.msra.mxu0 %v310
  %685 = vmatpush.bf16.msra.mxu0 %v309
  %686 = vmatpush.bf16.msra.mxu0 %v308
  %687 = vmatpush.bf16.msra.mxu0 %v307
  %688 = vmatpush.bf16.msra.mxu0 %v306
  %689 = vmatpush.bf16.msra.mxu0 %v305
  %690 = vmatmul.bf16.gmra.mxu0 %v644
  %v691 = vpop.f32.mrf.mxu0
  %v692 = vadd.f32 %v679, %v691
  %v693 = vpop.f32.mrf.mxu0
  %694 = vdwg.mxu0
  %695 = vmatpush.bf16.msra.mxu0 %v320
  %696 = vmatpush.bf16.msra.mxu0 %v319
  %697 = vmatpush.bf16.msra.mxu0 %v318
  %698 = vmatpush.bf16.msra.mxu0 %v317
  %699 = vmatpush.bf16.msra.mxu0 %v316
  %700 = vmatpush.bf16.msra.mxu0 %v315
  %701 = vmatpush.bf16.msra.mxu0 %v314
  %702 = vmatpush.bf16.msra.mxu0 %v313
  %703 = vmatmul.bf16.gmra.mxu0 %v645
  %v704 = vpop.f32.mrf.mxu0
  %v705 = vadd.f32 %v692, %v704
  %v706 = vpop.f32.mrf.mxu0
  %707 = vdwg.mxu0
  %v708 = vadd.f32 %v705, %v364
  %vm709 = vcmp.ge.f32.partialorder %v708, 0.0
  %v710 = vmul.f32 %v708, 0.01
  %v711 = vsel %vm709, %v708, %v710
  %v712 = vmul.f32 %v711, %v711
  %v713 = vpack.c.bf16 %v712, %v712
  %714 = vmatpush.bf16.msra.mxu0 %v414
  %715 = vmatpush.bf16.msra.mxu0 %v413
  %716 = vmatpush.bf16.msra.mxu0 %v412
  %717 = vmatpush.bf16.msra.mxu0 %v411
  %718 = vmatpush.bf16.msra.mxu0 %v410
  %719 = vmatpush.bf16.msra.mxu0 %v409
  %720 = vmatpush.bf16.msra.mxu0 %v408
  %721 = vmatpush.bf16.msra.mxu0 %v407
  %722 = vmatmul.bf16.gmra.mxu0 %v713
  %v723 = vpop.f32.mrf.mxu0
  %v724 = vadd.f32 %v373, %v723
  %v725 = vpop.f32.mrf.mxu0
  %726 = vdwg.mxu0
  %v727 = vrsqrt.pop %v724
  %v728 = vmul.f32 %v727, %v724
  %v729 = vmul.f32 %v728, %v727
  %v730 = vmul.f32 0.5, %v729
  %v731 = vsub.f32 1.5, %v730
  %v732 = vmul.f32 %v727, %v731
  %vm733 = vweird.f32 %v724
  %vm734 = vweird.f32 %v727
  %vm735 = vmor %vm733, %vm734
  %v736 = vsel %vm735, %v727, %v732
  %v737 = vmul.f32 %v711, %v736
  %738 = vst [vmem:[%s6 + $0xc] sm:$0xf] %v737
  %v739 = vld [vmem:[%s0 + $0x40] sm:$0xf]
  %v740 = vld [vmem:[%s0 + $0x48] sm:$0xf]
  %v741 = vpack.c.bf16 %v739, %v739
  %v742 = vpack.c.bf16 %v740, %v740
  %v743 = vld [vmem:[%s0 + $0x40] sm:$0xf0]
  %v744 = vld [vmem:[%s0 + $0x48] sm:$0xf0]
  %v745 = vpack.c.bf16 %v743, %v743
  %v746 = vpack.c.bf16 %v744, %v744
  %v749 = vrot.slane %v745, 2
  %v750 = vrot.slane %v746, 2
  %753 = vmatpush.bf16.msra.mxu0 %v190
  %754 = vmatpush.bf16.msra.mxu0 %v189
  %755 = vmatpush.bf16.msra.mxu0 %v188
  %756 = vmatpush.bf16.msra.mxu0 %v187
  %757 = vmatpush.bf16.msra.mxu0 %v186
  %758 = vmatpush.bf16.msra.mxu0 %v185
  %759 = vmatpush.bf16.msra.mxu0 %v184
  %760 = vmatpush.bf16.msra.mxu0 %v183
  %761 = vmatmul.bf16.gmra.mxu0 %v749
  %v762 = vpop.f32.mrf.mxu0
  %v763 = vadd.f32 0.0, %v762
  %v764 = vpop.f32.mrf.mxu0
  %765 = vdwg.mxu0
  %766 = vmatpush.bf16.msra.mxu0 %v198
  %767 = vmatpush.bf16.msra.mxu0 %v197
  %768 = vmatpush.bf16.msra.mxu0 %v196
  %769 = vmatpush.bf16.msra.mxu0 %v195
  %770 = vmatpush.bf16.msra.mxu0 %v194
  %771 = vmatpush.bf16.msra.mxu0 %v193
  %772 = vmatpush.bf16.msra.mxu0 %v192
  %773 = vmatpush.bf16.msra.mxu0 %v191
  %774 = vmatmul.bf16.gmra.mxu0 %v750
  %v775 = vpop.f32.mrf.mxu0
  %v776 = vadd.f32 %v763, %v775
  %v777 = vpop.f32.mrf.mxu0
  %778 = vdwg.mxu0
  %779 = vmatpush.bf16.msra.mxu0 %v312
  %780 = vmatpush.bf16.msra.mxu0 %v311
  %781 = vmatpush.bf16.msra.mxu0 %v310
  %782 = vmatpush.bf16.msra.mxu0 %v309
  %783 = vmatpush.bf16.msra.mxu0 %v308
  %784 = vmatpush.bf16.msra.mxu0 %v307
  %785 = vmatpush.bf16.msra.mxu0 %v306
  %786 = vmatpush.bf16.msra.mxu0 %v305
  %787 = vmatmul.bf16.gmra.mxu0 %v741
  %v788 = vpop.f32.mrf.mxu0
  %v789 = vadd.f32 %v776, %v788
  %v790 = vpop.f32.mrf.mxu0
  %791 = vdwg.mxu0
  %792 = vmatpush.bf16.msra.mxu0 %v320
  %793 = vmatpush.bf16.msra.mxu0 %v319
  %794 = vmatpush.bf16.msra.mxu0 %v318
  %795 = vmatpush.bf16.msra.mxu0 %v317
  %796 = vmatpush.bf16.msra.mxu0 %v316
  %797 = vmatpush.bf16.msra.mxu0 %v315
  %798 = vmatpush.bf16.msra.mxu0 %v314
  %799 = vmatpush.bf16.msra.mxu0 %v313
  %800 = vmatmul.bf16.gmra.mxu0 %v742
  %v801 = vpop.f32.mrf.mxu0
  %v802 = vadd.f32 %v789, %v801
  %v803 = vpop.f32.mrf.mxu0
  %804 = vdwg.mxu0
  %v805 = vadd.f32 %v802, %v364
  %vm806 = vcmp.ge.f32.partialorder %v805, 0.0
  %v807 = vmul.f32 %v805, 0.01
  %v808 = vsel %vm806, %v805, %v807
  %v809 = vmul.f32 %v808, %v808
  %v810 = vpack.c.bf16 %v809, %v809
  %811 = vmatpush.bf16.msra.mxu0 %v414
  %812 = vmatpush.bf16.msra.mxu0 %v413
  %813 = vmatpush.bf16.msra.mxu0 %v412
  %814 = vmatpush.bf16.msra.mxu0 %v411
  %815 = vmatpush.bf16.msra.mxu0 %v410
  %816 = vmatpush.bf16.msra.mxu0 %v409
  %817 = vmatpush.bf16.msra.mxu0 %v408
  %818 = vmatpush.bf16.msra.mxu0 %v407
  %819 = vmatmul.bf16.gmra.mxu0 %v810
  %v820 = vpop.f32.mrf.mxu0
  %v821 = vadd.f32 %v373, %v820
  %v822 = vpop.f32.mrf.mxu0
  %823 = vdwg.mxu0
  %v824 = vrsqrt.pop %v821
  %v825 = vmul.f32 %v824, %v821
  %v826 = vmul.f32 %v825, %v824
  %v827 = vmul.f32 0.5, %v826
  %v828 = vsub.f32 1.5, %v827
  %v829 = vmul.f32 %v824, %v828
  %vm830 = vweird.f32 %v821
  %vm831 = vweird.f32 %v824
  %vm832 = vmor %vm830, %vm831
  %v833 = vsel %vm832, %v824, %v829
  %v834 = vmul.f32 %v808, %v833
  %835 = vst [vmem:[%s6 + $0x10] sm:$0xf] %v834
  %v836 = vld [vmem:[%s0 + $0x50] sm:$0xf]
  %v837 = vld [vmem:[%s0 + $0x58] sm:$0xf]
  %v838 = vpack.c.bf16 %v836, %v836
  %v839 = vpack.c.bf16 %v837, %v837
  %v840 = vld [vmem:[%s0 + $0x50] sm:$0xf0]
  %v841 = vld [vmem:[%s0 + $0x58] sm:$0xf0]
  %v842 = vpack.c.bf16 %v840, %v840
  %v843 = vpack.c.bf16 %v841, %v841
  %v846 = vrot.slane %v842, 2
  %v847 = vrot.slane %v843, 2
  %850 = vmatpush.bf16.msra.mxu0 %v190
  %851 = vmatpush.bf16.msra.mxu0 %v189
  %852 = vmatpush.bf16.msra.mxu0 %v188
  %853 = vmatpush.bf16.msra.mxu0 %v187
  %854 = vmatpush.bf16.msra.mxu0 %v186
  %855 = vmatpush.bf16.msra.mxu0 %v185
  %856 = vmatpush.bf16.msra.mxu0 %v184
  %857 = vmatpush.bf16.msra.mxu0 %v183
  %858 = vmatmul.bf16.gmra.mxu0 %v846
  %v859 = vpop.f32.mrf.mxu0
  %v860 = vadd.f32 0.0, %v859
  %v861 = vpop.f32.mrf.mxu0
  %862 = vdwg.mxu0
  %863 = vmatpush.bf16.msra.mxu0 %v198
  %864 = vmatpush.bf16.msra.mxu0 %v197
  %865 = vmatpush.bf16.msra.mxu0 %v196
  %866 = vmatpush.bf16.msra.mxu0 %v195
  %867 = vmatpush.bf16.msra.mxu0 %v194
  %868 = vmatpush.bf16.msra.mxu0 %v193
  %869 = vmatpush.bf16.msra.mxu0 %v192
  %870 = vmatpush.bf16.msra.mxu0 %v191
  %871 = vmatmul.bf16.gmra.mxu0 %v847
  %v872 = vpop.f32.mrf.mxu0
  %v873 = vadd.f32 %v860, %v872
  %v874 = vpop.f32.mrf.mxu0
  %875 = vdwg.mxu0
  %876 = vmatpush.bf16.msra.mxu0 %v312
  %877 = vmatpush.bf16.msra.mxu0 %v311
  %878 = vmatpush.bf16.msra.mxu0 %v310
  %879 = vmatpush.bf16.msra.mxu0 %v309
  %880 = vmatpush.bf16.msra.mxu0 %v308
  %881 = vmatpush.bf16.msra.mxu0 %v307
  %882 = vmatpush.bf16.msra.mxu0 %v306
  %883 = vmatpush.bf16.msra.mxu0 %v305
  %884 = vmatmul.bf16.gmra.mxu0 %v838
  %v885 = vpop.f32.mrf.mxu0
  %v886 = vadd.f32 %v873, %v885
  %v887 = vpop.f32.mrf.mxu0
  %888 = vdwg.mxu0
  %889 = vmatpush.bf16.msra.mxu0 %v320
  %890 = vmatpush.bf16.msra.mxu0 %v319
  %891 = vmatpush.bf16.msra.mxu0 %v318
  %892 = vmatpush.bf16.msra.mxu0 %v317
  %893 = vmatpush.bf16.msra.mxu0 %v316
  %894 = vmatpush.bf16.msra.mxu0 %v315
  %895 = vmatpush.bf16.msra.mxu0 %v314
  %896 = vmatpush.bf16.msra.mxu0 %v313
  %897 = vmatmul.bf16.gmra.mxu0 %v839
  %v898 = vpop.f32.mrf.mxu0
  %v899 = vadd.f32 %v886, %v898
  %v900 = vpop.f32.mrf.mxu0
  %901 = vdwg.mxu0
  %v902 = vadd.f32 %v899, %v364
  %vm903 = vcmp.ge.f32.partialorder %v902, 0.0
  %v904 = vmul.f32 %v902, 0.01
  %v905 = vsel %vm903, %v902, %v904
  %v906 = vmul.f32 %v905, %v905
  %v907 = vpack.c.bf16 %v906, %v906
  %908 = vmatpush.bf16.msra.mxu0 %v414
  %909 = vmatpush.bf16.msra.mxu0 %v413
  %910 = vmatpush.bf16.msra.mxu0 %v412
  %911 = vmatpush.bf16.msra.mxu0 %v411
  %912 = vmatpush.bf16.msra.mxu0 %v410
  %913 = vmatpush.bf16.msra.mxu0 %v409
  %914 = vmatpush.bf16.msra.mxu0 %v408
  %915 = vmatpush.bf16.msra.mxu0 %v407
  %916 = vmatmul.bf16.gmra.mxu0 %v907
  %v917 = vpop.f32.mrf.mxu0
  %v918 = vadd.f32 %v373, %v917
  %v919 = vpop.f32.mrf.mxu0
  %920 = vdwg.mxu0
  %v921 = vrsqrt.pop %v918
  %v922 = vmul.f32 %v921, %v918
  %v923 = vmul.f32 %v922, %v921
  %v924 = vmul.f32 0.5, %v923
  %v925 = vsub.f32 1.5, %v924
  %v926 = vmul.f32 %v921, %v925
  %vm927 = vweird.f32 %v918
  %vm928 = vweird.f32 %v921
  %vm929 = vmor %vm927, %vm928
  %v930 = vsel %vm929, %v921, %v926
  %v931 = vmul.f32 %v905, %v930
  %932 = vst [vmem:[%s6 + $0x14] sm:$0xf] %v931
  %v933 = vld [vmem:[%s0 + $0x60] sm:$0xf]
  %v934 = vld [vmem:[%s0 + $0x68] sm:$0xf]
  %v935 = vpack.c.bf16 %v933, %v933
  %v936 = vpack.c.bf16 %v934, %v934
  %v937 = vld [vmem:[%s0 + $0x60] sm:$0xf0]
  %v938 = vld [vmem:[%s0 + $0x68] sm:$0xf0]
  %v939 = vpack.c.bf16 %v937, %v937
  %v940 = vpack.c.bf16 %v938, %v938
  %v943 = vrot.slane %v939, 2
  %v944 = vrot.slane %v940, 2
  %947 = vmatpush.bf16.msra.mxu0 %v190
  %948 = vmatpush.bf16.msra.mxu0 %v189
  %949 = vmatpush.bf16.msra.mxu0 %v188
  %950 = vmatpush.bf16.msra.mxu0 %v187
  %951 = vmatpush.bf16.msra.mxu0 %v186
  %952 = vmatpush.bf16.msra.mxu0 %v185
  %953 = vmatpush.bf16.msra.mxu0 %v184
  %954 = vmatpush.bf16.msra.mxu0 %v183
  %955 = vmatmul.bf16.gmra.mxu0 %v943
  %v956 = vpop.f32.mrf.mxu0
  %v957 = vadd.f32 0.0, %v956
  %v958 = vpop.f32.mrf.mxu0
  %959 = vdwg.mxu0
  %960 = vmatpush.bf16.msra.mxu0 %v198
  %961 = vmatpush.bf16.msra.mxu0 %v197
  %962 = vmatpush.bf16.msra.mxu0 %v196
  %963 = vmatpush.bf16.msra.mxu0 %v195
  %964 = vmatpush.bf16.msra.mxu0 %v194
  %965 = vmatpush.bf16.msra.mxu0 %v193
  %966 = vmatpush.bf16.msra.mxu0 %v192
  %967 = vmatpush.bf16.msra.mxu0 %v191
  %968 = vmatmul.bf16.gmra.mxu0 %v944
  %v969 = vpop.f32.mrf.mxu0
  %v970 = vadd.f32 %v957, %v969
  %v971 = vpop.f32.mrf.mxu0
  %972 = vdwg.mxu0
  %973 = vmatpush.bf16.msra.mxu0 %v312
  %974 = vmatpush.bf16.msra.mxu0 %v311
  %975 = vmatpush.bf16.msra.mxu0 %v310
  %976 = vmatpush.bf16.msra.mxu0 %v309
  %977 = vmatpush.bf16.msra.mxu0 %v308
  %978 = vmatpush.bf16.msra.mxu0 %v307
  %979 = vmatpush.bf16.msra.mxu0 %v306
  %980 = vmatpush.bf16.msra.mxu0 %v305
  %981 = vmatmul.bf16.gmra.mxu0 %v935
  %v982 = vpop.f32.mrf.mxu0
  %v983 = vadd.f32 %v970, %v982
  %v984 = vpop.f32.mrf.mxu0
  %985 = vdwg.mxu0
  %986 = vmatpush.bf16.msra.mxu0 %v320
  %987 = vmatpush.bf16.msra.mxu0 %v319
  %988 = vmatpush.bf16.msra.mxu0 %v318
  %989 = vmatpush.bf16.msra.mxu0 %v317
  %990 = vmatpush.bf16.msra.mxu0 %v316
  %991 = vmatpush.bf16.msra.mxu0 %v315
  %992 = vmatpush.bf16.msra.mxu0 %v314
  %993 = vmatpush.bf16.msra.mxu0 %v313
  %994 = vmatmul.bf16.gmra.mxu0 %v936
  %v995 = vpop.f32.mrf.mxu0
  %v996 = vadd.f32 %v983, %v995
  %v997 = vpop.f32.mrf.mxu0
  %998 = vdwg.mxu0
  %v999 = vadd.f32 %v996, %v364
  %vm1000 = vcmp.ge.f32.partialorder %v999, 0.0
  %v1001 = vmul.f32 %v999, 0.01
  %v1002 = vsel %vm1000, %v999, %v1001
  %v1003 = vmul.f32 %v1002, %v1002
  %v1004 = vpack.c.bf16 %v1003, %v1003
  %1005 = vmatpush.bf16.msra.mxu0 %v414
  %1006 = vmatpush.bf16.msra.mxu0 %v413
  %1007 = vmatpush.bf16.msra.mxu0 %v412
  %1008 = vmatpush.bf16.msra.mxu0 %v411
  %1009 = vmatpush.bf16.msra.mxu0 %v410
  %1010 = vmatpush.bf16.msra.mxu0 %v409
  %1011 = vmatpush.bf16.msra.mxu0 %v408
  %1012 = vmatpush.bf16.msra.mxu0 %v407
  %1013 = vmatmul.bf16.gmra.mxu0 %v1004
  %v1014 = vpop.f32.mrf.mxu0
  %v1015 = vadd.f32 %v373, %v1014
  %v1016 = vpop.f32.mrf.mxu0
  %1017 = vdwg.mxu0
  %v1018 = vrsqrt.pop %v1015
  %v1019 = vmul.f32 %v1018, %v1015
  %v1020 = vmul.f32 %v1019, %v1018
  %v1021 = vmul.f32 0.5, %v1020
  %v1022 = vsub.f32 1.5, %v1021
  %v1023 = vmul.f32 %v1018, %v1022
  %vm1024 = vweird.f32 %v1015
  %vm1025 = vweird.f32 %v1018
  %vm1026 = vmor %vm1024, %vm1025
  %v1027 = vsel %vm1026, %v1018, %v1023
  %v1028 = vmul.f32 %v1002, %v1027
  %1029 = vst [vmem:[%s6 + $0x18] sm:$0xf] %v1028
  %v1030 = vld [vmem:[%s0 + $0x70] sm:$0xf]
  %v1031 = vld [vmem:[%s0 + $0x78] sm:$0xf]
  %v1032 = vpack.c.bf16 %v1030, %v1030
  %v1033 = vpack.c.bf16 %v1031, %v1031
  %v1034 = vld [vmem:[%s0 + $0x70] sm:$0xf0]
  %v1035 = vld [vmem:[%s0 + $0x78] sm:$0xf0]
  %v1036 = vpack.c.bf16 %v1034, %v1034
  %v1037 = vpack.c.bf16 %v1035, %v1035
  %v1040 = vrot.slane %v1036, 2
  %v1041 = vrot.slane %v1037, 2
  %1044 = vmatpush.bf16.msra.mxu0 %v190
  %1045 = vmatpush.bf16.msra.mxu0 %v189
  %1046 = vmatpush.bf16.msra.mxu0 %v188
  %1047 = vmatpush.bf16.msra.mxu0 %v187
  %1048 = vmatpush.bf16.msra.mxu0 %v186
  %1049 = vmatpush.bf16.msra.mxu0 %v185
  %1050 = vmatpush.bf16.msra.mxu0 %v184
  %1051 = vmatpush.bf16.msra.mxu0 %v183
  %1052 = vmatmul.bf16.gmra.mxu0 %v1040
  %v1053 = vpop.f32.mrf.mxu0
  %v1054 = vadd.f32 0.0, %v1053
  %v1055 = vpop.f32.mrf.mxu0
  %1056 = vdwg.mxu0
  %1057 = vmatpush.bf16.msra.mxu0 %v198
  %1058 = vmatpush.bf16.msra.mxu0 %v197
  %1059 = vmatpush.bf16.msra.mxu0 %v196
  %1060 = vmatpush.bf16.msra.mxu0 %v195
  %1061 = vmatpush.bf16.msra.mxu0 %v194
  %1062 = vmatpush.bf16.msra.mxu0 %v193
  %1063 = vmatpush.bf16.msra.mxu0 %v192
  %1064 = vmatpush.bf16.msra.mxu0 %v191
  %1065 = vmatmul.bf16.gmra.mxu0 %v1041
  %v1066 = vpop.f32.mrf.mxu0
  %v1067 = vadd.f32 %v1054, %v1066
  %v1068 = vpop.f32.mrf.mxu0
  %1069 = vdwg.mxu0
  %1070 = vmatpush.bf16.msra.mxu0 %v312
  %1071 = vmatpush.bf16.msra.mxu0 %v311
  %1072 = vmatpush.bf16.msra.mxu0 %v310
  %1073 = vmatpush.bf16.msra.mxu0 %v309
  %1074 = vmatpush.bf16.msra.mxu0 %v308
  %1075 = vmatpush.bf16.msra.mxu0 %v307
  %1076 = vmatpush.bf16.msra.mxu0 %v306
  %1077 = vmatpush.bf16.msra.mxu0 %v305
  %1078 = vmatmul.bf16.gmra.mxu0 %v1032
  %v1079 = vpop.f32.mrf.mxu0
  %v1080 = vadd.f32 %v1067, %v1079
  %v1081 = vpop.f32.mrf.mxu0
  %1082 = vdwg.mxu0
  %1083 = vmatpush.bf16.msra.mxu0 %v320
  %1084 = vmatpush.bf16.msra.mxu0 %v319
  %1085 = vmatpush.bf16.msra.mxu0 %v318
  %1086 = vmatpush.bf16.msra.mxu0 %v317
  %1087 = vmatpush.bf16.msra.mxu0 %v316
  %1088 = vmatpush.bf16.msra.mxu0 %v315
  %1089 = vmatpush.bf16.msra.mxu0 %v314
  %1090 = vmatpush.bf16.msra.mxu0 %v313
  %1091 = vmatmul.bf16.gmra.mxu0 %v1033
  %v1092 = vpop.f32.mrf.mxu0
  %v1093 = vadd.f32 %v1080, %v1092
  %v1094 = vpop.f32.mrf.mxu0
  %1095 = vdwg.mxu0
  %v1096 = vadd.f32 %v1093, %v364
  %vm1097 = vcmp.ge.f32.partialorder %v1096, 0.0
  %v1098 = vmul.f32 %v1096, 0.01
  %v1099 = vsel %vm1097, %v1096, %v1098
  %v1100 = vmul.f32 %v1099, %v1099
  %v1101 = vpack.c.bf16 %v1100, %v1100
  %1102 = vmatpush.bf16.msra.mxu0 %v414
  %1103 = vmatpush.bf16.msra.mxu0 %v413
  %1104 = vmatpush.bf16.msra.mxu0 %v412
  %1105 = vmatpush.bf16.msra.mxu0 %v411
  %1106 = vmatpush.bf16.msra.mxu0 %v410
  %1107 = vmatpush.bf16.msra.mxu0 %v409
  %1108 = vmatpush.bf16.msra.mxu0 %v408
  %1109 = vmatpush.bf16.msra.mxu0 %v407
  %1110 = vmatmul.bf16.gmra.mxu0 %v1101
  %v1111 = vpop.f32.mrf.mxu0
  %v1112 = vadd.f32 %v373, %v1111
  %v1113 = vpop.f32.mrf.mxu0
  %1114 = vdwg.mxu0
  %v1115 = vrsqrt.pop %v1112
  %v1116 = vmul.f32 %v1115, %v1112
  %v1117 = vmul.f32 %v1116, %v1115
  %v1118 = vmul.f32 0.5, %v1117
  %v1119 = vsub.f32 1.5, %v1118
  %v1120 = vmul.f32 %v1115, %v1119
  %vm1121 = vweird.f32 %v1112
  %vm1122 = vweird.f32 %v1115
  %vm1123 = vmor %vm1121, %vm1122
  %v1124 = vsel %vm1123, %v1115, %v1120
  %v1125 = vmul.f32 %v1099, %v1124
  %1126 = vst [vmem:[%s6 + $0x1c] sm:$0xf] %v1125
  %v1127 = vld [vmem:[%s0 + $0x80] sm:$0xf]
  %v1128 = vld [vmem:[%s0 + $0x88] sm:$0xf]
  %v1129 = vpack.c.bf16 %v1127, %v1127
  %v1130 = vpack.c.bf16 %v1128, %v1128
  %v1131 = vld [vmem:[%s0 + $0x80] sm:$0xf0]
  %v1132 = vld [vmem:[%s0 + $0x88] sm:$0xf0]
  %v1133 = vpack.c.bf16 %v1131, %v1131
  %v1134 = vpack.c.bf16 %v1132, %v1132
  %v1137 = vrot.slane %v1133, 2
  %v1138 = vrot.slane %v1134, 2
  %1141 = vmatpush.bf16.msra.mxu0 %v190
  %1142 = vmatpush.bf16.msra.mxu0 %v189
  %1143 = vmatpush.bf16.msra.mxu0 %v188
  %1144 = vmatpush.bf16.msra.mxu0 %v187
  %1145 = vmatpush.bf16.msra.mxu0 %v186
  %1146 = vmatpush.bf16.msra.mxu0 %v185
  %1147 = vmatpush.bf16.msra.mxu0 %v184
  %1148 = vmatpush.bf16.msra.mxu0 %v183
  %1149 = vmatmul.bf16.gmra.mxu0 %v1137
  %v1150 = vpop.f32.mrf.mxu0
  %v1151 = vadd.f32 0.0, %v1150
  %v1152 = vpop.f32.mrf.mxu0
  %1153 = vdwg.mxu0
  %1154 = vmatpush.bf16.msra.mxu0 %v198
  %1155 = vmatpush.bf16.msra.mxu0 %v197
  %1156 = vmatpush.bf16.msra.mxu0 %v196
  %1157 = vmatpush.bf16.msra.mxu0 %v195
  %1158 = vmatpush.bf16.msra.mxu0 %v194
  %1159 = vmatpush.bf16.msra.mxu0 %v193
  %1160 = vmatpush.bf16.msra.mxu0 %v192
  %1161 = vmatpush.bf16.msra.mxu0 %v191
  %1162 = vmatmul.bf16.gmra.mxu0 %v1138
  %v1163 = vpop.f32.mrf.mxu0
  %v1164 = vadd.f32 %v1151, %v1163
  %v1165 = vpop.f32.mrf.mxu0
  %1166 = vdwg.mxu0
  %1167 = vmatpush.bf16.msra.mxu0 %v312
  %1168 = vmatpush.bf16.msra.mxu0 %v311
  %1169 = vmatpush.bf16.msra.mxu0 %v310
  %1170 = vmatpush.bf16.msra.mxu0 %v309
  %1171 = vmatpush.bf16.msra.mxu0 %v308
  %1172 = vmatpush.bf16.msra.mxu0 %v307
  %1173 = vmatpush.bf16.msra.mxu0 %v306
  %1174 = vmatpush.bf16.msra.mxu0 %v305
  %1175 = vmatmul.bf16.gmra.mxu0 %v1129
  %v1176 = vpop.f32.mrf.mxu0
  %v1177 = vadd.f32 %v1164, %v1176
  %v1178 = vpop.f32.mrf.mxu0
  %1179 = vdwg.mxu0
  %1180 = vmatpush.bf16.msra.mxu0 %v320
  %1181 = vmatpush.bf16.msra.mxu0 %v319
  %1182 = vmatpush.bf16.msra.mxu0 %v318
  %1183 = vmatpush.bf16.msra.mxu0 %v317
  %1184 = vmatpush.bf16.msra.mxu0 %v316
  %1185 = vmatpush.bf16.msra.mxu0 %v315
  %1186 = vmatpush.bf16.msra.mxu0 %v314
  %1187 = vmatpush.bf16.msra.mxu0 %v313
  %1188 = vmatmul.bf16.gmra.mxu0 %v1130
  %v1189 = vpop.f32.mrf.mxu0
  %v1190 = vadd.f32 %v1177, %v1189
  %v1191 = vpop.f32.mrf.mxu0
  %1192 = vdwg.mxu0
  %v1193 = vadd.f32 %v1190, %v364
  %vm1194 = vcmp.ge.f32.partialorder %v1193, 0.0
  %v1195 = vmul.f32 %v1193, 0.01
  %v1196 = vsel %vm1194, %v1193, %v1195
  %v1197 = vmul.f32 %v1196, %v1196
  %v1198 = vpack.c.bf16 %v1197, %v1197
  %1199 = vmatpush.bf16.msra.mxu0 %v414
  %1200 = vmatpush.bf16.msra.mxu0 %v413
  %1201 = vmatpush.bf16.msra.mxu0 %v412
  %1202 = vmatpush.bf16.msra.mxu0 %v411
  %1203 = vmatpush.bf16.msra.mxu0 %v410
  %1204 = vmatpush.bf16.msra.mxu0 %v409
  %1205 = vmatpush.bf16.msra.mxu0 %v408
  %1206 = vmatpush.bf16.msra.mxu0 %v407
  %1207 = vmatmul.bf16.gmra.mxu0 %v1198
  %v1208 = vpop.f32.mrf.mxu0
  %v1209 = vadd.f32 %v373, %v1208
  %v1210 = vpop.f32.mrf.mxu0
  %1211 = vdwg.mxu0
  %v1212 = vrsqrt.pop %v1209
  %v1213 = vmul.f32 %v1212, %v1209
  %v1214 = vmul.f32 %v1213, %v1212
  %v1215 = vmul.f32 0.5, %v1214
  %v1216 = vsub.f32 1.5, %v1215
  %v1217 = vmul.f32 %v1212, %v1216
  %vm1218 = vweird.f32 %v1209
  %vm1219 = vweird.f32 %v1212
  %vm1220 = vmor %vm1218, %vm1219
  %v1221 = vsel %vm1220, %v1212, %v1217
  %v1222 = vmul.f32 %v1196, %v1221
  %1223 = vst [vmem:[%s6 + $0x20] sm:$0xf] %v1222
  %v1224 = vld [vmem:[%s0 + $0x90] sm:$0xf]
  %v1225 = vld [vmem:[%s0 + $0x98] sm:$0xf]
  %v1226 = vpack.c.bf16 %v1224, %v1224
  %v1227 = vpack.c.bf16 %v1225, %v1225
  %v1228 = vld [vmem:[%s0 + $0x90] sm:$0xf0]
  %v1229 = vld [vmem:[%s0 + $0x98] sm:$0xf0]
  %v1230 = vpack.c.bf16 %v1228, %v1228
  %v1231 = vpack.c.bf16 %v1229, %v1229
  %v1234 = vrot.slane %v1230, 2
  %v1235 = vrot.slane %v1231, 2
  %1238 = vmatpush.bf16.msra.mxu0 %v190
  %1239 = vmatpush.bf16.msra.mxu0 %v189
  %1240 = vmatpush.bf16.msra.mxu0 %v188
  %1241 = vmatpush.bf16.msra.mxu0 %v187
  %1242 = vmatpush.bf16.msra.mxu0 %v186
  %1243 = vmatpush.bf16.msra.mxu0 %v185
  %1244 = vmatpush.bf16.msra.mxu0 %v184
  %1245 = vmatpush.bf16.msra.mxu0 %v183
  %1246 = vmatmul.bf16.gmra.mxu0 %v1234
  %v1247 = vpop.f32.mrf.mxu0
  %v1248 = vadd.f32 0.0, %v1247
  %v1249 = vpop.f32.mrf.mxu0
  %1250 = vdwg.mxu0
  %1251 = vmatpush.bf16.msra.mxu0 %v198
  %1252 = vmatpush.bf16.msra.mxu0 %v197
  %1253 = vmatpush.bf16.msra.mxu0 %v196
  %1254 = vmatpush.bf16.msra.mxu0 %v195
  %1255 = vmatpush.bf16.msra.mxu0 %v194
  %1256 = vmatpush.bf16.msra.mxu0 %v193
  %1257 = vmatpush.bf16.msra.mxu0 %v192
  %1258 = vmatpush.bf16.msra.mxu0 %v191
  %1259 = vmatmul.bf16.gmra.mxu0 %v1235
  %v1260 = vpop.f32.mrf.mxu0
  %v1261 = vadd.f32 %v1248, %v1260
  %v1262 = vpop.f32.mrf.mxu0
  %1263 = vdwg.mxu0
  %1264 = vmatpush.bf16.msra.mxu0 %v312
  %1265 = vmatpush.bf16.msra.mxu0 %v311
  %1266 = vmatpush.bf16.msra.mxu0 %v310
  %1267 = vmatpush.bf16.msra.mxu0 %v309
  %1268 = vmatpush.bf16.msra.mxu0 %v308
  %1269 = vmatpush.bf16.msra.mxu0 %v307
  %1270 = vmatpush.bf16.msra.mxu0 %v306
  %1271 = vmatpush.bf16.msra.mxu0 %v305
  %1272 = vmatmul.bf16.gmra.mxu0 %v1226
  %v1273 = vpop.f32.mrf.mxu0
  %v1274 = vadd.f32 %v1261, %v1273
  %v1275 = vpop.f32.mrf.mxu0
  %1276 = vdwg.mxu0
  %1277 = vmatpush.bf16.msra.mxu0 %v320
  %1278 = vmatpush.bf16.msra.mxu0 %v319
  %1279 = vmatpush.bf16.msra.mxu0 %v318
  %1280 = vmatpush.bf16.msra.mxu0 %v317
  %1281 = vmatpush.bf16.msra.mxu0 %v316
  %1282 = vmatpush.bf16.msra.mxu0 %v315
  %1283 = vmatpush.bf16.msra.mxu0 %v314
  %1284 = vmatpush.bf16.msra.mxu0 %v313
  %1285 = vmatmul.bf16.gmra.mxu0 %v1227
  %v1286 = vpop.f32.mrf.mxu0
  %v1287 = vadd.f32 %v1274, %v1286
  %v1288 = vpop.f32.mrf.mxu0
  %1289 = vdwg.mxu0
  %v1290 = vadd.f32 %v1287, %v364
  %vm1291 = vcmp.ge.f32.partialorder %v1290, 0.0
  %v1292 = vmul.f32 %v1290, 0.01
  %v1293 = vsel %vm1291, %v1290, %v1292
  %v1294 = vmul.f32 %v1293, %v1293
  %v1295 = vpack.c.bf16 %v1294, %v1294
  %1296 = vmatpush.bf16.msra.mxu0 %v414
  %1297 = vmatpush.bf16.msra.mxu0 %v413
  %1298 = vmatpush.bf16.msra.mxu0 %v412
  %1299 = vmatpush.bf16.msra.mxu0 %v411
  %1300 = vmatpush.bf16.msra.mxu0 %v410
  %1301 = vmatpush.bf16.msra.mxu0 %v409
  %1302 = vmatpush.bf16.msra.mxu0 %v408
  %1303 = vmatpush.bf16.msra.mxu0 %v407
  %1304 = vmatmul.bf16.gmra.mxu0 %v1295
  %v1305 = vpop.f32.mrf.mxu0
  %v1306 = vadd.f32 %v373, %v1305
  %v1307 = vpop.f32.mrf.mxu0
  %1308 = vdwg.mxu0
  %v1309 = vrsqrt.pop %v1306
  %v1310 = vmul.f32 %v1309, %v1306
  %v1311 = vmul.f32 %v1310, %v1309
  %v1312 = vmul.f32 0.5, %v1311
  %v1313 = vsub.f32 1.5, %v1312
  %v1314 = vmul.f32 %v1309, %v1313
  %vm1315 = vweird.f32 %v1306
  %vm1316 = vweird.f32 %v1309
  %vm1317 = vmor %vm1315, %vm1316
  %v1318 = vsel %vm1317, %v1309, %v1314
  %v1319 = vmul.f32 %v1293, %v1318
  %1320 = vst [vmem:[%s6 + $0x24] sm:$0xf] %v1319
  %v1321 = vld [vmem:[%s0 + $0xa0] sm:$0xf]
  %v1322 = vld [vmem:[%s0 + $0xa8] sm:$0xf]
  %v1323 = vpack.c.bf16 %v1321, %v1321
  %v1324 = vpack.c.bf16 %v1322, %v1322
  %v1325 = vld [vmem:[%s0 + $0xa0] sm:$0xf0]
  %v1326 = vld [vmem:[%s0 + $0xa8] sm:$0xf0]
  %v1327 = vpack.c.bf16 %v1325, %v1325
  %v1328 = vpack.c.bf16 %v1326, %v1326
  %v1331 = vrot.slane %v1327, 2
  %v1332 = vrot.slane %v1328, 2
  %1335 = vmatpush.bf16.msra.mxu0 %v190
  %1336 = vmatpush.bf16.msra.mxu0 %v189
  %1337 = vmatpush.bf16.msra.mxu0 %v188
  %1338 = vmatpush.bf16.msra.mxu0 %v187
  %1339 = vmatpush.bf16.msra.mxu0 %v186
  %1340 = vmatpush.bf16.msra.mxu0 %v185
  %1341 = vmatpush.bf16.msra.mxu0 %v184
  %1342 = vmatpush.bf16.msra.mxu0 %v183
  %1343 = vmatmul.bf16.gmra.mxu0 %v1331
  %v1344 = vpop.f32.mrf.mxu0
  %v1345 = vadd.f32 0.0, %v1344
  %v1346 = vpop.f32.mrf.mxu0
  %1347 = vdwg.mxu0
  %1348 = vmatpush.bf16.msra.mxu0 %v198
  %1349 = vmatpush.bf16.msra.mxu0 %v197
  %1350 = vmatpush.bf16.msra.mxu0 %v196
  %1351 = vmatpush.bf16.msra.mxu0 %v195
  %1352 = vmatpush.bf16.msra.mxu0 %v194
  %1353 = vmatpush.bf16.msra.mxu0 %v193
  %1354 = vmatpush.bf16.msra.mxu0 %v192
  %1355 = vmatpush.bf16.msra.mxu0 %v191
  %1356 = vmatmul.bf16.gmra.mxu0 %v1332
  %v1357 = vpop.f32.mrf.mxu0
  %v1358 = vadd.f32 %v1345, %v1357
  %v1359 = vpop.f32.mrf.mxu0
  %1360 = vdwg.mxu0
  %1361 = vmatpush.bf16.msra.mxu0 %v312
  %1362 = vmatpush.bf16.msra.mxu0 %v311
  %1363 = vmatpush.bf16.msra.mxu0 %v310
  %1364 = vmatpush.bf16.msra.mxu0 %v309
  %1365 = vmatpush.bf16.msra.mxu0 %v308
  %1366 = vmatpush.bf16.msra.mxu0 %v307
  %1367 = vmatpush.bf16.msra.mxu0 %v306
  %1368 = vmatpush.bf16.msra.mxu0 %v305
  %1369 = vmatmul.bf16.gmra.mxu0 %v1323
  %v1370 = vpop.f32.mrf.mxu0
  %v1371 = vadd.f32 %v1358, %v1370
  %v1372 = vpop.f32.mrf.mxu0
  %1373 = vdwg.mxu0
  %1374 = vmatpush.bf16.msra.mxu0 %v320
  %1375 = vmatpush.bf16.msra.mxu0 %v319
  %1376 = vmatpush.bf16.msra.mxu0 %v318
  %1377 = vmatpush.bf16.msra.mxu0 %v317
  %1378 = vmatpush.bf16.msra.mxu0 %v316
  %1379 = vmatpush.bf16.msra.mxu0 %v315
  %1380 = vmatpush.bf16.msra.mxu0 %v314
  %1381 = vmatpush.bf16.msra.mxu0 %v313
  %1382 = vmatmul.bf16.gmra.mxu0 %v1324
  %v1383 = vpop.f32.mrf.mxu0
  %v1384 = vadd.f32 %v1371, %v1383
  %v1385 = vpop.f32.mrf.mxu0
  %1386 = vdwg.mxu0
  %v1387 = vadd.f32 %v1384, %v364
  %vm1388 = vcmp.ge.f32.partialorder %v1387, 0.0
  %v1389 = vmul.f32 %v1387, 0.01
  %v1390 = vsel %vm1388, %v1387, %v1389
  %v1391 = vmul.f32 %v1390, %v1390
  %v1392 = vpack.c.bf16 %v1391, %v1391
  %1393 = vmatpush.bf16.msra.mxu0 %v414
  %1394 = vmatpush.bf16.msra.mxu0 %v413
  %1395 = vmatpush.bf16.msra.mxu0 %v412
  %1396 = vmatpush.bf16.msra.mxu0 %v411
  %1397 = vmatpush.bf16.msra.mxu0 %v410
  %1398 = vmatpush.bf16.msra.mxu0 %v409
  %1399 = vmatpush.bf16.msra.mxu0 %v408
  %1400 = vmatpush.bf16.msra.mxu0 %v407
  %1401 = vmatmul.bf16.gmra.mxu0 %v1392
  %v1402 = vpop.f32.mrf.mxu0
  %v1403 = vadd.f32 %v373, %v1402
  %v1404 = vpop.f32.mrf.mxu0
  %1405 = vdwg.mxu0
  %v1406 = vrsqrt.pop %v1403
  %v1407 = vmul.f32 %v1406, %v1403
  %v1408 = vmul.f32 %v1407, %v1406
  %v1409 = vmul.f32 0.5, %v1408
  %v1410 = vsub.f32 1.5, %v1409
  %v1411 = vmul.f32 %v1406, %v1410
  %vm1412 = vweird.f32 %v1403
  %vm1413 = vweird.f32 %v1406
  %vm1414 = vmor %vm1412, %vm1413
  %v1415 = vsel %vm1414, %v1406, %v1411
  %v1416 = vmul.f32 %v1390, %v1415
  %1417 = vst [vmem:[%s6 + $0x28] sm:$0xf] %v1416
  %v1418 = vld [vmem:[%s0 + $0xb0] sm:$0xf]
  %v1419 = vld [vmem:[%s0 + $0xb8] sm:$0xf]
  %v1420 = vpack.c.bf16 %v1418, %v1418
  %v1421 = vpack.c.bf16 %v1419, %v1419
  %v1422 = vld [vmem:[%s0 + $0xb0] sm:$0xf0]
  %v1423 = vld [vmem:[%s0 + $0xb8] sm:$0xf0]
  %v1424 = vpack.c.bf16 %v1422, %v1422
  %v1425 = vpack.c.bf16 %v1423, %v1423
  %v1428 = vrot.slane %v1424, 2
  %v1429 = vrot.slane %v1425, 2
  %1432 = vmatpush.bf16.msra.mxu0 %v190
  %1433 = vmatpush.bf16.msra.mxu0 %v189
  %1434 = vmatpush.bf16.msra.mxu0 %v188
  %1435 = vmatpush.bf16.msra.mxu0 %v187
  %1436 = vmatpush.bf16.msra.mxu0 %v186
  %1437 = vmatpush.bf16.msra.mxu0 %v185
  %1438 = vmatpush.bf16.msra.mxu0 %v184
  %1439 = vmatpush.bf16.msra.mxu0 %v183
  %1440 = vmatmul.bf16.gmra.mxu0 %v1428
  %v1441 = vpop.f32.mrf.mxu0
  %v1442 = vadd.f32 0.0, %v1441
  %v1443 = vpop.f32.mrf.mxu0
  %1444 = vdwg.mxu0
  %1445 = vmatpush.bf16.msra.mxu0 %v198
  %1446 = vmatpush.bf16.msra.mxu0 %v197
  %1447 = vmatpush.bf16.msra.mxu0 %v196
  %1448 = vmatpush.bf16.msra.mxu0 %v195
  %1449 = vmatpush.bf16.msra.mxu0 %v194
  %1450 = vmatpush.bf16.msra.mxu0 %v193
  %1451 = vmatpush.bf16.msra.mxu0 %v192
  %1452 = vmatpush.bf16.msra.mxu0 %v191
  %1453 = vmatmul.bf16.gmra.mxu0 %v1429
  %v1454 = vpop.f32.mrf.mxu0
  %v1455 = vadd.f32 %v1442, %v1454
  %v1456 = vpop.f32.mrf.mxu0
  %1457 = vdwg.mxu0
  %1458 = vmatpush.bf16.msra.mxu0 %v312
  %1459 = vmatpush.bf16.msra.mxu0 %v311
  %1460 = vmatpush.bf16.msra.mxu0 %v310
  %1461 = vmatpush.bf16.msra.mxu0 %v309
  %1462 = vmatpush.bf16.msra.mxu0 %v308
  %1463 = vmatpush.bf16.msra.mxu0 %v307
  %1464 = vmatpush.bf16.msra.mxu0 %v306
  %1465 = vmatpush.bf16.msra.mxu0 %v305
  %1466 = vmatmul.bf16.gmra.mxu0 %v1420
  %v1467 = vpop.f32.mrf.mxu0
  %v1468 = vadd.f32 %v1455, %v1467
  %v1469 = vpop.f32.mrf.mxu0
  %1470 = vdwg.mxu0
  %1471 = vmatpush.bf16.msra.mxu0 %v320
  %1472 = vmatpush.bf16.msra.mxu0 %v319
  %1473 = vmatpush.bf16.msra.mxu0 %v318
  %1474 = vmatpush.bf16.msra.mxu0 %v317
  %1475 = vmatpush.bf16.msra.mxu0 %v316
  %1476 = vmatpush.bf16.msra.mxu0 %v315
  %1477 = vmatpush.bf16.msra.mxu0 %v314
  %1478 = vmatpush.bf16.msra.mxu0 %v313
  %1479 = vmatmul.bf16.gmra.mxu0 %v1421
  %v1480 = vpop.f32.mrf.mxu0
  %v1481 = vadd.f32 %v1468, %v1480
  %v1482 = vpop.f32.mrf.mxu0
  %1483 = vdwg.mxu0
  %v1484 = vadd.f32 %v1481, %v364
  %vm1485 = vcmp.ge.f32.partialorder %v1484, 0.0
  %v1486 = vmul.f32 %v1484, 0.01
  %v1487 = vsel %vm1485, %v1484, %v1486
  %v1488 = vmul.f32 %v1487, %v1487
  %v1489 = vpack.c.bf16 %v1488, %v1488
  %1490 = vmatpush.bf16.msra.mxu0 %v414
  %1491 = vmatpush.bf16.msra.mxu0 %v413
  %1492 = vmatpush.bf16.msra.mxu0 %v412
  %1493 = vmatpush.bf16.msra.mxu0 %v411
  %1494 = vmatpush.bf16.msra.mxu0 %v410
  %1495 = vmatpush.bf16.msra.mxu0 %v409
  %1496 = vmatpush.bf16.msra.mxu0 %v408
  %1497 = vmatpush.bf16.msra.mxu0 %v407
  %1498 = vmatmul.bf16.gmra.mxu0 %v1489
  %v1499 = vpop.f32.mrf.mxu0
  %v1500 = vadd.f32 %v373, %v1499
  %v1501 = vpop.f32.mrf.mxu0
  %1502 = vdwg.mxu0
  %v1503 = vrsqrt.pop %v1500
  %v1504 = vmul.f32 %v1503, %v1500
  %v1505 = vmul.f32 %v1504, %v1503
  %v1506 = vmul.f32 0.5, %v1505
  %v1507 = vsub.f32 1.5, %v1506
  %v1508 = vmul.f32 %v1503, %v1507
  %vm1509 = vweird.f32 %v1500
  %vm1510 = vweird.f32 %v1503
  %vm1511 = vmor %vm1509, %vm1510
  %v1512 = vsel %vm1511, %v1503, %v1508
  %v1513 = vmul.f32 %v1487, %v1512
  %1514 = vst [vmem:[%s6 + $0x2c] sm:$0xf] %v1513
  %v1515 = vld [vmem:[%s0 + $0xc0] sm:$0xf]
  %v1516 = vld [vmem:[%s0 + $0xc8] sm:$0xf]
  %v1517 = vpack.c.bf16 %v1515, %v1515
  %v1518 = vpack.c.bf16 %v1516, %v1516
  %v1519 = vld [vmem:[%s0 + $0xc0] sm:$0xf0]
  %v1520 = vld [vmem:[%s0 + $0xc8] sm:$0xf0]
  %v1521 = vpack.c.bf16 %v1519, %v1519
  %v1522 = vpack.c.bf16 %v1520, %v1520
  %v1525 = vrot.slane %v1521, 2
  %v1526 = vrot.slane %v1522, 2
  %1529 = vmatpush.bf16.msra.mxu0 %v190
  %1530 = vmatpush.bf16.msra.mxu0 %v189
  %1531 = vmatpush.bf16.msra.mxu0 %v188
  %1532 = vmatpush.bf16.msra.mxu0 %v187
  %1533 = vmatpush.bf16.msra.mxu0 %v186
  %1534 = vmatpush.bf16.msra.mxu0 %v185
  %1535 = vmatpush.bf16.msra.mxu0 %v184
  %1536 = vmatpush.bf16.msra.mxu0 %v183
  %1537 = vmatmul.bf16.gmra.mxu0 %v1525
  %v1538 = vpop.f32.mrf.mxu0
  %v1539 = vadd.f32 0.0, %v1538
  %v1540 = vpop.f32.mrf.mxu0
  %1541 = vdwg.mxu0
  %1542 = vmatpush.bf16.msra.mxu0 %v198
  %1543 = vmatpush.bf16.msra.mxu0 %v197
  %1544 = vmatpush.bf16.msra.mxu0 %v196
  %1545 = vmatpush.bf16.msra.mxu0 %v195
  %1546 = vmatpush.bf16.msra.mxu0 %v194
  %1547 = vmatpush.bf16.msra.mxu0 %v193
  %1548 = vmatpush.bf16.msra.mxu0 %v192
  %1549 = vmatpush.bf16.msra.mxu0 %v191
  %1550 = vmatmul.bf16.gmra.mxu0 %v1526
  %v1551 = vpop.f32.mrf.mxu0
  %v1552 = vadd.f32 %v1539, %v1551
  %v1553 = vpop.f32.mrf.mxu0
  %1554 = vdwg.mxu0
  %1555 = vmatpush.bf16.msra.mxu0 %v312
  %1556 = vmatpush.bf16.msra.mxu0 %v311
  %1557 = vmatpush.bf16.msra.mxu0 %v310
  %1558 = vmatpush.bf16.msra.mxu0 %v309
  %1559 = vmatpush.bf16.msra.mxu0 %v308
  %1560 = vmatpush.bf16.msra.mxu0 %v307
  %1561 = vmatpush.bf16.msra.mxu0 %v306
  %1562 = vmatpush.bf16.msra.mxu0 %v305
  %1563 = vmatmul.bf16.gmra.mxu0 %v1517
  %v1564 = vpop.f32.mrf.mxu0
  %v1565 = vadd.f32 %v1552, %v1564
  %v1566 = vpop.f32.mrf.mxu0
  %1567 = vdwg.mxu0
  %1568 = vmatpush.bf16.msra.mxu0 %v320
  %1569 = vmatpush.bf16.msra.mxu0 %v319
  %1570 = vmatpush.bf16.msra.mxu0 %v318
  %1571 = vmatpush.bf16.msra.mxu0 %v317
  %1572 = vmatpush.bf16.msra.mxu0 %v316
  %1573 = vmatpush.bf16.msra.mxu0 %v315
  %1574 = vmatpush.bf16.msra.mxu0 %v314
  %1575 = vmatpush.bf16.msra.mxu0 %v313
  %1576 = vmatmul.bf16.gmra.mxu0 %v1518
  %v1577 = vpop.f32.mrf.mxu0
  %v1578 = vadd.f32 %v1565, %v1577
  %v1579 = vpop.f32.mrf.mxu0
  %1580 = vdwg.mxu0
  %v1581 = vadd.f32 %v1578, %v364
  %vm1582 = vcmp.ge.f32.partialorder %v1581, 0.0
  %v1583 = vmul.f32 %v1581, 0.01
  %v1584 = vsel %vm1582, %v1581, %v1583
  %v1585 = vmul.f32 %v1584, %v1584
  %v1586 = vpack.c.bf16 %v1585, %v1585
  %1587 = vmatpush.bf16.msra.mxu0 %v414
  %1588 = vmatpush.bf16.msra.mxu0 %v413
  %1589 = vmatpush.bf16.msra.mxu0 %v412
  %1590 = vmatpush.bf16.msra.mxu0 %v411
  %1591 = vmatpush.bf16.msra.mxu0 %v410
  %1592 = vmatpush.bf16.msra.mxu0 %v409
  %1593 = vmatpush.bf16.msra.mxu0 %v408
  %1594 = vmatpush.bf16.msra.mxu0 %v407
  %1595 = vmatmul.bf16.gmra.mxu0 %v1586
  %v1596 = vpop.f32.mrf.mxu0
  %v1597 = vadd.f32 %v373, %v1596
  %v1598 = vpop.f32.mrf.mxu0
  %1599 = vdwg.mxu0
  %v1600 = vrsqrt.pop %v1597
  %v1601 = vmul.f32 %v1600, %v1597
  %v1602 = vmul.f32 %v1601, %v1600
  %v1603 = vmul.f32 0.5, %v1602
  %v1604 = vsub.f32 1.5, %v1603
  %v1605 = vmul.f32 %v1600, %v1604
  %vm1606 = vweird.f32 %v1597
  %vm1607 = vweird.f32 %v1600
  %vm1608 = vmor %vm1606, %vm1607
  %v1609 = vsel %vm1608, %v1600, %v1605
  %v1610 = vmul.f32 %v1584, %v1609
  %1611 = vst [vmem:[%s6 + $0x30] sm:$0xf] %v1610
  %v1612 = vld [vmem:[%s0 + $0xd0] sm:$0xf]
  %v1613 = vld [vmem:[%s0 + $0xd8] sm:$0xf]
  %v1614 = vpack.c.bf16 %v1612, %v1612
  %v1615 = vpack.c.bf16 %v1613, %v1613
  %v1616 = vld [vmem:[%s0 + $0xd0] sm:$0xf0]
  %v1617 = vld [vmem:[%s0 + $0xd8] sm:$0xf0]
  %v1618 = vpack.c.bf16 %v1616, %v1616
  %v1619 = vpack.c.bf16 %v1617, %v1617
  %v1622 = vrot.slane %v1618, 2
  %v1623 = vrot.slane %v1619, 2
  %1626 = vmatpush.bf16.msra.mxu0 %v190
  %1627 = vmatpush.bf16.msra.mxu0 %v189
  %1628 = vmatpush.bf16.msra.mxu0 %v188
  %1629 = vmatpush.bf16.msra.mxu0 %v187
  %1630 = vmatpush.bf16.msra.mxu0 %v186
  %1631 = vmatpush.bf16.msra.mxu0 %v185
  %1632 = vmatpush.bf16.msra.mxu0 %v184
  %1633 = vmatpush.bf16.msra.mxu0 %v183
  %1634 = vmatmul.bf16.gmra.mxu0 %v1622
  %v1635 = vpop.f32.mrf.mxu0
  %v1636 = vadd.f32 0.0, %v1635
  %v1637 = vpop.f32.mrf.mxu0
  %1638 = vdwg.mxu0
  %1639 = vmatpush.bf16.msra.mxu0 %v198
  %1640 = vmatpush.bf16.msra.mxu0 %v197
  %1641 = vmatpush.bf16.msra.mxu0 %v196
  %1642 = vmatpush.bf16.msra.mxu0 %v195
  %1643 = vmatpush.bf16.msra.mxu0 %v194
  %1644 = vmatpush.bf16.msra.mxu0 %v193
  %1645 = vmatpush.bf16.msra.mxu0 %v192
  %1646 = vmatpush.bf16.msra.mxu0 %v191
  %1647 = vmatmul.bf16.gmra.mxu0 %v1623
  %v1648 = vpop.f32.mrf.mxu0
  %v1649 = vadd.f32 %v1636, %v1648
  %v1650 = vpop.f32.mrf.mxu0
  %1651 = vdwg.mxu0
  %1652 = vmatpush.bf16.msra.mxu0 %v312
  %1653 = vmatpush.bf16.msra.mxu0 %v311
  %1654 = vmatpush.bf16.msra.mxu0 %v310
  %1655 = vmatpush.bf16.msra.mxu0 %v309
  %1656 = vmatpush.bf16.msra.mxu0 %v308
  %1657 = vmatpush.bf16.msra.mxu0 %v307
  %1658 = vmatpush.bf16.msra.mxu0 %v306
  %1659 = vmatpush.bf16.msra.mxu0 %v305
  %1660 = vmatmul.bf16.gmra.mxu0 %v1614
  %v1661 = vpop.f32.mrf.mxu0
  %v1662 = vadd.f32 %v1649, %v1661
  %v1663 = vpop.f32.mrf.mxu0
  %1664 = vdwg.mxu0
  %1665 = vmatpush.bf16.msra.mxu0 %v320
  %1666 = vmatpush.bf16.msra.mxu0 %v319
  %1667 = vmatpush.bf16.msra.mxu0 %v318
  %1668 = vmatpush.bf16.msra.mxu0 %v317
  %1669 = vmatpush.bf16.msra.mxu0 %v316
  %1670 = vmatpush.bf16.msra.mxu0 %v315
  %1671 = vmatpush.bf16.msra.mxu0 %v314
  %1672 = vmatpush.bf16.msra.mxu0 %v313
  %1673 = vmatmul.bf16.gmra.mxu0 %v1615
  %v1674 = vpop.f32.mrf.mxu0
  %v1675 = vadd.f32 %v1662, %v1674
  %v1676 = vpop.f32.mrf.mxu0
  %1677 = vdwg.mxu0
  %v1678 = vadd.f32 %v1675, %v364
  %vm1679 = vcmp.ge.f32.partialorder %v1678, 0.0
  %v1680 = vmul.f32 %v1678, 0.01
  %v1681 = vsel %vm1679, %v1678, %v1680
  %v1682 = vmul.f32 %v1681, %v1681
  %v1683 = vpack.c.bf16 %v1682, %v1682
  %1684 = vmatpush.bf16.msra.mxu0 %v414
  %1685 = vmatpush.bf16.msra.mxu0 %v413
  %1686 = vmatpush.bf16.msra.mxu0 %v412
  %1687 = vmatpush.bf16.msra.mxu0 %v411
  %1688 = vmatpush.bf16.msra.mxu0 %v410
  %1689 = vmatpush.bf16.msra.mxu0 %v409
  %1690 = vmatpush.bf16.msra.mxu0 %v408
  %1691 = vmatpush.bf16.msra.mxu0 %v407
  %1692 = vmatmul.bf16.gmra.mxu0 %v1683
  %v1693 = vpop.f32.mrf.mxu0
  %v1694 = vadd.f32 %v373, %v1693
  %v1695 = vpop.f32.mrf.mxu0
  %1696 = vdwg.mxu0
  %v1697 = vrsqrt.pop %v1694
  %v1698 = vmul.f32 %v1697, %v1694
  %v1699 = vmul.f32 %v1698, %v1697
  %v1700 = vmul.f32 0.5, %v1699
  %v1701 = vsub.f32 1.5, %v1700
  %v1702 = vmul.f32 %v1697, %v1701
  %vm1703 = vweird.f32 %v1694
  %vm1704 = vweird.f32 %v1697
  %vm1705 = vmor %vm1703, %vm1704
  %v1706 = vsel %vm1705, %v1697, %v1702
  %v1707 = vmul.f32 %v1681, %v1706
  %1708 = vst [vmem:[%s6 + $0x34] sm:$0xf] %v1707
  %v1709 = vld [vmem:[%s0 + $0xe0] sm:$0xf]
  %v1710 = vld [vmem:[%s0 + $0xe8] sm:$0xf]
  %v1711 = vpack.c.bf16 %v1709, %v1709
  %v1712 = vpack.c.bf16 %v1710, %v1710
  %v1713 = vld [vmem:[%s0 + $0xe0] sm:$0xf0]
  %v1714 = vld [vmem:[%s0 + $0xe8] sm:$0xf0]
  %v1715 = vpack.c.bf16 %v1713, %v1713
  %v1716 = vpack.c.bf16 %v1714, %v1714
  %v1719 = vrot.slane %v1715, 2
  %v1720 = vrot.slane %v1716, 2
  %1723 = vmatpush.bf16.msra.mxu0 %v190
  %1724 = vmatpush.bf16.msra.mxu0 %v189
  %1725 = vmatpush.bf16.msra.mxu0 %v188
  %1726 = vmatpush.bf16.msra.mxu0 %v187
  %1727 = vmatpush.bf16.msra.mxu0 %v186
  %1728 = vmatpush.bf16.msra.mxu0 %v185
  %1729 = vmatpush.bf16.msra.mxu0 %v184
  %1730 = vmatpush.bf16.msra.mxu0 %v183
  %1731 = vmatmul.bf16.gmra.mxu0 %v1719
  %v1732 = vpop.f32.mrf.mxu0
  %v1733 = vadd.f32 0.0, %v1732
  %v1734 = vpop.f32.mrf.mxu0
  %1735 = vdwg.mxu0
  %1736 = vmatpush.bf16.msra.mxu0 %v198
  %1737 = vmatpush.bf16.msra.mxu0 %v197
  %1738 = vmatpush.bf16.msra.mxu0 %v196
  %1739 = vmatpush.bf16.msra.mxu0 %v195
  %1740 = vmatpush.bf16.msra.mxu0 %v194
  %1741 = vmatpush.bf16.msra.mxu0 %v193
  %1742 = vmatpush.bf16.msra.mxu0 %v192
  %1743 = vmatpush.bf16.msra.mxu0 %v191
  %1744 = vmatmul.bf16.gmra.mxu0 %v1720
  %v1745 = vpop.f32.mrf.mxu0
  %v1746 = vadd.f32 %v1733, %v1745
  %v1747 = vpop.f32.mrf.mxu0
  %1748 = vdwg.mxu0
  %1749 = vmatpush.bf16.msra.mxu0 %v312
  %1750 = vmatpush.bf16.msra.mxu0 %v311
  %1751 = vmatpush.bf16.msra.mxu0 %v310
  %1752 = vmatpush.bf16.msra.mxu0 %v309
  %1753 = vmatpush.bf16.msra.mxu0 %v308
  %1754 = vmatpush.bf16.msra.mxu0 %v307
  %1755 = vmatpush.bf16.msra.mxu0 %v306
  %1756 = vmatpush.bf16.msra.mxu0 %v305
  %1757 = vmatmul.bf16.gmra.mxu0 %v1711
  %v1758 = vpop.f32.mrf.mxu0
  %v1759 = vadd.f32 %v1746, %v1758
  %v1760 = vpop.f32.mrf.mxu0
  %1761 = vdwg.mxu0
  %1762 = vmatpush.bf16.msra.mxu0 %v320
  %1763 = vmatpush.bf16.msra.mxu0 %v319
  %1764 = vmatpush.bf16.msra.mxu0 %v318
  %1765 = vmatpush.bf16.msra.mxu0 %v317
  %1766 = vmatpush.bf16.msra.mxu0 %v316
  %1767 = vmatpush.bf16.msra.mxu0 %v315
  %1768 = vmatpush.bf16.msra.mxu0 %v314
  %1769 = vmatpush.bf16.msra.mxu0 %v313
  %1770 = vmatmul.bf16.gmra.mxu0 %v1712
  %v1771 = vpop.f32.mrf.mxu0
  %v1772 = vadd.f32 %v1759, %v1771
  %v1773 = vpop.f32.mrf.mxu0
  %1774 = vdwg.mxu0
  %v1775 = vadd.f32 %v1772, %v364
  %vm1776 = vcmp.ge.f32.partialorder %v1775, 0.0
  %v1777 = vmul.f32 %v1775, 0.01
  %v1778 = vsel %vm1776, %v1775, %v1777
  %v1779 = vmul.f32 %v1778, %v1778
  %v1780 = vpack.c.bf16 %v1779, %v1779
  %1781 = vmatpush.bf16.msra.mxu0 %v414
  %1782 = vmatpush.bf16.msra.mxu0 %v413
  %1783 = vmatpush.bf16.msra.mxu0 %v412
  %1784 = vmatpush.bf16.msra.mxu0 %v411
  %1785 = vmatpush.bf16.msra.mxu0 %v410
  %1786 = vmatpush.bf16.msra.mxu0 %v409
  %1787 = vmatpush.bf16.msra.mxu0 %v408
  %1788 = vmatpush.bf16.msra.mxu0 %v407
  %1789 = vmatmul.bf16.gmra.mxu0 %v1780
  %v1790 = vpop.f32.mrf.mxu0
  %v1791 = vadd.f32 %v373, %v1790
  %v1792 = vpop.f32.mrf.mxu0
  %1793 = vdwg.mxu0
  %v1794 = vrsqrt.pop %v1791
  %v1795 = vmul.f32 %v1794, %v1791
  %v1796 = vmul.f32 %v1795, %v1794
  %v1797 = vmul.f32 0.5, %v1796
  %v1798 = vsub.f32 1.5, %v1797
  %v1799 = vmul.f32 %v1794, %v1798
  %vm1800 = vweird.f32 %v1791
  %vm1801 = vweird.f32 %v1794
  %vm1802 = vmor %vm1800, %vm1801
  %v1803 = vsel %vm1802, %v1794, %v1799
  %v1804 = vmul.f32 %v1778, %v1803
  %1805 = vst [vmem:[%s6 + $0x38] sm:$0xf] %v1804
  %v1806 = vld [vmem:[%s0 + $0xf0] sm:$0xf]
  %v1807 = vld [vmem:[%s0 + $0xf8] sm:$0xf]
  %v1808 = vpack.c.bf16 %v1806, %v1806
  %v1809 = vpack.c.bf16 %v1807, %v1807
  %v1810 = vld [vmem:[%s0 + $0xf0] sm:$0xf0]
  %v1811 = vld [vmem:[%s0 + $0xf8] sm:$0xf0]
  %v1812 = vpack.c.bf16 %v1810, %v1810
  %v1813 = vpack.c.bf16 %v1811, %v1811
  %v1816 = vrot.slane %v1812, 2
  %v1817 = vrot.slane %v1813, 2
  %1820 = vmatpush.bf16.msra.mxu0 %v190
  %1821 = vmatpush.bf16.msra.mxu0 %v189
  %1822 = vmatpush.bf16.msra.mxu0 %v188
  %1823 = vmatpush.bf16.msra.mxu0 %v187
  %1824 = vmatpush.bf16.msra.mxu0 %v186
  %1825 = vmatpush.bf16.msra.mxu0 %v185
  %1826 = vmatpush.bf16.msra.mxu0 %v184
  %1827 = vmatpush.bf16.msra.mxu0 %v183
  %1828 = vmatmul.bf16.gmra.mxu0 %v1816
  %v1829 = vpop.f32.mrf.mxu0
  %v1830 = vadd.f32 0.0, %v1829
  %v1831 = vpop.f32.mrf.mxu0
  %1832 = vdwg.mxu0
  %1833 = vmatpush.bf16.msra.mxu0 %v198
  %1834 = vmatpush.bf16.msra.mxu0 %v197
  %1835 = vmatpush.bf16.msra.mxu0 %v196
  %1836 = vmatpush.bf16.msra.mxu0 %v195
  %1837 = vmatpush.bf16.msra.mxu0 %v194
  %1838 = vmatpush.bf16.msra.mxu0 %v193
  %1839 = vmatpush.bf16.msra.mxu0 %v192
  %1840 = vmatpush.bf16.msra.mxu0 %v191
  %1841 = vmatmul.bf16.gmra.mxu0 %v1817
  %v1842 = vpop.f32.mrf.mxu0
  %v1843 = vadd.f32 %v1830, %v1842
  %v1844 = vpop.f32.mrf.mxu0
  %1845 = vdwg.mxu0
  %1846 = vmatpush.bf16.msra.mxu0 %v312
  %1847 = vmatpush.bf16.msra.mxu0 %v311
  %1848 = vmatpush.bf16.msra.mxu0 %v310
  %1849 = vmatpush.bf16.msra.mxu0 %v309
  %1850 = vmatpush.bf16.msra.mxu0 %v308
  %1851 = vmatpush.bf16.msra.mxu0 %v307
  %1852 = vmatpush.bf16.msra.mxu0 %v306
  %1853 = vmatpush.bf16.msra.mxu0 %v305
  %1854 = vmatmul.bf16.gmra.mxu0 %v1808
  %v1855 = vpop.f32.mrf.mxu0
  %v1856 = vadd.f32 %v1843, %v1855
  %v1857 = vpop.f32.mrf.mxu0
  %1858 = vdwg.mxu0
  %1859 = vmatpush.bf16.msra.mxu0 %v320
  %1860 = vmatpush.bf16.msra.mxu0 %v319
  %1861 = vmatpush.bf16.msra.mxu0 %v318
  %1862 = vmatpush.bf16.msra.mxu0 %v317
  %1863 = vmatpush.bf16.msra.mxu0 %v316
  %1864 = vmatpush.bf16.msra.mxu0 %v315
  %1865 = vmatpush.bf16.msra.mxu0 %v314
  %1866 = vmatpush.bf16.msra.mxu0 %v313
  %1867 = vmatmul.bf16.gmra.mxu0 %v1809
  %v1868 = vpop.f32.mrf.mxu0
  %v1869 = vadd.f32 %v1856, %v1868
  %v1870 = vpop.f32.mrf.mxu0
  %1871 = vdwg.mxu0
  %v1872 = vadd.f32 %v1869, %v364
  %vm1873 = vcmp.ge.f32.partialorder %v1872, 0.0
  %v1874 = vmul.f32 %v1872, 0.01
  %v1875 = vsel %vm1873, %v1872, %v1874
  %v1876 = vmul.f32 %v1875, %v1875
  %v1877 = vpack.c.bf16 %v1876, %v1876
  %1878 = vmatpush.bf16.msra.mxu0 %v414
  %1879 = vmatpush.bf16.msra.mxu0 %v413
  %1880 = vmatpush.bf16.msra.mxu0 %v412
  %1881 = vmatpush.bf16.msra.mxu0 %v411
  %1882 = vmatpush.bf16.msra.mxu0 %v410
  %1883 = vmatpush.bf16.msra.mxu0 %v409
  %1884 = vmatpush.bf16.msra.mxu0 %v408
  %1885 = vmatpush.bf16.msra.mxu0 %v407
  %1886 = vmatmul.bf16.gmra.mxu0 %v1877
  %v1887 = vpop.f32.mrf.mxu0
  %v1888 = vadd.f32 %v373, %v1887
  %v1889 = vpop.f32.mrf.mxu0
  %1890 = vdwg.mxu0
  %v1891 = vrsqrt.pop %v1888
  %v1892 = vmul.f32 %v1891, %v1888
  %v1893 = vmul.f32 %v1892, %v1891
  %v1894 = vmul.f32 0.5, %v1893
  %v1895 = vsub.f32 1.5, %v1894
  %v1896 = vmul.f32 %v1891, %v1895
  %vm1897 = vweird.f32 %v1888
  %vm1898 = vweird.f32 %v1891
  %vm1899 = vmor %vm1897, %vm1898
  %v1900 = vsel %vm1899, %v1891, %v1896
  %v1901 = vmul.f32 %v1875, %v1900
  %1902 = vst [vmem:[%s6 + $0x3c] sm:$0xf] %v1901
  // Predicated region
  $region26: #{encode_net_forward.8} parent=0 // pred_check
    _
  $region27: #{encode_net_forward.8} parent=0 // pred_check_branch
    %1904 = sbr.rel (0) target = $region29
  $region28: #{encode_net_forward.8} parent=0 // pred_region
    _
  $region29: #{encode_net_forward.8} parent=0 // pred_fallthru
    _
  // Predicated region
  $region30: #{encode_net_forward.8} parent=0 // pred_check
    _
  $region31: #{encode_net_forward.8} parent=0 // pred_check_branch
    %1906 = sbr.rel (0) target = $region33
  $region32: #{encode_net_forward.8} parent=0 // pred_region
    _
  $region33: #{encode_net_forward.8} parent=0 // pred_fallthru
    _

// kernel: encode_net_forward.7
$region0: #{encode_net_forward.7}
  #allocation0 [shape = 'u32[]', space=smem, size = 0x4, offset = 0x4, fixed_abs, tag = 'smem constant byte address 0x4 - core index']
  #allocation1 [shape = 'u32[72,128]{1,0:T(1,128)}', space=vmem, size = 0x9000, scoped, tag = 'internal scratch']
  %s0 = inlined_call_operand.vmem [shape: f32[256,8], index: 0, kind: input, shape index: {}]
  %s1 = inlined_call_operand.vmem [shape: f32[1,128], index: 1, kind: input, shape index: {}]
  %s2 = inlined_call_operand.vmem [shape: f32[1,128], index: 2, kind: input, shape index: {}]
  %s3 = inlined_call_operand.vmem [shape: f32[1,128], index: 3, kind: input, shape index: {}]
  %s4 = inlined_call_operand.vmem [shape: bf16[4,128,128], index: 4, kind: input, shape index: {}]
  %s5 = inlined_call_operand.vmem [shape: f32[1,128], index: 5, kind: input, shape index: {}]
  %s6 = inlined_call_operand.vmem [shape: bf16[128,128], index: 6, kind: input, shape index: {}]
  %s7 = inlined_call_operand.vmem [shape: f32[1,128], index: 7, kind: input, shape index: {}]
  %s8 = inlined_call_operand.vmem [shape: f32[256,128], index: 8, kind: output, shape index: {}]
  %s9 = sld [smem:[#allocation0]]
  $region42: #{encode_net_forward.7} parent=0
    _
  %s11 = ssub.s32 1, %s9
  %s12 = scalar_select 0, %s11, %s9
  // Predicated region
  $region2: #{encode_net_forward.7} parent=0 // pred_check
    _
  $region3: #{encode_net_forward.7} parent=0 // pred_check_branch
    %14 = sbr.rel (0) target = $region5
  $region4: #{encode_net_forward.7} parent=0 // pred_region
    _
  $region5: #{encode_net_forward.7} parent=0 // pred_fallthru
    _
  // Predicated region
  $region6: #{encode_net_forward.7} parent=0 // pred_check
    _
  $region7: #{encode_net_forward.7} parent=0 // pred_check_branch
    %16 = sbr.rel (0) target = $region9
  $region8: #{encode_net_forward.7} parent=0 // pred_region
    _
  $region9: #{encode_net_forward.7} parent=0 // pred_fallthru
    _
  // Predicated region
  $region10: #{encode_net_forward.7} parent=0 // pred_check
    _
  $region11: #{encode_net_forward.7} parent=0 // pred_check_branch
    %18 = sbr.rel (0) target = $region13
  $region12: #{encode_net_forward.7} parent=0 // pred_region
    _
  $region13: #{encode_net_forward.7} parent=0 // pred_fallthru
    _
  // Predicated region
  $region14: #{encode_net_forward.7} parent=0 // pred_check
    _
  $region15: #{encode_net_forward.7} parent=0 // pred_check_branch
    %20 = sbr.rel (0) target = $region17
  $region16: #{encode_net_forward.7} parent=0 // pred_region
    _
  $region17: #{encode_net_forward.7} parent=0 // pred_fallthru
    _
  // Predicated region
  $region18: #{encode_net_forward.7} parent=0 // pred_check
    _
  $region19: #{encode_net_forward.7} parent=0 // pred_check_branch
    %22 = sbr.rel (0) target = $region21
  $region20: #{encode_net_forward.7} parent=0 // pred_region
    _
  $region21: #{encode_net_forward.7} parent=0 // pred_fallthru
    _
  // Predicated region
  $region22: #{encode_net_forward.7} parent=0 // pred_check
    _
  $region23: #{encode_net_forward.7} parent=0 // pred_check_branch
    %24 = sbr.rel (0) target = $region25
  $region24: #{encode_net_forward.7} parent=0 // pred_region
    _
  $region25: #{encode_net_forward.7} parent=0 // pred_fallthru
    _
  // Predicated region
  $region26: #{encode_net_forward.7} parent=0 // pred_check
    _
  $region27: #{encode_net_forward.7} parent=0 // pred_check_branch
    %26 = sbr.rel (0) target = $region29
  $region28: #{encode_net_forward.7} parent=0 // pred_region
    _
  $region29: #{encode_net_forward.7} parent=0 // pred_fallthru
    _
  // Predicated region
  $region30: #{encode_net_forward.7} parent=0 // pred_check
    _
  $region31: #{encode_net_forward.7} parent=0 // pred_check_branch
    %28 = sbr.rel (0) target = $region33
  $region32: #{encode_net_forward.7} parent=0 // pred_region
    _
  $region33: #{encode_net_forward.7} parent=0 // pred_fallthru
    _
  %v29 = vld [vmem:[%s0] sm:$0xff]
  %v30 = vld [vmem:[%s0 + $0x8] sm:$0xff]
  %v31 = vld [vmem:[%s0 + $0x10] sm:$0xff]
  %v32 = vld [vmem:[%s0 + $0x18] sm:$0xff]
  %v33 = vld [vmem:[%s0 + $0x20] sm:$0xff]
  %v34 = vld [vmem:[%s0 + $0x28] sm:$0xff]
  %v35 = vld [vmem:[%s0 + $0x30] sm:$0xff]
  %v36 = vld [vmem:[%s0 + $0x38] sm:$0xff]
  %v37 = vld [vmem:[%s0 + $0x40] sm:$0xff]
  %v38 = vld [vmem:[%s0 + $0x48] sm:$0xff]
  %v39 = vld [vmem:[%s0 + $0x50] sm:$0xff]
  %v40 = vld [vmem:[%s0 + $0x58] sm:$0xff]
  %v41 = vld [vmem:[%s0 + $0x60] sm:$0xff]
  %v42 = vld [vmem:[%s0 + $0x68] sm:$0xff]
  %v43 = vld [vmem:[%s0 + $0x70] sm:$0xff]
  %v44 = vld [vmem:[%s0 + $0x78] sm:$0xff]
  %v45 = vld [vmem:[%s0 + $0x80] sm:$0xff]
  %v46 = vld [vmem:[%s0 + $0x88] sm:$0xff]
  %v47 = vld [vmem:[%s0 + $0x90] sm:$0xff]
  %v48 = vld [vmem:[%s0 + $0x98] sm:$0xff]
  %v49 = vld [vmem:[%s0 + $0xa0] sm:$0xff]
  %v50 = vld [vmem:[%s0 + $0xa8] sm:$0xff]
  %v51 = vld [vmem:[%s0 + $0xb0] sm:$0xff]
  %v52 = vld [vmem:[%s0 + $0xb8] sm:$0xff]
  %v53 = vld [vmem:[%s0 + $0xc0] sm:$0xff]
  %v54 = vld [vmem:[%s0 + $0xc8] sm:$0xff]
  %v55 = vld [vmem:[%s0 + $0xd0] sm:$0xff]
  %v56 = vld [vmem:[%s0 + $0xd8] sm:$0xff]
  %v57 = vld [vmem:[%s0 + $0xe0] sm:$0xff]
  %v58 = vld [vmem:[%s0 + $0xe8] sm:$0xff]
  %v59 = vld [vmem:[%s0 + $0xf0] sm:$0xff]
  %v60 = vld [vmem:[%s0 + $0xf8] sm:$0xff]
  %v61 = vmul.f32 %v29, 0.003921569
  %v62 = vmul.f32 %v30, 0.003921569
  %v63 = vmul.f32 %v31, 0.003921569
  %v64 = vmul.f32 %v32, 0.003921569
  %v65 = vmul.f32 %v33, 0.003921569
  %v66 = vmul.f32 %v34, 0.003921569
  %v67 = vmul.f32 %v35, 0.003921569
  %v68 = vmul.f32 %v36, 0.003921569
  %v69 = vmul.f32 %v37, 0.003921569
  %v70 = vmul.f32 %v38, 0.003921569
  %v71 = vmul.f32 %v39, 0.003921569
  %v72 = vmul.f32 %v40, 0.003921569
  %v73 = vmul.f32 %v41, 0.003921569
  %v74 = vmul.f32 %v42, 0.003921569
  %v75 = vmul.f32 %v43, 0.003921569
  %v76 = vmul.f32 %v44, 0.003921569
  %v77 = vmul.f32 %v45, 0.003921569
  %v78 = vmul.f32 %v46, 0.003921569
  %v79 = vmul.f32 %v47, 0.003921569
  %v80 = vmul.f32 %v48, 0.003921569
  %v81 = vmul.f32 %v49, 0.003921569
  %v82 = vmul.f32 %v50, 0.003921569
  %v83 = vmul.f32 %v51, 0.003921569
  %v84 = vmul.f32 %v52, 0.003921569
  %v85 = vmul.f32 %v53, 0.003921569
  %v86 = vmul.f32 %v54, 0.003921569
  %v87 = vmul.f32 %v55, 0.003921569
  %v88 = vmul.f32 %v56, 0.003921569
  %v89 = vmul.f32 %v57, 0.003921569
  %v90 = vmul.f32 %v58, 0.003921569
  %v91 = vmul.f32 %v59, 0.003921569
  %v92 = vmul.f32 %v60, 0.003921569
  %v93 = vld [vmem:[%s1] sm:$0x1]
  %v94 = vld [vmem:[%s2] sm:$0x1]
  %v95 = vld [vmem:[%s3] sm:$0x1]
  %v96 = vld [vmem:[%s5] sm:$0x1]
  %v97 = vld [vmem:[%s6] sm:$0xf]
  %v98 = vld [vmem:[%s6 + $0x4] sm:$0xf]
  %v99 = vld [vmem:[%s6 + $0x8] sm:$0xf]
  %v100 = vld [vmem:[%s6 + $0xc] sm:$0xf]
  %v101 = vld [vmem:[%s6 + $0x10] sm:$0xf]
  %v102 = vld [vmem:[%s6 + $0x14] sm:$0xf]
  %v103 = vld [vmem:[%s6 + $0x18] sm:$0xf]
  %v104 = vld [vmem:[%s6 + $0x1c] sm:$0xf]
  %v105 = vld [vmem:[%s6 + $0x20] sm:$0xf]
  %v106 = vld [vmem:[%s6 + $0x24] sm:$0xf]
  %v107 = vld [vmem:[%s6 + $0x28] sm:$0xf]
  %v108 = vld [vmem:[%s6 + $0x2c] sm:$0xf]
  %v109 = vld [vmem:[%s6 + $0x30] sm:$0xf]
  %v110 = vld [vmem:[%s6 + $0x34] sm:$0xf]
  %v111 = vld [vmem:[%s6 + $0x38] sm:$0xf]
  %v112 = vld [vmem:[%s6 + $0x3c] sm:$0xf]
  %v113 = vld [vmem:[%s7] sm:$0x1]
  %115 = vset.pattern.permute.xlu0 0
  %116 = vperm.xlu0 %115, %v61
  %v117 = vpop.permute.xlu0 %116
  %120 = vset.pattern.permute.xlu0 0
  %121 = vperm.xlu0 %120, %v62
  %v122 = vpop.permute.xlu0 %121
  %125 = vset.pattern.permute.xlu0 0
  %126 = vperm.xlu0 %125, %v63
  %v127 = vpop.permute.xlu0 %126
  %130 = vset.pattern.permute.xlu0 0
  %131 = vperm.xlu0 %130, %v64
  %v132 = vpop.permute.xlu0 %131
  %135 = vset.pattern.permute.xlu0 0
  %136 = vperm.xlu0 %135, %v65
  %v137 = vpop.permute.xlu0 %136
  %140 = vset.pattern.permute.xlu0 0
  %141 = vperm.xlu0 %140, %v66
  %v142 = vpop.permute.xlu0 %141
  %145 = vset.pattern.permute.xlu0 0
  %146 = vperm.xlu0 %145, %v67
  %v147 = vpop.permute.xlu0 %146
  %150 = vset.pattern.permute.xlu0 0
  %151 = vperm.xlu0 %150, %v68
  %v152 = vpop.permute.xlu0 %151
  %155 = vset.pattern.permute.xlu0 0
  %156 = vperm.xlu0 %155, %v69
  %v157 = vpop.permute.xlu0 %156
  %160 = vset.pattern.permute.xlu0 0
  %161 = vperm.xlu0 %160, %v70
  %v162 = vpop.permute.xlu0 %161
  %165 = vset.pattern.permute.xlu0 0
  %166 = vperm.xlu0 %165, %v71
  %v167 = vpop.permute.xlu0 %166
  %170 = vset.pattern.permute.xlu0 0
  %171 = vperm.xlu0 %170, %v72
  %v172 = vpop.permute.xlu0 %171
  %175 = vset.pattern.permute.xlu0 0
  %176 = vperm.xlu0 %175, %v73
  %v177 = vpop.permute.xlu0 %176
  %180 = vset.pattern.permute.xlu0 0
  %181 = vperm.xlu0 %180, %v74
  %v182 = vpop.permute.xlu0 %181
  %185 = vset.pattern.permute.xlu0 0
  %186 = vperm.xlu0 %185, %v75
  %v187 = vpop.permute.xlu0 %186
  %190 = vset.pattern.permute.xlu0 0
  %191 = vperm.xlu0 %190, %v76
  %v192 = vpop.permute.xlu0 %191
  %195 = vset.pattern.permute.xlu0 0
  %196 = vperm.xlu0 %195, %v77
  %v197 = vpop.permute.xlu0 %196
  %200 = vset.pattern.permute.xlu0 0
  %201 = vperm.xlu0 %200, %v78
  %v202 = vpop.permute.xlu0 %201
  %205 = vset.pattern.permute.xlu0 0
  %206 = vperm.xlu0 %205, %v79
  %v207 = vpop.permute.xlu0 %206
  %210 = vset.pattern.permute.xlu0 0
  %211 = vperm.xlu0 %210, %v80
  %v212 = vpop.permute.xlu0 %211
  %215 = vset.pattern.permute.xlu0 0
  %216 = vperm.xlu0 %215, %v81
  %v217 = vpop.permute.xlu0 %216
  %220 = vset.pattern.permute.xlu0 0
  %221 = vperm.xlu0 %220, %v82
  %v222 = vpop.permute.xlu0 %221
  %225 = vset.pattern.permute.xlu0 0
  %226 = vperm.xlu0 %225, %v83
  %v227 = vpop.permute.xlu0 %226
  %230 = vset.pattern.permute.xlu0 0
  %231 = vperm.xlu0 %230, %v84
  %v232 = vpop.permute.xlu0 %231
  %235 = vset.pattern.permute.xlu0 0
  %236 = vperm.xlu0 %235, %v85
  %v237 = vpop.permute.xlu0 %236
  %240 = vset.pattern.permute.xlu0 0
  %241 = vperm.xlu0 %240, %v86
  %v242 = vpop.permute.xlu0 %241
  %245 = vset.pattern.permute.xlu0 0
  %246 = vperm.xlu0 %245, %v87
  %v247 = vpop.permute.xlu0 %246
  %250 = vset.pattern.permute.xlu0 0
  %251 = vperm.xlu0 %250, %v88
  %v252 = vpop.permute.xlu0 %251
  %255 = vset.pattern.permute.xlu0 0
  %256 = vperm.xlu0 %255, %v89
  %v257 = vpop.permute.xlu0 %256
  %260 = vset.pattern.permute.xlu0 0
  %261 = vperm.xlu0 %260, %v90
  %v262 = vpop.permute.xlu0 %261
  %265 = vset.pattern.permute.xlu0 0
  %266 = vperm.xlu0 %265, %v91
  %v267 = vpop.permute.xlu0 %266
  %270 = vset.pattern.permute.xlu0 0
  %271 = vperm.xlu0 %270, %v92
  %v272 = vpop.permute.xlu0 %271
  %v275 = vperm.slane %v93, 0
  %v277 = vmul.f32 %v117, %v275
  %v278 = vmul.f32 %v122, %v275
  %v279 = vmul.f32 %v127, %v275
  %v280 = vmul.f32 %v132, %v275
  %v281 = vmul.f32 %v137, %v275
  %v282 = vmul.f32 %v142, %v275
  %v283 = vmul.f32 %v147, %v275
  %v284 = vmul.f32 %v152, %v275
  %v285 = vmul.f32 %v157, %v275
  %v286 = vmul.f32 %v162, %v275
  %v287 = vmul.f32 %v167, %v275
  %v288 = vmul.f32 %v172, %v275
  %v289 = vmul.f32 %v177, %v275
  %v290 = vmul.f32 %v182, %v275
  %v291 = vmul.f32 %v187, %v275
  %v292 = vmul.f32 %v192, %v275
  %v293 = vmul.f32 %v197, %v275
  %v294 = vmul.f32 %v202, %v275
  %v295 = vmul.f32 %v207, %v275
  %v296 = vmul.f32 %v212, %v275
  %v297 = vmul.f32 %v217, %v275
  %v298 = vmul.f32 %v222, %v275
  %v299 = vmul.f32 %v227, %v275
  %v300 = vmul.f32 %v232, %v275
  %v301 = vmul.f32 %v237, %v275
  %v302 = vmul.f32 %v242, %v275
  %v303 = vmul.f32 %v247, %v275
  %v304 = vmul.f32 %v252, %v275
  %v305 = vmul.f32 %v257, %v275
  %v306 = vmul.f32 %v262, %v275
  %v307 = vmul.f32 %v267, %v275
  %v308 = vmul.f32 %v272, %v275
  %309 = vset.pattern.permute.xlu0 4
  %310 = vperm.xlu0 %309, %v61
  %v311 = vpop.permute.xlu0 %310
  %313 = vset.pattern.permute.xlu0 4
  %314 = vperm.xlu0 %313, %v62
  %v315 = vpop.permute.xlu0 %314
  %317 = vset.pattern.permute.xlu0 4
  %318 = vperm.xlu0 %317, %v63
  %v319 = vpop.permute.xlu0 %318
  %321 = vset.pattern.permute.xlu0 4
  %322 = vperm.xlu0 %321, %v64
  %v323 = vpop.permute.xlu0 %322
  %325 = vset.pattern.permute.xlu0 4
  %326 = vperm.xlu0 %325, %v65
  %v327 = vpop.permute.xlu0 %326
  %329 = vset.pattern.permute.xlu0 4
  %330 = vperm.xlu0 %329, %v66
  %v331 = vpop.permute.xlu0 %330
  %333 = vset.pattern.permute.xlu0 4
  %334 = vperm.xlu0 %333, %v67
  %v335 = vpop.permute.xlu0 %334
  %337 = vset.pattern.permute.xlu0 4
  %338 = vperm.xlu0 %337, %v68
  %v339 = vpop.permute.xlu0 %338
  %341 = vset.pattern.permute.xlu0 4
  %342 = vperm.xlu0 %341, %v69
  %v343 = vpop.permute.xlu0 %342
  %345 = vset.pattern.permute.xlu0 4
  %346 = vperm.xlu0 %345, %v70
  %v347 = vpop.permute.xlu0 %346
  %349 = vset.pattern.permute.xlu0 4
  %350 = vperm.xlu0 %349, %v71
  %v351 = vpop.permute.xlu0 %350
  %353 = vset.pattern.permute.xlu0 4
  %354 = vperm.xlu0 %353, %v72
  %v355 = vpop.permute.xlu0 %354
  %357 = vset.pattern.permute.xlu0 4
  %358 = vperm.xlu0 %357, %v73
  %v359 = vpop.permute.xlu0 %358
  %361 = vset.pattern.permute.xlu0 4
  %362 = vperm.xlu0 %361, %v74
  %v363 = vpop.permute.xlu0 %362
  %365 = vset.pattern.permute.xlu0 4
  %366 = vperm.xlu0 %365, %v75
  %v367 = vpop.permute.xlu0 %366
  %369 = vset.pattern.permute.xlu0 4
  %370 = vperm.xlu0 %369, %v76
  %v371 = vpop.permute.xlu0 %370
  %373 = vset.pattern.permute.xlu0 4
  %374 = vperm.xlu0 %373, %v77
  %v375 = vpop.permute.xlu0 %374
  %377 = vset.pattern.permute.xlu0 4
  %378 = vperm.xlu0 %377, %v78
  %v379 = vpop.permute.xlu0 %378
  %381 = vset.pattern.permute.xlu0 4
  %382 = vperm.xlu0 %381, %v79
  %v383 = vpop.permute.xlu0 %382
  %385 = vset.pattern.permute.xlu0 4
  %386 = vperm.xlu0 %385, %v80
  %v387 = vpop.permute.xlu0 %386
  %389 = vset.pattern.permute.xlu0 4
  %390 = vperm.xlu0 %389, %v81
  %v391 = vpop.permute.xlu0 %390
  %393 = vset.pattern.permute.xlu0 4
  %394 = vperm.xlu0 %393, %v82
  %v395 = vpop.permute.xlu0 %394
  %397 = vset.pattern.permute.xlu0 4
  %398 = vperm.xlu0 %397, %v83
  %v399 = vpop.permute.xlu0 %398
  %401 = vset.pattern.permute.xlu0 4
  %402 = vperm.xlu0 %401, %v84
  %v403 = vpop.permute.xlu0 %402
  %405 = vset.pattern.permute.xlu0 4
  %406 = vperm.xlu0 %405, %v85
  %v407 = vpop.permute.xlu0 %406
  %409 = vset.pattern.permute.xlu0 4
  %410 = vperm.xlu0 %409, %v86
  %v411 = vpop.permute.xlu0 %410
  %413 = vset.pattern.permute.xlu0 4
  %414 = vperm.xlu0 %413, %v87
  %v415 = vpop.permute.xlu0 %414
  %417 = vset.pattern.permute.xlu0 4
  %418 = vperm.xlu0 %417, %v88
  %v419 = vpop.permute.xlu0 %418
  %421 = vset.pattern.permute.xlu0 4
  %422 = vperm.xlu0 %421, %v89
  %v423 = vpop.permute.xlu0 %422
  %425 = vset.pattern.permute.xlu0 4
  %426 = vperm.xlu0 %425, %v90
  %v427 = vpop.permute.xlu0 %426
  %429 = vset.pattern.permute.xlu0 4
  %430 = vperm.xlu0 %429, %v91
  %v431 = vpop.permute.xlu0 %430
  %433 = vset.pattern.permute.xlu0 4
  %434 = vperm.xlu0 %433, %v92
  %v435 = vpop.permute.xlu0 %434
  %v438 = vperm.slane %v94, 0
  %v440 = vmul.f32 %v311, %v438
  %v441 = vmul.f32 %v315, %v438
  %v442 = vmul.f32 %v319, %v438
  %v443 = vmul.f32 %v323, %v438
  %v444 = vmul.f32 %v327, %v438
  %v445 = vmul.f32 %v331, %v438
  %v446 = vmul.f32 %v335, %v438
  %v447 = vmul.f32 %v339, %v438
  %v448 = vmul.f32 %v343, %v438
  %v449 = vmul.f32 %v347, %v438
  %v450 = vmul.f32 %v351, %v438
  %v451 = vmul.f32 %v355, %v438
  %v452 = vmul.f32 %v359, %v438
  %v453 = vmul.f32 %v363, %v438
  %v454 = vmul.f32 %v367, %v438
  %v455 = vmul.f32 %v371, %v438
  %v456 = vmul.f32 %v375, %v438
  %v457 = vmul.f32 %v379, %v438
  %v458 = vmul.f32 %v383, %v438
  %v459 = vmul.f32 %v387, %v438
  %v460 = vmul.f32 %v391, %v438
  %v461 = vmul.f32 %v395, %v438
  %v462 = vmul.f32 %v399, %v438
  %v463 = vmul.f32 %v403, %v438
  %v464 = vmul.f32 %v407, %v438
  %v465 = vmul.f32 %v411, %v438
  %v466 = vmul.f32 %v415, %v438
  %v467 = vmul.f32 %v419, %v438
  %v468 = vmul.f32 %v423, %v438
  %v469 = vmul.f32 %v427, %v438
  %v470 = vmul.f32 %v431, %v438
  %v471 = vmul.f32 %v435, %v438
  %v472 = vadd.f32 %v277, %v440
  %v473 = vadd.f32 %v278, %v441
  %v474 = vadd.f32 %v279, %v442
  %v475 = vadd.f32 %v280, %v443
  %v476 = vadd.f32 %v281, %v444
  %v477 = vadd.f32 %v282, %v445
  %v478 = vadd.f32 %v283, %v446
  %v479 = vadd.f32 %v284, %v447
  %v480 = vadd.f32 %v285, %v448
  %v481 = vadd.f32 %v286, %v449
  %v482 = vadd.f32 %v287, %v450
  %v483 = vadd.f32 %v288, %v451
  %v484 = vadd.f32 %v289, %v452
  %v485 = vadd.f32 %v290, %v453
  %v486 = vadd.f32 %v291, %v454
  %v487 = vadd.f32 %v292, %v455
  %v488 = vadd.f32 %v293, %v456
  %v489 = vadd.f32 %v294, %v457
  %v490 = vadd.f32 %v295, %v458
  %v491 = vadd.f32 %v296, %v459
  %v492 = vadd.f32 %v297, %v460
  %v493 = vadd.f32 %v298, %v461
  %v494 = vadd.f32 %v299, %v462
  %v495 = vadd.f32 %v300, %v463
  %v496 = vadd.f32 %v301, %v464
  %v497 = vadd.f32 %v302, %v465
  %v498 = vadd.f32 %v303, %v466
  %v499 = vadd.f32 %v304, %v467
  %v500 = vadd.f32 %v305, %v468
  %v501 = vadd.f32 %v306, %v469
  %v502 = vadd.f32 %v307, %v470
  %v503 = vadd.f32 %v308, %v471
  %v505 = vperm.slane %v95, 0
  %v507 = vadd.f32 %v472, %v505
  %v508 = vadd.f32 %v473, %v505
  %v509 = vadd.f32 %v474, %v505
  %v510 = vadd.f32 %v475, %v505
  %v511 = vadd.f32 %v476, %v505
  %v512 = vadd.f32 %v477, %v505
  %v513 = vadd.f32 %v478, %v505
  %v514 = vadd.f32 %v479, %v505
  %v515 = vadd.f32 %v480, %v505
  %v516 = vadd.f32 %v481, %v505
  %v517 = vadd.f32 %v482, %v505
  %v518 = vadd.f32 %v483, %v505
  %v519 = vadd.f32 %v484, %v505
  %v520 = vadd.f32 %v485, %v505
  %v521 = vadd.f32 %v486, %v505
  %v522 = vadd.f32 %v487, %v505
  %v523 = vadd.f32 %v488, %v505
  %v524 = vadd.f32 %v489, %v505
  %v525 = vadd.f32 %v490, %v505
  %v526 = vadd.f32 %v491, %v505
  %v527 = vadd.f32 %v492, %v505
  %v528 = vadd.f32 %v493, %v505
  %v529 = vadd.f32 %v494, %v505
  %v530 = vadd.f32 %v495, %v505
  %v531 = vadd.f32 %v496, %v505
  %v532 = vadd.f32 %v497, %v505
  %v533 = vadd.f32 %v498, %v505
  %v534 = vadd.f32 %v499, %v505
  %v535 = vadd.f32 %v500, %v505
  %v536 = vadd.f32 %v501, %v505
  %v537 = vadd.f32 %v502, %v505
  %v538 = vadd.f32 %v503, %v505
  %vm539 = vcmp.ge.f32.partialorder %v507, 0.0
  %vm540 = vcmp.ge.f32.partialorder %v508, 0.0
  %vm541 = vcmp.ge.f32.partialorder %v509, 0.0
  %vm542 = vcmp.ge.f32.partialorder %v510, 0.0
  %vm543 = vcmp.ge.f32.partialorder %v511, 0.0
  %vm544 = vcmp.ge.f32.partialorder %v512, 0.0
  %vm545 = vcmp.ge.f32.partialorder %v513, 0.0
  %vm546 = vcmp.ge.f32.partialorder %v514, 0.0
  %vm547 = vcmp.ge.f32.partialorder %v515, 0.0
  %vm548 = vcmp.ge.f32.partialorder %v516, 0.0
  %vm549 = vcmp.ge.f32.partialorder %v517, 0.0
  %vm550 = vcmp.ge.f32.partialorder %v518, 0.0
  %vm551 = vcmp.ge.f32.partialorder %v519, 0.0
  %vm552 = vcmp.ge.f32.partialorder %v520, 0.0
  %vm553 = vcmp.ge.f32.partialorder %v521, 0.0
  %vm554 = vcmp.ge.f32.partialorder %v522, 0.0
  %vm555 = vcmp.ge.f32.partialorder %v523, 0.0
  %vm556 = vcmp.ge.f32.partialorder %v524, 0.0
  %vm557 = vcmp.ge.f32.partialorder %v525, 0.0
  %vm558 = vcmp.ge.f32.partialorder %v526, 0.0
  %vm559 = vcmp.ge.f32.partialorder %v527, 0.0
  %vm560 = vcmp.ge.f32.partialorder %v528, 0.0
  %vm561 = vcmp.ge.f32.partialorder %v529, 0.0
  %vm562 = vcmp.ge.f32.partialorder %v530, 0.0
  %vm563 = vcmp.ge.f32.partialorder %v531, 0.0
  %vm564 = vcmp.ge.f32.partialorder %v532, 0.0
  %vm565 = vcmp.ge.f32.partialorder %v533, 0.0
  %vm566 = vcmp.ge.f32.partialorder %v534, 0.0
  %vm567 = vcmp.ge.f32.partialorder %v535, 0.0
  %vm568 = vcmp.ge.f32.partialorder %v536, 0.0
  %vm569 = vcmp.ge.f32.partialorder %v537, 0.0
  %vm570 = vcmp.ge.f32.partialorder %v538, 0.0
  %v571 = vmul.f32 %v507, 0.01
  %v572 = vmul.f32 %v508, 0.01
  %v573 = vmul.f32 %v509, 0.01
  %v574 = vmul.f32 %v510, 0.01
  %v575 = vmul.f32 %v511, 0.01
  %v576 = vmul.f32 %v512, 0.01
  %v577 = vmul.f32 %v513, 0.01
  %v578 = vmul.f32 %v514, 0.01
  %v579 = vmul.f32 %v515, 0.01
  %v580 = vmul.f32 %v516, 0.01
  %v581 = vmul.f32 %v517, 0.01
  %v582 = vmul.f32 %v518, 0.01
  %v583 = vmul.f32 %v519, 0.01
  %v584 = vmul.f32 %v520, 0.01
  %v585 = vmul.f32 %v521, 0.01
  %v586 = vmul.f32 %v522, 0.01
  %v587 = vmul.f32 %v523, 0.01
  %v588 = vmul.f32 %v524, 0.01
  %v589 = vmul.f32 %v525, 0.01
  %v590 = vmul.f32 %v526, 0.01
  %v591 = vmul.f32 %v527, 0.01
  %v592 = vmul.f32 %v528, 0.01
  %v593 = vmul.f32 %v529, 0.01
  %v594 = vmul.f32 %v530, 0.01
  %v595 = vmul.f32 %v531, 0.01
  %v596 = vmul.f32 %v532, 0.01
  %v597 = vmul.f32 %v533, 0.01
  %v598 = vmul.f32 %v534, 0.01
  %v599 = vmul.f32 %v535, 0.01
  %v600 = vmul.f32 %v536, 0.01
  %v601 = vmul.f32 %v537, 0.01
  %v602 = vmul.f32 %v538, 0.01
  %v603 = vsel %vm539, %v507, %v571
  %v604 = vsel %vm540, %v508, %v572
  %v605 = vsel %vm541, %v509, %v573
  %v606 = vsel %vm542, %v510, %v574
  %v607 = vsel %vm543, %v511, %v575
  %v608 = vsel %vm544, %v512, %v576
  %v609 = vsel %vm545, %v513, %v577
  %v610 = vsel %vm546, %v514, %v578
  %v611 = vsel %vm547, %v515, %v579
  %v612 = vsel %vm548, %v516, %v580
  %v613 = vsel %vm549, %v517, %v581
  %v614 = vsel %vm550, %v518, %v582
  %v615 = vsel %vm551, %v519, %v583
  %v616 = vsel %vm552, %v520, %v584
  %v617 = vsel %vm553, %v521, %v585
  %v618 = vsel %vm554, %v522, %v586
  %v619 = vsel %vm555, %v523, %v587
  %v620 = vsel %vm556, %v524, %v588
  %v621 = vsel %vm557, %v525, %v589
  %v622 = vsel %vm558, %v526, %v590
  %v623 = vsel %vm559, %v527, %v591
  %v624 = vsel %vm560, %v528, %v592
  %v625 = vsel %vm561, %v529, %v593
  %v626 = vsel %vm562, %v530, %v594
  %v627 = vsel %vm563, %v531, %v595
  %v628 = vsel %vm564, %v532, %v596
  %v629 = vsel %vm565, %v533, %v597
  %v630 = vsel %vm566, %v534, %v598
  %v631 = vsel %vm567, %v535, %v599
  %v632 = vsel %vm568, %v536, %v600
  %v633 = vsel %vm569, %v537, %v601
  %v634 = vsel %vm570, %v538, %v602
  %v635 = vpack.c.bf16 %v604, %v603
  %v636 = vpack.c.bf16 %v606, %v605
  %v637 = vpack.c.bf16 %v608, %v607
  %v638 = vpack.c.bf16 %v610, %v609
  %v639 = vpack.c.bf16 %v612, %v611
  %v640 = vpack.c.bf16 %v614, %v613
  %v641 = vpack.c.bf16 %v616, %v615
  %v642 = vpack.c.bf16 %v618, %v617
  %v643 = vpack.c.bf16 %v620, %v619
  %v644 = vpack.c.bf16 %v622, %v621
  %v645 = vpack.c.bf16 %v624, %v623
  %v646 = vpack.c.bf16 %v626, %v625
  %v647 = vpack.c.bf16 %v628, %v627
  %v648 = vpack.c.bf16 %v630, %v629
  %v649 = vpack.c.bf16 %v632, %v631
  %v650 = vpack.c.bf16 %v634, %v633
  %v651 = vld [vmem:[%s4] sm:$0xf]
  %v652 = vld [vmem:[%s4 + $0x4] sm:$0xf]
  %v653 = vld [vmem:[%s4 + $0x8] sm:$0xf]
  %v654 = vld [vmem:[%s4 + $0xc] sm:$0xf]
  %v655 = vld [vmem:[%s4 + $0x10] sm:$0xf]
  %v656 = vld [vmem:[%s4 + $0x14] sm:$0xf]
  %v657 = vld [vmem:[%s4 + $0x18] sm:$0xf]
  %v658 = vld [vmem:[%s4 + $0x1c] sm:$0xf]
  %v659 = vld [vmem:[%s4 + $0x20] sm:$0xf]
  %v660 = vld [vmem:[%s4 + $0x24] sm:$0xf]
  %v661 = vld [vmem:[%s4 + $0x28] sm:$0xf]
  %v662 = vld [vmem:[%s4 + $0x2c] sm:$0xf]
  %v663 = vld [vmem:[%s4 + $0x30] sm:$0xf]
  %v664 = vld [vmem:[%s4 + $0x34] sm:$0xf]
  %v665 = vld [vmem:[%s4 + $0x38] sm:$0xf]
  %v666 = vld [vmem:[%s4 + $0x3c] sm:$0xf]
  %667 = vset.pattern.permute.xlu0 1
  %668 = vperm.xlu0 %667, %v61
  %v669 = vpop.permute.xlu0 %668
  %671 = vset.pattern.permute.xlu0 1
  %672 = vperm.xlu0 %671, %v62
  %v673 = vpop.permute.xlu0 %672
  %675 = vset.pattern.permute.xlu0 1
  %676 = vperm.xlu0 %675, %v63
  %v677 = vpop.permute.xlu0 %676
  %679 = vset.pattern.permute.xlu0 1
  %680 = vperm.xlu0 %679, %v64
  %v681 = vpop.permute.xlu0 %680
  %683 = vset.pattern.permute.xlu0 1
  %684 = vperm.xlu0 %683, %v65
  %v685 = vpop.permute.xlu0 %684
  %687 = vset.pattern.permute.xlu0 1
  %688 = vperm.xlu0 %687, %v66
  %v689 = vpop.permute.xlu0 %688
  %691 = vset.pattern.permute.xlu0 1
  %692 = vperm.xlu0 %691, %v67
  %v693 = vpop.permute.xlu0 %692
  %695 = vset.pattern.permute.xlu0 1
  %696 = vperm.xlu0 %695, %v68
  %v697 = vpop.permute.xlu0 %696
  %699 = vset.pattern.permute.xlu0 1
  %700 = vperm.xlu0 %699, %v69
  %v701 = vpop.permute.xlu0 %700
  %703 = vset.pattern.permute.xlu0 1
  %704 = vperm.xlu0 %703, %v70
  %v705 = vpop.permute.xlu0 %704
  %707 = vset.pattern.permute.xlu0 1
  %708 = vperm.xlu0 %707, %v71
  %v709 = vpop.permute.xlu0 %708
  %711 = vset.pattern.permute.xlu0 1
  %712 = vperm.xlu0 %711, %v72
  %v713 = vpop.permute.xlu0 %712
  %715 = vset.pattern.permute.xlu0 1
  %716 = vperm.xlu0 %715, %v73
  %v717 = vpop.permute.xlu0 %716
  %719 = vset.pattern.permute.xlu0 1
  %720 = vperm.xlu0 %719, %v74
  %v721 = vpop.permute.xlu0 %720
  %723 = vset.pattern.permute.xlu0 1
  %724 = vperm.xlu0 %723, %v75
  %v725 = vpop.permute.xlu0 %724
  %727 = vset.pattern.permute.xlu0 1
  %728 = vperm.xlu0 %727, %v76
  %v729 = vpop.permute.xlu0 %728
  %731 = vset.pattern.permute.xlu0 1
  %732 = vperm.xlu0 %731, %v77
  %v733 = vpop.permute.xlu0 %732
  %735 = vset.pattern.permute.xlu0 1
  %736 = vperm.xlu0 %735, %v78
  %v737 = vpop.permute.xlu0 %736
  %739 = vset.pattern.permute.xlu0 1
  %740 = vperm.xlu0 %739, %v79
  %v741 = vpop.permute.xlu0 %740
  %743 = vset.pattern.permute.xlu0 1
  %744 = vperm.xlu0 %743, %v80
  %v745 = vpop.permute.xlu0 %744
  %747 = vset.pattern.permute.xlu0 1
  %748 = vperm.xlu0 %747, %v81
  %v749 = vpop.permute.xlu0 %748
  %751 = vset.pattern.permute.xlu0 1
  %752 = vperm.xlu0 %751, %v82
  %v753 = vpop.permute.xlu0 %752
  %755 = vset.pattern.permute.xlu0 1
  %756 = vperm.xlu0 %755, %v83
  %v757 = vpop.permute.xlu0 %756
  %759 = vset.pattern.permute.xlu0 1
  %760 = vperm.xlu0 %759, %v84
  %v761 = vpop.permute.xlu0 %760
  %763 = vset.pattern.permute.xlu0 1
  %764 = vperm.xlu0 %763, %v85
  %v765 = vpop.permute.xlu0 %764
  %767 = vset.pattern.permute.xlu0 1
  %768 = vperm.xlu0 %767, %v86
  %v769 = vpop.permute.xlu0 %768
  %771 = vset.pattern.permute.xlu0 1
  %772 = vperm.xlu0 %771, %v87
  %v773 = vpop.permute.xlu0 %772
  %775 = vset.pattern.permute.xlu0 1
  %776 = vperm.xlu0 %775, %v88
  %v777 = vpop.permute.xlu0 %776
  %779 = vset.pattern.permute.xlu0 1
  %780 = vperm.xlu0 %779, %v89
  %v781 = vpop.permute.xlu0 %780
  %783 = vset.pattern.permute.xlu0 1
  %784 = vperm.xlu0 %783, %v90
  %v785 = vpop.permute.xlu0 %784
  %787 = vset.pattern.permute.xlu0 1
  %788 = vperm.xlu0 %787, %v91
  %v789 = vpop.permute.xlu0 %788
  %791 = vset.pattern.permute.xlu0 1
  %792 = vperm.xlu0 %791, %v92
  %v793 = vpop.permute.xlu0 %792
  %v795 = vmul.f32 %v669, %v275
  %v796 = vmul.f32 %v673, %v275
  %v797 = vmul.f32 %v677, %v275
  %v798 = vmul.f32 %v681, %v275
  %v799 = vmul.f32 %v685, %v275
  %v800 = vmul.f32 %v689, %v275
  %v801 = vmul.f32 %v693, %v275
  %v802 = vmul.f32 %v697, %v275
  %v803 = vmul.f32 %v701, %v275
  %v804 = vmul.f32 %v705, %v275
  %v805 = vmul.f32 %v709, %v275
  %v806 = vmul.f32 %v713, %v275
  %v807 = vmul.f32 %v717, %v275
  %v808 = vmul.f32 %v721, %v275
  %v809 = vmul.f32 %v725, %v275
  %v810 = vmul.f32 %v729, %v275
  %v811 = vmul.f32 %v733, %v275
  %v812 = vmul.f32 %v737, %v275
  %v813 = vmul.f32 %v741, %v275
  %v814 = vmul.f32 %v745, %v275
  %v815 = vmul.f32 %v749, %v275
  %v816 = vmul.f32 %v753, %v275
  %v817 = vmul.f32 %v757, %v275
  %v818 = vmul.f32 %v761, %v275
  %v819 = vmul.f32 %v765, %v275
  %v820 = vmul.f32 %v769, %v275
  %v821 = vmul.f32 %v773, %v275
  %v822 = vmul.f32 %v777, %v275
  %v823 = vmul.f32 %v781, %v275
  %v824 = vmul.f32 %v785, %v275
  %v825 = vmul.f32 %v789, %v275
  %v826 = vmul.f32 %v793, %v275
  %827 = vset.pattern.permute.xlu0 5
  %828 = vperm.xlu0 %827, %v61
  %v829 = vpop.permute.xlu0 %828
  %831 = vset.pattern.permute.xlu0 5
  %832 = vperm.xlu0 %831, %v62
  %v833 = vpop.permute.xlu0 %832
  %835 = vset.pattern.permute.xlu0 5
  %836 = vperm.xlu0 %835, %v63
  %v837 = vpop.permute.xlu0 %836
  %839 = vset.pattern.permute.xlu0 5
  %840 = vperm.xlu0 %839, %v64
  %v841 = vpop.permute.xlu0 %840
  %843 = vset.pattern.permute.xlu0 5
  %844 = vperm.xlu0 %843, %v65
  %v845 = vpop.permute.xlu0 %844
  %847 = vset.pattern.permute.xlu0 5
  %848 = vperm.xlu0 %847, %v66
  %v849 = vpop.permute.xlu0 %848
  %851 = vset.pattern.permute.xlu0 5
  %852 = vperm.xlu0 %851, %v67
  %v853 = vpop.permute.xlu0 %852
  %855 = vset.pattern.permute.xlu0 5
  %856 = vperm.xlu0 %855, %v68
  %v857 = vpop.permute.xlu0 %856
  %859 = vset.pattern.permute.xlu0 5
  %860 = vperm.xlu0 %859, %v69
  %v861 = vpop.permute.xlu0 %860
  %863 = vset.pattern.permute.xlu0 5
  %864 = vperm.xlu0 %863, %v70
  %v865 = vpop.permute.xlu0 %864
  %867 = vset.pattern.permute.xlu0 5
  %868 = vperm.xlu0 %867, %v71
  %v869 = vpop.permute.xlu0 %868
  %871 = vset.pattern.permute.xlu0 5
  %872 = vperm.xlu0 %871, %v72
  %v873 = vpop.permute.xlu0 %872
  %875 = vset.pattern.permute.xlu0 5
  %876 = vperm.xlu0 %875, %v73
  %v877 = vpop.permute.xlu0 %876
  %879 = vset.pattern.permute.xlu0 5
  %880 = vperm.xlu0 %879, %v74
  %v881 = vpop.permute.xlu0 %880
  %883 = vset.pattern.permute.xlu0 5
  %884 = vperm.xlu0 %883, %v75
  %v885 = vpop.permute.xlu0 %884
  %887 = vset.pattern.permute.xlu0 5
  %888 = vperm.xlu0 %887, %v76
  %v889 = vpop.permute.xlu0 %888
  %891 = vset.pattern.permute.xlu0 5
  %892 = vperm.xlu0 %891, %v77
  %v893 = vpop.permute.xlu0 %892
  %895 = vset.pattern.permute.xlu0 5
  %896 = vperm.xlu0 %895, %v78
  %v897 = vpop.permute.xlu0 %896
  %899 = vset.pattern.permute.xlu0 5
  %900 = vperm.xlu0 %899, %v79
  %v901 = vpop.permute.xlu0 %900
  %903 = vset.pattern.permute.xlu0 5
  %904 = vperm.xlu0 %903, %v80
  %v905 = vpop.permute.xlu0 %904
  %907 = vset.pattern.permute.xlu0 5
  %908 = vperm.xlu0 %907, %v81
  %v909 = vpop.permute.xlu0 %908
  %911 = vset.pattern.permute.xlu0 5
  %912 = vperm.xlu0 %911, %v82
  %v913 = vpop.permute.xlu0 %912
  %915 = vset.pattern.permute.xlu0 5
  %916 = vperm.xlu0 %915, %v83
  %v917 = vpop.permute.xlu0 %916
  %919 = vset.pattern.permute.xlu0 5
  %920 = vperm.xlu0 %919, %v84
  %v921 = vpop.permute.xlu0 %920
  %923 = vset.pattern.permute.xlu0 5
  %924 = vperm.xlu0 %923, %v85
  %v925 = vpop.permute.xlu0 %924
  %927 = vset.pattern.permute.xlu0 5
  %928 = vperm.xlu0 %927, %v86
  %v929 = vpop.permute.xlu0 %928
  %931 = vset.pattern.permute.xlu0 5
  %932 = vperm.xlu0 %931, %v87
  %v933 = vpop.permute.xlu0 %932
  %935 = vset.pattern.permute.xlu0 5
  %936 = vperm.xlu0 %935, %v88
  %v937 = vpop.permute.xlu0 %936
  %939 = vset.pattern.permute.xlu0 5
  %940 = vperm.xlu0 %939, %v89
  %v941 = vpop.permute.xlu0 %940
  %943 = vset.pattern.permute.xlu0 5
  %944 = vperm.xlu0 %943, %v90
  %v945 = vpop.permute.xlu0 %944
  %947 = vset.pattern.permute.xlu0 5
  %948 = vperm.xlu0 %947, %v91
  %v949 = vpop.permute.xlu0 %948
  %951 = vset.pattern.permute.xlu0 5
  %952 = vperm.xlu0 %951, %v92
  %v953 = vpop.permute.xlu0 %952
  %v955 = vmul.f32 %v829, %v438
  %v956 = vmul.f32 %v833, %v438
  %v957 = vmul.f32 %v837, %v438
  %v958 = vmul.f32 %v841, %v438
  %v959 = vmul.f32 %v845, %v438
  %v960 = vmul.f32 %v849, %v438
  %v961 = vmul.f32 %v853, %v438
  %v962 = vmul.f32 %v857, %v438
  %v963 = vmul.f32 %v861, %v438
  %v964 = vmul.f32 %v865, %v438
  %v965 = vmul.f32 %v869, %v438
  %v966 = vmul.f32 %v873, %v438
  %v967 = vmul.f32 %v877, %v438
  %v968 = vmul.f32 %v881, %v438
  %v969 = vmul.f32 %v885, %v438
  %v970 = vmul.f32 %v889, %v438
  %v971 = vmul.f32 %v893, %v438
  %v972 = vmul.f32 %v897, %v438
  %v973 = vmul.f32 %v901, %v438
  %v974 = vmul.f32 %v905, %v438
  %v975 = vmul.f32 %v909, %v438
  %v976 = vmul.f32 %v913, %v438
  %v977 = vmul.f32 %v917, %v438
  %v978 = vmul.f32 %v921, %v438
  %v979 = vmul.f32 %v925, %v438
  %v980 = vmul.f32 %v929, %v438
  %v981 = vmul.f32 %v933, %v438
  %v982 = vmul.f32 %v937, %v438
  %v983 = vmul.f32 %v941, %v438
  %v984 = vmul.f32 %v945, %v438
  %v985 = vmul.f32 %v949, %v438
  %v986 = vmul.f32 %v953, %v438
  %v987 = vadd.f32 %v795, %v955
  %v988 = vadd.f32 %v796, %v956
  %v989 = vadd.f32 %v797, %v957
  %v990 = vadd.f32 %v798, %v958
  %v991 = vadd.f32 %v799, %v959
  %v992 = vadd.f32 %v800, %v960
  %v993 = vadd.f32 %v801, %v961
  %v994 = vadd.f32 %v802, %v962
  %v995 = vadd.f32 %v803, %v963
  %v996 = vadd.f32 %v804, %v964
  %v997 = vadd.f32 %v805, %v965
  %v998 = vadd.f32 %v806, %v966
  %v999 = vadd.f32 %v807, %v967
  %v1000 = vadd.f32 %v808, %v968
  %v1001 = vadd.f32 %v809, %v969
  %v1002 = vadd.f32 %v810, %v970
  %v1003 = vadd.f32 %v811, %v971
  %v1004 = vadd.f32 %v812, %v972
  %v1005 = vadd.f32 %v813, %v973
  %v1006 = vadd.f32 %v814, %v974
  %v1007 = vadd.f32 %v815, %v975
  %v1008 = vadd.f32 %v816, %v976
  %v1009 = vadd.f32 %v817, %v977
  %v1010 = vadd.f32 %v818, %v978
  %v1011 = vadd.f32 %v819, %v979
  %v1012 = vadd.f32 %v820, %v980
  %v1013 = vadd.f32 %v821, %v981
  %v1014 = vadd.f32 %v822, %v982
  %v1015 = vadd.f32 %v823, %v983
  %v1016 = vadd.f32 %v824, %v984
  %v1017 = vadd.f32 %v825, %v985
  %v1018 = vadd.f32 %v826, %v986
  %v1019 = vadd.f32 %v987, %v505
  %v1020 = vadd.f32 %v988, %v505
  %v1021 = vadd.f32 %v989, %v505
  %v1022 = vadd.f32 %v990, %v505
  %v1023 = vadd.f32 %v991, %v505
  %v1024 = vadd.f32 %v992, %v505
  %v1025 = vadd.f32 %v993, %v505
  %v1026 = vadd.f32 %v994, %v505
  %v1027 = vadd.f32 %v995, %v505
  %v1028 = vadd.f32 %v996, %v505
  %v1029 = vadd.f32 %v997, %v505
  %v1030 = vadd.f32 %v998, %v505
  %v1031 = vadd.f32 %v999, %v505
  %v1032 = vadd.f32 %v1000, %v505
  %v1033 = vadd.f32 %v1001, %v505
  %v1034 = vadd.f32 %v1002, %v505
  %v1035 = vadd.f32 %v1003, %v505
  %v1036 = vadd.f32 %v1004, %v505
  %v1037 = vadd.f32 %v1005, %v505
  %v1038 = vadd.f32 %v1006, %v505
  %v1039 = vadd.f32 %v1007, %v505
  %v1040 = vadd.f32 %v1008, %v505
  %v1041 = vadd.f32 %v1009, %v505
  %v1042 = vadd.f32 %v1010, %v505
  %v1043 = vadd.f32 %v1011, %v505
  %v1044 = vadd.f32 %v1012, %v505
  %v1045 = vadd.f32 %v1013, %v505
  %v1046 = vadd.f32 %v1014, %v505
  %v1047 = vadd.f32 %v1015, %v505
  %v1048 = vadd.f32 %v1016, %v505
  %v1049 = vadd.f32 %v1017, %v505
  %v1050 = vadd.f32 %v1018, %v505
  %vm1051 = vcmp.ge.f32.partialorder %v1019, 0.0
  %vm1052 = vcmp.ge.f32.partialorder %v1020, 0.0
  %vm1053 = vcmp.ge.f32.partialorder %v1021, 0.0
  %vm1054 = vcmp.ge.f32.partialorder %v1022, 0.0
  %vm1055 = vcmp.ge.f32.partialorder %v1023, 0.0
  %vm1056 = vcmp.ge.f32.partialorder %v1024, 0.0
  %vm1057 = vcmp.ge.f32.partialorder %v1025, 0.0
  %vm1058 = vcmp.ge.f32.partialorder %v1026, 0.0
  %vm1059 = vcmp.ge.f32.partialorder %v1027, 0.0
  %vm1060 = vcmp.ge.f32.partialorder %v1028, 0.0
  %vm1061 = vcmp.ge.f32.partialorder %v1029, 0.0
  %vm1062 = vcmp.ge.f32.partialorder %v1030, 0.0
  %vm1063 = vcmp.ge.f32.partialorder %v1031, 0.0
  %vm1064 = vcmp.ge.f32.partialorder %v1032, 0.0
  %vm1065 = vcmp.ge.f32.partialorder %v1033, 0.0
  %vm1066 = vcmp.ge.f32.partialorder %v1034, 0.0
  %vm1067 = vcmp.ge.f32.partialorder %v1035, 0.0
  %vm1068 = vcmp.ge.f32.partialorder %v1036, 0.0
  %vm1069 = vcmp.ge.f32.partialorder %v1037, 0.0
  %vm1070 = vcmp.ge.f32.partialorder %v1038, 0.0
  %vm1071 = vcmp.ge.f32.partialorder %v1039, 0.0
  %vm1072 = vcmp.ge.f32.partialorder %v1040, 0.0
  %vm1073 = vcmp.ge.f32.partialorder %v1041, 0.0
  %vm1074 = vcmp.ge.f32.partialorder %v1042, 0.0
  %vm1075 = vcmp.ge.f32.partialorder %v1043, 0.0
  %vm1076 = vcmp.ge.f32.partialorder %v1044, 0.0
  %vm1077 = vcmp.ge.f32.partialorder %v1045, 0.0
  %vm1078 = vcmp.ge.f32.partialorder %v1046, 0.0
  %vm1079 = vcmp.ge.f32.partialorder %v1047, 0.0
  %vm1080 = vcmp.ge.f32.partialorder %v1048, 0.0
  %vm1081 = vcmp.ge.f32.partialorder %v1049, 0.0
  %vm1082 = vcmp.ge.f32.partialorder %v1050, 0.0
  %v1083 = vmul.f32 %v1019, 0.01
  %v1084 = vmul.f32 %v1020, 0.01
  %v1085 = vmul.f32 %v1021, 0.01
  %v1086 = vmul.f32 %v1022, 0.01
  %v1087 = vmul.f32 %v1023, 0.01
  %v1088 = vmul.f32 %v1024, 0.01
  %v1089 = vmul.f32 %v1025, 0.01
  %v1090 = vmul.f32 %v1026, 0.01
  %v1091 = vmul.f32 %v1027, 0.01
  %v1092 = vmul.f32 %v1028, 0.01
  %v1093 = vmul.f32 %v1029, 0.01
  %v1094 = vmul.f32 %v1030, 0.01
  %v1095 = vmul.f32 %v1031, 0.01
  %v1096 = vmul.f32 %v1032, 0.01
  %v1097 = vmul.f32 %v1033, 0.01
  %v1098 = vmul.f32 %v1034, 0.01
  %v1099 = vmul.f32 %v1035, 0.01
  %v1100 = vmul.f32 %v1036, 0.01
  %v1101 = vmul.f32 %v1037, 0.01
  %v1102 = vmul.f32 %v1038, 0.01
  %v1103 = vmul.f32 %v1039, 0.01
  %v1104 = vmul.f32 %v1040, 0.01
  %v1105 = vmul.f32 %v1041, 0.01
  %v1106 = vmul.f32 %v1042, 0.01
  %v1107 = vmul.f32 %v1043, 0.01
  %v1108 = vmul.f32 %v1044, 0.01
  %v1109 = vmul.f32 %v1045, 0.01
  %v1110 = vmul.f32 %v1046, 0.01
  %v1111 = vmul.f32 %v1047, 0.01
  %v1112 = vmul.f32 %v1048, 0.01
  %v1113 = vmul.f32 %v1049, 0.01
  %v1114 = vmul.f32 %v1050, 0.01
  %v1115 = vsel %vm1051, %v1019, %v1083
  %v1116 = vsel %vm1052, %v1020, %v1084
  %v1117 = vsel %vm1053, %v1021, %v1085
  %v1118 = vsel %vm1054, %v1022, %v1086
  %v1119 = vsel %vm1055, %v1023, %v1087
  %v1120 = vsel %vm1056, %v1024, %v1088
  %v1121 = vsel %vm1057, %v1025, %v1089
  %v1122 = vsel %vm1058, %v1026, %v1090
  %v1123 = vsel %vm1059, %v1027, %v1091
  %v1124 = vsel %vm1060, %v1028, %v1092
  %v1125 = vsel %vm1061, %v1029, %v1093
  %v1126 = vsel %vm1062, %v1030, %v1094
  %v1127 = vsel %vm1063, %v1031, %v1095
  %v1128 = vsel %vm1064, %v1032, %v1096
  %v1129 = vsel %vm1065, %v1033, %v1097
  %v1130 = vsel %vm1066, %v1034, %v1098
  %v1131 = vsel %vm1067, %v1035, %v1099
  %v1132 = vsel %vm1068, %v1036, %v1100
  %v1133 = vsel %vm1069, %v1037, %v1101
  %v1134 = vsel %vm1070, %v1038, %v1102
  %v1135 = vsel %vm1071, %v1039, %v1103
  %v1136 = vsel %vm1072, %v1040, %v1104
  %v1137 = vsel %vm1073, %v1041, %v1105
  %v1138 = vsel %vm1074, %v1042, %v1106
  %v1139 = vsel %vm1075, %v1043, %v1107
  %v1140 = vsel %vm1076, %v1044, %v1108
  %v1141 = vsel %vm1077, %v1045, %v1109
  %v1142 = vsel %vm1078, %v1046, %v1110
  %v1143 = vsel %vm1079, %v1047, %v1111
  %v1144 = vsel %vm1080, %v1048, %v1112
  %v1145 = vsel %vm1081, %v1049, %v1113
  %v1146 = vsel %vm1082, %v1050, %v1114
  %v1147 = vpack.c.bf16 %v1116, %v1115
  %v1148 = vpack.c.bf16 %v1118, %v1117
  %v1149 = vpack.c.bf16 %v1120, %v1119
  %v1150 = vpack.c.bf16 %v1122, %v1121
  %v1151 = vpack.c.bf16 %v1124, %v1123
  %v1152 = vpack.c.bf16 %v1126, %v1125
  %v1153 = vpack.c.bf16 %v1128, %v1127
  %v1154 = vpack.c.bf16 %v1130, %v1129
  %v1155 = vpack.c.bf16 %v1132, %v1131
  %v1156 = vpack.c.bf16 %v1134, %v1133
  %v1157 = vpack.c.bf16 %v1136, %v1135
  %v1158 = vpack.c.bf16 %v1138, %v1137
  %v1159 = vpack.c.bf16 %v1140, %v1139
  %v1160 = vpack.c.bf16 %v1142, %v1141
  %v1161 = vpack.c.bf16 %v1144, %v1143
  %v1162 = vpack.c.bf16 %v1146, %v1145
  %s1163 = scalar_lea.vmem %s4, 64
  %v1164 = vld [vmem:[%s1163] sm:$0xf]
  %v1165 = vld [vmem:[%s1163 + $0x4] sm:$0xf]
  %v1166 = vld [vmem:[%s1163 + $0x8] sm:$0xf]
  %v1167 = vld [vmem:[%s1163 + $0xc] sm:$0xf]
  %v1168 = vld [vmem:[%s1163 + $0x10] sm:$0xf]
  %v1169 = vld [vmem:[%s1163 + $0x14] sm:$0xf]
  %v1170 = vld [vmem:[%s1163 + $0x18] sm:$0xf]
  %v1171 = vld [vmem:[%s1163 + $0x1c] sm:$0xf]
  %v1172 = vld [vmem:[%s1163 + $0x20] sm:$0xf]
  %v1173 = vld [vmem:[%s1163 + $0x24] sm:$0xf]
  %v1174 = vld [vmem:[%s1163 + $0x28] sm:$0xf]
  %v1175 = vld [vmem:[%s1163 + $0x2c] sm:$0xf]
  %v1176 = vld [vmem:[%s1163 + $0x30] sm:$0xf]
  %v1177 = vld [vmem:[%s1163 + $0x34] sm:$0xf]
  %v1178 = vld [vmem:[%s1163 + $0x38] sm:$0xf]
  %v1179 = vld [vmem:[%s1163 + $0x3c] sm:$0xf]
  %v1196 = vunpack.c.l.b16 %v1164
  %v1197 = vunpack.c.l.b16 %v1165
  %v1198 = vunpack.c.l.b16 %v1166
  %v1199 = vunpack.c.l.b16 %v1167
  %v1200 = vunpack.c.l.b16 %v1168
  %v1201 = vunpack.c.l.b16 %v1169
  %v1202 = vunpack.c.l.b16 %v1170
  %v1203 = vunpack.c.l.b16 %v1171
  %v1204 = vunpack.c.l.b16 %v1172
  %v1205 = vunpack.c.l.b16 %v1173
  %v1206 = vunpack.c.l.b16 %v1174
  %v1207 = vunpack.c.l.b16 %v1175
  %v1208 = vunpack.c.l.b16 %v1176
  %v1209 = vunpack.c.l.b16 %v1177
  %v1210 = vunpack.c.l.b16 %v1178
  %v1211 = vunpack.c.l.b16 %v1179
  %v1212 = vpack.c.b16 %v1197, %v1196
  %v1213 = vpack.c.b16 %v1199, %v1198
  %v1214 = vpack.c.b16 %v1201, %v1200
  %v1215 = vpack.c.b16 %v1203, %v1202
  %v1216 = vpack.c.b16 %v1205, %v1204
  %v1217 = vpack.c.b16 %v1207, %v1206
  %v1218 = vpack.c.b16 %v1209, %v1208
  %v1219 = vpack.c.b16 %v1211, %v1210
  %1228 = vmatpush.bf16.msra.mxu0 %v1219
  %1229 = vmatpush.bf16.msra.mxu0 %v1218
  %1230 = vmatpush.bf16.msra.mxu0 %v1217
  %1231 = vmatpush.bf16.msra.mxu0 %v1216
  %1232 = vmatpush.bf16.msra.mxu0 %v1215
  %1233 = vmatpush.bf16.msra.mxu0 %v1214
  %1234 = vmatpush.bf16.msra.mxu0 %v1213
  %1235 = vmatpush.bf16.msra.mxu0 %v1212
  %1236 = vmatmul.bf16.gmra.mxu0 %v1147
  %v1237 = vpop.f32.mrf.mxu0
  %v1238 = vadd.f32 0.0, %v1237
  %v1239 = vpop.f32.mrf.mxu0
  %v1240 = vadd.f32 0.0, %v1239
  %1241 = vmatmul.bf16.gmra.mxu0 %v1148
  %v1242 = vpop.f32.mrf.mxu0
  %v1243 = vadd.f32 0.0, %v1242
  %v1244 = vpop.f32.mrf.mxu0
  %v1245 = vadd.f32 0.0, %v1244
  %1246 = vmatmul.bf16.gmra.mxu0 %v1149
  %v1247 = vpop.f32.mrf.mxu0
  %v1248 = vadd.f32 0.0, %v1247
  %v1249 = vpop.f32.mrf.mxu0
  %v1250 = vadd.f32 0.0, %v1249
  %1251 = vmatmul.bf16.gmra.mxu0 %v1150
  %v1252 = vpop.f32.mrf.mxu0
  %v1253 = vadd.f32 0.0, %v1252
  %v1254 = vpop.f32.mrf.mxu0
  %v1255 = vadd.f32 0.0, %v1254
  %1256 = vmatmul.bf16.gmra.mxu0 %v1151
  %v1257 = vpop.f32.mrf.mxu0
  %v1258 = vadd.f32 0.0, %v1257
  %v1259 = vpop.f32.mrf.mxu0
  %v1260 = vadd.f32 0.0, %v1259
  %1261 = vmatmul.bf16.gmra.mxu0 %v1152
  %v1262 = vpop.f32.mrf.mxu0
  %v1263 = vadd.f32 0.0, %v1262
  %v1264 = vpop.f32.mrf.mxu0
  %v1265 = vadd.f32 0.0, %v1264
  %1266 = vmatmul.bf16.gmra.mxu0 %v1153
  %v1267 = vpop.f32.mrf.mxu0
  %v1268 = vadd.f32 0.0, %v1267
  %v1269 = vpop.f32.mrf.mxu0
  %v1270 = vadd.f32 0.0, %v1269
  %1271 = vmatmul.bf16.gmra.mxu0 %v1154
  %v1272 = vpop.f32.mrf.mxu0
  %v1273 = vadd.f32 0.0, %v1272
  %v1274 = vpop.f32.mrf.mxu0
  %v1275 = vadd.f32 0.0, %v1274
  %1276 = vmatmul.bf16.gmra.mxu0 %v1155
  %v1277 = vpop.f32.mrf.mxu0
  %v1278 = vadd.f32 0.0, %v1277
  %v1279 = vpop.f32.mrf.mxu0
  %v1280 = vadd.f32 0.0, %v1279
  %1281 = vmatmul.bf16.gmra.mxu0 %v1156
  %v1282 = vpop.f32.mrf.mxu0
  %v1283 = vadd.f32 0.0, %v1282
  %v1284 = vpop.f32.mrf.mxu0
  %v1285 = vadd.f32 0.0, %v1284
  %1286 = vmatmul.bf16.gmra.mxu0 %v1157
  %v1287 = vpop.f32.mrf.mxu0
  %v1288 = vadd.f32 0.0, %v1287
  %v1289 = vpop.f32.mrf.mxu0
  %v1290 = vadd.f32 0.0, %v1289
  %1291 = vmatmul.bf16.gmra.mxu0 %v1158
  %v1292 = vpop.f32.mrf.mxu0
  %v1293 = vadd.f32 0.0, %v1292
  %v1294 = vpop.f32.mrf.mxu0
  %v1295 = vadd.f32 0.0, %v1294
  %1296 = vmatmul.bf16.gmra.mxu0 %v1159
  %v1297 = vpop.f32.mrf.mxu0
  %v1298 = vadd.f32 0.0, %v1297
  %v1299 = vpop.f32.mrf.mxu0
  %v1300 = vadd.f32 0.0, %v1299
  %1301 = vmatmul.bf16.gmra.mxu0 %v1160
  %v1302 = vpop.f32.mrf.mxu0
  %v1303 = vadd.f32 0.0, %v1302
  %v1304 = vpop.f32.mrf.mxu0
  %v1305 = vadd.f32 0.0, %v1304
  %1306 = vmatmul.bf16.gmra.mxu0 %v1161
  %v1307 = vpop.f32.mrf.mxu0
  %v1308 = vadd.f32 0.0, %v1307
  %v1309 = vpop.f32.mrf.mxu0
  %v1310 = vadd.f32 0.0, %v1309
  %1311 = vmatmul.bf16.gmra.mxu0 %v1162
  %v1312 = vpop.f32.mrf.mxu0
  %v1313 = vadd.f32 0.0, %v1312
  %v1314 = vpop.f32.mrf.mxu0
  %v1315 = vadd.f32 0.0, %v1314
  %1316 = vdwg.mxu0
  %v1333 = vunpack.c.l.b16 %v651
  %v1334 = vunpack.c.l.b16 %v652
  %v1335 = vunpack.c.l.b16 %v653
  %v1336 = vunpack.c.l.b16 %v654
  %v1337 = vunpack.c.l.b16 %v655
  %v1338 = vunpack.c.l.b16 %v656
  %v1339 = vunpack.c.l.b16 %v657
  %v1340 = vunpack.c.l.b16 %v658
  %v1341 = vunpack.c.l.b16 %v659
  %v1342 = vunpack.c.l.b16 %v660
  %v1343 = vunpack.c.l.b16 %v661
  %v1344 = vunpack.c.l.b16 %v662
  %v1345 = vunpack.c.l.b16 %v663
  %v1346 = vunpack.c.l.b16 %v664
  %v1347 = vunpack.c.l.b16 %v665
  %v1348 = vunpack.c.l.b16 %v666
  %v1349 = vpack.c.b16 %v1334, %v1333
  %v1350 = vpack.c.b16 %v1336, %v1335
  %v1351 = vpack.c.b16 %v1338, %v1337
  %v1352 = vpack.c.b16 %v1340, %v1339
  %v1353 = vpack.c.b16 %v1342, %v1341
  %v1354 = vpack.c.b16 %v1344, %v1343
  %v1355 = vpack.c.b16 %v1346, %v1345
  %v1356 = vpack.c.b16 %v1348, %v1347
  %1365 = vmatpush.bf16.msra.mxu0 %v1356
  %1366 = vmatpush.bf16.msra.mxu0 %v1355
  %1367 = vmatpush.bf16.msra.mxu0 %v1354
  %1368 = vmatpush.bf16.msra.mxu0 %v1353
  %1369 = vmatpush.bf16.msra.mxu0 %v1352
  %1370 = vmatpush.bf16.msra.mxu0 %v1351
  %1371 = vmatpush.bf16.msra.mxu0 %v1350
  %1372 = vmatpush.bf16.msra.mxu0 %v1349
  %1373 = vmatmul.bf16.gmra.mxu0 %v635
  %v1374 = vpop.f32.mrf.mxu0
  %v1375 = vadd.f32 %v1238, %v1374
  %v1376 = vpop.f32.mrf.mxu0
  %v1377 = vadd.f32 %v1240, %v1376
  %1378 = vmatmul.bf16.gmra.mxu0 %v636
  %v1379 = vpop.f32.mrf.mxu0
  %v1380 = vadd.f32 %v1243, %v1379
  %v1381 = vpop.f32.mrf.mxu0
  %v1382 = vadd.f32 %v1245, %v1381
  %1383 = vmatmul.bf16.gmra.mxu0 %v637
  %v1384 = vpop.f32.mrf.mxu0
  %v1385 = vadd.f32 %v1248, %v1384
  %v1386 = vpop.f32.mrf.mxu0
  %v1387 = vadd.f32 %v1250, %v1386
  %1388 = vmatmul.bf16.gmra.mxu0 %v638
  %v1389 = vpop.f32.mrf.mxu0
  %v1390 = vadd.f32 %v1253, %v1389
  %v1391 = vpop.f32.mrf.mxu0
  %v1392 = vadd.f32 %v1255, %v1391
  %1393 = vmatmul.bf16.gmra.mxu0 %v639
  %v1394 = vpop.f32.mrf.mxu0
  %v1395 = vadd.f32 %v1258, %v1394
  %v1396 = vpop.f32.mrf.mxu0
  %v1397 = vadd.f32 %v1260, %v1396
  %1398 = vmatmul.bf16.gmra.mxu0 %v640
  %v1399 = vpop.f32.mrf.mxu0
  %v1400 = vadd.f32 %v1263, %v1399
  %v1401 = vpop.f32.mrf.mxu0
  %v1402 = vadd.f32 %v1265, %v1401
  %1403 = vmatmul.bf16.gmra.mxu0 %v641
  %v1404 = vpop.f32.mrf.mxu0
  %v1405 = vadd.f32 %v1268, %v1404
  %v1406 = vpop.f32.mrf.mxu0
  %v1407 = vadd.f32 %v1270, %v1406
  %1408 = vmatmul.bf16.gmra.mxu0 %v642
  %v1409 = vpop.f32.mrf.mxu0
  %v1410 = vadd.f32 %v1273, %v1409
  %v1411 = vpop.f32.mrf.mxu0
  %v1412 = vadd.f32 %v1275, %v1411
  %1413 = vmatmul.bf16.gmra.mxu0 %v643
  %v1414 = vpop.f32.mrf.mxu0
  %v1415 = vadd.f32 %v1278, %v1414
  %v1416 = vpop.f32.mrf.mxu0
  %v1417 = vadd.f32 %v1280, %v1416
  %1418 = vmatmul.bf16.gmra.mxu0 %v644
  %v1419 = vpop.f32.mrf.mxu0
  %v1420 = vadd.f32 %v1283, %v1419
  %v1421 = vpop.f32.mrf.mxu0
  %v1422 = vadd.f32 %v1285, %v1421
  %1423 = vmatmul.bf16.gmra.mxu0 %v645
  %v1424 = vpop.f32.mrf.mxu0
  %v1425 = vadd.f32 %v1288, %v1424
  %v1426 = vpop.f32.mrf.mxu0
  %v1427 = vadd.f32 %v1290, %v1426
  %1428 = vmatmul.bf16.gmra.mxu0 %v646
  %v1429 = vpop.f32.mrf.mxu0
  %v1430 = vadd.f32 %v1293, %v1429
  %v1431 = vpop.f32.mrf.mxu0
  %v1432 = vadd.f32 %v1295, %v1431
  %1433 = vmatmul.bf16.gmra.mxu0 %v647
  %v1434 = vpop.f32.mrf.mxu0
  %v1435 = vadd.f32 %v1298, %v1434
  %v1436 = vpop.f32.mrf.mxu0
  %v1437 = vadd.f32 %v1300, %v1436
  %1438 = vmatmul.bf16.gmra.mxu0 %v648
  %v1439 = vpop.f32.mrf.mxu0
  %v1440 = vadd.f32 %v1303, %v1439
  %v1441 = vpop.f32.mrf.mxu0
  %v1442 = vadd.f32 %v1305, %v1441
  %1443 = vmatmul.bf16.gmra.mxu0 %v649
  %v1444 = vpop.f32.mrf.mxu0
  %v1445 = vadd.f32 %v1308, %v1444
  %v1446 = vpop.f32.mrf.mxu0
  %v1447 = vadd.f32 %v1310, %v1446
  %1448 = vmatmul.bf16.gmra.mxu0 %v650
  %v1449 = vpop.f32.mrf.mxu0
  %v1450 = vadd.f32 %v1313, %v1449
  %v1451 = vpop.f32.mrf.mxu0
  %v1452 = vadd.f32 %v1315, %v1451
  %1453 = vdwg.mxu0
  %1454 = vset.pattern.permute.xlu0 2
  %1455 = vperm.xlu0 %1454, %v61
  %v1456 = vpop.permute.xlu0 %1455
  %1458 = vset.pattern.permute.xlu0 2
  %1459 = vperm.xlu0 %1458, %v62
  %v1460 = vpop.permute.xlu0 %1459
  %1462 = vset.pattern.permute.xlu0 2
  %1463 = vperm.xlu0 %1462, %v63
  %v1464 = vpop.permute.xlu0 %1463
  %1466 = vset.pattern.permute.xlu0 2
  %1467 = vperm.xlu0 %1466, %v64
  %v1468 = vpop.permute.xlu0 %1467
  %1470 = vset.pattern.permute.xlu0 2
  %1471 = vperm.xlu0 %1470, %v65
  %v1472 = vpop.permute.xlu0 %1471
  %1474 = vset.pattern.permute.xlu0 2
  %1475 = vperm.xlu0 %1474, %v66
  %v1476 = vpop.permute.xlu0 %1475
  %1478 = vset.pattern.permute.xlu0 2
  %1479 = vperm.xlu0 %1478, %v67
  %v1480 = vpop.permute.xlu0 %1479
  %1482 = vset.pattern.permute.xlu0 2
  %1483 = vperm.xlu0 %1482, %v68
  %v1484 = vpop.permute.xlu0 %1483
  %1486 = vset.pattern.permute.xlu0 2
  %1487 = vperm.xlu0 %1486, %v69
  %v1488 = vpop.permute.xlu0 %1487
  %1490 = vset.pattern.permute.xlu0 2
  %1491 = vperm.xlu0 %1490, %v70
  %v1492 = vpop.permute.xlu0 %1491
  %1494 = vset.pattern.permute.xlu0 2
  %1495 = vperm.xlu0 %1494, %v71
  %v1496 = vpop.permute.xlu0 %1495
  %1498 = vset.pattern.permute.xlu0 2
  %1499 = vperm.xlu0 %1498, %v72
  %v1500 = vpop.permute.xlu0 %1499
  %1502 = vset.pattern.permute.xlu0 2
  %1503 = vperm.xlu0 %1502, %v73
  %v1504 = vpop.permute.xlu0 %1503
  %1506 = vset.pattern.permute.xlu0 2
  %1507 = vperm.xlu0 %1506, %v74
  %v1508 = vpop.permute.xlu0 %1507
  %1510 = vset.pattern.permute.xlu0 2
  %1511 = vperm.xlu0 %1510, %v75
  %v1512 = vpop.permute.xlu0 %1511
  %1514 = vset.pattern.permute.xlu0 2
  %1515 = vperm.xlu0 %1514, %v76
  %v1516 = vpop.permute.xlu0 %1515
  %1518 = vset.pattern.permute.xlu0 2
  %1519 = vperm.xlu0 %1518, %v77
  %v1520 = vpop.permute.xlu0 %1519
  %1522 = vset.pattern.permute.xlu0 2
  %1523 = vperm.xlu0 %1522, %v78
  %v1524 = vpop.permute.xlu0 %1523
  %1526 = vset.pattern.permute.xlu0 2
  %1527 = vperm.xlu0 %1526, %v79
  %v1528 = vpop.permute.xlu0 %1527
  %1530 = vset.pattern.permute.xlu0 2
  %1531 = vperm.xlu0 %1530, %v80
  %v1532 = vpop.permute.xlu0 %1531
  %1534 = vset.pattern.permute.xlu0 2
  %1535 = vperm.xlu0 %1534, %v81
  %v1536 = vpop.permute.xlu0 %1535
  %1538 = vset.pattern.permute.xlu0 2
  %1539 = vperm.xlu0 %1538, %v82
  %v1540 = vpop.permute.xlu0 %1539
  %1542 = vset.pattern.permute.xlu0 2
  %1543 = vperm.xlu0 %1542, %v83
  %v1544 = vpop.permute.xlu0 %1543
  %1546 = vset.pattern.permute.xlu0 2
  %1547 = vperm.xlu0 %1546, %v84
  %v1548 = vpop.permute.xlu0 %1547
  %1550 = vset.pattern.permute.xlu0 2
  %1551 = vperm.xlu0 %1550, %v85
  %v1552 = vpop.permute.xlu0 %1551
  %1554 = vset.pattern.permute.xlu0 2
  %1555 = vperm.xlu0 %1554, %v86
  %v1556 = vpop.permute.xlu0 %1555
  %1558 = vset.pattern.permute.xlu0 2
  %1559 = vperm.xlu0 %1558, %v87
  %v1560 = vpop.permute.xlu0 %1559
  %1562 = vset.pattern.permute.xlu0 2
  %1563 = vperm.xlu0 %1562, %v88
  %v1564 = vpop.permute.xlu0 %1563
  %1566 = vset.pattern.permute.xlu0 2
  %1567 = vperm.xlu0 %1566, %v89
  %v1568 = vpop.permute.xlu0 %1567
  %1570 = vset.pattern.permute.xlu0 2
  %1571 = vperm.xlu0 %1570, %v90
  %v1572 = vpop.permute.xlu0 %1571
  %1574 = vset.pattern.permute.xlu0 2
  %1575 = vperm.xlu0 %1574, %v91
  %v1576 = vpop.permute.xlu0 %1575
  %1578 = vset.pattern.permute.xlu0 2
  %1579 = vperm.xlu0 %1578, %v92
  %v1580 = vpop.permute.xlu0 %1579
  %v1582 = vmul.f32 %v1456, %v275
  %v1583 = vmul.f32 %v1460, %v275
  %v1584 = vmul.f32 %v1464, %v275
  %v1585 = vmul.f32 %v1468, %v275
  %v1586 = vmul.f32 %v1472, %v275
  %v1587 = vmul.f32 %v1476, %v275
  %v1588 = vmul.f32 %v1480, %v275
  %v1589 = vmul.f32 %v1484, %v275
  %v1590 = vmul.f32 %v1488, %v275
  %v1591 = vmul.f32 %v1492, %v275
  %v1592 = vmul.f32 %v1496, %v275
  %v1593 = vmul.f32 %v1500, %v275
  %v1594 = vmul.f32 %v1504, %v275
  %v1595 = vmul.f32 %v1508, %v275
  %v1596 = vmul.f32 %v1512, %v275
  %v1597 = vmul.f32 %v1516, %v275
  %v1598 = vmul.f32 %v1520, %v275
  %v1599 = vmul.f32 %v1524, %v275
  %v1600 = vmul.f32 %v1528, %v275
  %v1601 = vmul.f32 %v1532, %v275
  %v1602 = vmul.f32 %v1536, %v275
  %v1603 = vmul.f32 %v1540, %v275
  %v1604 = vmul.f32 %v1544, %v275
  %v1605 = vmul.f32 %v1548, %v275
  %v1606 = vmul.f32 %v1552, %v275
  %v1607 = vmul.f32 %v1556, %v275
  %v1608 = vmul.f32 %v1560, %v275
  %v1609 = vmul.f32 %v1564, %v275
  %v1610 = vmul.f32 %v1568, %v275
  %v1611 = vmul.f32 %v1572, %v275
  %v1612 = vmul.f32 %v1576, %v275
  %v1613 = vmul.f32 %v1580, %v275
  %1614 = vset.pattern.permute.xlu0 6
  %1615 = vperm.xlu0 %1614, %v61
  %v1616 = vpop.permute.xlu0 %1615
  %1618 = vset.pattern.permute.xlu0 6
  %1619 = vperm.xlu0 %1618, %v62
  %v1620 = vpop.permute.xlu0 %1619
  %1622 = vset.pattern.permute.xlu0 6
  %1623 = vperm.xlu0 %1622, %v63
  %v1624 = vpop.permute.xlu0 %1623
  %1626 = vset.pattern.permute.xlu0 6
  %1627 = vperm.xlu0 %1626, %v64
  %v1628 = vpop.permute.xlu0 %1627
  %1630 = vset.pattern.permute.xlu0 6
  %1631 = vperm.xlu0 %1630, %v65
  %v1632 = vpop.permute.xlu0 %1631
  %1634 = vset.pattern.permute.xlu0 6
  %1635 = vperm.xlu0 %1634, %v66
  %v1636 = vpop.permute.xlu0 %1635
  %1638 = vset.pattern.permute.xlu0 6
  %1639 = vperm.xlu0 %1638, %v67
  %v1640 = vpop.permute.xlu0 %1639
  %1642 = vset.pattern.permute.xlu0 6
  %1643 = vperm.xlu0 %1642, %v68
  %v1644 = vpop.permute.xlu0 %1643
  %1646 = vset.pattern.permute.xlu0 6
  %1647 = vperm.xlu0 %1646, %v69
  %v1648 = vpop.permute.xlu0 %1647
  %1650 = vset.pattern.permute.xlu0 6
  %1651 = vperm.xlu0 %1650, %v70
  %v1652 = vpop.permute.xlu0 %1651
  %1654 = vset.pattern.permute.xlu0 6
  %1655 = vperm.xlu0 %1654, %v71
  %v1656 = vpop.permute.xlu0 %1655
  %1658 = vset.pattern.permute.xlu0 6
  %1659 = vperm.xlu0 %1658, %v72
  %v1660 = vpop.permute.xlu0 %1659
  %1662 = vset.pattern.permute.xlu0 6
  %1663 = vperm.xlu0 %1662, %v73
  %v1664 = vpop.permute.xlu0 %1663
  %1666 = vset.pattern.permute.xlu0 6
  %1667 = vperm.xlu0 %1666, %v74
  %v1668 = vpop.permute.xlu0 %1667
  %1670 = vset.pattern.permute.xlu0 6
  %1671 = vperm.xlu0 %1670, %v75
  %v1672 = vpop.permute.xlu0 %1671
  %1674 = vset.pattern.permute.xlu0 6
  %1675 = vperm.xlu0 %1674, %v76
  %v1676 = vpop.permute.xlu0 %1675
  %1678 = vset.pattern.permute.xlu0 6
  %1679 = vperm.xlu0 %1678, %v77
  %v1680 = vpop.permute.xlu0 %1679
  %1682 = vset.pattern.permute.xlu0 6
  %1683 = vperm.xlu0 %1682, %v78
  %v1684 = vpop.permute.xlu0 %1683
  %1686 = vset.pattern.permute.xlu0 6
  %1687 = vperm.xlu0 %1686, %v79
  %v1688 = vpop.permute.xlu0 %1687
  %1690 = vset.pattern.permute.xlu0 6
  %1691 = vperm.xlu0 %1690, %v80
  %v1692 = vpop.permute.xlu0 %1691
  %1694 = vset.pattern.permute.xlu0 6
  %1695 = vperm.xlu0 %1694, %v81
  %v1696 = vpop.permute.xlu0 %1695
  %1698 = vset.pattern.permute.xlu0 6
  %1699 = vperm.xlu0 %1698, %v82
  %v1700 = vpop.permute.xlu0 %1699
  %1702 = vset.pattern.permute.xlu0 6
  %1703 = vperm.xlu0 %1702, %v83
  %v1704 = vpop.permute.xlu0 %1703
  %1706 = vset.pattern.permute.xlu0 6
  %1707 = vperm.xlu0 %1706, %v84
  %v1708 = vpop.permute.xlu0 %1707
  %1710 = vset.pattern.permute.xlu0 6
  %1711 = vperm.xlu0 %1710, %v85
  %v1712 = vpop.permute.xlu0 %1711
  %1714 = vset.pattern.permute.xlu0 6
  %1715 = vperm.xlu0 %1714, %v86
  %v1716 = vpop.permute.xlu0 %1715
  %1718 = vset.pattern.permute.xlu0 6
  %1719 = vperm.xlu0 %1718, %v87
  %v1720 = vpop.permute.xlu0 %1719
  %1722 = vset.pattern.permute.xlu0 6
  %1723 = vperm.xlu0 %1722, %v88
  %v1724 = vpop.permute.xlu0 %1723
  %1726 = vset.pattern.permute.xlu0 6
  %1727 = vperm.xlu0 %1726, %v89
  %v1728 = vpop.permute.xlu0 %1727
  %1730 = vset.pattern.permute.xlu0 6
  %1731 = vperm.xlu0 %1730, %v90
  %v1732 = vpop.permute.xlu0 %1731
  %1734 = vset.pattern.permute.xlu0 6
  %1735 = vperm.xlu0 %1734, %v91
  %v1736 = vpop.permute.xlu0 %1735
  %1738 = vset.pattern.permute.xlu0 6
  %1739 = vperm.xlu0 %1738, %v92
  %v1740 = vpop.permute.xlu0 %1739
  %v1742 = vmul.f32 %v1616, %v438
  %v1743 = vmul.f32 %v1620, %v438
  %v1744 = vmul.f32 %v1624, %v438
  %v1745 = vmul.f32 %v1628, %v438
  %v1746 = vmul.f32 %v1632, %v438
  %v1747 = vmul.f32 %v1636, %v438
  %v1748 = vmul.f32 %v1640, %v438
  %v1749 = vmul.f32 %v1644, %v438
  %v1750 = vmul.f32 %v1648, %v438
  %v1751 = vmul.f32 %v1652, %v438
  %v1752 = vmul.f32 %v1656, %v438
  %v1753 = vmul.f32 %v1660, %v438
  %v1754 = vmul.f32 %v1664, %v438
  %v1755 = vmul.f32 %v1668, %v438
  %v1756 = vmul.f32 %v1672, %v438
  %v1757 = vmul.f32 %v1676, %v438
  %v1758 = vmul.f32 %v1680, %v438
  %v1759 = vmul.f32 %v1684, %v438
  %v1760 = vmul.f32 %v1688, %v438
  %v1761 = vmul.f32 %v1692, %v438
  %v1762 = vmul.f32 %v1696, %v438
  %v1763 = vmul.f32 %v1700, %v438
  %v1764 = vmul.f32 %v1704, %v438
  %v1765 = vmul.f32 %v1708, %v438
  %v1766 = vmul.f32 %v1712, %v438
  %v1767 = vmul.f32 %v1716, %v438
  %v1768 = vmul.f32 %v1720, %v438
  %v1769 = vmul.f32 %v1724, %v438
  %v1770 = vmul.f32 %v1728, %v438
  %v1771 = vmul.f32 %v1732, %v438
  %v1772 = vmul.f32 %v1736, %v438
  %v1773 = vmul.f32 %v1740, %v438
  %v1774 = vadd.f32 %v1582, %v1742
  %v1775 = vadd.f32 %v1583, %v1743
  %v1776 = vadd.f32 %v1584, %v1744
  %v1777 = vadd.f32 %v1585, %v1745
  %v1778 = vadd.f32 %v1586, %v1746
  %v1779 = vadd.f32 %v1587, %v1747
  %v1780 = vadd.f32 %v1588, %v1748
  %v1781 = vadd.f32 %v1589, %v1749
  %v1782 = vadd.f32 %v1590, %v1750
  %v1783 = vadd.f32 %v1591, %v1751
  %v1784 = vadd.f32 %v1592, %v1752
  %v1785 = vadd.f32 %v1593, %v1753
  %v1786 = vadd.f32 %v1594, %v1754
  %v1787 = vadd.f32 %v1595, %v1755
  %v1788 = vadd.f32 %v1596, %v1756
  %v1789 = vadd.f32 %v1597, %v1757
  %v1790 = vadd.f32 %v1598, %v1758
  %v1791 = vadd.f32 %v1599, %v1759
  %v1792 = vadd.f32 %v1600, %v1760
  %v1793 = vadd.f32 %v1601, %v1761
  %v1794 = vadd.f32 %v1602, %v1762
  %v1795 = vadd.f32 %v1603, %v1763
  %v1796 = vadd.f32 %v1604, %v1764
  %v1797 = vadd.f32 %v1605, %v1765
  %v1798 = vadd.f32 %v1606, %v1766
  %v1799 = vadd.f32 %v1607, %v1767
  %v1800 = vadd.f32 %v1608, %v1768
  %v1801 = vadd.f32 %v1609, %v1769
  %v1802 = vadd.f32 %v1610, %v1770
  %v1803 = vadd.f32 %v1611, %v1771
  %v1804 = vadd.f32 %v1612, %v1772
  %v1805 = vadd.f32 %v1613, %v1773
  %v1806 = vadd.f32 %v1774, %v505
  %v1807 = vadd.f32 %v1775, %v505
  %v1808 = vadd.f32 %v1776, %v505
  %v1809 = vadd.f32 %v1777, %v505
  %v1810 = vadd.f32 %v1778, %v505
  %v1811 = vadd.f32 %v1779, %v505
  %v1812 = vadd.f32 %v1780, %v505
  %v1813 = vadd.f32 %v1781, %v505
  %v1814 = vadd.f32 %v1782, %v505
  %v1815 = vadd.f32 %v1783, %v505
  %v1816 = vadd.f32 %v1784, %v505
  %v1817 = vadd.f32 %v1785, %v505
  %v1818 = vadd.f32 %v1786, %v505
  %v1819 = vadd.f32 %v1787, %v505
  %v1820 = vadd.f32 %v1788, %v505
  %v1821 = vadd.f32 %v1789, %v505
  %v1822 = vadd.f32 %v1790, %v505
  %v1823 = vadd.f32 %v1791, %v505
  %v1824 = vadd.f32 %v1792, %v505
  %v1825 = vadd.f32 %v1793, %v505
  %v1826 = vadd.f32 %v1794, %v505
  %v1827 = vadd.f32 %v1795, %v505
  %v1828 = vadd.f32 %v1796, %v505
  %v1829 = vadd.f32 %v1797, %v505
  %v1830 = vadd.f32 %v1798, %v505
  %v1831 = vadd.f32 %v1799, %v505
  %v1832 = vadd.f32 %v1800, %v505
  %v1833 = vadd.f32 %v1801, %v505
  %v1834 = vadd.f32 %v1802, %v505
  %v1835 = vadd.f32 %v1803, %v505
  %v1836 = vadd.f32 %v1804, %v505
  %v1837 = vadd.f32 %v1805, %v505
  %vm1838 = vcmp.ge.f32.partialorder %v1806, 0.0
  %vm1839 = vcmp.ge.f32.partialorder %v1807, 0.0
  %vm1840 = vcmp.ge.f32.partialorder %v1808, 0.0
  %vm1841 = vcmp.ge.f32.partialorder %v1809, 0.0
  %vm1842 = vcmp.ge.f32.partialorder %v1810, 0.0
  %vm1843 = vcmp.ge.f32.partialorder %v1811, 0.0
  %vm1844 = vcmp.ge.f32.partialorder %v1812, 0.0
  %vm1845 = vcmp.ge.f32.partialorder %v1813, 0.0
  %vm1846 = vcmp.ge.f32.partialorder %v1814, 0.0
  %vm1847 = vcmp.ge.f32.partialorder %v1815, 0.0
  %vm1848 = vcmp.ge.f32.partialorder %v1816, 0.0
  %vm1849 = vcmp.ge.f32.partialorder %v1817, 0.0
  %vm1850 = vcmp.ge.f32.partialorder %v1818, 0.0
  %vm1851 = vcmp.ge.f32.partialorder %v1819, 0.0
  %vm1852 = vcmp.ge.f32.partialorder %v1820, 0.0
  %vm1853 = vcmp.ge.f32.partialorder %v1821, 0.0
  %vm1854 = vcmp.ge.f32.partialorder %v1822, 0.0
  %vm1855 = vcmp.ge.f32.partialorder %v1823, 0.0
  %vm1856 = vcmp.ge.f32.partialorder %v1824, 0.0
  %vm1857 = vcmp.ge.f32.partialorder %v1825, 0.0
  %vm1858 = vcmp.ge.f32.partialorder %v1826, 0.0
  %vm1859 = vcmp.ge.f32.partialorder %v1827, 0.0
  %vm1860 = vcmp.ge.f32.partialorder %v1828, 0.0
  %vm1861 = vcmp.ge.f32.partialorder %v1829, 0.0
  %vm1862 = vcmp.ge.f32.partialorder %v1830, 0.0
  %vm1863 = vcmp.ge.f32.partialorder %v1831, 0.0
  %vm1864 = vcmp.ge.f32.partialorder %v1832, 0.0
  %vm1865 = vcmp.ge.f32.partialorder %v1833, 0.0
  %vm1866 = vcmp.ge.f32.partialorder %v1834, 0.0
  %vm1867 = vcmp.ge.f32.partialorder %v1835, 0.0
  %vm1868 = vcmp.ge.f32.partialorder %v1836, 0.0
  %vm1869 = vcmp.ge.f32.partialorder %v1837, 0.0
  %v1870 = vmul.f32 %v1806, 0.01
  %v1871 = vmul.f32 %v1807, 0.01
  %v1872 = vmul.f32 %v1808, 0.01
  %v1873 = vmul.f32 %v1809, 0.01
  %v1874 = vmul.f32 %v1810, 0.01
  %v1875 = vmul.f32 %v1811, 0.01
  %v1876 = vmul.f32 %v1812, 0.01
  %v1877 = vmul.f32 %v1813, 0.01
  %v1878 = vmul.f32 %v1814, 0.01
  %v1879 = vmul.f32 %v1815, 0.01
  %v1880 = vmul.f32 %v1816, 0.01
  %v1881 = vmul.f32 %v1817, 0.01
  %v1882 = vmul.f32 %v1818, 0.01
  %v1883 = vmul.f32 %v1819, 0.01
  %v1884 = vmul.f32 %v1820, 0.01
  %v1885 = vmul.f32 %v1821, 0.01
  %v1886 = vmul.f32 %v1822, 0.01
  %v1887 = vmul.f32 %v1823, 0.01
  %v1888 = vmul.f32 %v1824, 0.01
  %v1889 = vmul.f32 %v1825, 0.01
  %v1890 = vmul.f32 %v1826, 0.01
  %v1891 = vmul.f32 %v1827, 0.01
  %v1892 = vmul.f32 %v1828, 0.01
  %v1893 = vmul.f32 %v1829, 0.01
  %v1894 = vmul.f32 %v1830, 0.01
  %v1895 = vmul.f32 %v1831, 0.01
  %v1896 = vmul.f32 %v1832, 0.01
  %v1897 = vmul.f32 %v1833, 0.01
  %v1898 = vmul.f32 %v1834, 0.01
  %v1899 = vmul.f32 %v1835, 0.01
  %v1900 = vmul.f32 %v1836, 0.01
  %v1901 = vmul.f32 %v1837, 0.01
  %v1902 = vsel %vm1838, %v1806, %v1870
  %v1903 = vsel %vm1839, %v1807, %v1871
  %v1904 = vsel %vm1840, %v1808, %v1872
  %v1905 = vsel %vm1841, %v1809, %v1873
  %v1906 = vsel %vm1842, %v1810, %v1874
  %v1907 = vsel %vm1843, %v1811, %v1875
  %v1908 = vsel %vm1844, %v1812, %v1876
  %v1909 = vsel %vm1845, %v1813, %v1877
  %v1910 = vsel %vm1846, %v1814, %v1878
  %v1911 = vsel %vm1847, %v1815, %v1879
  %v1912 = vsel %vm1848, %v1816, %v1880
  %v1913 = vsel %vm1849, %v1817, %v1881
  %v1914 = vsel %vm1850, %v1818, %v1882
  %v1915 = vsel %vm1851, %v1819, %v1883
  %v1916 = vsel %vm1852, %v1820, %v1884
  %v1917 = vsel %vm1853, %v1821, %v1885
  %v1918 = vsel %vm1854, %v1822, %v1886
  %v1919 = vsel %vm1855, %v1823, %v1887
  %v1920 = vsel %vm1856, %v1824, %v1888
  %v1921 = vsel %vm1857, %v1825, %v1889
  %v1922 = vsel %vm1858, %v1826, %v1890
  %v1923 = vsel %vm1859, %v1827, %v1891
  %v1924 = vsel %vm1860, %v1828, %v1892
  %v1925 = vsel %vm1861, %v1829, %v1893
  %v1926 = vsel %vm1862, %v1830, %v1894
  %v1927 = vsel %vm1863, %v1831, %v1895
  %v1928 = vsel %vm1864, %v1832, %v1896
  %v1929 = vsel %vm1865, %v1833, %v1897
  %v1930 = vsel %vm1866, %v1834, %v1898
  %v1931 = vsel %vm1867, %v1835, %v1899
  %v1932 = vsel %vm1868, %v1836, %v1900
  %v1933 = vsel %vm1869, %v1837, %v1901
  %v1934 = vpack.c.bf16 %v1903, %v1902
  %v1935 = vpack.c.bf16 %v1905, %v1904
  %v1936 = vpack.c.bf16 %v1907, %v1906
  %v1937 = vpack.c.bf16 %v1909, %v1908
  %v1938 = vpack.c.bf16 %v1911, %v1910
  %v1939 = vpack.c.bf16 %v1913, %v1912
  %v1940 = vpack.c.bf16 %v1915, %v1914
  %v1941 = vpack.c.bf16 %v1917, %v1916
  %v1942 = vpack.c.bf16 %v1919, %v1918
  %v1943 = vpack.c.bf16 %v1921, %v1920
  %v1944 = vpack.c.bf16 %v1923, %v1922
  %v1945 = vpack.c.bf16 %v1925, %v1924
  %v1946 = vpack.c.bf16 %v1927, %v1926
  %v1947 = vpack.c.bf16 %v1929, %v1928
  %v1948 = vpack.c.bf16 %v1931, %v1930
  %v1949 = vpack.c.bf16 %v1933, %v1932
  %s1950 = scalar_lea.vmem %s4, 128
  %v1951 = vld [vmem:[%s1950] sm:$0xf]
  %v1952 = vld [vmem:[%s1950 + $0x4] sm:$0xf]
  %v1953 = vld [vmem:[%s1950 + $0x8] sm:$0xf]
  %v1954 = vld [vmem:[%s1950 + $0xc] sm:$0xf]
  %v1955 = vld [vmem:[%s1950 + $0x10] sm:$0xf]
  %v1956 = vld [vmem:[%s1950 + $0x14] sm:$0xf]
  %v1957 = vld [vmem:[%s1950 + $0x18] sm:$0xf]
  %v1958 = vld [vmem:[%s1950 + $0x1c] sm:$0xf]
  %v1959 = vld [vmem:[%s1950 + $0x20] sm:$0xf]
  %v1960 = vld [vmem:[%s1950 + $0x24] sm:$0xf]
  %v1961 = vld [vmem:[%s1950 + $0x28] sm:$0xf]
  %v1962 = vld [vmem:[%s1950 + $0x2c] sm:$0xf]
  %v1963 = vld [vmem:[%s1950 + $0x30] sm:$0xf]
  %v1964 = vld [vmem:[%s1950 + $0x34] sm:$0xf]
  %v1965 = vld [vmem:[%s1950 + $0x38] sm:$0xf]
  %v1966 = vld [vmem:[%s1950 + $0x3c] sm:$0xf]
  %v1983 = vunpack.c.l.b16 %v1951
  %v1984 = vunpack.c.l.b16 %v1952
  %v1985 = vunpack.c.l.b16 %v1953
  %v1986 = vunpack.c.l.b16 %v1954
  %v1987 = vunpack.c.l.b16 %v1955
  %v1988 = vunpack.c.l.b16 %v1956
  %v1989 = vunpack.c.l.b16 %v1957
  %v1990 = vunpack.c.l.b16 %v1958
  %v1991 = vunpack.c.l.b16 %v1959
  %v1992 = vunpack.c.l.b16 %v1960
  %v1993 = vunpack.c.l.b16 %v1961
  %v1994 = vunpack.c.l.b16 %v1962
  %v1995 = vunpack.c.l.b16 %v1963
  %v1996 = vunpack.c.l.b16 %v1964
  %v1997 = vunpack.c.l.b16 %v1965
  %v1998 = vunpack.c.l.b16 %v1966
  %v1999 = vpack.c.b16 %v1984, %v1983
  %v2000 = vpack.c.b16 %v1986, %v1985
  %v2001 = vpack.c.b16 %v1988, %v1987
  %v2002 = vpack.c.b16 %v1990, %v1989
  %v2003 = vpack.c.b16 %v1992, %v1991
  %v2004 = vpack.c.b16 %v1994, %v1993
  %v2005 = vpack.c.b16 %v1996, %v1995
  %v2006 = vpack.c.b16 %v1998, %v1997
  %2015 = vmatpush.bf16.msra.mxu0 %v2006
  %2016 = vmatpush.bf16.msra.mxu0 %v2005
  %2017 = vmatpush.bf16.msra.mxu0 %v2004
  %2018 = vmatpush.bf16.msra.mxu0 %v2003
  %2019 = vmatpush.bf16.msra.mxu0 %v2002
  %2020 = vmatpush.bf16.msra.mxu0 %v2001
  %2021 = vmatpush.bf16.msra.mxu0 %v2000
  %2022 = vmatpush.bf16.msra.mxu0 %v1999
  %2023 = vmatmul.bf16.gmra.mxu0 %v1934
  %v2024 = vpop.f32.mrf.mxu0
  %v2025 = vadd.f32 0.0, %v2024
  %v2026 = vpop.f32.mrf.mxu0
  %v2027 = vadd.f32 0.0, %v2026
  %2028 = vmatmul.bf16.gmra.mxu0 %v1935
  %v2029 = vpop.f32.mrf.mxu0
  %v2030 = vadd.f32 0.0, %v2029
  %v2031 = vpop.f32.mrf.mxu0
  %v2032 = vadd.f32 0.0, %v2031
  %2033 = vmatmul.bf16.gmra.mxu0 %v1936
  %v2034 = vpop.f32.mrf.mxu0
  %v2035 = vadd.f32 0.0, %v2034
  %v2036 = vpop.f32.mrf.mxu0
  %v2037 = vadd.f32 0.0, %v2036
  %2038 = vmatmul.bf16.gmra.mxu0 %v1937
  %v2039 = vpop.f32.mrf.mxu0
  %v2040 = vadd.f32 0.0, %v2039
  %v2041 = vpop.f32.mrf.mxu0
  %v2042 = vadd.f32 0.0, %v2041
  %2043 = vmatmul.bf16.gmra.mxu0 %v1938
  %v2044 = vpop.f32.mrf.mxu0
  %v2045 = vadd.f32 0.0, %v2044
  %v2046 = vpop.f32.mrf.mxu0
  %v2047 = vadd.f32 0.0, %v2046
  %2048 = vmatmul.bf16.gmra.mxu0 %v1939
  %v2049 = vpop.f32.mrf.mxu0
  %v2050 = vadd.f32 0.0, %v2049
  %v2051 = vpop.f32.mrf.mxu0
  %v2052 = vadd.f32 0.0, %v2051
  %2053 = vmatmul.bf16.gmra.mxu0 %v1940
  %v2054 = vpop.f32.mrf.mxu0
  %v2055 = vadd.f32 0.0, %v2054
  %v2056 = vpop.f32.mrf.mxu0
  %v2057 = vadd.f32 0.0, %v2056
  %2058 = vmatmul.bf16.gmra.mxu0 %v1941
  %v2059 = vpop.f32.mrf.mxu0
  %v2060 = vadd.f32 0.0, %v2059
  %v2061 = vpop.f32.mrf.mxu0
  %v2062 = vadd.f32 0.0, %v2061
  %2063 = vmatmul.bf16.gmra.mxu0 %v1942
  %v2064 = vpop.f32.mrf.mxu0
  %v2065 = vadd.f32 0.0, %v2064
  %v2066 = vpop.f32.mrf.mxu0
  %v2067 = vadd.f32 0.0, %v2066
  %2068 = vmatmul.bf16.gmra.mxu0 %v1943
  %v2069 = vpop.f32.mrf.mxu0
  %v2070 = vadd.f32 0.0, %v2069
  %v2071 = vpop.f32.mrf.mxu0
  %v2072 = vadd.f32 0.0, %v2071
  %2073 = vmatmul.bf16.gmra.mxu0 %v1944
  %v2074 = vpop.f32.mrf.mxu0
  %v2075 = vadd.f32 0.0, %v2074
  %v2076 = vpop.f32.mrf.mxu0
  %v2077 = vadd.f32 0.0, %v2076
  %2078 = vmatmul.bf16.gmra.mxu0 %v1945
  %v2079 = vpop.f32.mrf.mxu0
  %v2080 = vadd.f32 0.0, %v2079
  %v2081 = vpop.f32.mrf.mxu0
  %v2082 = vadd.f32 0.0, %v2081
  %2083 = vmatmul.bf16.gmra.mxu0 %v1946
  %v2084 = vpop.f32.mrf.mxu0
  %v2085 = vadd.f32 0.0, %v2084
  %v2086 = vpop.f32.mrf.mxu0
  %v2087 = vadd.f32 0.0, %v2086
  %2088 = vmatmul.bf16.gmra.mxu0 %v1947
  %v2089 = vpop.f32.mrf.mxu0
  %v2090 = vadd.f32 0.0, %v2089
  %v2091 = vpop.f32.mrf.mxu0
  %v2092 = vadd.f32 0.0, %v2091
  %2093 = vmatmul.bf16.gmra.mxu0 %v1948
  %v2094 = vpop.f32.mrf.mxu0
  %v2095 = vadd.f32 0.0, %v2094
  %v2096 = vpop.f32.mrf.mxu0
  %v2097 = vadd.f32 0.0, %v2096
  %2098 = vmatmul.bf16.gmra.mxu0 %v1949
  %v2099 = vpop.f32.mrf.mxu0
  %v2100 = vadd.f32 0.0, %v2099
  %v2101 = vpop.f32.mrf.mxu0
  %v2102 = vadd.f32 0.0, %v2101
  %2103 = vdwg.mxu0
  %v2104 = vadd.f32 %v1375, %v2025
  %v2105 = vadd.f32 %v1377, %v2027
  %v2106 = vadd.f32 %v1380, %v2030
  %v2107 = vadd.f32 %v1382, %v2032
  %v2108 = vadd.f32 %v1385, %v2035
  %v2109 = vadd.f32 %v1387, %v2037
  %v2110 = vadd.f32 %v1390, %v2040
  %v2111 = vadd.f32 %v1392, %v2042
  %v2112 = vadd.f32 %v1395, %v2045
  %v2113 = vadd.f32 %v1397, %v2047
  %v2114 = vadd.f32 %v1400, %v2050
  %v2115 = vadd.f32 %v1402, %v2052
  %v2116 = vadd.f32 %v1405, %v2055
  %v2117 = vadd.f32 %v1407, %v2057
  %v2118 = vadd.f32 %v1410, %v2060
  %v2119 = vadd.f32 %v1412, %v2062
  %v2120 = vadd.f32 %v1415, %v2065
  %v2121 = vadd.f32 %v1417, %v2067
  %v2122 = vadd.f32 %v1420, %v2070
  %v2123 = vadd.f32 %v1422, %v2072
  %v2124 = vadd.f32 %v1425, %v2075
  %v2125 = vadd.f32 %v1427, %v2077
  %v2126 = vadd.f32 %v1430, %v2080
  %v2127 = vadd.f32 %v1432, %v2082
  %v2128 = vadd.f32 %v1435, %v2085
  %v2129 = vadd.f32 %v1437, %v2087
  %v2130 = vadd.f32 %v1440, %v2090
  %v2131 = vadd.f32 %v1442, %v2092
  %v2132 = vadd.f32 %v1445, %v2095
  %v2133 = vadd.f32 %v1447, %v2097
  %v2134 = vadd.f32 %v1450, %v2100
  %v2135 = vadd.f32 %v1452, %v2102
  %2136 = vset.pattern.permute.xlu0 3
  %2137 = vperm.xlu0 %2136, %v61
  %v2138 = vpop.permute.xlu0 %2137
  %2140 = vset.pattern.permute.xlu0 3
  %2141 = vperm.xlu0 %2140, %v62
  %v2142 = vpop.permute.xlu0 %2141
  %2144 = vset.pattern.permute.xlu0 3
  %2145 = vperm.xlu0 %2144, %v63
  %v2146 = vpop.permute.xlu0 %2145
  %2148 = vset.pattern.permute.xlu0 3
  %2149 = vperm.xlu0 %2148, %v64
  %v2150 = vpop.permute.xlu0 %2149
  %2152 = vset.pattern.permute.xlu0 3
  %2153 = vperm.xlu0 %2152, %v65
  %v2154 = vpop.permute.xlu0 %2153
  %2156 = vset.pattern.permute.xlu0 3
  %2157 = vperm.xlu0 %2156, %v66
  %v2158 = vpop.permute.xlu0 %2157
  %2160 = vset.pattern.permute.xlu0 3
  %2161 = vperm.xlu0 %2160, %v67
  %v2162 = vpop.permute.xlu0 %2161
  %2164 = vset.pattern.permute.xlu0 3
  %2165 = vperm.xlu0 %2164, %v68
  %v2166 = vpop.permute.xlu0 %2165
  %2168 = vset.pattern.permute.xlu0 3
  %2169 = vperm.xlu0 %2168, %v69
  %v2170 = vpop.permute.xlu0 %2169
  %2172 = vset.pattern.permute.xlu0 3
  %2173 = vperm.xlu0 %2172, %v70
  %v2174 = vpop.permute.xlu0 %2173
  %2176 = vset.pattern.permute.xlu0 3
  %2177 = vperm.xlu0 %2176, %v71
  %v2178 = vpop.permute.xlu0 %2177
  %2180 = vset.pattern.permute.xlu0 3
  %2181 = vperm.xlu0 %2180, %v72
  %v2182 = vpop.permute.xlu0 %2181
  %2184 = vset.pattern.permute.xlu0 3
  %2185 = vperm.xlu0 %2184, %v73
  %v2186 = vpop.permute.xlu0 %2185
  %2188 = vset.pattern.permute.xlu0 3
  %2189 = vperm.xlu0 %2188, %v74
  %v2190 = vpop.permute.xlu0 %2189
  %2192 = vset.pattern.permute.xlu0 3
  %2193 = vperm.xlu0 %2192, %v75
  %v2194 = vpop.permute.xlu0 %2193
  %2196 = vset.pattern.permute.xlu0 3
  %2197 = vperm.xlu0 %2196, %v76
  %v2198 = vpop.permute.xlu0 %2197
  %2200 = vset.pattern.permute.xlu0 3
  %2201 = vperm.xlu0 %2200, %v77
  %v2202 = vpop.permute.xlu0 %2201
  %2204 = vset.pattern.permute.xlu0 3
  %2205 = vperm.xlu0 %2204, %v78
  %v2206 = vpop.permute.xlu0 %2205
  %2208 = vset.pattern.permute.xlu0 3
  %2209 = vperm.xlu0 %2208, %v79
  %v2210 = vpop.permute.xlu0 %2209
  %2212 = vset.pattern.permute.xlu0 3
  %2213 = vperm.xlu0 %2212, %v80
  %v2214 = vpop.permute.xlu0 %2213
  %2216 = vset.pattern.permute.xlu0 3
  %2217 = vperm.xlu0 %2216, %v81
  %v2218 = vpop.permute.xlu0 %2217
  %2220 = vset.pattern.permute.xlu0 3
  %2221 = vperm.xlu0 %2220, %v82
  %v2222 = vpop.permute.xlu0 %2221
  %2224 = vset.pattern.permute.xlu0 3
  %2225 = vperm.xlu0 %2224, %v83
  %v2226 = vpop.permute.xlu0 %2225
  %2228 = vset.pattern.permute.xlu0 3
  %2229 = vperm.xlu0 %2228, %v84
  %v2230 = vpop.permute.xlu0 %2229
  %2232 = vset.pattern.permute.xlu0 3
  %2233 = vperm.xlu0 %2232, %v85
  %v2234 = vpop.permute.xlu0 %2233
  %2236 = vset.pattern.permute.xlu0 3
  %2237 = vperm.xlu0 %2236, %v86
  %v2238 = vpop.permute.xlu0 %2237
  %2240 = vset.pattern.permute.xlu0 3
  %2241 = vperm.xlu0 %2240, %v87
  %v2242 = vpop.permute.xlu0 %2241
  %2244 = vset.pattern.permute.xlu0 3
  %2245 = vperm.xlu0 %2244, %v88
  %v2246 = vpop.permute.xlu0 %2245
  %2248 = vset.pattern.permute.xlu0 3
  %2249 = vperm.xlu0 %2248, %v89
  %v2250 = vpop.permute.xlu0 %2249
  %2252 = vset.pattern.permute.xlu0 3
  %2253 = vperm.xlu0 %2252, %v90
  %v2254 = vpop.permute.xlu0 %2253
  %2256 = vset.pattern.permute.xlu0 3
  %2257 = vperm.xlu0 %2256, %v91
  %v2258 = vpop.permute.xlu0 %2257
  %2260 = vset.pattern.permute.xlu0 3
  %2261 = vperm.xlu0 %2260, %v92
  %v2262 = vpop.permute.xlu0 %2261
  %v2264 = vmul.f32 %v2138, %v275
  %v2265 = vmul.f32 %v2142, %v275
  %v2266 = vmul.f32 %v2146, %v275
  %v2267 = vmul.f32 %v2150, %v275
  %v2268 = vmul.f32 %v2154, %v275
  %v2269 = vmul.f32 %v2158, %v275
  %v2270 = vmul.f32 %v2162, %v275
  %v2271 = vmul.f32 %v2166, %v275
  %v2272 = vmul.f32 %v2170, %v275
  %v2273 = vmul.f32 %v2174, %v275
  %v2274 = vmul.f32 %v2178, %v275
  %v2275 = vmul.f32 %v2182, %v275
  %v2276 = vmul.f32 %v2186, %v275
  %v2277 = vmul.f32 %v2190, %v275
  %v2278 = vmul.f32 %v2194, %v275
  %v2279 = vmul.f32 %v2198, %v275
  %v2280 = vmul.f32 %v2202, %v275
  %v2281 = vmul.f32 %v2206, %v275
  %v2282 = vmul.f32 %v2210, %v275
  %v2283 = vmul.f32 %v2214, %v275
  %v2284 = vmul.f32 %v2218, %v275
  %v2285 = vmul.f32 %v2222, %v275
  %v2286 = vmul.f32 %v2226, %v275
  %v2287 = vmul.f32 %v2230, %v275
  %v2288 = vmul.f32 %v2234, %v275
  %v2289 = vmul.f32 %v2238, %v275
  %v2290 = vmul.f32 %v2242, %v275
  %v2291 = vmul.f32 %v2246, %v275
  %v2292 = vmul.f32 %v2250, %v275
  %v2293 = vmul.f32 %v2254, %v275
  %v2294 = vmul.f32 %v2258, %v275
  %v2295 = vmul.f32 %v2262, %v275
  %2296 = vset.pattern.permute.xlu0 7
  %2297 = vperm.xlu0 %2296, %v61
  %v2298 = vpop.permute.xlu0 %2297
  %2300 = vset.pattern.permute.xlu0 7
  %2301 = vperm.xlu0 %2300, %v62
  %v2302 = vpop.permute.xlu0 %2301
  %2304 = vset.pattern.permute.xlu0 7
  %2305 = vperm.xlu0 %2304, %v63
  %v2306 = vpop.permute.xlu0 %2305
  %2308 = vset.pattern.permute.xlu0 7
  %2309 = vperm.xlu0 %2308, %v64
  %v2310 = vpop.permute.xlu0 %2309
  %2312 = vset.pattern.permute.xlu0 7
  %2313 = vperm.xlu0 %2312, %v65
  %v2314 = vpop.permute.xlu0 %2313
  %2316 = vset.pattern.permute.xlu0 7
  %2317 = vperm.xlu0 %2316, %v66
  %v2318 = vpop.permute.xlu0 %2317
  %2320 = vset.pattern.permute.xlu0 7
  %2321 = vperm.xlu0 %2320, %v67
  %v2322 = vpop.permute.xlu0 %2321
  %2324 = vset.pattern.permute.xlu0 7
  %2325 = vperm.xlu0 %2324, %v68
  %v2326 = vpop.permute.xlu0 %2325
  %2328 = vset.pattern.permute.xlu0 7
  %2329 = vperm.xlu0 %2328, %v69
  %v2330 = vpop.permute.xlu0 %2329
  %2332 = vset.pattern.permute.xlu0 7
  %2333 = vperm.xlu0 %2332, %v70
  %v2334 = vpop.permute.xlu0 %2333
  %2336 = vset.pattern.permute.xlu0 7
  %2337 = vperm.xlu0 %2336, %v71
  %v2338 = vpop.permute.xlu0 %2337
  %2340 = vset.pattern.permute.xlu0 7
  %2341 = vperm.xlu0 %2340, %v72
  %v2342 = vpop.permute.xlu0 %2341
  %2344 = vset.pattern.permute.xlu0 7
  %2345 = vperm.xlu0 %2344, %v73
  %v2346 = vpop.permute.xlu0 %2345
  %2348 = vset.pattern.permute.xlu0 7
  %2349 = vperm.xlu0 %2348, %v74
  %v2350 = vpop.permute.xlu0 %2349
  %2352 = vset.pattern.permute.xlu0 7
  %2353 = vperm.xlu0 %2352, %v75
  %v2354 = vpop.permute.xlu0 %2353
  %2356 = vset.pattern.permute.xlu0 7
  %2357 = vperm.xlu0 %2356, %v76
  %v2358 = vpop.permute.xlu0 %2357
  %2360 = vset.pattern.permute.xlu0 7
  %2361 = vperm.xlu0 %2360, %v77
  %v2362 = vpop.permute.xlu0 %2361
  %2364 = vset.pattern.permute.xlu0 7
  %2365 = vperm.xlu0 %2364, %v78
  %v2366 = vpop.permute.xlu0 %2365
  %2368 = vset.pattern.permute.xlu0 7
  %2369 = vperm.xlu0 %2368, %v79
  %v2370 = vpop.permute.xlu0 %2369
  %2372 = vset.pattern.permute.xlu0 7
  %2373 = vperm.xlu0 %2372, %v80
  %v2374 = vpop.permute.xlu0 %2373
  %2376 = vset.pattern.permute.xlu0 7
  %2377 = vperm.xlu0 %2376, %v81
  %v2378 = vpop.permute.xlu0 %2377
  %2380 = vset.pattern.permute.xlu0 7
  %2381 = vperm.xlu0 %2380, %v82
  %v2382 = vpop.permute.xlu0 %2381
  %2384 = vset.pattern.permute.xlu0 7
  %2385 = vperm.xlu0 %2384, %v83
  %v2386 = vpop.permute.xlu0 %2385
  %2388 = vset.pattern.permute.xlu0 7
  %2389 = vperm.xlu0 %2388, %v84
  %v2390 = vpop.permute.xlu0 %2389
  %2392 = vset.pattern.permute.xlu0 7
  %2393 = vperm.xlu0 %2392, %v85
  %v2394 = vpop.permute.xlu0 %2393
  %2396 = vset.pattern.permute.xlu0 7
  %2397 = vperm.xlu0 %2396, %v86
  %v2398 = vpop.permute.xlu0 %2397
  %2400 = vset.pattern.permute.xlu0 7
  %2401 = vperm.xlu0 %2400, %v87
  %v2402 = vpop.permute.xlu0 %2401
  %2404 = vset.pattern.permute.xlu0 7
  %2405 = vperm.xlu0 %2404, %v88
  %v2406 = vpop.permute.xlu0 %2405
  %2408 = vset.pattern.permute.xlu0 7
  %2409 = vperm.xlu0 %2408, %v89
  %v2410 = vpop.permute.xlu0 %2409
  %2412 = vset.pattern.permute.xlu0 7
  %2413 = vperm.xlu0 %2412, %v90
  %v2414 = vpop.permute.xlu0 %2413
  %2416 = vset.pattern.permute.xlu0 7
  %2417 = vperm.xlu0 %2416, %v91
  %v2418 = vpop.permute.xlu0 %2417
  %2420 = vset.pattern.permute.xlu0 7
  %2421 = vperm.xlu0 %2420, %v92
  %v2422 = vpop.permute.xlu0 %2421
  %v2424 = vmul.f32 %v2298, %v438
  %v2425 = vmul.f32 %v2302, %v438
  %v2426 = vmul.f32 %v2306, %v438
  %v2427 = vmul.f32 %v2310, %v438
  %v2428 = vmul.f32 %v2314, %v438
  %v2429 = vmul.f32 %v2318, %v438
  %v2430 = vmul.f32 %v2322, %v438
  %v2431 = vmul.f32 %v2326, %v438
  %v2432 = vmul.f32 %v2330, %v438
  %v2433 = vmul.f32 %v2334, %v438
  %v2434 = vmul.f32 %v2338, %v438
  %v2435 = vmul.f32 %v2342, %v438
  %v2436 = vmul.f32 %v2346, %v438
  %v2437 = vmul.f32 %v2350, %v438
  %v2438 = vmul.f32 %v2354, %v438
  %v2439 = vmul.f32 %v2358, %v438
  %v2440 = vmul.f32 %v2362, %v438
  %v2441 = vmul.f32 %v2366, %v438
  %v2442 = vmul.f32 %v2370, %v438
  %v2443 = vmul.f32 %v2374, %v438
  %v2444 = vmul.f32 %v2378, %v438
  %v2445 = vmul.f32 %v2382, %v438
  %v2446 = vmul.f32 %v2386, %v438
  %v2447 = vmul.f32 %v2390, %v438
  %v2448 = vmul.f32 %v2394, %v438
  %v2449 = vmul.f32 %v2398, %v438
  %v2450 = vmul.f32 %v2402, %v438
  %v2451 = vmul.f32 %v2406, %v438
  %v2452 = vmul.f32 %v2410, %v438
  %v2453 = vmul.f32 %v2414, %v438
  %v2454 = vmul.f32 %v2418, %v438
  %v2455 = vmul.f32 %v2422, %v438
  %v2456 = vadd.f32 %v2264, %v2424
  %v2457 = vadd.f32 %v2265, %v2425
  %v2458 = vadd.f32 %v2266, %v2426
  %v2459 = vadd.f32 %v2267, %v2427
  %v2460 = vadd.f32 %v2268, %v2428
  %v2461 = vadd.f32 %v2269, %v2429
  %v2462 = vadd.f32 %v2270, %v2430
  %v2463 = vadd.f32 %v2271, %v2431
  %v2464 = vadd.f32 %v2272, %v2432
  %v2465 = vadd.f32 %v2273, %v2433
  %v2466 = vadd.f32 %v2274, %v2434
  %v2467 = vadd.f32 %v2275, %v2435
  %v2468 = vadd.f32 %v2276, %v2436
  %v2469 = vadd.f32 %v2277, %v2437
  %v2470 = vadd.f32 %v2278, %v2438
  %v2471 = vadd.f32 %v2279, %v2439
  %v2472 = vadd.f32 %v2280, %v2440
  %v2473 = vadd.f32 %v2281, %v2441
  %v2474 = vadd.f32 %v2282, %v2442
  %v2475 = vadd.f32 %v2283, %v2443
  %v2476 = vadd.f32 %v2284, %v2444
  %v2477 = vadd.f32 %v2285, %v2445
  %v2478 = vadd.f32 %v2286, %v2446
  %v2479 = vadd.f32 %v2287, %v2447
  %v2480 = vadd.f32 %v2288, %v2448
  %v2481 = vadd.f32 %v2289, %v2449
  %v2482 = vadd.f32 %v2290, %v2450
  %v2483 = vadd.f32 %v2291, %v2451
  %v2484 = vadd.f32 %v2292, %v2452
  %v2485 = vadd.f32 %v2293, %v2453
  %v2486 = vadd.f32 %v2294, %v2454
  %v2487 = vadd.f32 %v2295, %v2455
  %v2488 = vadd.f32 %v2456, %v505
  %v2489 = vadd.f32 %v2457, %v505
  %v2490 = vadd.f32 %v2458, %v505
  %v2491 = vadd.f32 %v2459, %v505
  %v2492 = vadd.f32 %v2460, %v505
  %v2493 = vadd.f32 %v2461, %v505
  %v2494 = vadd.f32 %v2462, %v505
  %v2495 = vadd.f32 %v2463, %v505
  %v2496 = vadd.f32 %v2464, %v505
  %v2497 = vadd.f32 %v2465, %v505
  %v2498 = vadd.f32 %v2466, %v505
  %v2499 = vadd.f32 %v2467, %v505
  %v2500 = vadd.f32 %v2468, %v505
  %v2501 = vadd.f32 %v2469, %v505
  %v2502 = vadd.f32 %v2470, %v505
  %v2503 = vadd.f32 %v2471, %v505
  %v2504 = vadd.f32 %v2472, %v505
  %v2505 = vadd.f32 %v2473, %v505
  %v2506 = vadd.f32 %v2474, %v505
  %v2507 = vadd.f32 %v2475, %v505
  %v2508 = vadd.f32 %v2476, %v505
  %v2509 = vadd.f32 %v2477, %v505
  %v2510 = vadd.f32 %v2478, %v505
  %v2511 = vadd.f32 %v2479, %v505
  %v2512 = vadd.f32 %v2480, %v505
  %v2513 = vadd.f32 %v2481, %v505
  %v2514 = vadd.f32 %v2482, %v505
  %v2515 = vadd.f32 %v2483, %v505
  %v2516 = vadd.f32 %v2484, %v505
  %v2517 = vadd.f32 %v2485, %v505
  %v2518 = vadd.f32 %v2486, %v505
  %v2519 = vadd.f32 %v2487, %v505
  %vm2520 = vcmp.ge.f32.partialorder %v2488, 0.0
  %vm2521 = vcmp.ge.f32.partialorder %v2489, 0.0
  %vm2522 = vcmp.ge.f32.partialorder %v2490, 0.0
  %vm2523 = vcmp.ge.f32.partialorder %v2491, 0.0
  %vm2524 = vcmp.ge.f32.partialorder %v2492, 0.0
  %vm2525 = vcmp.ge.f32.partialorder %v2493, 0.0
  %vm2526 = vcmp.ge.f32.partialorder %v2494, 0.0
  %vm2527 = vcmp.ge.f32.partialorder %v2495, 0.0
  %vm2528 = vcmp.ge.f32.partialorder %v2496, 0.0
  %vm2529 = vcmp.ge.f32.partialorder %v2497, 0.0
  %vm2530 = vcmp.ge.f32.partialorder %v2498, 0.0
  %vm2531 = vcmp.ge.f32.partialorder %v2499, 0.0
  %vm2532 = vcmp.ge.f32.partialorder %v2500, 0.0
  %vm2533 = vcmp.ge.f32.partialorder %v2501, 0.0
  %vm2534 = vcmp.ge.f32.partialorder %v2502, 0.0
  %vm2535 = vcmp.ge.f32.partialorder %v2503, 0.0
  %vm2536 = vcmp.ge.f32.partialorder %v2504, 0.0
  %vm2537 = vcmp.ge.f32.partialorder %v2505, 0.0
  %vm2538 = vcmp.ge.f32.partialorder %v2506, 0.0
  %vm2539 = vcmp.ge.f32.partialorder %v2507, 0.0
  %vm2540 = vcmp.ge.f32.partialorder %v2508, 0.0
  %vm2541 = vcmp.ge.f32.partialorder %v2509, 0.0
  %vm2542 = vcmp.ge.f32.partialorder %v2510, 0.0
  %vm2543 = vcmp.ge.f32.partialorder %v2511, 0.0
  %vm2544 = vcmp.ge.f32.partialorder %v2512, 0.0
  %vm2545 = vcmp.ge.f32.partialorder %v2513, 0.0
  %vm2546 = vcmp.ge.f32.partialorder %v2514, 0.0
  %vm2547 = vcmp.ge.f32.partialorder %v2515, 0.0
  %vm2548 = vcmp.ge.f32.partialorder %v2516, 0.0
  %vm2549 = vcmp.ge.f32.partialorder %v2517, 0.0
  %vm2550 = vcmp.ge.f32.partialorder %v2518, 0.0
  %vm2551 = vcmp.ge.f32.partialorder %v2519, 0.0
  %v2552 = vmul.f32 %v2488, 0.01
  %v2553 = vmul.f32 %v2489, 0.01
  %v2554 = vmul.f32 %v2490, 0.01
  %v2555 = vmul.f32 %v2491, 0.01
  %v2556 = vmul.f32 %v2492, 0.01
  %v2557 = vmul.f32 %v2493, 0.01
  %v2558 = vmul.f32 %v2494, 0.01
  %v2559 = vmul.f32 %v2495, 0.01
  %v2560 = vmul.f32 %v2496, 0.01
  %v2561 = vmul.f32 %v2497, 0.01
  %v2562 = vmul.f32 %v2498, 0.01
  %v2563 = vmul.f32 %v2499, 0.01
  %v2564 = vmul.f32 %v2500, 0.01
  %v2565 = vmul.f32 %v2501, 0.01
  %v2566 = vmul.f32 %v2502, 0.01
  %v2567 = vmul.f32 %v2503, 0.01
  %v2568 = vmul.f32 %v2504, 0.01
  %v2569 = vmul.f32 %v2505, 0.01
  %v2570 = vmul.f32 %v2506, 0.01
  %v2571 = vmul.f32 %v2507, 0.01
  %v2572 = vmul.f32 %v2508, 0.01
  %v2573 = vmul.f32 %v2509, 0.01
  %v2574 = vmul.f32 %v2510, 0.01
  %v2575 = vmul.f32 %v2511, 0.01
  %v2576 = vmul.f32 %v2512, 0.01
  %v2577 = vmul.f32 %v2513, 0.01
  %v2578 = vmul.f32 %v2514, 0.01
  %v2579 = vmul.f32 %v2515, 0.01
  %v2580 = vmul.f32 %v2516, 0.01
  %v2581 = vmul.f32 %v2517, 0.01
  %v2582 = vmul.f32 %v2518, 0.01
  %v2583 = vmul.f32 %v2519, 0.01
  %v2584 = vsel %vm2520, %v2488, %v2552
  %v2585 = vsel %vm2521, %v2489, %v2553
  %v2586 = vsel %vm2522, %v2490, %v2554
  %v2587 = vsel %vm2523, %v2491, %v2555
  %v2588 = vsel %vm2524, %v2492, %v2556
  %v2589 = vsel %vm2525, %v2493, %v2557
  %v2590 = vsel %vm2526, %v2494, %v2558
  %v2591 = vsel %vm2527, %v2495, %v2559
  %v2592 = vsel %vm2528, %v2496, %v2560
  %v2593 = vsel %vm2529, %v2497, %v2561
  %v2594 = vsel %vm2530, %v2498, %v2562
  %v2595 = vsel %vm2531, %v2499, %v2563
  %v2596 = vsel %vm2532, %v2500, %v2564
  %v2597 = vsel %vm2533, %v2501, %v2565
  %v2598 = vsel %vm2534, %v2502, %v2566
  %v2599 = vsel %vm2535, %v2503, %v2567
  %v2600 = vsel %vm2536, %v2504, %v2568
  %v2601 = vsel %vm2537, %v2505, %v2569
  %v2602 = vsel %vm2538, %v2506, %v2570
  %v2603 = vsel %vm2539, %v2507, %v2571
  %v2604 = vsel %vm2540, %v2508, %v2572
  %v2605 = vsel %vm2541, %v2509, %v2573
  %v2606 = vsel %vm2542, %v2510, %v2574
  %v2607 = vsel %vm2543, %v2511, %v2575
  %v2608 = vsel %vm2544, %v2512, %v2576
  %v2609 = vsel %vm2545, %v2513, %v2577
  %v2610 = vsel %vm2546, %v2514, %v2578
  %v2611 = vsel %vm2547, %v2515, %v2579
  %v2612 = vsel %vm2548, %v2516, %v2580
  %v2613 = vsel %vm2549, %v2517, %v2581
  %v2614 = vsel %vm2550, %v2518, %v2582
  %v2615 = vsel %vm2551, %v2519, %v2583
  %v2616 = vpack.c.bf16 %v2585, %v2584
  %v2617 = vpack.c.bf16 %v2587, %v2586
  %v2618 = vpack.c.bf16 %v2589, %v2588
  %v2619 = vpack.c.bf16 %v2591, %v2590
  %v2620 = vpack.c.bf16 %v2593, %v2592
  %v2621 = vpack.c.bf16 %v2595, %v2594
  %v2622 = vpack.c.bf16 %v2597, %v2596
  %v2623 = vpack.c.bf16 %v2599, %v2598
  %v2624 = vpack.c.bf16 %v2601, %v2600
  %v2625 = vpack.c.bf16 %v2603, %v2602
  %v2626 = vpack.c.bf16 %v2605, %v2604
  %v2627 = vpack.c.bf16 %v2607, %v2606
  %v2628 = vpack.c.bf16 %v2609, %v2608
  %v2629 = vpack.c.bf16 %v2611, %v2610
  %v2630 = vpack.c.bf16 %v2613, %v2612
  %v2631 = vpack.c.bf16 %v2615, %v2614
  %s2632 = scalar_lea.vmem %s4, 192
  %v2633 = vld [vmem:[%s2632] sm:$0xf]
  %v2634 = vld [vmem:[%s2632 + $0x4] sm:$0xf]
  %v2635 = vld [vmem:[%s2632 + $0x8] sm:$0xf]
  %v2636 = vld [vmem:[%s2632 + $0xc] sm:$0xf]
  %v2637 = vld [vmem:[%s2632 + $0x10] sm:$0xf]
  %v2638 = vld [vmem:[%s2632 + $0x14] sm:$0xf]
  %v2639 = vld [vmem:[%s2632 + $0x18] sm:$0xf]
  %v2640 = vld [vmem:[%s2632 + $0x1c] sm:$0xf]
  %v2641 = vld [vmem:[%s2632 + $0x20] sm:$0xf]
  %v2642 = vld [vmem:[%s2632 + $0x24] sm:$0xf]
  %v2643 = vld [vmem:[%s2632 + $0x28] sm:$0xf]
  %v2644 = vld [vmem:[%s2632 + $0x2c] sm:$0xf]
  %v2645 = vld [vmem:[%s2632 + $0x30] sm:$0xf]
  %v2646 = vld [vmem:[%s2632 + $0x34] sm:$0xf]
  %v2647 = vld [vmem:[%s2632 + $0x38] sm:$0xf]
  %v2648 = vld [vmem:[%s2632 + $0x3c] sm:$0xf]
  %v2665 = vunpack.c.l.b16 %v2633
  %v2666 = vunpack.c.l.b16 %v2634
  %v2667 = vunpack.c.l.b16 %v2635
  %v2668 = vunpack.c.l.b16 %v2636
  %v2669 = vunpack.c.l.b16 %v2637
  %v2670 = vunpack.c.l.b16 %v2638
  %v2671 = vunpack.c.l.b16 %v2639
  %v2672 = vunpack.c.l.b16 %v2640
  %v2673 = vunpack.c.l.b16 %v2641
  %v2674 = vunpack.c.l.b16 %v2642
  %v2675 = vunpack.c.l.b16 %v2643
  %v2676 = vunpack.c.l.b16 %v2644
  %v2677 = vunpack.c.l.b16 %v2645
  %v2678 = vunpack.c.l.b16 %v2646
  %v2679 = vunpack.c.l.b16 %v2647
  %v2680 = vunpack.c.l.b16 %v2648
  %v2681 = vpack.c.b16 %v2666, %v2665
  %v2682 = vpack.c.b16 %v2668, %v2667
  %v2683 = vpack.c.b16 %v2670, %v2669
  %v2684 = vpack.c.b16 %v2672, %v2671
  %v2685 = vpack.c.b16 %v2674, %v2673
  %v2686 = vpack.c.b16 %v2676, %v2675
  %v2687 = vpack.c.b16 %v2678, %v2677
  %v2688 = vpack.c.b16 %v2680, %v2679
  %2697 = vmatpush.bf16.msra.mxu0 %v2688
  %2698 = vmatpush.bf16.msra.mxu0 %v2687
  %2699 = vmatpush.bf16.msra.mxu0 %v2686
  %2700 = vmatpush.bf16.msra.mxu0 %v2685
  %2701 = vmatpush.bf16.msra.mxu0 %v2684
  %2702 = vmatpush.bf16.msra.mxu0 %v2683
  %2703 = vmatpush.bf16.msra.mxu0 %v2682
  %2704 = vmatpush.bf16.msra.mxu0 %v2681
  %2705 = vmatmul.bf16.gmra.mxu0 %v2616
  %v2706 = vpop.f32.mrf.mxu0
  %v2707 = vadd.f32 0.0, %v2706
  %v2708 = vpop.f32.mrf.mxu0
  %v2709 = vadd.f32 0.0, %v2708
  %2710 = vmatmul.bf16.gmra.mxu0 %v2617
  %v2711 = vpop.f32.mrf.mxu0
  %v2712 = vadd.f32 0.0, %v2711
  %v2713 = vpop.f32.mrf.mxu0
  %v2714 = vadd.f32 0.0, %v2713
  %2715 = vmatmul.bf16.gmra.mxu0 %v2618
  %v2716 = vpop.f32.mrf.mxu0
  %v2717 = vadd.f32 0.0, %v2716
  %v2718 = vpop.f32.mrf.mxu0
  %v2719 = vadd.f32 0.0, %v2718
  %2720 = vmatmul.bf16.gmra.mxu0 %v2619
  %v2721 = vpop.f32.mrf.mxu0
  %v2722 = vadd.f32 0.0, %v2721
  %v2723 = vpop.f32.mrf.mxu0
  %v2724 = vadd.f32 0.0, %v2723
  %2725 = vmatmul.bf16.gmra.mxu0 %v2620
  %v2726 = vpop.f32.mrf.mxu0
  %v2727 = vadd.f32 0.0, %v2726
  %v2728 = vpop.f32.mrf.mxu0
  %v2729 = vadd.f32 0.0, %v2728
  %2730 = vmatmul.bf16.gmra.mxu0 %v2621
  %v2731 = vpop.f32.mrf.mxu0
  %v2732 = vadd.f32 0.0, %v2731
  %v2733 = vpop.f32.mrf.mxu0
  %v2734 = vadd.f32 0.0, %v2733
  %2735 = vmatmul.bf16.gmra.mxu0 %v2622
  %v2736 = vpop.f32.mrf.mxu0
  %v2737 = vadd.f32 0.0, %v2736
  %v2738 = vpop.f32.mrf.mxu0
  %v2739 = vadd.f32 0.0, %v2738
  %2740 = vmatmul.bf16.gmra.mxu0 %v2623
  %v2741 = vpop.f32.mrf.mxu0
  %v2742 = vadd.f32 0.0, %v2741
  %v2743 = vpop.f32.mrf.mxu0
  %v2744 = vadd.f32 0.0, %v2743
  %2745 = vmatmul.bf16.gmra.mxu0 %v2624
  %v2746 = vpop.f32.mrf.mxu0
  %v2747 = vadd.f32 0.0, %v2746
  %v2748 = vpop.f32.mrf.mxu0
  %v2749 = vadd.f32 0.0, %v2748
  %2750 = vmatmul.bf16.gmra.mxu0 %v2625
  %v2751 = vpop.f32.mrf.mxu0
  %v2752 = vadd.f32 0.0, %v2751
  %v2753 = vpop.f32.mrf.mxu0
  %v2754 = vadd.f32 0.0, %v2753
  %2755 = vmatmul.bf16.gmra.mxu0 %v2626
  %v2756 = vpop.f32.mrf.mxu0
  %v2757 = vadd.f32 0.0, %v2756
  %v2758 = vpop.f32.mrf.mxu0
  %v2759 = vadd.f32 0.0, %v2758
  %2760 = vmatmul.bf16.gmra.mxu0 %v2627
  %v2761 = vpop.f32.mrf.mxu0
  %v2762 = vadd.f32 0.0, %v2761
  %v2763 = vpop.f32.mrf.mxu0
  %v2764 = vadd.f32 0.0, %v2763
  %2765 = vmatmul.bf16.gmra.mxu0 %v2628
  %v2766 = vpop.f32.mrf.mxu0
  %v2767 = vadd.f32 0.0, %v2766
  %v2768 = vpop.f32.mrf.mxu0
  %v2769 = vadd.f32 0.0, %v2768
  %2770 = vmatmul.bf16.gmra.mxu0 %v2629
  %v2771 = vpop.f32.mrf.mxu0
  %v2772 = vadd.f32 0.0, %v2771
  %v2773 = vpop.f32.mrf.mxu0
  %v2774 = vadd.f32 0.0, %v2773
  %2775 = vmatmul.bf16.gmra.mxu0 %v2630
  %v2776 = vpop.f32.mrf.mxu0
  %v2777 = vadd.f32 0.0, %v2776
  %v2778 = vpop.f32.mrf.mxu0
  %v2779 = vadd.f32 0.0, %v2778
  %2780 = vmatmul.bf16.gmra.mxu0 %v2631
  %v2781 = vpop.f32.mrf.mxu0
  %v2782 = vadd.f32 0.0, %v2781
  %v2783 = vpop.f32.mrf.mxu0
  %v2784 = vadd.f32 0.0, %v2783
  %2785 = vdwg.mxu0
  %v2786 = vadd.f32 %v2104, %v2707
  %v2787 = vadd.f32 %v2105, %v2709
  %v2788 = vadd.f32 %v2106, %v2712
  %v2789 = vadd.f32 %v2107, %v2714
  %v2790 = vadd.f32 %v2108, %v2717
  %v2791 = vadd.f32 %v2109, %v2719
  %v2792 = vadd.f32 %v2110, %v2722
  %v2793 = vadd.f32 %v2111, %v2724
  %v2794 = vadd.f32 %v2112, %v2727
  %v2795 = vadd.f32 %v2113, %v2729
  %v2796 = vadd.f32 %v2114, %v2732
  %v2797 = vadd.f32 %v2115, %v2734
  %v2798 = vadd.f32 %v2116, %v2737
  %v2799 = vadd.f32 %v2117, %v2739
  %v2800 = vadd.f32 %v2118, %v2742
  %v2801 = vadd.f32 %v2119, %v2744
  %v2802 = vadd.f32 %v2120, %v2747
  %v2803 = vadd.f32 %v2121, %v2749
  %v2804 = vadd.f32 %v2122, %v2752
  %v2805 = vadd.f32 %v2123, %v2754
  %v2806 = vadd.f32 %v2124, %v2757
  %v2807 = vadd.f32 %v2125, %v2759
  %v2808 = vadd.f32 %v2126, %v2762
  %v2809 = vadd.f32 %v2127, %v2764
  %v2810 = vadd.f32 %v2128, %v2767
  %v2811 = vadd.f32 %v2129, %v2769
  %v2812 = vadd.f32 %v2130, %v2772
  %v2813 = vadd.f32 %v2131, %v2774
  %v2814 = vadd.f32 %v2132, %v2777
  %v2815 = vadd.f32 %v2133, %v2779
  %v2816 = vadd.f32 %v2134, %v2782
  %v2817 = vadd.f32 %v2135, %v2784
  %v2819 = vperm.slane %v96, 0
  %v2821 = vadd.f32 %v2786, %v2819
  %v2822 = vadd.f32 %v2787, %v2819
  %v2823 = vadd.f32 %v2788, %v2819
  %v2824 = vadd.f32 %v2789, %v2819
  %v2825 = vadd.f32 %v2790, %v2819
  %v2826 = vadd.f32 %v2791, %v2819
  %v2827 = vadd.f32 %v2792, %v2819
  %v2828 = vadd.f32 %v2793, %v2819
  %v2829 = vadd.f32 %v2794, %v2819
  %v2830 = vadd.f32 %v2795, %v2819
  %v2831 = vadd.f32 %v2796, %v2819
  %v2832 = vadd.f32 %v2797, %v2819
  %v2833 = vadd.f32 %v2798, %v2819
  %v2834 = vadd.f32 %v2799, %v2819
  %v2835 = vadd.f32 %v2800, %v2819
  %v2836 = vadd.f32 %v2801, %v2819
  %v2837 = vadd.f32 %v2802, %v2819
  %v2838 = vadd.f32 %v2803, %v2819
  %v2839 = vadd.f32 %v2804, %v2819
  %v2840 = vadd.f32 %v2805, %v2819
  %v2841 = vadd.f32 %v2806, %v2819
  %v2842 = vadd.f32 %v2807, %v2819
  %v2843 = vadd.f32 %v2808, %v2819
  %v2844 = vadd.f32 %v2809, %v2819
  %v2845 = vadd.f32 %v2810, %v2819
  %v2846 = vadd.f32 %v2811, %v2819
  %v2847 = vadd.f32 %v2812, %v2819
  %v2848 = vadd.f32 %v2813, %v2819
  %v2849 = vadd.f32 %v2814, %v2819
  %v2850 = vadd.f32 %v2815, %v2819
  %v2851 = vadd.f32 %v2816, %v2819
  %v2852 = vadd.f32 %v2817, %v2819
  %vm2853 = vcmp.ge.f32.partialorder %v2821, 0.0
  %vm2854 = vcmp.ge.f32.partialorder %v2822, 0.0
  %vm2855 = vcmp.ge.f32.partialorder %v2823, 0.0
  %vm2856 = vcmp.ge.f32.partialorder %v2824, 0.0
  %vm2857 = vcmp.ge.f32.partialorder %v2825, 0.0
  %vm2858 = vcmp.ge.f32.partialorder %v2826, 0.0
  %vm2859 = vcmp.ge.f32.partialorder %v2827, 0.0
  %vm2860 = vcmp.ge.f32.partialorder %v2828, 0.0
  %vm2861 = vcmp.ge.f32.partialorder %v2829, 0.0
  %vm2862 = vcmp.ge.f32.partialorder %v2830, 0.0
  %vm2863 = vcmp.ge.f32.partialorder %v2831, 0.0
  %vm2864 = vcmp.ge.f32.partialorder %v2832, 0.0
  %vm2865 = vcmp.ge.f32.partialorder %v2833, 0.0
  %vm2866 = vcmp.ge.f32.partialorder %v2834, 0.0
  %vm2867 = vcmp.ge.f32.partialorder %v2835, 0.0
  %vm2868 = vcmp.ge.f32.partialorder %v2836, 0.0
  %vm2869 = vcmp.ge.f32.partialorder %v2837, 0.0
  %vm2870 = vcmp.ge.f32.partialorder %v2838, 0.0
  %vm2871 = vcmp.ge.f32.partialorder %v2839, 0.0
  %vm2872 = vcmp.ge.f32.partialorder %v2840, 0.0
  %vm2873 = vcmp.ge.f32.partialorder %v2841, 0.0
  %vm2874 = vcmp.ge.f32.partialorder %v2842, 0.0
  %vm2875 = vcmp.ge.f32.partialorder %v2843, 0.0
  %vm2876 = vcmp.ge.f32.partialorder %v2844, 0.0
  %vm2877 = vcmp.ge.f32.partialorder %v2845, 0.0
  %vm2878 = vcmp.ge.f32.partialorder %v2846, 0.0
  %vm2879 = vcmp.ge.f32.partialorder %v2847, 0.0
  %vm2880 = vcmp.ge.f32.partialorder %v2848, 0.0
  %vm2881 = vcmp.ge.f32.partialorder %v2849, 0.0
  %vm2882 = vcmp.ge.f32.partialorder %v2850, 0.0
  %vm2883 = vcmp.ge.f32.partialorder %v2851, 0.0
  %vm2884 = vcmp.ge.f32.partialorder %v2852, 0.0
  %v2885 = vmul.f32 %v2821, 0.01
  %v2886 = vmul.f32 %v2822, 0.01
  %v2887 = vmul.f32 %v2823, 0.01
  %v2888 = vmul.f32 %v2824, 0.01
  %v2889 = vmul.f32 %v2825, 0.01
  %v2890 = vmul.f32 %v2826, 0.01
  %v2891 = vmul.f32 %v2827, 0.01
  %v2892 = vmul.f32 %v2828, 0.01
  %v2893 = vmul.f32 %v2829, 0.01
  %v2894 = vmul.f32 %v2830, 0.01
  %v2895 = vmul.f32 %v2831, 0.01
  %v2896 = vmul.f32 %v2832, 0.01
  %v2897 = vmul.f32 %v2833, 0.01
  %v2898 = vmul.f32 %v2834, 0.01
  %v2899 = vmul.f32 %v2835, 0.01
  %v2900 = vmul.f32 %v2836, 0.01
  %v2901 = vmul.f32 %v2837, 0.01
  %v2902 = vmul.f32 %v2838, 0.01
  %v2903 = vmul.f32 %v2839, 0.01
  %v2904 = vmul.f32 %v2840, 0.01
  %v2905 = vmul.f32 %v2841, 0.01
  %v2906 = vmul.f32 %v2842, 0.01
  %v2907 = vmul.f32 %v2843, 0.01
  %v2908 = vmul.f32 %v2844, 0.01
  %v2909 = vmul.f32 %v2845, 0.01
  %v2910 = vmul.f32 %v2846, 0.01
  %v2911 = vmul.f32 %v2847, 0.01
  %v2912 = vmul.f32 %v2848, 0.01
  %v2913 = vmul.f32 %v2849, 0.01
  %v2914 = vmul.f32 %v2850, 0.01
  %v2915 = vmul.f32 %v2851, 0.01
  %v2916 = vmul.f32 %v2852, 0.01
  %v2917 = vsel %vm2853, %v2821, %v2885
  %v2918 = vsel %vm2854, %v2822, %v2886
  %v2919 = vsel %vm2855, %v2823, %v2887
  %v2920 = vsel %vm2856, %v2824, %v2888
  %v2921 = vsel %vm2857, %v2825, %v2889
  %v2922 = vsel %vm2858, %v2826, %v2890
  %v2923 = vsel %vm2859, %v2827, %v2891
  %v2924 = vsel %vm2860, %v2828, %v2892
  %v2925 = vsel %vm2861, %v2829, %v2893
  %v2926 = vsel %vm2862, %v2830, %v2894
  %v2927 = vsel %vm2863, %v2831, %v2895
  %v2928 = vsel %vm2864, %v2832, %v2896
  %v2929 = vsel %vm2865, %v2833, %v2897
  %v2930 = vsel %vm2866, %v2834, %v2898
  %v2931 = vsel %vm2867, %v2835, %v2899
  %v2932 = vsel %vm2868, %v2836, %v2900
  %v2933 = vsel %vm2869, %v2837, %v2901
  %v2934 = vsel %vm2870, %v2838, %v2902
  %v2935 = vsel %vm2871, %v2839, %v2903
  %v2936 = vsel %vm2872, %v2840, %v2904
  %v2937 = vsel %vm2873, %v2841, %v2905
  %v2938 = vsel %vm2874, %v2842, %v2906
  %v2939 = vsel %vm2875, %v2843, %v2907
  %v2940 = vsel %vm2876, %v2844, %v2908
  %v2941 = vsel %vm2877, %v2845, %v2909
  %v2942 = vsel %vm2878, %v2846, %v2910
  %v2943 = vsel %vm2879, %v2847, %v2911
  %v2944 = vsel %vm2880, %v2848, %v2912
  %v2945 = vsel %vm2881, %v2849, %v2913
  %v2946 = vsel %vm2882, %v2850, %v2914
  %v2947 = vsel %vm2883, %v2851, %v2915
  %v2948 = vsel %vm2884, %v2852, %v2916
  %v2949 = vmul.f32 %v2917, %v2917
  %v2950 = vmul.f32 %v2918, %v2918
  %v2951 = vmul.f32 %v2919, %v2919
  %v2952 = vmul.f32 %v2920, %v2920
  %v2953 = vmul.f32 %v2921, %v2921
  %v2954 = vmul.f32 %v2922, %v2922
  %v2955 = vmul.f32 %v2923, %v2923
  %v2956 = vmul.f32 %v2924, %v2924
  %v2957 = vmul.f32 %v2925, %v2925
  %v2958 = vmul.f32 %v2926, %v2926
  %v2959 = vmul.f32 %v2927, %v2927
  %v2960 = vmul.f32 %v2928, %v2928
  %v2961 = vmul.f32 %v2929, %v2929
  %v2962 = vmul.f32 %v2930, %v2930
  %v2963 = vmul.f32 %v2931, %v2931
  %v2964 = vmul.f32 %v2932, %v2932
  %v2965 = vmul.f32 %v2933, %v2933
  %v2966 = vmul.f32 %v2934, %v2934
  %v2967 = vmul.f32 %v2935, %v2935
  %v2968 = vmul.f32 %v2936, %v2936
  %v2969 = vmul.f32 %v2937, %v2937
  %v2970 = vmul.f32 %v2938, %v2938
  %v2971 = vmul.f32 %v2939, %v2939
  %v2972 = vmul.f32 %v2940, %v2940
  %v2973 = vmul.f32 %v2941, %v2941
  %v2974 = vmul.f32 %v2942, %v2942
  %v2975 = vmul.f32 %v2943, %v2943
  %v2976 = vmul.f32 %v2944, %v2944
  %v2977 = vmul.f32 %v2945, %v2945
  %v2978 = vmul.f32 %v2946, %v2946
  %v2979 = vmul.f32 %v2947, %v2947
  %v2980 = vmul.f32 %v2948, %v2948
  %v2981 = vpack.c.bf16 %v2950, %v2949
  %v2982 = vpack.c.bf16 %v2952, %v2951
  %v2983 = vpack.c.bf16 %v2954, %v2953
  %v2984 = vpack.c.bf16 %v2956, %v2955
  %v2985 = vpack.c.bf16 %v2958, %v2957
  %v2986 = vpack.c.bf16 %v2960, %v2959
  %v2987 = vpack.c.bf16 %v2962, %v2961
  %v2988 = vpack.c.bf16 %v2964, %v2963
  %v2989 = vpack.c.bf16 %v2966, %v2965
  %v2990 = vpack.c.bf16 %v2968, %v2967
  %v2991 = vpack.c.bf16 %v2970, %v2969
  %v2992 = vpack.c.bf16 %v2972, %v2971
  %v2993 = vpack.c.bf16 %v2974, %v2973
  %v2994 = vpack.c.bf16 %v2976, %v2975
  %v2995 = vpack.c.bf16 %v2978, %v2977
  %v2996 = vpack.c.bf16 %v2980, %v2979
  %v2998 = vperm.slane %v113, 0
  %v3016 = vunpack.c.l.b16 %v97
  %v3017 = vunpack.c.l.b16 %v98
  %v3018 = vunpack.c.l.b16 %v99
  %v3019 = vunpack.c.l.b16 %v100
  %v3020 = vunpack.c.l.b16 %v101
  %v3021 = vunpack.c.l.b16 %v102
  %v3022 = vunpack.c.l.b16 %v103
  %v3023 = vunpack.c.l.b16 %v104
  %v3024 = vunpack.c.l.b16 %v105
  %v3025 = vunpack.c.l.b16 %v106
  %v3026 = vunpack.c.l.b16 %v107
  %v3027 = vunpack.c.l.b16 %v108
  %v3028 = vunpack.c.l.b16 %v109
  %v3029 = vunpack.c.l.b16 %v110
  %v3030 = vunpack.c.l.b16 %v111
  %v3031 = vunpack.c.l.b16 %v112
  %v3032 = vpack.c.b16 %v3017, %v3016
  %v3033 = vpack.c.b16 %v3019, %v3018
  %v3034 = vpack.c.b16 %v3021, %v3020
  %v3035 = vpack.c.b16 %v3023, %v3022
  %v3036 = vpack.c.b16 %v3025, %v3024
  %v3037 = vpack.c.b16 %v3027, %v3026
  %v3038 = vpack.c.b16 %v3029, %v3028
  %v3039 = vpack.c.b16 %v3031, %v3030
  %3048 = vmatpush.bf16.msra.mxu0 %v3039
  %3049 = vmatpush.bf16.msra.mxu0 %v3038
  %3050 = vmatpush.bf16.msra.mxu0 %v3037
  %3051 = vmatpush.bf16.msra.mxu0 %v3036
  %3052 = vmatpush.bf16.msra.mxu0 %v3035
  %3053 = vmatpush.bf16.msra.mxu0 %v3034
  %3054 = vmatpush.bf16.msra.mxu0 %v3033
  %3055 = vmatpush.bf16.msra.mxu0 %v3032
  %3056 = vmatmul.bf16.gmra.mxu0 %v2981
  %v3057 = vpop.f32.mrf.mxu0
  %v3058 = vadd.f32 %v2998, %v3057
  %v3059 = vpop.f32.mrf.mxu0
  %v3060 = vadd.f32 %v2998, %v3059
  %3061 = vmatmul.bf16.gmra.mxu0 %v2982
  %v3062 = vpop.f32.mrf.mxu0
  %v3063 = vadd.f32 %v2998, %v3062
  %v3064 = vpop.f32.mrf.mxu0
  %v3065 = vadd.f32 %v2998, %v3064
  %3066 = vmatmul.bf16.gmra.mxu0 %v2983
  %v3067 = vpop.f32.mrf.mxu0
  %v3068 = vadd.f32 %v2998, %v3067
  %v3069 = vpop.f32.mrf.mxu0
  %v3070 = vadd.f32 %v2998, %v3069
  %3071 = vmatmul.bf16.gmra.mxu0 %v2984
  %v3072 = vpop.f32.mrf.mxu0
  %v3073 = vadd.f32 %v2998, %v3072
  %v3074 = vpop.f32.mrf.mxu0
  %v3075 = vadd.f32 %v2998, %v3074
  %3076 = vmatmul.bf16.gmra.mxu0 %v2985
  %v3077 = vpop.f32.mrf.mxu0
  %v3078 = vadd.f32 %v2998, %v3077
  %v3079 = vpop.f32.mrf.mxu0
  %v3080 = vadd.f32 %v2998, %v3079
  %3081 = vmatmul.bf16.gmra.mxu0 %v2986
  %v3082 = vpop.f32.mrf.mxu0
  %v3083 = vadd.f32 %v2998, %v3082
  %v3084 = vpop.f32.mrf.mxu0
  %v3085 = vadd.f32 %v2998, %v3084
  %3086 = vmatmul.bf16.gmra.mxu0 %v2987
  %v3087 = vpop.f32.mrf.mxu0
  %v3088 = vadd.f32 %v2998, %v3087
  %v3089 = vpop.f32.mrf.mxu0
  %v3090 = vadd.f32 %v2998, %v3089
  %3091 = vmatmul.bf16.gmra.mxu0 %v2988
  %v3092 = vpop.f32.mrf.mxu0
  %v3093 = vadd.f32 %v2998, %v3092
  %v3094 = vpop.f32.mrf.mxu0
  %v3095 = vadd.f32 %v2998, %v3094
  %3096 = vmatmul.bf16.gmra.mxu0 %v2989
  %v3097 = vpop.f32.mrf.mxu0
  %v3098 = vadd.f32 %v2998, %v3097
  %v3099 = vpop.f32.mrf.mxu0
  %v3100 = vadd.f32 %v2998, %v3099
  %3101 = vmatmul.bf16.gmra.mxu0 %v2990
  %v3102 = vpop.f32.mrf.mxu0
  %v3103 = vadd.f32 %v2998, %v3102
  %v3104 = vpop.f32.mrf.mxu0
  %v3105 = vadd.f32 %v2998, %v3104
  %3106 = vmatmul.bf16.gmra.mxu0 %v2991
  %v3107 = vpop.f32.mrf.mxu0
  %v3108 = vadd.f32 %v2998, %v3107
  %v3109 = vpop.f32.mrf.mxu0
  %v3110 = vadd.f32 %v2998, %v3109
  %3111 = vmatmul.bf16.gmra.mxu0 %v2992
  %v3112 = vpop.f32.mrf.mxu0
  %v3113 = vadd.f32 %v2998, %v3112
  %v3114 = vpop.f32.mrf.mxu0
  %v3115 = vadd.f32 %v2998, %v3114
  %3116 = vmatmul.bf16.gmra.mxu0 %v2993
  %v3117 = vpop.f32.mrf.mxu0
  %v3118 = vadd.f32 %v2998, %v3117
  %v3119 = vpop.f32.mrf.mxu0
  %v3120 = vadd.f32 %v2998, %v3119
  %3121 = vmatmul.bf16.gmra.mxu0 %v2994
  %v3122 = vpop.f32.mrf.mxu0
  %v3123 = vadd.f32 %v2998, %v3122
  %v3124 = vpop.f32.mrf.mxu0
  %v3125 = vadd.f32 %v2998, %v3124
  %3126 = vmatmul.bf16.gmra.mxu0 %v2995
  %v3127 = vpop.f32.mrf.mxu0
  %v3128 = vadd.f32 %v2998, %v3127
  %v3129 = vpop.f32.mrf.mxu0
  %v3130 = vadd.f32 %v2998, %v3129
  %3131 = vmatmul.bf16.gmra.mxu0 %v2996
  %v3132 = vpop.f32.mrf.mxu0
  %v3133 = vadd.f32 %v2998, %v3132
  %v3134 = vpop.f32.mrf.mxu0
  %v3135 = vadd.f32 %v2998, %v3134
  %3136 = vdwg.mxu0
  %v3137 = vrsqrt.pop %v3058
  %v3138 = vmul.f32 %v3137, %v3058
  %v3139 = vmul.f32 %v3138, %v3137
  %v3140 = vmul.f32 0.5, %v3139
  %v3141 = vsub.f32 1.5, %v3140
  %v3142 = vmul.f32 %v3137, %v3141
  %vm3143 = vweird.f32 %v3058
  %vm3144 = vweird.f32 %v3137
  %vm3145 = vmor %vm3143, %vm3144
  %v3146 = vsel %vm3145, %v3137, %v3142
  %v3147 = vrsqrt.pop %v3060
  %v3148 = vmul.f32 %v3147, %v3060
  %v3149 = vmul.f32 %v3148, %v3147
  %v3150 = vmul.f32 0.5, %v3149
  %v3151 = vsub.f32 1.5, %v3150
  %v3152 = vmul.f32 %v3147, %v3151
  %vm3153 = vweird.f32 %v3060
  %vm3154 = vweird.f32 %v3147
  %vm3155 = vmor %vm3153, %vm3154
  %v3156 = vsel %vm3155, %v3147, %v3152
  %v3157 = vrsqrt.pop %v3063
  %v3158 = vmul.f32 %v3157, %v3063
  %v3159 = vmul.f32 %v3158, %v3157
  %v3160 = vmul.f32 0.5, %v3159
  %v3161 = vsub.f32 1.5, %v3160
  %v3162 = vmul.f32 %v3157, %v3161
  %vm3163 = vweird.f32 %v3063
  %vm3164 = vweird.f32 %v3157
  %vm3165 = vmor %vm3163, %vm3164
  %v3166 = vsel %vm3165, %v3157, %v3162
  %v3167 = vrsqrt.pop %v3065
  %v3168 = vmul.f32 %v3167, %v3065
  %v3169 = vmul.f32 %v3168, %v3167
  %v3170 = vmul.f32 0.5, %v3169
  %v3171 = vsub.f32 1.5, %v3170
  %v3172 = vmul.f32 %v3167, %v3171
  %vm3173 = vweird.f32 %v3065
  %vm3174 = vweird.f32 %v3167
  %vm3175 = vmor %vm3173, %vm3174
  %v3176 = vsel %vm3175, %v3167, %v3172
  %v3177 = vrsqrt.pop %v3068
  %v3178 = vmul.f32 %v3177, %v3068
  %v3179 = vmul.f32 %v3178, %v3177
  %v3180 = vmul.f32 0.5, %v3179
  %v3181 = vsub.f32 1.5, %v3180
  %v3182 = vmul.f32 %v3177, %v3181
  %vm3183 = vweird.f32 %v3068
  %vm3184 = vweird.f32 %v3177
  %vm3185 = vmor %vm3183, %vm3184
  %v3186 = vsel %vm3185, %v3177, %v3182
  %v3187 = vrsqrt.pop %v3070
  %v3188 = vmul.f32 %v3187, %v3070
  %v3189 = vmul.f32 %v3188, %v3187
  %v3190 = vmul.f32 0.5, %v3189
  %v3191 = vsub.f32 1.5, %v3190
  %v3192 = vmul.f32 %v3187, %v3191
  %vm3193 = vweird.f32 %v3070
  %vm3194 = vweird.f32 %v3187
  %vm3195 = vmor %vm3193, %vm3194
  %v3196 = vsel %vm3195, %v3187, %v3192
  %v3197 = vrsqrt.pop %v3073
  %v3198 = vmul.f32 %v3197, %v3073
  %v3199 = vmul.f32 %v3198, %v3197
  %v3200 = vmul.f32 0.5, %v3199
  %v3201 = vsub.f32 1.5, %v3200
  %v3202 = vmul.f32 %v3197, %v3201
  %vm3203 = vweird.f32 %v3073
  %vm3204 = vweird.f32 %v3197
  %vm3205 = vmor %vm3203, %vm3204
  %v3206 = vsel %vm3205, %v3197, %v3202
  %v3207 = vrsqrt.pop %v3075
  %v3208 = vmul.f32 %v3207, %v3075
  %v3209 = vmul.f32 %v3208, %v3207
  %v3210 = vmul.f32 0.5, %v3209
  %v3211 = vsub.f32 1.5, %v3210
  %v3212 = vmul.f32 %v3207, %v3211
  %vm3213 = vweird.f32 %v3075
  %vm3214 = vweird.f32 %v3207
  %vm3215 = vmor %vm3213, %vm3214
  %v3216 = vsel %vm3215, %v3207, %v3212
  %v3217 = vrsqrt.pop %v3078
  %v3218 = vmul.f32 %v3217, %v3078
  %v3219 = vmul.f32 %v3218, %v3217
  %v3220 = vmul.f32 0.5, %v3219
  %v3221 = vsub.f32 1.5, %v3220
  %v3222 = vmul.f32 %v3217, %v3221
  %vm3223 = vweird.f32 %v3078
  %vm3224 = vweird.f32 %v3217
  %vm3225 = vmor %vm3223, %vm3224
  %v3226 = vsel %vm3225, %v3217, %v3222
  %v3227 = vrsqrt.pop %v3080
  %v3228 = vmul.f32 %v3227, %v3080
  %v3229 = vmul.f32 %v3228, %v3227
  %v3230 = vmul.f32 0.5, %v3229
  %v3231 = vsub.f32 1.5, %v3230
  %v3232 = vmul.f32 %v3227, %v3231
  %vm3233 = vweird.f32 %v3080
  %vm3234 = vweird.f32 %v3227
  %vm3235 = vmor %vm3233, %vm3234
  %v3236 = vsel %vm3235, %v3227, %v3232
  %v3237 = vrsqrt.pop %v3083
  %v3238 = vmul.f32 %v3237, %v3083
  %v3239 = vmul.f32 %v3238, %v3237
  %v3240 = vmul.f32 0.5, %v3239
  %v3241 = vsub.f32 1.5, %v3240
  %v3242 = vmul.f32 %v3237, %v3241
  %vm3243 = vweird.f32 %v3083
  %vm3244 = vweird.f32 %v3237
  %vm3245 = vmor %vm3243, %vm3244
  %v3246 = vsel %vm3245, %v3237, %v3242
  %v3247 = vrsqrt.pop %v3085
  %v3248 = vmul.f32 %v3247, %v3085
  %v3249 = vmul.f32 %v3248, %v3247
  %v3250 = vmul.f32 0.5, %v3249
  %v3251 = vsub.f32 1.5, %v3250
  %v3252 = vmul.f32 %v3247, %v3251
  %vm3253 = vweird.f32 %v3085
  %vm3254 = vweird.f32 %v3247
  %vm3255 = vmor %vm3253, %vm3254
  %v3256 = vsel %vm3255, %v3247, %v3252
  %v3257 = vrsqrt.pop %v3088
  %v3258 = vmul.f32 %v3257, %v3088
  %v3259 = vmul.f32 %v3258, %v3257
  %v3260 = vmul.f32 0.5, %v3259
  %v3261 = vsub.f32 1.5, %v3260
  %v3262 = vmul.f32 %v3257, %v3261
  %vm3263 = vweird.f32 %v3088
  %vm3264 = vweird.f32 %v3257
  %vm3265 = vmor %vm3263, %vm3264
  %v3266 = vsel %vm3265, %v3257, %v3262
  %v3267 = vrsqrt.pop %v3090
  %v3268 = vmul.f32 %v3267, %v3090
  %v3269 = vmul.f32 %v3268, %v3267
  %v3270 = vmul.f32 0.5, %v3269
  %v3271 = vsub.f32 1.5, %v3270
  %v3272 = vmul.f32 %v3267, %v3271
  %vm3273 = vweird.f32 %v3090
  %vm3274 = vweird.f32 %v3267
  %vm3275 = vmor %vm3273, %vm3274
  %v3276 = vsel %vm3275, %v3267, %v3272
  %v3277 = vrsqrt.pop %v3093
  %v3278 = vmul.f32 %v3277, %v3093
  %v3279 = vmul.f32 %v3278, %v3277
  %v3280 = vmul.f32 0.5, %v3279
  %v3281 = vsub.f32 1.5, %v3280
  %v3282 = vmul.f32 %v3277, %v3281
  %vm3283 = vweird.f32 %v3093
  %vm3284 = vweird.f32 %v3277
  %vm3285 = vmor %vm3283, %vm3284
  %v3286 = vsel %vm3285, %v3277, %v3282
  %v3287 = vrsqrt.pop %v3095
  %v3288 = vmul.f32 %v3287, %v3095
  %v3289 = vmul.f32 %v3288, %v3287
  %v3290 = vmul.f32 0.5, %v3289
  %v3291 = vsub.f32 1.5, %v3290
  %v3292 = vmul.f32 %v3287, %v3291
  %vm3293 = vweird.f32 %v3095
  %vm3294 = vweird.f32 %v3287
  %vm3295 = vmor %vm3293, %vm3294
  %v3296 = vsel %vm3295, %v3287, %v3292
  %v3297 = vrsqrt.pop %v3098
  %v3298 = vmul.f32 %v3297, %v3098
  %v3299 = vmul.f32 %v3298, %v3297
  %v3300 = vmul.f32 0.5, %v3299
  %v3301 = vsub.f32 1.5, %v3300
  %v3302 = vmul.f32 %v3297, %v3301
  %vm3303 = vweird.f32 %v3098
  %vm3304 = vweird.f32 %v3297
  %vm3305 = vmor %vm3303, %vm3304
  %v3306 = vsel %vm3305, %v3297, %v3302
  %v3307 = vrsqrt.pop %v3100
  %v3308 = vmul.f32 %v3307, %v3100
  %v3309 = vmul.f32 %v3308, %v3307
  %v3310 = vmul.f32 0.5, %v3309
  %v3311 = vsub.f32 1.5, %v3310
  %v3312 = vmul.f32 %v3307, %v3311
  %vm3313 = vweird.f32 %v3100
  %vm3314 = vweird.f32 %v3307
  %vm3315 = vmor %vm3313, %vm3314
  %v3316 = vsel %vm3315, %v3307, %v3312
  %v3317 = vrsqrt.pop %v3103
  %v3318 = vmul.f32 %v3317, %v3103
  %v3319 = vmul.f32 %v3318, %v3317
  %v3320 = vmul.f32 0.5, %v3319
  %v3321 = vsub.f32 1.5, %v3320
  %v3322 = vmul.f32 %v3317, %v3321
  %vm3323 = vweird.f32 %v3103
  %vm3324 = vweird.f32 %v3317
  %vm3325 = vmor %vm3323, %vm3324
  %v3326 = vsel %vm3325, %v3317, %v3322
  %v3327 = vrsqrt.pop %v3105
  %v3328 = vmul.f32 %v3327, %v3105
  %v3329 = vmul.f32 %v3328, %v3327
  %v3330 = vmul.f32 0.5, %v3329
  %v3331 = vsub.f32 1.5, %v3330
  %v3332 = vmul.f32 %v3327, %v3331
  %vm3333 = vweird.f32 %v3105
  %vm3334 = vweird.f32 %v3327
  %vm3335 = vmor %vm3333, %vm3334
  %v3336 = vsel %vm3335, %v3327, %v3332
  %v3337 = vrsqrt.pop %v3108
  %v3338 = vmul.f32 %v3337, %v3108
  %v3339 = vmul.f32 %v3338, %v3337
  %v3340 = vmul.f32 0.5, %v3339
  %v3341 = vsub.f32 1.5, %v3340
  %v3342 = vmul.f32 %v3337, %v3341
  %vm3343 = vweird.f32 %v3108
  %vm3344 = vweird.f32 %v3337
  %vm3345 = vmor %vm3343, %vm3344
  %v3346 = vsel %vm3345, %v3337, %v3342
  %v3347 = vrsqrt.pop %v3110
  %v3348 = vmul.f32 %v3347, %v3110
  %v3349 = vmul.f32 %v3348, %v3347
  %v3350 = vmul.f32 0.5, %v3349
  %v3351 = vsub.f32 1.5, %v3350
  %v3352 = vmul.f32 %v3347, %v3351
  %vm3353 = vweird.f32 %v3110
  %vm3354 = vweird.f32 %v3347
  %vm3355 = vmor %vm3353, %vm3354
  %v3356 = vsel %vm3355, %v3347, %v3352
  %v3357 = vrsqrt.pop %v3113
  %v3358 = vmul.f32 %v3357, %v3113
  %v3359 = vmul.f32 %v3358, %v3357
  %v3360 = vmul.f32 0.5, %v3359
  %v3361 = vsub.f32 1.5, %v3360
  %v3362 = vmul.f32 %v3357, %v3361
  %vm3363 = vweird.f32 %v3113
  %vm3364 = vweird.f32 %v3357
  %vm3365 = vmor %vm3363, %vm3364
  %v3366 = vsel %vm3365, %v3357, %v3362
  %v3367 = vrsqrt.pop %v3115
  %v3368 = vmul.f32 %v3367, %v3115
  %v3369 = vmul.f32 %v3368, %v3367
  %v3370 = vmul.f32 0.5, %v3369
  %v3371 = vsub.f32 1.5, %v3370
  %v3372 = vmul.f32 %v3367, %v3371
  %vm3373 = vweird.f32 %v3115
  %vm3374 = vweird.f32 %v3367
  %vm3375 = vmor %vm3373, %vm3374
  %v3376 = vsel %vm3375, %v3367, %v3372
  %v3377 = vrsqrt.pop %v3118
  %v3378 = vmul.f32 %v3377, %v3118
  %v3379 = vmul.f32 %v3378, %v3377
  %v3380 = vmul.f32 0.5, %v3379
  %v3381 = vsub.f32 1.5, %v3380
  %v3382 = vmul.f32 %v3377, %v3381
  %vm3383 = vweird.f32 %v3118
  %vm3384 = vweird.f32 %v3377
  %vm3385 = vmor %vm3383, %vm3384
  %v3386 = vsel %vm3385, %v3377, %v3382
  %v3387 = vrsqrt.pop %v3120
  %v3388 = vmul.f32 %v3387, %v3120
  %v3389 = vmul.f32 %v3388, %v3387
  %v3390 = vmul.f32 0.5, %v3389
  %v3391 = vsub.f32 1.5, %v3390
  %v3392 = vmul.f32 %v3387, %v3391
  %vm3393 = vweird.f32 %v3120
  %vm3394 = vweird.f32 %v3387
  %vm3395 = vmor %vm3393, %vm3394
  %v3396 = vsel %vm3395, %v3387, %v3392
  %v3397 = vrsqrt.pop %v3123
  %v3398 = vmul.f32 %v3397, %v3123
  %v3399 = vmul.f32 %v3398, %v3397
  %v3400 = vmul.f32 0.5, %v3399
  %v3401 = vsub.f32 1.5, %v3400
  %v3402 = vmul.f32 %v3397, %v3401
  %vm3403 = vweird.f32 %v3123
  %vm3404 = vweird.f32 %v3397
  %vm3405 = vmor %vm3403, %vm3404
  %v3406 = vsel %vm3405, %v3397, %v3402
  %v3407 = vrsqrt.pop %v3125
  %v3408 = vmul.f32 %v3407, %v3125
  %v3409 = vmul.f32 %v3408, %v3407
  %v3410 = vmul.f32 0.5, %v3409
  %v3411 = vsub.f32 1.5, %v3410
  %v3412 = vmul.f32 %v3407, %v3411
  %vm3413 = vweird.f32 %v3125
  %vm3414 = vweird.f32 %v3407
  %vm3415 = vmor %vm3413, %vm3414
  %v3416 = vsel %vm3415, %v3407, %v3412
  %v3417 = vrsqrt.pop %v3128
  %v3418 = vmul.f32 %v3417, %v3128
  %v3419 = vmul.f32 %v3418, %v3417
  %v3420 = vmul.f32 0.5, %v3419
  %v3421 = vsub.f32 1.5, %v3420
  %v3422 = vmul.f32 %v3417, %v3421
  %vm3423 = vweird.f32 %v3128
  %vm3424 = vweird.f32 %v3417
  %vm3425 = vmor %vm3423, %vm3424
  %v3426 = vsel %vm3425, %v3417, %v3422
  %v3427 = vrsqrt.pop %v3130
  %v3428 = vmul.f32 %v3427, %v3130
  %v3429 = vmul.f32 %v3428, %v3427
  %v3430 = vmul.f32 0.5, %v3429
  %v3431 = vsub.f32 1.5, %v3430
  %v3432 = vmul.f32 %v3427, %v3431
  %vm3433 = vweird.f32 %v3130
  %vm3434 = vweird.f32 %v3427
  %vm3435 = vmor %vm3433, %vm3434
  %v3436 = vsel %vm3435, %v3427, %v3432
  %v3437 = vrsqrt.pop %v3133
  %v3438 = vmul.f32 %v3437, %v3133
  %v3439 = vmul.f32 %v3438, %v3437
  %v3440 = vmul.f32 0.5, %v3439
  %v3441 = vsub.f32 1.5, %v3440
  %v3442 = vmul.f32 %v3437, %v3441
  %vm3443 = vweird.f32 %v3133
  %vm3444 = vweird.f32 %v3437
  %vm3445 = vmor %vm3443, %vm3444
  %v3446 = vsel %vm3445, %v3437, %v3442
  %v3447 = vrsqrt.pop %v3135
  %v3448 = vmul.f32 %v3447, %v3135
  %v3449 = vmul.f32 %v3448, %v3447
  %v3450 = vmul.f32 0.5, %v3449
  %v3451 = vsub.f32 1.5, %v3450
  %v3452 = vmul.f32 %v3447, %v3451
  %vm3453 = vweird.f32 %v3135
  %vm3454 = vweird.f32 %v3447
  %vm3455 = vmor %vm3453, %vm3454
  %v3456 = vsel %vm3455, %v3447, %v3452
  %v3457 = vmul.f32 %v2917, %v3146
  %v3458 = vmul.f32 %v2918, %v3156
  %v3459 = vmul.f32 %v2919, %v3166
  %v3460 = vmul.f32 %v2920, %v3176
  %v3461 = vmul.f32 %v2921, %v3186
  %v3462 = vmul.f32 %v2922, %v3196
  %v3463 = vmul.f32 %v2923, %v3206
  %v3464 = vmul.f32 %v2924, %v3216
  %v3465 = vmul.f32 %v2925, %v3226
  %v3466 = vmul.f32 %v2926, %v3236
  %v3467 = vmul.f32 %v2927, %v3246
  %v3468 = vmul.f32 %v2928, %v3256
  %v3469 = vmul.f32 %v2929, %v3266
  %v3470 = vmul.f32 %v2930, %v3276
  %v3471 = vmul.f32 %v2931, %v3286
  %v3472 = vmul.f32 %v2932, %v3296
  %v3473 = vmul.f32 %v2933, %v3306
  %v3474 = vmul.f32 %v2934, %v3316
  %v3475 = vmul.f32 %v2935, %v3326
  %v3476 = vmul.f32 %v2936, %v3336
  %v3477 = vmul.f32 %v2937, %v3346
  %v3478 = vmul.f32 %v2938, %v3356
  %v3479 = vmul.f32 %v2939, %v3366
  %v3480 = vmul.f32 %v2940, %v3376
  %v3481 = vmul.f32 %v2941, %v3386
  %v3482 = vmul.f32 %v2942, %v3396
  %v3483 = vmul.f32 %v2943, %v3406
  %v3484 = vmul.f32 %v2944, %v3416
  %v3485 = vmul.f32 %v2945, %v3426
  %v3486 = vmul.f32 %v2946, %v3436
  %v3487 = vmul.f32 %v2947, %v3446
  %v3488 = vmul.f32 %v2948, %v3456
  %3489 = vst [vmem:[%s8] sm:$0xff] %v3457
  %3490 = vst [vmem:[%s8 + $0x8] sm:$0xff] %v3458
  %3491 = vst [vmem:[%s8 + $0x10] sm:$0xff] %v3459
  %3492 = vst [vmem:[%s8 + $0x18] sm:$0xff] %v3460
  %3493 = vst [vmem:[%s8 + $0x20] sm:$0xff] %v3461
  %3494 = vst [vmem:[%s8 + $0x28] sm:$0xff] %v3462
  %3495 = vst [vmem:[%s8 + $0x30] sm:$0xff] %v3463
  %3496 = vst [vmem:[%s8 + $0x38] sm:$0xff] %v3464
  %3497 = vst [vmem:[%s8 + $0x40] sm:$0xff] %v3465
  %3498 = vst [vmem:[%s8 + $0x48] sm:$0xff] %v3466
  %3499 = vst [vmem:[%s8 + $0x50] sm:$0xff] %v3467
  %3500 = vst [vmem:[%s8 + $0x58] sm:$0xff] %v3468
  %3501 = vst [vmem:[%s8 + $0x60] sm:$0xff] %v3469
  %3502 = vst [vmem:[%s8 + $0x68] sm:$0xff] %v3470
  %3503 = vst [vmem:[%s8 + $0x70] sm:$0xff] %v3471
  %3504 = vst [vmem:[%s8 + $0x78] sm:$0xff] %v3472
  %3505 = vst [vmem:[%s8 + $0x80] sm:$0xff] %v3473
  %3506 = vst [vmem:[%s8 + $0x88] sm:$0xff] %v3474
  %3507 = vst [vmem:[%s8 + $0x90] sm:$0xff] %v3475
  %3508 = vst [vmem:[%s8 + $0x98] sm:$0xff] %v3476
  %3509 = vst [vmem:[%s8 + $0xa0] sm:$0xff] %v3477
  %3510 = vst [vmem:[%s8 + $0xa8] sm:$0xff] %v3478
  %3511 = vst [vmem:[%s8 + $0xb0] sm:$0xff] %v3479
  %3512 = vst [vmem:[%s8 + $0xb8] sm:$0xff] %v3480
  %3513 = vst [vmem:[%s8 + $0xc0] sm:$0xff] %v3481
  %3514 = vst [vmem:[%s8 + $0xc8] sm:$0xff] %v3482
  %3515 = vst [vmem:[%s8 + $0xd0] sm:$0xff] %v3483
  %3516 = vst [vmem:[%s8 + $0xd8] sm:$0xff] %v3484
  %3517 = vst [vmem:[%s8 + $0xe0] sm:$0xff] %v3485
  %3518 = vst [vmem:[%s8 + $0xe8] sm:$0xff] %v3486
  %3519 = vst [vmem:[%s8 + $0xf0] sm:$0xff] %v3487
  %3520 = vst [vmem:[%s8 + $0xf8] sm:$0xff] %v3488
  // Predicated region
  $region34: #{encode_net_forward.7} parent=0 // pred_check
    _
  $region35: #{encode_net_forward.7} parent=0 // pred_check_branch
    %3522 = sbr.rel (0) target = $region37
  $region36: #{encode_net_forward.7} parent=0 // pred_region
    _
  $region37: #{encode_net_forward.7} parent=0 // pred_fallthru
    _
  // Predicated region
  $region38: #{encode_net_forward.7} parent=0 // pred_check
    _
  $region39: #{encode_net_forward.7} parent=0 // pred_check_branch
    %3524 = sbr.rel (0) target = $region41
  $region40: #{encode_net_forward.7} parent=0 // pred_region
    _
  $region41: #{encode_net_forward.7} parent=0 // pred_fallthru
    _

// kernel: encode_net_forward.10
$region0: #{encode_net_forward.10}
  #allocation0 [shape = 'u32[]', space=smem, size = 0x4, offset = 0x4, fixed_abs, tag = 'smem constant byte address 0x4 - core index']
  #allocation1 [shape = 'u32[72,128]{1,0:T(1,128)}', space=vmem, size = 0x9000, scoped, tag = 'internal scratch']
  %s0 = inlined_call_operand.vmem [shape: f32[8,256], index: 0, kind: input, shape index: {}]
  %s1 = inlined_call_operand.vmem [shape: bf16[256,128], index: 1, kind: input, shape index: {}]
  %s2 = inlined_call_operand.vmem [shape: bf16[256,128], index: 2, kind: input, shape index: {}]
  %s3 = inlined_call_operand.vmem [shape: f32[1,128], index: 3, kind: input, shape index: {}]
  %s4 = inlined_call_operand.vmem [shape: bf16[128,128], index: 4, kind: input, shape index: {}]
  %s5 = inlined_call_operand.vmem [shape: f32[1,128], index: 5, kind: input, shape index: {}]
  %s6 = inlined_call_operand.vmem [shape: f32[4,128], index: 6, kind: output, shape index: {}]
  %s7 = sld [smem:[#allocation0]]
  $region34: #{encode_net_forward.10} parent=0
    _
  %s9 = ssub.s32 1, %s7
  %s10 = scalar_select 0, %s9, %s7
  // Predicated region
  $region2: #{encode_net_forward.10} parent=0 // pred_check
    _
  $region3: #{encode_net_forward.10} parent=0 // pred_check_branch
    %12 = sbr.rel (0) target = $region5
  $region4: #{encode_net_forward.10} parent=0 // pred_region
    _
  $region5: #{encode_net_forward.10} parent=0 // pred_fallthru
    _
  // Predicated region
  $region6: #{encode_net_forward.10} parent=0 // pred_check
    _
  $region7: #{encode_net_forward.10} parent=0 // pred_check_branch
    %14 = sbr.rel (0) target = $region9
  $region8: #{encode_net_forward.10} parent=0 // pred_region
    _
  $region9: #{encode_net_forward.10} parent=0 // pred_fallthru
    _
  // Predicated region
  $region10: #{encode_net_forward.10} parent=0 // pred_check
    _
  $region11: #{encode_net_forward.10} parent=0 // pred_check_branch
    %16 = sbr.rel (0) target = $region13
  $region12: #{encode_net_forward.10} parent=0 // pred_region
    _
  $region13: #{encode_net_forward.10} parent=0 // pred_fallthru
    _
  // Predicated region
  $region14: #{encode_net_forward.10} parent=0 // pred_check
    _
  $region15: #{encode_net_forward.10} parent=0 // pred_check_branch
    %18 = sbr.rel (0) target = $region17
  $region16: #{encode_net_forward.10} parent=0 // pred_region
    _
  $region17: #{encode_net_forward.10} parent=0 // pred_fallthru
    _
  // Predicated region
  $region18: #{encode_net_forward.10} parent=0 // pred_check
    _
  $region19: #{encode_net_forward.10} parent=0 // pred_check_branch
    %20 = sbr.rel (0) target = $region21
  $region20: #{encode_net_forward.10} parent=0 // pred_region
    _
  $region21: #{encode_net_forward.10} parent=0 // pred_fallthru
    _
  // Predicated region
  $region22: #{encode_net_forward.10} parent=0 // pred_check
    _
  $region23: #{encode_net_forward.10} parent=0 // pred_check_branch
    %22 = sbr.rel (0) target = $region25
  $region24: #{encode_net_forward.10} parent=0 // pred_region
    _
  $region25: #{encode_net_forward.10} parent=0 // pred_fallthru
    _
  %v23 = vld [vmem:[%s1] sm:$0xf]
  %v24 = vld [vmem:[%s1 + $0x4] sm:$0xf]
  %v25 = vld [vmem:[%s1 + $0x8] sm:$0xf]
  %v26 = vld [vmem:[%s1 + $0xc] sm:$0xf]
  %v27 = vld [vmem:[%s1 + $0x10] sm:$0xf]
  %v28 = vld [vmem:[%s1 + $0x14] sm:$0xf]
  %v29 = vld [vmem:[%s1 + $0x18] sm:$0xf]
  %v30 = vld [vmem:[%s1 + $0x1c] sm:$0xf]
  %v31 = vld [vmem:[%s1 + $0x20] sm:$0xf]
  %v32 = vld [vmem:[%s1 + $0x24] sm:$0xf]
  %v33 = vld [vmem:[%s1 + $0x28] sm:$0xf]
  %v34 = vld [vmem:[%s1 + $0x2c] sm:$0xf]
  %v35 = vld [vmem:[%s1 + $0x30] sm:$0xf]
  %v36 = vld [vmem:[%s1 + $0x34] sm:$0xf]
  %v37 = vld [vmem:[%s1 + $0x38] sm:$0xf]
  %v38 = vld [vmem:[%s1 + $0x3c] sm:$0xf]
  %v39 = vld [vmem:[%s1 + $0x40] sm:$0xf]
  %v40 = vld [vmem:[%s1 + $0x44] sm:$0xf]
  %v41 = vld [vmem:[%s1 + $0x48] sm:$0xf]
  %v42 = vld [vmem:[%s1 + $0x4c] sm:$0xf]
  %v43 = vld [vmem:[%s1 + $0x50] sm:$0xf]
  %v44 = vld [vmem:[%s1 + $0x54] sm:$0xf]
  %v45 = vld [vmem:[%s1 + $0x58] sm:$0xf]
  %v46 = vld [vmem:[%s1 + $0x5c] sm:$0xf]
  %v47 = vld [vmem:[%s1 + $0x60] sm:$0xf]
  %v48 = vld [vmem:[%s1 + $0x64] sm:$0xf]
  %v49 = vld [vmem:[%s1 + $0x68] sm:$0xf]
  %v50 = vld [vmem:[%s1 + $0x6c] sm:$0xf]
  %v51 = vld [vmem:[%s1 + $0x70] sm:$0xf]
  %v52 = vld [vmem:[%s1 + $0x74] sm:$0xf]
  %v53 = vld [vmem:[%s1 + $0x78] sm:$0xf]
  %v54 = vld [vmem:[%s1 + $0x7c] sm:$0xf]
  %v55 = vld [vmem:[%s2] sm:$0xf]
  %v56 = vld [vmem:[%s2 + $0x4] sm:$0xf]
  %v57 = vld [vmem:[%s2 + $0x8] sm:$0xf]
  %v58 = vld [vmem:[%s2 + $0xc] sm:$0xf]
  %v59 = vld [vmem:[%s2 + $0x10] sm:$0xf]
  %v60 = vld [vmem:[%s2 + $0x14] sm:$0xf]
  %v61 = vld [vmem:[%s2 + $0x18] sm:$0xf]
  %v62 = vld [vmem:[%s2 + $0x1c] sm:$0xf]
  %v63 = vld [vmem:[%s2 + $0x20] sm:$0xf]
  %v64 = vld [vmem:[%s2 + $0x24] sm:$0xf]
  %v65 = vld [vmem:[%s2 + $0x28] sm:$0xf]
  %v66 = vld [vmem:[%s2 + $0x2c] sm:$0xf]
  %v67 = vld [vmem:[%s2 + $0x30] sm:$0xf]
  %v68 = vld [vmem:[%s2 + $0x34] sm:$0xf]
  %v69 = vld [vmem:[%s2 + $0x38] sm:$0xf]
  %v70 = vld [vmem:[%s2 + $0x3c] sm:$0xf]
  %v71 = vld [vmem:[%s2 + $0x40] sm:$0xf]
  %v72 = vld [vmem:[%s2 + $0x44] sm:$0xf]
  %v73 = vld [vmem:[%s2 + $0x48] sm:$0xf]
  %v74 = vld [vmem:[%s2 + $0x4c] sm:$0xf]
  %v75 = vld [vmem:[%s2 + $0x50] sm:$0xf]
  %v76 = vld [vmem:[%s2 + $0x54] sm:$0xf]
  %v77 = vld [vmem:[%s2 + $0x58] sm:$0xf]
  %v78 = vld [vmem:[%s2 + $0x5c] sm:$0xf]
  %v79 = vld [vmem:[%s2 + $0x60] sm:$0xf]
  %v80 = vld [vmem:[%s2 + $0x64] sm:$0xf]
  %v81 = vld [vmem:[%s2 + $0x68] sm:$0xf]
  %v82 = vld [vmem:[%s2 + $0x6c] sm:$0xf]
  %v83 = vld [vmem:[%s2 + $0x70] sm:$0xf]
  %v84 = vld [vmem:[%s2 + $0x74] sm:$0xf]
  %v85 = vld [vmem:[%s2 + $0x78] sm:$0xf]
  %v86 = vld [vmem:[%s2 + $0x7c] sm:$0xf]
  %v87 = vld [vmem:[%s3] sm:$0x1]
  %v88 = vld [vmem:[%s4] sm:$0xf]
  %v89 = vld [vmem:[%s4 + $0x4] sm:$0xf]
  %v90 = vld [vmem:[%s4 + $0x8] sm:$0xf]
  %v91 = vld [vmem:[%s4 + $0xc] sm:$0xf]
  %v92 = vld [vmem:[%s4 + $0x10] sm:$0xf]
  %v93 = vld [vmem:[%s4 + $0x14] sm:$0xf]
  %v94 = vld [vmem:[%s4 + $0x18] sm:$0xf]
  %v95 = vld [vmem:[%s4 + $0x1c] sm:$0xf]
  %v96 = vld [vmem:[%s4 + $0x20] sm:$0xf]
  %v97 = vld [vmem:[%s4 + $0x24] sm:$0xf]
  %v98 = vld [vmem:[%s4 + $0x28] sm:$0xf]
  %v99 = vld [vmem:[%s4 + $0x2c] sm:$0xf]
  %v100 = vld [vmem:[%s4 + $0x30] sm:$0xf]
  %v101 = vld [vmem:[%s4 + $0x34] sm:$0xf]
  %v102 = vld [vmem:[%s4 + $0x38] sm:$0xf]
  %v103 = vld [vmem:[%s4 + $0x3c] sm:$0xf]
  %v104 = vld [vmem:[%s5] sm:$0x1]
  %v105 = vld [vmem:[%s0] ss:$8 sm:$0x3]
  %v107 = vperm.slane %v105, 0
  %v108 = vperm.slane %v105, 1
  %v111 = vpack.c.bf16 %v107, %v107
  %v112 = vpack.c.bf16 %v108, %v108
  %s113 = scalar_lea.vmem %s0, 1
  %v114 = vld [vmem:[%s113] ss:$8 sm:$0x3]
  %v116 = vperm.slane %v114, 0
  %v117 = vperm.slane %v114, 1
  %v120 = vpack.c.bf16 %v116, %v116
  %v121 = vpack.c.bf16 %v117, %v117
  %v154 = vunpack.c.l.b16 %v55
  %v155 = vunpack.c.l.b16 %v56
  %v156 = vunpack.c.l.b16 %v57
  %v157 = vunpack.c.l.b16 %v58
  %v158 = vunpack.c.l.b16 %v59
  %v159 = vunpack.c.l.b16 %v60
  %v160 = vunpack.c.l.b16 %v61
  %v161 = vunpack.c.l.b16 %v62
  %v162 = vunpack.c.l.b16 %v63
  %v163 = vunpack.c.l.b16 %v64
  %v164 = vunpack.c.l.b16 %v65
  %v165 = vunpack.c.l.b16 %v66
  %v166 = vunpack.c.l.b16 %v67
  %v167 = vunpack.c.l.b16 %v68
  %v168 = vunpack.c.l.b16 %v69
  %v169 = vunpack.c.l.b16 %v70
  %v170 = vunpack.c.l.b16 %v71
  %v171 = vunpack.c.l.b16 %v72
  %v172 = vunpack.c.l.b16 %v73
  %v173 = vunpack.c.l.b16 %v74
  %v174 = vunpack.c.l.b16 %v75
  %v175 = vunpack.c.l.b16 %v76
  %v176 = vunpack.c.l.b16 %v77
  %v177 = vunpack.c.l.b16 %v78
  %v178 = vunpack.c.l.b16 %v79
  %v179 = vunpack.c.l.b16 %v80
  %v180 = vunpack.c.l.b16 %v81
  %v181 = vunpack.c.l.b16 %v82
  %v182 = vunpack.c.l.b16 %v83
  %v183 = vunpack.c.l.b16 %v84
  %v184 = vunpack.c.l.b16 %v85
  %v185 = vunpack.c.l.b16 %v86
  %v186 = vpack.c.b16 %v155, %v154
  %v187 = vpack.c.b16 %v157, %v156
  %v188 = vpack.c.b16 %v159, %v158
  %v189 = vpack.c.b16 %v161, %v160
  %v190 = vpack.c.b16 %v163, %v162
  %v191 = vpack.c.b16 %v165, %v164
  %v192 = vpack.c.b16 %v167, %v166
  %v193 = vpack.c.b16 %v169, %v168
  %v194 = vpack.c.b16 %v171, %v170
  %v195 = vpack.c.b16 %v173, %v172
  %v196 = vpack.c.b16 %v175, %v174
  %v197 = vpack.c.b16 %v177, %v176
  %v198 = vpack.c.b16 %v179, %v178
  %v199 = vpack.c.b16 %v181, %v180
  %v200 = vpack.c.b16 %v183, %v182
  %v201 = vpack.c.b16 %v185, %v184
  %218 = vmatpush.bf16.msra.mxu0 %v193
  %219 = vmatpush.bf16.msra.mxu0 %v192
  %220 = vmatpush.bf16.msra.mxu0 %v191
  %221 = vmatpush.bf16.msra.mxu0 %v190
  %222 = vmatpush.bf16.msra.mxu0 %v189
  %223 = vmatpush.bf16.msra.mxu0 %v188
  %224 = vmatpush.bf16.msra.mxu0 %v187
  %225 = vmatpush.bf16.msra.mxu0 %v186
  %226 = vmatmul.bf16.gmra.mxu0 %v120
  %v227 = vpop.f32.mrf.mxu0
  %v228 = vadd.f32 0.0, %v227
  %v229 = vpop.f32.mrf.mxu0
  %230 = vdwg.mxu0
  %231 = vmatpush.bf16.msra.mxu0 %v201
  %232 = vmatpush.bf16.msra.mxu0 %v200
  %233 = vmatpush.bf16.msra.mxu0 %v199
  %234 = vmatpush.bf16.msra.mxu0 %v198
  %235 = vmatpush.bf16.msra.mxu0 %v197
  %236 = vmatpush.bf16.msra.mxu0 %v196
  %237 = vmatpush.bf16.msra.mxu0 %v195
  %238 = vmatpush.bf16.msra.mxu0 %v194
  %239 = vmatmul.bf16.gmra.mxu0 %v121
  %v240 = vpop.f32.mrf.mxu0
  %v241 = vadd.f32 %v228, %v240
  %v242 = vpop.f32.mrf.mxu0
  %243 = vdwg.mxu0
  %v276 = vunpack.c.l.b16 %v23
  %v277 = vunpack.c.l.b16 %v24
  %v278 = vunpack.c.l.b16 %v25
  %v279 = vunpack.c.l.b16 %v26
  %v280 = vunpack.c.l.b16 %v27
  %v281 = vunpack.c.l.b16 %v28
  %v282 = vunpack.c.l.b16 %v29
  %v283 = vunpack.c.l.b16 %v30
  %v284 = vunpack.c.l.b16 %v31
  %v285 = vunpack.c.l.b16 %v32
  %v286 = vunpack.c.l.b16 %v33
  %v287 = vunpack.c.l.b16 %v34
  %v288 = vunpack.c.l.b16 %v35
  %v289 = vunpack.c.l.b16 %v36
  %v290 = vunpack.c.l.b16 %v37
  %v291 = vunpack.c.l.b16 %v38
  %v292 = vunpack.c.l.b16 %v39
  %v293 = vunpack.c.l.b16 %v40
  %v294 = vunpack.c.l.b16 %v41
  %v295 = vunpack.c.l.b16 %v42
  %v296 = vunpack.c.l.b16 %v43
  %v297 = vunpack.c.l.b16 %v44
  %v298 = vunpack.c.l.b16 %v45
  %v299 = vunpack.c.l.b16 %v46
  %v300 = vunpack.c.l.b16 %v47
  %v301 = vunpack.c.l.b16 %v48
  %v302 = vunpack.c.l.b16 %v49
  %v303 = vunpack.c.l.b16 %v50
  %v304 = vunpack.c.l.b16 %v51
  %v305 = vunpack.c.l.b16 %v52
  %v306 = vunpack.c.l.b16 %v53
  %v307 = vunpack.c.l.b16 %v54
  %v308 = vpack.c.b16 %v277, %v276
  %v309 = vpack.c.b16 %v279, %v278
  %v310 = vpack.c.b16 %v281, %v280
  %v311 = vpack.c.b16 %v283, %v282
  %v312 = vpack.c.b16 %v285, %v284
  %v313 = vpack.c.b16 %v287, %v286
  %v314 = vpack.c.b16 %v289, %v288
  %v315 = vpack.c.b16 %v291, %v290
  %v316 = vpack.c.b16 %v293, %v292
  %v317 = vpack.c.b16 %v295, %v294
  %v318 = vpack.c.b16 %v297, %v296
  %v319 = vpack.c.b16 %v299, %v298
  %v320 = vpack.c.b16 %v301, %v300
  %v321 = vpack.c.b16 %v303, %v302
  %v322 = vpack.c.b16 %v305, %v304
  %v323 = vpack.c.b16 %v307, %v306
  %340 = vmatpush.bf16.msra.mxu0 %v315
  %341 = vmatpush.bf16.msra.mxu0 %v314
  %342 = vmatpush.bf16.msra.mxu0 %v313
  %343 = vmatpush.bf16.msra.mxu0 %v312
  %344 = vmatpush.bf16.msra.mxu0 %v311
  %345 = vmatpush.bf16.msra.mxu0 %v310
  %346 = vmatpush.bf16.msra.mxu0 %v309
  %347 = vmatpush.bf16.msra.mxu0 %v308
  %348 = vmatmul.bf16.gmra.mxu0 %v111
  %v349 = vpop.f32.mrf.mxu0
  %v350 = vadd.f32 %v241, %v349
  %v351 = vpop.f32.mrf.mxu0
  %352 = vdwg.mxu0
  %353 = vmatpush.bf16.msra.mxu0 %v323
  %354 = vmatpush.bf16.msra.mxu0 %v322
  %355 = vmatpush.bf16.msra.mxu0 %v321
  %356 = vmatpush.bf16.msra.mxu0 %v320
  %357 = vmatpush.bf16.msra.mxu0 %v319
  %358 = vmatpush.bf16.msra.mxu0 %v318
  %359 = vmatpush.bf16.msra.mxu0 %v317
  %360 = vmatpush.bf16.msra.mxu0 %v316
  %361 = vmatmul.bf16.gmra.mxu0 %v112
  %v362 = vpop.f32.mrf.mxu0
  %v363 = vadd.f32 %v350, %v362
  %v364 = vpop.f32.mrf.mxu0
  %365 = vdwg.mxu0
  %v366 = vadd.f32 %v363, %v87
  %vm367 = vcmp.ge.f32.partialorder %v366, 0.0
  %v368 = vmul.f32 %v366, 0.01
  %v369 = vsel %vm367, %v366, %v368
  %v370 = vmul.f32 %v369, %v369
  %v371 = vpack.c.bf16 %v370, %v370
  %v388 = vunpack.c.l.b16 %v88
  %v389 = vunpack.c.l.b16 %v89
  %v390 = vunpack.c.l.b16 %v90
  %v391 = vunpack.c.l.b16 %v91
  %v392 = vunpack.c.l.b16 %v92
  %v393 = vunpack.c.l.b16 %v93
  %v394 = vunpack.c.l.b16 %v94
  %v395 = vunpack.c.l.b16 %v95
  %v396 = vunpack.c.l.b16 %v96
  %v397 = vunpack.c.l.b16 %v97
  %v398 = vunpack.c.l.b16 %v98
  %v399 = vunpack.c.l.b16 %v99
  %v400 = vunpack.c.l.b16 %v100
  %v401 = vunpack.c.l.b16 %v101
  %v402 = vunpack.c.l.b16 %v102
  %v403 = vunpack.c.l.b16 %v103
  %v404 = vpack.c.b16 %v389, %v388
  %v405 = vpack.c.b16 %v391, %v390
  %v406 = vpack.c.b16 %v393, %v392
  %v407 = vpack.c.b16 %v395, %v394
  %v408 = vpack.c.b16 %v397, %v396
  %v409 = vpack.c.b16 %v399, %v398
  %v410 = vpack.c.b16 %v401, %v400
  %v411 = vpack.c.b16 %v403, %v402
  %420 = vmatpush.bf16.msra.mxu0 %v411
  %421 = vmatpush.bf16.msra.mxu0 %v410
  %422 = vmatpush.bf16.msra.mxu0 %v409
  %423 = vmatpush.bf16.msra.mxu0 %v408
  %424 = vmatpush.bf16.msra.mxu0 %v407
  %425 = vmatpush.bf16.msra.mxu0 %v406
  %426 = vmatpush.bf16.msra.mxu0 %v405
  %427 = vmatpush.bf16.msra.mxu0 %v404
  %428 = vmatmul.bf16.gmra.mxu0 %v371
  %v429 = vpop.f32.mrf.mxu0
  %v430 = vadd.f32 %v104, %v429
  %v431 = vpop.f32.mrf.mxu0
  %432 = vdwg.mxu0
  %v433 = vrsqrt.pop %v430
  %v434 = vmul.f32 %v433, %v430
  %v435 = vmul.f32 %v434, %v433
  %v436 = vmul.f32 0.5, %v435
  %v437 = vsub.f32 1.5, %v436
  %v438 = vmul.f32 %v433, %v437
  %vm439 = vweird.f32 %v430
  %vm440 = vweird.f32 %v433
  %vm441 = vmor %vm439, %vm440
  %v442 = vsel %vm441, %v433, %v438
  %v443 = vmul.f32 %v369, %v442
  %444 = vst [vmem:[%s6] sm:$0x1] %v443
  %s445 = scalar_lea.vmem %s0, 2
  %v446 = vld [vmem:[%s445] ss:$8 sm:$0x3]
  %v448 = vperm.slane %v446, 0
  %v449 = vperm.slane %v446, 1
  %v452 = vpack.c.bf16 %v448, %v448
  %v453 = vpack.c.bf16 %v449, %v449
  %s454 = scalar_lea.vmem %s0, 3
  %v455 = vld [vmem:[%s454] ss:$8 sm:$0x3]
  %v457 = vperm.slane %v455, 0
  %v458 = vperm.slane %v455, 1
  %v461 = vpack.c.bf16 %v457, %v457
  %v462 = vpack.c.bf16 %v458, %v458
  %463 = vmatpush.bf16.msra.mxu0 %v193
  %464 = vmatpush.bf16.msra.mxu0 %v192
  %465 = vmatpush.bf16.msra.mxu0 %v191
  %466 = vmatpush.bf16.msra.mxu0 %v190
  %467 = vmatpush.bf16.msra.mxu0 %v189
  %468 = vmatpush.bf16.msra.mxu0 %v188
  %469 = vmatpush.bf16.msra.mxu0 %v187
  %470 = vmatpush.bf16.msra.mxu0 %v186
  %471 = vmatmul.bf16.gmra.mxu0 %v461
  %v472 = vpop.f32.mrf.mxu0
  %v473 = vadd.f32 0.0, %v472
  %v474 = vpop.f32.mrf.mxu0
  %475 = vdwg.mxu0
  %476 = vmatpush.bf16.msra.mxu0 %v201
  %477 = vmatpush.bf16.msra.mxu0 %v200
  %478 = vmatpush.bf16.msra.mxu0 %v199
  %479 = vmatpush.bf16.msra.mxu0 %v198
  %480 = vmatpush.bf16.msra.mxu0 %v197
  %481 = vmatpush.bf16.msra.mxu0 %v196
  %482 = vmatpush.bf16.msra.mxu0 %v195
  %483 = vmatpush.bf16.msra.mxu0 %v194
  %484 = vmatmul.bf16.gmra.mxu0 %v462
  %v485 = vpop.f32.mrf.mxu0
  %v486 = vadd.f32 %v473, %v485
  %v487 = vpop.f32.mrf.mxu0
  %488 = vdwg.mxu0
  %489 = vmatpush.bf16.msra.mxu0 %v315
  %490 = vmatpush.bf16.msra.mxu0 %v314
  %491 = vmatpush.bf16.msra.mxu0 %v313
  %492 = vmatpush.bf16.msra.mxu0 %v312
  %493 = vmatpush.bf16.msra.mxu0 %v311
  %494 = vmatpush.bf16.msra.mxu0 %v310
  %495 = vmatpush.bf16.msra.mxu0 %v309
  %496 = vmatpush.bf16.msra.mxu0 %v308
  %497 = vmatmul.bf16.gmra.mxu0 %v452
  %v498 = vpop.f32.mrf.mxu0
  %v499 = vadd.f32 %v486, %v498
  %v500 = vpop.f32.mrf.mxu0
  %501 = vdwg.mxu0
  %502 = vmatpush.bf16.msra.mxu0 %v323
  %503 = vmatpush.bf16.msra.mxu0 %v322
  %504 = vmatpush.bf16.msra.mxu0 %v321
  %505 = vmatpush.bf16.msra.mxu0 %v320
  %506 = vmatpush.bf16.msra.mxu0 %v319
  %507 = vmatpush.bf16.msra.mxu0 %v318
  %508 = vmatpush.bf16.msra.mxu0 %v317
  %509 = vmatpush.bf16.msra.mxu0 %v316
  %510 = vmatmul.bf16.gmra.mxu0 %v453
  %v511 = vpop.f32.mrf.mxu0
  %v512 = vadd.f32 %v499, %v511
  %v513 = vpop.f32.mrf.mxu0
  %514 = vdwg.mxu0
  %v515 = vadd.f32 %v512, %v87
  %vm516 = vcmp.ge.f32.partialorder %v515, 0.0
  %v517 = vmul.f32 %v515, 0.01
  %v518 = vsel %vm516, %v515, %v517
  %v519 = vmul.f32 %v518, %v518
  %v520 = vpack.c.bf16 %v519, %v519
  %521 = vmatpush.bf16.msra.mxu0 %v411
  %522 = vmatpush.bf16.msra.mxu0 %v410
  %523 = vmatpush.bf16.msra.mxu0 %v409
  %524 = vmatpush.bf16.msra.mxu0 %v408
  %525 = vmatpush.bf16.msra.mxu0 %v407
  %526 = vmatpush.bf16.msra.mxu0 %v406
  %527 = vmatpush.bf16.msra.mxu0 %v405
  %528 = vmatpush.bf16.msra.mxu0 %v404
  %529 = vmatmul.bf16.gmra.mxu0 %v520
  %v530 = vpop.f32.mrf.mxu0
  %v531 = vadd.f32 %v104, %v530
  %v532 = vpop.f32.mrf.mxu0
  %533 = vdwg.mxu0
  %v534 = vrsqrt.pop %v531
  %v535 = vmul.f32 %v534, %v531
  %v536 = vmul.f32 %v535, %v534
  %v537 = vmul.f32 0.5, %v536
  %v538 = vsub.f32 1.5, %v537
  %v539 = vmul.f32 %v534, %v538
  %vm540 = vweird.f32 %v531
  %vm541 = vweird.f32 %v534
  %vm542 = vmor %vm540, %vm541
  %v543 = vsel %vm542, %v534, %v539
  %v544 = vmul.f32 %v518, %v543
  %545 = vst [vmem:[%s6 + $0x1] sm:$0x1] %v544
  %s546 = scalar_lea.vmem %s0, 4
  %v547 = vld [vmem:[%s546] ss:$8 sm:$0x3]
  %v549 = vperm.slane %v547, 0
  %v550 = vperm.slane %v547, 1
  %v553 = vpack.c.bf16 %v549, %v549
  %v554 = vpack.c.bf16 %v550, %v550
  %s555 = scalar_lea.vmem %s0, 5
  %v556 = vld [vmem:[%s555] ss:$8 sm:$0x3]
  %v558 = vperm.slane %v556, 0
  %v559 = vperm.slane %v556, 1
  %v562 = vpack.c.bf16 %v558, %v558
  %v563 = vpack.c.bf16 %v559, %v559
  %564 = vmatpush.bf16.msra.mxu0 %v193
  %565 = vmatpush.bf16.msra.mxu0 %v192
  %566 = vmatpush.bf16.msra.mxu0 %v191
  %567 = vmatpush.bf16.msra.mxu0 %v190
  %568 = vmatpush.bf16.msra.mxu0 %v189
  %569 = vmatpush.bf16.msra.mxu0 %v188
  %570 = vmatpush.bf16.msra.mxu0 %v187
  %571 = vmatpush.bf16.msra.mxu0 %v186
  %572 = vmatmul.bf16.gmra.mxu0 %v562
  %v573 = vpop.f32.mrf.mxu0
  %v574 = vadd.f32 0.0, %v573
  %v575 = vpop.f32.mrf.mxu0
  %576 = vdwg.mxu0
  %577 = vmatpush.bf16.msra.mxu0 %v201
  %578 = vmatpush.bf16.msra.mxu0 %v200
  %579 = vmatpush.bf16.msra.mxu0 %v199
  %580 = vmatpush.bf16.msra.mxu0 %v198
  %581 = vmatpush.bf16.msra.mxu0 %v197
  %582 = vmatpush.bf16.msra.mxu0 %v196
  %583 = vmatpush.bf16.msra.mxu0 %v195
  %584 = vmatpush.bf16.msra.mxu0 %v194
  %585 = vmatmul.bf16.gmra.mxu0 %v563
  %v586 = vpop.f32.mrf.mxu0
  %v587 = vadd.f32 %v574, %v586
  %v588 = vpop.f32.mrf.mxu0
  %589 = vdwg.mxu0
  %590 = vmatpush.bf16.msra.mxu0 %v315
  %591 = vmatpush.bf16.msra.mxu0 %v314
  %592 = vmatpush.bf16.msra.mxu0 %v313
  %593 = vmatpush.bf16.msra.mxu0 %v312
  %594 = vmatpush.bf16.msra.mxu0 %v311
  %595 = vmatpush.bf16.msra.mxu0 %v310
  %596 = vmatpush.bf16.msra.mxu0 %v309
  %597 = vmatpush.bf16.msra.mxu0 %v308
  %598 = vmatmul.bf16.gmra.mxu0 %v553
  %v599 = vpop.f32.mrf.mxu0
  %v600 = vadd.f32 %v587, %v599
  %v601 = vpop.f32.mrf.mxu0
  %602 = vdwg.mxu0
  %603 = vmatpush.bf16.msra.mxu0 %v323
  %604 = vmatpush.bf16.msra.mxu0 %v322
  %605 = vmatpush.bf16.msra.mxu0 %v321
  %606 = vmatpush.bf16.msra.mxu0 %v320
  %607 = vmatpush.bf16.msra.mxu0 %v319
  %608 = vmatpush.bf16.msra.mxu0 %v318
  %609 = vmatpush.bf16.msra.mxu0 %v317
  %610 = vmatpush.bf16.msra.mxu0 %v316
  %611 = vmatmul.bf16.gmra.mxu0 %v554
  %v612 = vpop.f32.mrf.mxu0
  %v613 = vadd.f32 %v600, %v612
  %v614 = vpop.f32.mrf.mxu0
  %615 = vdwg.mxu0
  %v616 = vadd.f32 %v613, %v87
  %vm617 = vcmp.ge.f32.partialorder %v616, 0.0
  %v618 = vmul.f32 %v616, 0.01
  %v619 = vsel %vm617, %v616, %v618
  %v620 = vmul.f32 %v619, %v619
  %v621 = vpack.c.bf16 %v620, %v620
  %622 = vmatpush.bf16.msra.mxu0 %v411
  %623 = vmatpush.bf16.msra.mxu0 %v410
  %624 = vmatpush.bf16.msra.mxu0 %v409
  %625 = vmatpush.bf16.msra.mxu0 %v408
  %626 = vmatpush.bf16.msra.mxu0 %v407
  %627 = vmatpush.bf16.msra.mxu0 %v406
  %628 = vmatpush.bf16.msra.mxu0 %v405
  %629 = vmatpush.bf16.msra.mxu0 %v404
  %630 = vmatmul.bf16.gmra.mxu0 %v621
  %v631 = vpop.f32.mrf.mxu0
  %v632 = vadd.f32 %v104, %v631
  %v633 = vpop.f32.mrf.mxu0
  %634 = vdwg.mxu0
  %v635 = vrsqrt.pop %v632
  %v636 = vmul.f32 %v635, %v632
  %v637 = vmul.f32 %v636, %v635
  %v638 = vmul.f32 0.5, %v637
  %v639 = vsub.f32 1.5, %v638
  %v640 = vmul.f32 %v635, %v639
  %vm641 = vweird.f32 %v632
  %vm642 = vweird.f32 %v635
  %vm643 = vmor %vm641, %vm642
  %v644 = vsel %vm643, %v635, %v640
  %v645 = vmul.f32 %v619, %v644
  %646 = vst [vmem:[%s6 + $0x2] sm:$0x1] %v645
  %s647 = scalar_lea.vmem %s0, 6
  %v648 = vld [vmem:[%s647] ss:$8 sm:$0x3]
  %v650 = vperm.slane %v648, 0
  %v651 = vperm.slane %v648, 1
  %v654 = vpack.c.bf16 %v650, %v650
  %v655 = vpack.c.bf16 %v651, %v651
  %s656 = scalar_lea.vmem %s0, 7
  %v657 = vld [vmem:[%s656] ss:$8 sm:$0x3]
  %v659 = vperm.slane %v657, 0
  %v660 = vperm.slane %v657, 1
  %v663 = vpack.c.bf16 %v659, %v659
  %v664 = vpack.c.bf16 %v660, %v660
  %665 = vmatpush.bf16.msra.mxu0 %v193
  %666 = vmatpush.bf16.msra.mxu0 %v192
  %667 = vmatpush.bf16.msra.mxu0 %v191
  %668 = vmatpush.bf16.msra.mxu0 %v190
  %669 = vmatpush.bf16.msra.mxu0 %v189
  %670 = vmatpush.bf16.msra.mxu0 %v188
  %671 = vmatpush.bf16.msra.mxu0 %v187
  %672 = vmatpush.bf16.msra.mxu0 %v186
  %673 = vmatmul.bf16.gmra.mxu0 %v663
  %v674 = vpop.f32.mrf.mxu0
  %v675 = vadd.f32 0.0, %v674
  %v676 = vpop.f32.mrf.mxu0
  %677 = vdwg.mxu0
  %678 = vmatpush.bf16.msra.mxu0 %v201
  %679 = vmatpush.bf16.msra.mxu0 %v200
  %680 = vmatpush.bf16.msra.mxu0 %v199
  %681 = vmatpush.bf16.msra.mxu0 %v198
  %682 = vmatpush.bf16.msra.mxu0 %v197
  %683 = vmatpush.bf16.msra.mxu0 %v196
  %684 = vmatpush.bf16.msra.mxu0 %v195
  %685 = vmatpush.bf16.msra.mxu0 %v194
  %686 = vmatmul.bf16.gmra.mxu0 %v664
  %v687 = vpop.f32.mrf.mxu0
  %v688 = vadd.f32 %v675, %v687
  %v689 = vpop.f32.mrf.mxu0
  %690 = vdwg.mxu0
  %691 = vmatpush.bf16.msra.mxu0 %v315
  %692 = vmatpush.bf16.msra.mxu0 %v314
  %693 = vmatpush.bf16.msra.mxu0 %v313
  %694 = vmatpush.bf16.msra.mxu0 %v312
  %695 = vmatpush.bf16.msra.mxu0 %v311
  %696 = vmatpush.bf16.msra.mxu0 %v310
  %697 = vmatpush.bf16.msra.mxu0 %v309
  %698 = vmatpush.bf16.msra.mxu0 %v308
  %699 = vmatmul.bf16.gmra.mxu0 %v654
  %v700 = vpop.f32.mrf.mxu0
  %v701 = vadd.f32 %v688, %v700
  %v702 = vpop.f32.mrf.mxu0
  %703 = vdwg.mxu0
  %704 = vmatpush.bf16.msra.mxu0 %v323
  %705 = vmatpush.bf16.msra.mxu0 %v322
  %706 = vmatpush.bf16.msra.mxu0 %v321
  %707 = vmatpush.bf16.msra.mxu0 %v320
  %708 = vmatpush.bf16.msra.mxu0 %v319
  %709 = vmatpush.bf16.msra.mxu0 %v318
  %710 = vmatpush.bf16.msra.mxu0 %v317
  %711 = vmatpush.bf16.msra.mxu0 %v316
  %712 = vmatmul.bf16.gmra.mxu0 %v655
  %v713 = vpop.f32.mrf.mxu0
  %v714 = vadd.f32 %v701, %v713
  %v715 = vpop.f32.mrf.mxu0
  %716 = vdwg.mxu0
  %v717 = vadd.f32 %v714, %v87
  %vm718 = vcmp.ge.f32.partialorder %v717, 0.0
  %v719 = vmul.f32 %v717, 0.01
  %v720 = vsel %vm718, %v717, %v719
  %v721 = vmul.f32 %v720, %v720
  %v722 = vpack.c.bf16 %v721, %v721
  %723 = vmatpush.bf16.msra.mxu0 %v411
  %724 = vmatpush.bf16.msra.mxu0 %v410
  %725 = vmatpush.bf16.msra.mxu0 %v409
  %726 = vmatpush.bf16.msra.mxu0 %v408
  %727 = vmatpush.bf16.msra.mxu0 %v407
  %728 = vmatpush.bf16.msra.mxu0 %v406
  %729 = vmatpush.bf16.msra.mxu0 %v405
  %730 = vmatpush.bf16.msra.mxu0 %v404
  %731 = vmatmul.bf16.gmra.mxu0 %v722
  %v732 = vpop.f32.mrf.mxu0
  %v733 = vadd.f32 %v104, %v732
  %v734 = vpop.f32.mrf.mxu0
  %735 = vdwg.mxu0
  %v736 = vrsqrt.pop %v733
  %v737 = vmul.f32 %v736, %v733
  %v738 = vmul.f32 %v737, %v736
  %v739 = vmul.f32 0.5, %v738
  %v740 = vsub.f32 1.5, %v739
  %v741 = vmul.f32 %v736, %v740
  %vm742 = vweird.f32 %v733
  %vm743 = vweird.f32 %v736
  %vm744 = vmor %vm742, %vm743
  %v745 = vsel %vm744, %v736, %v741
  %v746 = vmul.f32 %v720, %v745
  %747 = vst [vmem:[%s6 + $0x3] sm:$0x1] %v746
  // Predicated region
  $region26: #{encode_net_forward.10} parent=0 // pred_check
    _
  $region27: #{encode_net_forward.10} parent=0 // pred_check_branch
    %749 = sbr.rel (0) target = $region29
  $region28: #{encode_net_forward.10} parent=0 // pred_region
    _
  $region29: #{encode_net_forward.10} parent=0 // pred_fallthru
    _
  // Predicated region
  $region30: #{encode_net_forward.10} parent=0 // pred_check
    _
  $region31: #{encode_net_forward.10} parent=0 // pred_check_branch
    %751 = sbr.rel (0) target = $region33
  $region32: #{encode_net_forward.10} parent=0 // pred_region
    _
  $region33: #{encode_net_forward.10} parent=0 // pred_fallthru
    _

// kernel: encode_net_forward.11
$region0: #{encode_net_forward.11}
  #allocation0 [shape = 'u32[]', space=smem, size = 0x4, offset = 0x4, fixed_abs, tag = 'smem constant byte address 0x4 - core index']
  #allocation1 [shape = 'u32[72,128]{1,0:T(1,128)}', space=vmem, size = 0x9000, scoped, tag = 'internal scratch']
  %s0 = inlined_call_operand.vmem [shape: f32[2,256], index: 0, kind: input, shape index: {}]
  %s1 = inlined_call_operand.vmem [shape: bf16[256,64], index: 1, kind: input, shape index: {}]
  %s2 = inlined_call_operand.vmem [shape: f32[1,64], index: 2, kind: input, shape index: {}]
  %s3 = inlined_call_operand.vmem [shape: bf16[64,64], index: 3, kind: input, shape index: {}]
  %s4 = inlined_call_operand.vmem [shape: f32[1,64], index: 4, kind: input, shape index: {}]
  %s5 = inlined_call_operand.vmem [shape: f32[2,64], index: 5, kind: output, shape index: {}]
  %s6 = sld [smem:[#allocation0]]
  $region30: #{encode_net_forward.11} parent=0
    _
  %s8 = ssub.s32 1, %s6
  %s9 = scalar_select 0, %s8, %s6
  // Predicated region
  $region2: #{encode_net_forward.11} parent=0 // pred_check
    _
  $region3: #{encode_net_forward.11} parent=0 // pred_check_branch
    %11 = sbr.rel (0) target = $region5
  $region4: #{encode_net_forward.11} parent=0 // pred_region
    _
  $region5: #{encode_net_forward.11} parent=0 // pred_fallthru
    _
  // Predicated region
  $region6: #{encode_net_forward.11} parent=0 // pred_check
    _
  $region7: #{encode_net_forward.11} parent=0 // pred_check_branch
    %13 = sbr.rel (0) target = $region9
  $region8: #{encode_net_forward.11} parent=0 // pred_region
    _
  $region9: #{encode_net_forward.11} parent=0 // pred_fallthru
    _
  // Predicated region
  $region10: #{encode_net_forward.11} parent=0 // pred_check
    _
  $region11: #{encode_net_forward.11} parent=0 // pred_check_branch
    %15 = sbr.rel (0) target = $region13
  $region12: #{encode_net_forward.11} parent=0 // pred_region
    _
  $region13: #{encode_net_forward.11} parent=0 // pred_fallthru
    _
  // Predicated region
  $region14: #{encode_net_forward.11} parent=0 // pred_check
    _
  $region15: #{encode_net_forward.11} parent=0 // pred_check_branch
    %17 = sbr.rel (0) target = $region17
  $region16: #{encode_net_forward.11} parent=0 // pred_region
    _
  $region17: #{encode_net_forward.11} parent=0 // pred_fallthru
    _
  // Predicated region
  $region18: #{encode_net_forward.11} parent=0 // pred_check
    _
  $region19: #{encode_net_forward.11} parent=0 // pred_check_branch
    %19 = sbr.rel (0) target = $region21
  $region20: #{encode_net_forward.11} parent=0 // pred_region
    _
  $region21: #{encode_net_forward.11} parent=0 // pred_fallthru
    _
  %v21 = vld [vmem:[%s0] sm:$0xf]
  %23 = vst [vmem:[#allocation1] ss:$4 sm:$0xff] %v21
  %v24 = vld.sshfl [vmem:[#allocation1] sm:$0xff pattern:$0x73625140]
  %v25 = vld.sshfl [vmem:[#allocation1 + $0x8] sm:$0xff pattern:$0x73625140]
  %v28 = vpack.c.bf16 %v24, %v24
  %v29 = vpack.c.bf16 %v25, %v25
  %v30 = vld [vmem:[%s1] sm:$0xf]
  %v31 = vld [vmem:[%s1 + $0x4] sm:$0xf]
  %v32 = vld [vmem:[%s1 + $0x8] sm:$0xf]
  %v33 = vld [vmem:[%s1 + $0xc] sm:$0xf]
  %v34 = vld [vmem:[%s1 + $0x10] sm:$0xf]
  %v35 = vld [vmem:[%s1 + $0x14] sm:$0xf]
  %v36 = vld [vmem:[%s1 + $0x18] sm:$0xf]
  %v37 = vld [vmem:[%s1 + $0x1c] sm:$0xf]
  %v38 = vld [vmem:[%s1 + $0x20] sm:$0xf]
  %v39 = vld [vmem:[%s1 + $0x24] sm:$0xf]
  %v40 = vld [vmem:[%s1 + $0x28] sm:$0xf]
  %v41 = vld [vmem:[%s1 + $0x2c] sm:$0xf]
  %v42 = vld [vmem:[%s1 + $0x30] sm:$0xf]
  %v43 = vld [vmem:[%s1 + $0x34] sm:$0xf]
  %v44 = vld [vmem:[%s1 + $0x38] sm:$0xf]
  %v45 = vld [vmem:[%s1 + $0x3c] sm:$0xf]
  %v46 = vld [vmem:[%s1 + $0x40] sm:$0xf]
  %v47 = vld [vmem:[%s1 + $0x44] sm:$0xf]
  %v48 = vld [vmem:[%s1 + $0x48] sm:$0xf]
  %v49 = vld [vmem:[%s1 + $0x4c] sm:$0xf]
  %v50 = vld [vmem:[%s1 + $0x50] sm:$0xf]
  %v51 = vld [vmem:[%s1 + $0x54] sm:$0xf]
  %v52 = vld [vmem:[%s1 + $0x58] sm:$0xf]
  %v53 = vld [vmem:[%s1 + $0x5c] sm:$0xf]
  %v54 = vld [vmem:[%s1 + $0x60] sm:$0xf]
  %v55 = vld [vmem:[%s1 + $0x64] sm:$0xf]
  %v56 = vld [vmem:[%s1 + $0x68] sm:$0xf]
  %v57 = vld [vmem:[%s1 + $0x6c] sm:$0xf]
  %v58 = vld [vmem:[%s1 + $0x70] sm:$0xf]
  %v59 = vld [vmem:[%s1 + $0x74] sm:$0xf]
  %v60 = vld [vmem:[%s1 + $0x78] sm:$0xf]
  %v61 = vld [vmem:[%s1 + $0x7c] sm:$0xf]
  %v62 = vld [vmem:[%s2] sm:$0x1]
  %v64 = vperm.slane %v62, 0
  %v98 = vunpack.c.l.b16 %v30
  %v99 = vunpack.c.l.b16 %v31
  %v100 = vunpack.c.l.b16 %v32
  %v101 = vunpack.c.l.b16 %v33
  %v102 = vunpack.c.l.b16 %v34
  %v103 = vunpack.c.l.b16 %v35
  %v104 = vunpack.c.l.b16 %v36
  %v105 = vunpack.c.l.b16 %v37
  %v106 = vunpack.c.l.b16 %v38
  %v107 = vunpack.c.l.b16 %v39
  %v108 = vunpack.c.l.b16 %v40
  %v109 = vunpack.c.l.b16 %v41
  %v110 = vunpack.c.l.b16 %v42
  %v111 = vunpack.c.l.b16 %v43
  %v112 = vunpack.c.l.b16 %v44
  %v113 = vunpack.c.l.b16 %v45
  %v114 = vunpack.c.l.b16 %v46
  %v115 = vunpack.c.l.b16 %v47
  %v116 = vunpack.c.l.b16 %v48
  %v117 = vunpack.c.l.b16 %v49
  %v118 = vunpack.c.l.b16 %v50
  %v119 = vunpack.c.l.b16 %v51
  %v120 = vunpack.c.l.b16 %v52
  %v121 = vunpack.c.l.b16 %v53
  %v122 = vunpack.c.l.b16 %v54
  %v123 = vunpack.c.l.b16 %v55
  %v124 = vunpack.c.l.b16 %v56
  %v125 = vunpack.c.l.b16 %v57
  %v126 = vunpack.c.l.b16 %v58
  %v127 = vunpack.c.l.b16 %v59
  %v128 = vunpack.c.l.b16 %v60
  %v129 = vunpack.c.l.b16 %v61
  %v130 = vpack.c.b16 %v99, %v98
  %v131 = vpack.c.b16 %v101, %v100
  %v132 = vpack.c.b16 %v103, %v102
  %v133 = vpack.c.b16 %v105, %v104
  %v134 = vpack.c.b16 %v107, %v106
  %v135 = vpack.c.b16 %v109, %v108
  %v136 = vpack.c.b16 %v111, %v110
  %v137 = vpack.c.b16 %v113, %v112
  %v138 = vpack.c.b16 %v115, %v114
  %v139 = vpack.c.b16 %v117, %v116
  %v140 = vpack.c.b16 %v119, %v118
  %v141 = vpack.c.b16 %v121, %v120
  %v142 = vpack.c.b16 %v123, %v122
  %v143 = vpack.c.b16 %v125, %v124
  %v144 = vpack.c.b16 %v127, %v126
  %v145 = vpack.c.b16 %v129, %v128
  %162 = vmatpush.bf16.msra.mxu0 %v137
  %163 = vmatpush.bf16.msra.mxu0 %v136
  %164 = vmatpush.bf16.msra.mxu0 %v135
  %165 = vmatpush.bf16.msra.mxu0 %v134
  %166 = vmatpush.bf16.msra.mxu0 %v133
  %167 = vmatpush.bf16.msra.mxu0 %v132
  %168 = vmatpush.bf16.msra.mxu0 %v131
  %169 = vmatpush.bf16.msra.mxu0 %v130
  %170 = vmatmul.bf16.gmra.mxu0 %v28
  %v171 = vpop.f32.mrf.mxu0
  %v172 = vadd.f32 %v64, %v171
  %v173 = vpop.f32.mrf.mxu0
  %174 = vdwg.mxu0
  %175 = vmatpush.bf16.msra.mxu0 %v145
  %176 = vmatpush.bf16.msra.mxu0 %v144
  %177 = vmatpush.bf16.msra.mxu0 %v143
  %178 = vmatpush.bf16.msra.mxu0 %v142
  %179 = vmatpush.bf16.msra.mxu0 %v141
  %180 = vmatpush.bf16.msra.mxu0 %v140
  %181 = vmatpush.bf16.msra.mxu0 %v139
  %182 = vmatpush.bf16.msra.mxu0 %v138
  %183 = vmatmul.bf16.gmra.mxu0 %v29
  %v184 = vpop.f32.mrf.mxu0
  %v185 = vadd.f32 %v172, %v184
  %v186 = vpop.f32.mrf.mxu0
  %187 = vdwg.mxu0
  %vm188 = vcmp.ge.f32.partialorder %v185, 0.0
  %v189 = vmul.f32 %v185, 0.01
  %v190 = vsel %vm188, %v185, %v189
  %v191 = vmul.f32 %v190, %v190
  %v192 = vpack.c.bf16 %v191, %v191
  %v193 = vld [vmem:[%s3] sm:$0xf]
  %v194 = vld [vmem:[%s3 + $0x4] sm:$0xf]
  %v195 = vld [vmem:[%s3 + $0x8] sm:$0xf]
  %v196 = vld [vmem:[%s3 + $0xc] sm:$0xf]
  %v197 = vld [vmem:[%s3 + $0x10] sm:$0xf]
  %v198 = vld [vmem:[%s3 + $0x14] sm:$0xf]
  %v199 = vld [vmem:[%s3 + $0x18] sm:$0xf]
  %v200 = vld [vmem:[%s3 + $0x1c] sm:$0xf]
  %v201 = vld [vmem:[%s4] sm:$0x1]
  %v203 = vperm.slane %v201, 0
  %v213 = vunpack.c.l.b16 %v193
  %v214 = vunpack.c.l.b16 %v194
  %v215 = vunpack.c.l.b16 %v195
  %v216 = vunpack.c.l.b16 %v196
  %v217 = vunpack.c.l.b16 %v197
  %v218 = vunpack.c.l.b16 %v198
  %v219 = vunpack.c.l.b16 %v199
  %v220 = vunpack.c.l.b16 %v200
  %v221 = vpack.c.b16 %v214, %v213
  %v222 = vpack.c.b16 %v216, %v215
  %v223 = vpack.c.b16 %v218, %v217
  %v224 = vpack.c.b16 %v220, %v219
  %vm229 = vcmask 523264
  %v231 = vsel %vm229, %v192, 0
  %233 = vmatpush.bf16.msra.mxu0 0
  %234 = vmatpush.bf16.msra.mxu0 0
  %235 = vmatpush.bf16.msra.mxu0 0
  %236 = vmatpush.bf16.msra.mxu0 0
  %237 = vmatpush.bf16.msra.mxu0 %v224
  %238 = vmatpush.bf16.msra.mxu0 %v223
  %239 = vmatpush.bf16.msra.mxu0 %v222
  %240 = vmatpush.bf16.msra.mxu0 %v221
  %241 = vmatmul.bf16.gmra.mxu0 %v231
  %v242 = vpop.f32.mrf.mxu0
  %v243 = vadd.f32 %v203, %v242
  %v244 = vpop.f32.mrf.mxu0
  %245 = vdwg.mxu0
  %v246 = vrsqrt.pop %v243
  %v247 = vmul.f32 %v246, %v243
  %v248 = vmul.f32 %v247, %v246
  %v249 = vmul.f32 0.5, %v248
  %v250 = vsub.f32 1.5, %v249
  %v251 = vmul.f32 %v246, %v250
  %vm252 = vweird.f32 %v243
  %vm253 = vweird.f32 %v246
  %vm254 = vmor %vm252, %vm253
  %v255 = vsel %vm254, %v246, %v251
  %v256 = vmul.f32 %v190, %v255
  %vm257 = vcmask 517120
  %258 = vst.msk [vmem:[%s5] sm:$0x3] %vm257, %v256
  // Predicated region
  $region22: #{encode_net_forward.11} parent=0 // pred_check
    _
  $region23: #{encode_net_forward.11} parent=0 // pred_check_branch
    %260 = sbr.rel (0) target = $region25
  $region24: #{encode_net_forward.11} parent=0 // pred_region
    _
  $region25: #{encode_net_forward.11} parent=0 // pred_fallthru
    _
  // Predicated region
  $region26: #{encode_net_forward.11} parent=0 // pred_check
    _
  $region27: #{encode_net_forward.11} parent=0 // pred_check_branch
    %262 = sbr.rel (0) target = $region29
  $region28: #{encode_net_forward.11} parent=0 // pred_region
    _
  $region29: #{encode_net_forward.11} parent=0 // pred_fallthru
    _

// kernel: encode_net_forward.12
$region0: #{encode_net_forward.12}
  #allocation0 [shape = 'u32[]', space=smem, size = 0x4, offset = 0x4, fixed_abs, tag = 'smem constant byte address 0x4 - core index']
  #allocation1 [shape = 'u32[72,128]{1,0:T(1,128)}', space=vmem, size = 0x9000, scoped, tag = 'internal scratch']
  %s0 = inlined_call_operand.vmem [shape: f32[2,64], index: 0, kind: input, shape index: {}]
  %s1 = inlined_call_operand.vmem [shape: f32[2], index: 1, kind: output, shape index: {}]
  %s2 = sld [smem:[#allocation0]]
  $region22: #{encode_net_forward.12} parent=0
    _
  %s4 = ssub.s32 1, %s2
  %s5 = scalar_select 0, %s4, %s2
  $region1: #{encode_net_forward.12} parent=0
    #allocation2 [shape = 'u8[512]{0}', space=smem, size = 0x200, scoped, tag = 'output window, operand 0, single buffered']
    #allocation3 [shape = 's32[1]{0}', space=sflag, size = 0x4, scoped, tag = 'scoped memory for encode_net_forward.12']
    %6 = vsyncpa [#allocation3], 0
    // Predicated region
    $region2: #{encode_net_forward.12} parent=1 // pred_check
      _
    $region3: #{encode_net_forward.12} parent=1 // pred_check_branch
      %8 = sbr.rel (0) target = $region5
    $region4: #{encode_net_forward.12} parent=1 // pred_region
      _
    $region5: #{encode_net_forward.12} parent=1 // pred_fallthru
      _
    %v9 = vld [vmem:[%s0] sm:$0x3]
    %vm10 = vcmask 517120
    %v11 = vsel %vm10, %v9, inf
    %12 = vmin.xlane.f32.xlu0 %v11
    %v13 = vpop.xlane.xlu0 %12
    %v14 = vrot.slane %v13, 4
    %v15 = vmin.f32 %v13, %v14
    %v16 = vrot.slane %v15, 2
    %v17 = vmin.f32 %v15, %v16
    %v18 = vrot.slane %v17, 1
    %v19 = vmin.f32 %v17, %v18
    %s20 = vtos %v19
    %v21 = vsel %vm10, %v9, -inf
    %22 = vmax.xlane.f32.xlu0 %v21
    %v23 = vpop.xlane.xlu0 %22
    %v24 = vrot.slane %v23, 4
    %v25 = vmax.f32 %v23, %v24
    %v26 = vrot.slane %v25, 2
    %v27 = vmax.f32 %v25, %v26
    %v28 = vrot.slane %v27, 1
    %v29 = vmax.f32 %v27, %v28
    %s30 = vtos %v29
    %p31 = scmp.eq.s32.totalorder 0, 0
    // Predicated region
    $region6: #{encode_net_forward.12} parent=1 // pred_check
      %p32 = pneg %p31
    $region7: #{encode_net_forward.12} parent=1 // pred_check_branch
      %34 = sbr.rel (%p32) target = $region9
    $region8: #{encode_net_forward.12} parent=1 // pred_region
      %s35 = scalar_lea.smem [#allocation2], 0
      %36 = sst [smem:[%s35]] %s20
      %s37 = scalar_lea.smem [#allocation2], 1
      %38 = sst [smem:[%s37]] %s30
    $region9: #{encode_net_forward.12} parent=1 // pred_fallthru
      _
    %p39 = scmp.ne.s32.totalorder 0, 0
    // Predicated region
    $region10: #{encode_net_forward.12} parent=1 // pred_check
      %p40 = pneg %p39
    $region11: #{encode_net_forward.12} parent=1 // pred_check_branch
      %42 = sbr.rel (%p40) target = $region13
    $region12: #{encode_net_forward.12} parent=1 // pred_region
      %s43 = sld [smem:[#allocation2]]
      %s44 = smin.f32 %s43, %s20
      %s45 = scalar_lea.smem [#allocation2], 0
      %46 = sst [smem:[%s45]] %s44
      %s47 = sld [smem:[#allocation2 + $0x1]]
      %s48 = smax.f32 %s47, %s30
      %s49 = scalar_lea.smem [#allocation2], 1
      %50 = sst [smem:[%s49]] %s48
    $region13: #{encode_net_forward.12} parent=1 // pred_fallthru
      _
    // Predicated region
    $region14: #{encode_net_forward.12} parent=1 // pred_check
      _
    $region15: #{encode_net_forward.12} parent=1 // pred_check_branch
      %52 = sbr.rel (0) target = $region17
    $region16: #{encode_net_forward.12} parent=1 // pred_region
      %54 = vsyncadd [#allocation3], 0
      %s56 = sshll.u32 %s1, 4
      %s57 = int_to_ptr.vmem [resolvable:$true] %s56
      %59 = dma.smem_to_vmem [#allocation2], 16, %s57, [#allocation3]
    $region17: #{encode_net_forward.12} parent=1 // pred_fallthru
      _
    // Predicated region
    $region18: #{encode_net_forward.12} parent=1 // pred_check
      _
    $region19: #{encode_net_forward.12} parent=1 // pred_check_branch
      %61 = sbr.rel (0) target = $region21
    $region20: #{encode_net_forward.12} parent=1 // pred_region
      %63 = dma.done [#allocation3], 16
    $region21: #{encode_net_forward.12} parent=1 // pred_fallthru
      _
    %64 = sfence
    %65 = vsyncpa [#allocation3], 1

// kernel: encode_net_forward.13
$region0: #{encode_net_forward.13}
  #allocation0 [shape = 'u32[]', space=smem, size = 0x4, offset = 0x4, fixed_abs, tag = 'smem constant byte address 0x4 - core index']
  #allocation1 [shape = 'u32[72,128]{1,0:T(1,128)}', space=vmem, size = 0x9000, scoped, tag = 'internal scratch']
  %s0 = inlined_call_operand.vmem [shape: f32[2,64], index: 0, kind: input, shape index: {}]
  %s1 = inlined_call_operand.vmem [shape: f32[2], index: 1, kind: input, shape index: {}]
  %s2 = inlined_call_operand.hbm [shape: f32[2,64], index: 2, kind: output, shape index: {}]
  %s3 = sld [smem:[#allocation0]]
  $region22: #{encode_net_forward.13} parent=0
    _
  %s5 = ssub.s32 1, %s3
  %s6 = scalar_select 0, %s5, %s3
  $region1: #{encode_net_forward.13} parent=0
    #allocation2 [shape = 'u8[512]{0}', space=smem, size = 0x200, scoped, tag = 'input window, operand 1, single buffered']
    #allocation3 [shape = 's32[1]{0}', space=sflag, size = 0x4, scoped, tag = 'scoped memory for encode_net_forward.13']
    #allocation4 [shape = 's32[1]{0}', space=sflag, size = 0x4, scoped, tag = 'scoped memory for encode_net_forward.13']
    #allocation5 [shape = 'u8[1024]{0}', space=vmem, size = 0x400, scoped, tag = 'output window, operand 0, single buffered']
    %7 = vsyncpa [#allocation4], 0
    %8 = vsyncpa [#allocation3], 0
    // Predicated region
    $region2: #{encode_net_forward.13} parent=1 // pred_check
      _
    $region3: #{encode_net_forward.13} parent=1 // pred_check_branch
      %10 = sbr.rel (0) target = $region5
    $region4: #{encode_net_forward.13} parent=1 // pred_region
      _
    $region5: #{encode_net_forward.13} parent=1 // pred_fallthru
      _
    // Predicated region
    $region6: #{encode_net_forward.13} parent=1 // pred_check
      _
    $region7: #{encode_net_forward.13} parent=1 // pred_check_branch
      %12 = sbr.rel (0) target = $region9
    $region8: #{encode_net_forward.13} parent=1 // pred_region
      %14 = vsyncadd [#allocation4], 0
      %s16 = sshll.u32 %s1, 4
      %s17 = int_to_ptr.vmem [resolvable:$true] %s16
      %19 = dma.vmem_to_smem %s17, 16, [#allocation2], [#allocation4]
    $region9: #{encode_net_forward.13} parent=1 // pred_fallthru
      _
    // Predicated region
    $region10: #{encode_net_forward.13} parent=1 // pred_check
      _
    $region11: #{encode_net_forward.13} parent=1 // pred_check_branch
      %21 = sbr.rel (0) target = $region13
    $region12: #{encode_net_forward.13} parent=1 // pred_region
      %23 = dma.done [#allocation4], 16
    $region13: #{encode_net_forward.13} parent=1 // pred_fallthru
      _
    %24 = sfence
    %s25 = sld [smem:[#allocation2]]
    %s26 = sld [smem:[#allocation2 + $0x1]]
    %s27 = ssub.f32 %s26, %s25
    %v28 = vstv %s27
    %v29 = vrcp.pop %v28
    %v30 = vmul.f32 %v28, %v29
    %v31 = vsub.f32 1.0, %v30
    %v32 = vmul.f32 %v29, %v31
    %v33 = vadd.f32 %v29, %v32
    %vm34 = vweird.f32 %v28
    %vm35 = vweird.f32 %v29
    %vm36 = vmor %vm34, %vm35
    %v37 = vsel %vm36, %v29, %v33
    %v38 = vand.u32 2147483647, %v28
    %vm39 = vcmp.eq.f32.partialorder %v38, 8.507059e+37
    %v40 = vand.u32 %v28, 2147483648
    %v41 = vor.u32 1.1754944e-38, %v40
    %v42 = vsel %vm39, %v41, %v37
    %s43 = vtos %v42
    %v44 = vld [vmem:[%s0] sm:$0x3]
    %v45 = vstv %s25
    %v46 = vsub.f32 %v44, %v45
    %v47 = vstv %s43
    %v48 = vmul.f32 %v46, %v47
    %vm49 = vcmask 517120
    %50 = vst.msk [vmem:[#allocation5] sm:$0x3] %vm49, %v48
    // Predicated region
    $region14: #{encode_net_forward.13} parent=1 // pred_check
      _
    $region15: #{encode_net_forward.13} parent=1 // pred_check_branch
      %52 = sbr.rel (0) target = $region17
    $region16: #{encode_net_forward.13} parent=1 // pred_region
      %54 = vsyncadd [#allocation3], 0
      %s56 = sshll.u32 [#allocation5], 4
      %s57 = int_to_ptr.vmem [resolvable:$true] %s56
      %s58 = sshll.u32 %s2, 4
      %s59 = int_to_ptr.hbm [resolvable:$true] %s58
      %61 = dma.vmem_to_hbm [thread:$0]  %s57, 32, %s59, [#allocation3]
    $region17: #{encode_net_forward.13} parent=1 // pred_fallthru
      _
    // Predicated region
    $region18: #{encode_net_forward.13} parent=1 // pred_check
      _
    $region19: #{encode_net_forward.13} parent=1 // pred_check_branch
      %63 = sbr.rel (0) target = $region21
    $region20: #{encode_net_forward.13} parent=1 // pred_region
      %65 = dma.done [#allocation3], 32
    $region21: #{encode_net_forward.13} parent=1 // pred_fallthru
      _
    %66 = vsyncpa [#allocation3], 1
    %67 = vsyncpa [#allocation4], 1

</llo_original>
